<compile_context>
chip_gen: v7x
topology: tpu7x:2x2x1
jax: 0.10.0
libtpu: 0.0.40
codegen_flags: <defaults>
</compile_context>

<pallas_src>
import functools

import jax
import jax.numpy as jnp
from jax import lax
from jax.experimental import pallas as pl
from jax.experimental.pallas import tpu as pltpu


def _round_up(x, m):
    return (x + m - 1) // m * m


def _pick_tm(M, target=512):
    return target if M >= target else _round_up(M, 8)


# ---------------- Pallas kernels ----------------

def _gemm_relu_stats_kernel(a_ref, w_ref, b_ref, o_ref, sum_ref, ssq_ref,
                            *, m_valid, tm, cout):
    """One M-tile: y = relu(A @ W + b); write lane-dense y[:, :cout] plus masked
    per-tile BN partial sums / sums-of-squares (rows >= m_valid excluded)."""
    i = pl.program_id(0)
    acc = jnp.dot(a_ref[...], w_ref[...], preferred_element_type=jnp.float32)
    y = jnp.maximum(acc + b_ref[...], 0.0)                      # (tm, Cp) f32
    o_ref[...] = y[:, :cout]                                    # lane-dense store

    row = i * tm + lax.broadcasted_iota(jnp.int32, (tm, 1), 0)
    ym = jnp.where(row < m_valid, y, 0.0)                       # mask padded rows
    s = jnp.sum(ym, axis=0, keepdims=True)[:, :cout]            # (1, cout)
    ss = jnp.sum(ym * ym, axis=0, keepdims=True)[:, :cout]      # (1, cout)
    sum_ref[...] = jnp.broadcast_to(s, (8, cout))
    ssq_ref[...] = jnp.broadcast_to(ss, (8, cout))


def _bn_affine_kernel(x_ref, scale_ref, shift_ref, o_ref):
    # y = x * scale + shift  (per-channel, channels on lane dim, lane-dense)
    o_ref[...] = x_ref[...] * scale_ref[...] + shift_ref[...]


def gemm_relu_stats(A_p, W_p, b_p, *, m_valid, cout, tm):
    """A_p: (Mp, K) bf16, W_p: (K, Cp) bf16, b_p: (1, Cp) f32.
    Returns (y (Mp, cout) f32, sum_part (T*8, cout) f32, ssq_part (T*8, cout) f32)."""
    Mp, K = A_p.shape
    Kw, Cp = W_p.shape
    T = Mp // tm
    kern = functools.partial(_gemm_relu_stats_kernel, m_valid=m_valid, tm=tm, cout=cout)
    return pl.pallas_call(
        kern,
        out_shape=(
            jax.ShapeDtypeStruct((Mp, cout), jnp.float32),
            jax.ShapeDtypeStruct((T * 8, cout), jnp.float32),
            jax.ShapeDtypeStruct((T * 8, cout), jnp.float32),
        ),
        grid=(T,),
        in_specs=[
            pl.BlockSpec((tm, K), lambda i: (i, 0)),     # A tile, pipelined over M
            pl.BlockSpec((Kw, Cp), lambda i: (0, 0)),    # W resident
            pl.BlockSpec((1, Cp), lambda i: (0, 0)),     # bias resident
        ],
        out_specs=(
            pl.BlockSpec((tm, cout), lambda i: (i, 0)),
            pl.BlockSpec((8, cout), lambda i: (i, 0)),
            pl.BlockSpec((8, cout), lambda i: (i, 0)),
        ),
        compiler_params=pltpu.CompilerParams(
            dimension_semantics=("parallel",),           # v7x: shard tiles across 2 TCs
            vmem_limit_bytes=32 * 1024 * 1024,
        ),
    )(A_p, W_p, b_p)


def bn_affine(y, scale, shift, *, tm):
    """y: (Mp, C) f32; scale/shift: (C,). Tiled, lane-dense elementwise affine."""
    Mp, C = y.shape
    T = Mp // tm
    return pl.pallas_call(
        _bn_affine_kernel,
        out_shape=jax.ShapeDtypeStruct((Mp, C), jnp.float32),
        grid=(T,),
        in_specs=[
            pl.BlockSpec((tm, C), lambda i: (i, 0)),
            pl.BlockSpec((1, C), lambda i: (0, 0)),
            pl.BlockSpec((1, C), lambda i: (0, 0)),
        ],
        out_specs=pl.BlockSpec((tm, C), lambda i: (i, 0)),
        compiler_params=pltpu.CompilerParams(
            dimension_semantics=("parallel",),
            vmem_limit_bytes=32 * 1024 * 1024,
        ),
    )(y, scale.reshape(1, C), shift.reshape(1, C))


# ---------------- JAX glue: NHWC im2col for transposed conv ----------------

def _im2col_nhwc(x_nhwc, kH, kW, stride, padding):
    """Transposed conv = dilate input by stride, pad by (k-1-p), take dense patches.
    Input/patches stay channels-last so no transposes are needed."""
    N, H, W, Cin = x_nhwc.shape
    Hup, Wup = (H - 1) * stride + 1, (W - 1) * stride + 1
    x_up = jnp.zeros((N, Hup, Wup, Cin), x_nhwc.dtype)
    x_up = x_up.at[:, ::stride, ::stride, :].set(x_nhwc)
    ph, pw = kH - 1 - padding, kW - 1 - padding
    x_pad = jnp.pad(x_up, ((0, 0), (ph, ph), (pw, pw), (0, 0)))
    oH = Hup + 2 * ph - kH + 1
    oW = Wup + 2 * pw - kW + 1
    cols = [x_pad[:, i:i + oH, j:j + oW, :] for i in range(kH) for j in range(kW)]
    A = jnp.concatenate(cols, axis=-1).reshape(N * oH * oW, kH * kW * Cin)
    return A, oH, oW


def deconv_bn_pad_layer(x_nhwc, lp, eps=1e-5):
    """One block: ConvTranspose2d -> ReLU -> BatchNorm2d (batch stats) -> ZeroPad2d."""
    N = x_nhwc.shape[0]
    kH, kW = lp["kH"], lp["kW"]
    stride, padding, zp = lp["stride"], lp["padding"], lp["zeropad"]
    cout = lp["cout"]

    # bf16 operand storage (f32 accumulation happens in-kernel).
    A, oH, oW = _im2col_nhwc(x_nhwc.astype(jnp.bfloat16), kH, kW, stride, padding)
    M, K = A.shape
    tm = _pick_tm(M)
    Mp = _round_up(M, tm)
    A_p = jnp.zeros((Mp, K), jnp.bfloat16).at[:M].set(A)

    # Fused: GEMM + bias + ReLU + masked per-tile BN partial stats (one Pallas pass).
    y, s_part, ss_part = gemm_relu_stats(A_p, lp["W_p"], lp["b_p"],
                                         m_valid=M, cout=cout, tm=tm)

    # Tiny per-channel finalize in JAX (T x cout partials -> mean/var/scale/shift).
    T = Mp // tm
    s_tot = s_part.reshape(T, 8, cout)[:, 0, :].sum(axis=0)
    ss_tot = ss_part.reshape(T, 8, cout)[:, 0, :].sum(axis=0)
    mean = s_tot / M
    var = jnp.maximum(ss_tot / M - mean * mean, 0.0)
    scale = lp["gamma"] * lax.rsqrt(var + eps)
    shift = lp["beta"] - mean * scale

    # Epilogue: per-channel affine on the lane-dense slab (Pallas), then ZeroPad2d.
    z = bn_affine(y, scale, shift, tm=tm)
    z = z[:M].reshape(N, oH, oW, cout)
    return jnp.pad(z, ((0, 0), (zp, zp), (zp, zp), (0, 0)))


def deconv_nn_forward(x_nchw, layers):
    x = jnp.transpose(x_nchw, (0, 2, 3, 1))          # NCHW -> NHWC once at entry
    for lp in layers:
        x = deconv_bn_pad_layer(x, lp)
    return jnp.transpose(x, (0, 3, 1, 2))            # NHWC -> NCHW once at exit


# ---------------- one-time parameter preparation (hoisted out of forward) ----------------

def prepare_params(raw_params):
    layers = []
    for (w, b, gamma, beta, stride, padding, zeropad) in raw_params:
        Cin, Cout, kH, kW = w.shape
        K = kH * kW * Cin
        Cp = _round_up(Cout, 128)
        # ConvTranspose2d weight (Cin, Cout, kH, kW) -> GEMM matrix (kH*kW*Cin, Cout),
        # rows ordered (ki, kj, cin) with spatially flipped taps; bf16 storage.
        W_mat = jnp.flip(w, (2, 3)).transpose(2, 3, 0, 1).reshape(K, Cout)
        W_p = jnp.zeros((K, Cp), jnp.bfloat16).at[:, :Cout].set(W_mat.astype(jnp.bfloat16))
        b_p = jnp.zeros((1, Cp), jnp.float32).at[0, :Cout].set(b)
        layers.append(dict(W_p=W_p, b_p=b_p, gamma=gamma, beta=beta,
                           stride=stride, padding=padding, zeropad=zeropad,
                           kH=kH, kW=kW, cout=Cout))
    return layers


# ---------------- pure-JAX reference (same bf16-operand / f32-accumulate math) ----------------

def _ref_forward(x, raw_params, eps=1e-5):
    for (w, b, gamma, beta, stride, padding, zeropad) in raw_params:
        k = w.shape[2]
        w_conv = jnp.flip(w, (2, 3)).transpose(1, 0, 2, 3)      # OIHW
        y = lax.conv_general_dilated(
            x.astype(jnp.bfloat16), w_conv.astype(jnp.bfloat16),
            window_strides=(1, 1),
            padding=[(k - 1 - padding,) * 2] * 2,
            lhs_dilation=(stride, stride),
            dimension_numbers=("NCHW", "OIHW", "NCHW"),
            preferred_element_type=jnp.float32,
        ) + b[None, :, None, None]
        r = jnp.maximum(y, 0.0)
        mean = r.mean(axis=(0, 2, 3))
        var = ((r - mean[None, :, None, None]) ** 2).mean(axis=(0, 2, 3))
        bn = (r - mean[None, :, None, None]) * (gamma / jnp.sqrt(var + eps))[None, :, None, None]
        bn = bn + beta[None, :, None, None]
        x = jnp.pad(bn, ((0, 0), (0, 0), (zeropad, zeropad), (zeropad, zeropad)))
    return x


# ---------------- parameter init ----------------

def _init_params(deconv_params, key):
    params = []
    for spec in deconv_params:
        cin, cout, k, stride, pad, _unused, zeropad = spec
        key, kw, kb = jax.random.split(key, 3)
        bound = 1.0 / jnp.sqrt(cin * k * k)
        w = jax.random.uniform(kw, (cin, cout, k, k), jnp.float32, -bound, bound)
        b = jax.random.uniform(kb, (cout,), jnp.float32, -bound, bound)
        gamma = jnp.ones((cout,), jnp.float32)
        beta = jnp.zeros((cout,), jnp.float32)
        params.append((w, b, gamma, beta, stride, pad, zeropad))
    return params


if __name__ == "__main__":
    # deconvParams[i] = (in_ch, out_ch, kernel, stride, padding, <unused>, zeropad)
    deconvParams = [
        [4, 8, 3, 2, 1, None, 1],
        [8, 8, 3, 1, 1, None, 0],
        [8, 4, 3, 2, 1, None, 1],
    ]
    key = jax.random.PRNGKey(0)
    key, kx = jax.random.split(key)
    x = jax.random.normal(kx, (2, 4, 16, 16), jnp.float32)      # NCHW, like PyTorch

    raw = _init_params(deconvParams, key)
    layers = prepare_params(raw)                                # hoisted weight prep

    fwd = jax.jit(functools.partial(deconv_nn_forward, layers=layers))
    out = jax.block_until_ready(fwd(x))

    ref = jax.block_until_ready(_ref_forward(x, raw))
    assert out.shape == ref.shape, (out.shape, ref.shape)
    # bf16 operand storage (per perf feedback) with f32 accumulation; tolerance covers
    # bf16 re-rounding differences at layer boundaries between the two paths.
    assert jnp.allclose(out, ref, atol=1e-2, rtol=1e-2), float(jnp.max(jnp.abs(out - ref)))

    print("KERNEL_OK")
</pallas_src>

<mosaic_0001>
module attributes {stable_mosaic.version = 11 : i64} {
  func.func @_bn_affine_kernel(%arg0: i32, %arg1: memref<512x8xf32, #tpu.memory_space<vmem>>, %arg2: memref<1x8xf32, #tpu.memory_space<vmem>>, %arg3: memref<1x8xf32, #tpu.memory_space<vmem>>, %arg4: memref<512x8xf32, #tpu.memory_space<vmem>>) attributes {dimension_semantics = [#tpu.dimension_semantics<parallel>], iteration_bounds = array<i64: 4>, scalar_prefetch = 0 : i64, scratch_operands = 0 : i64, tpu.core_type = #tpu.core_type<tc>, window_params = [{transform_indices = @transform_0, window_bounds = array<i64: 512, 8>}, {pipeline_mode = #tpu.pipeline_mode<synchronous>, transform_indices = @transform_1, window_bounds = array<i64: 1, 8>}, {pipeline_mode = #tpu.pipeline_mode<synchronous>, transform_indices = @transform_2, window_bounds = array<i64: 1, 8>}, {transform_indices = @transform_3, window_bounds = array<i64: 512, 8>}]} {
    %c0 = arith.constant 0 : index
    %c0_0 = arith.constant 0 : index
    %0 = vector.load %arg1[%c0, %c0_0] : memref<512x8xf32, #tpu.memory_space<vmem>>, vector<512x8xf32>
    %c0_1 = arith.constant 0 : index
    %c0_2 = arith.constant 0 : index
    %1 = vector.load %arg2[%c0_1, %c0_2] : memref<1x8xf32, #tpu.memory_space<vmem>>, vector<1x8xf32>
    %2 = vector.broadcast %1 : vector<1x8xf32> to vector<512x8xf32>
    %3 = arith.mulf %0, %2 : vector<512x8xf32>
    %c0_3 = arith.constant 0 : index
    %c0_4 = arith.constant 0 : index
    %4 = vector.load %arg3[%c0_3, %c0_4] : memref<1x8xf32, #tpu.memory_space<vmem>>, vector<1x8xf32>
    %5 = vector.broadcast %4 : vector<1x8xf32> to vector<512x8xf32>
    %6 = arith.addf %3, %5 : vector<512x8xf32>
    %c0_5 = arith.constant 0 : index
    %c0_6 = arith.constant 0 : index
    %7 = vector.load %arg4[%c0_5, %c0_6] : memref<512x8xf32, #tpu.memory_space<vmem>>, vector<512x8xf32>
    tpu.vector_store %arg4[%c0_5, %c0_6], %6 {strides = array<i32>} : memref<512x8xf32, #tpu.memory_space<vmem>>, vector<512x8xf32>,
    return
  }
  func.func @transform_0(%arg0: i32) -> (i32, i32) {
    %c0_i32 = arith.constant 0 : i32
    %c0_i32_0 = arith.constant 0 : i32
    return %arg0, %c0_i32 : i32, i32
  }
  func.func @transform_1(%arg0: i32) -> (i32, i32) {
    %c0_i32 = arith.constant 0 : i32
    %c0_i32_0 = arith.constant 0 : i32
    %c0_i32_1 = arith.constant 0 : i32
    return %c0_i32, %c0_i32_0 : i32, i32
  }
  func.func @transform_2(%arg0: i32) -> (i32, i32) {
    %c0_i32 = arith.constant 0 : i32
    %c0_i32_0 = arith.constant 0 : i32
    %c0_i32_1 = arith.constant 0 : i32
    return %c0_i32, %c0_i32_0 : i32, i32
  }
  func.func @transform_3(%arg0: i32) -> (i32, i32) {
    %c0_i32 = arith.constant 0 : i32
    %c0_i32_0 = arith.constant 0 : i32
    return %arg0, %c0_i32 : i32, i32
  }
}

module attributes {stable_mosaic.version = 11 : i64} {
  func.func @_gemm_relu_stats_kernel(%arg0: i32, %arg1: memref<512x36xbf16, #tpu.memory_space<vmem>>, %arg2: memref<36x128xbf16, #tpu.memory_space<vmem>>, %arg3: memref<1x128xf32, #tpu.memory_space<vmem>>, %arg4: memref<512x8xf32, #tpu.memory_space<vmem>>, %arg5: memref<8x8xf32, #tpu.memory_space<vmem>>, %arg6: memref<8x8xf32, #tpu.memory_space<vmem>>) attributes {dimension_semantics = [#tpu.dimension_semantics<parallel>], iteration_bounds = array<i64: 4>, scalar_prefetch = 0 : i64, scratch_operands = 0 : i64, tpu.core_type = #tpu.core_type<tc>, window_params = [{transform_indices = @transform_0, window_bounds = array<i64: 512, 36>}, {pipeline_mode = #tpu.pipeline_mode<synchronous>, transform_indices = @transform_1, window_bounds = array<i64: 36, 128>}, {pipeline_mode = #tpu.pipeline_mode<synchronous>, transform_indices = @transform_2, window_bounds = array<i64: 1, 128>}, {transform_indices = @transform_3, window_bounds = array<i64: 512, 8>}, {transform_indices = @transform_4, window_bounds = array<i64: 8, 8>}, {transform_indices = @transform_5, window_bounds = array<i64: 8, 8>}]} {
    %c0 = arith.constant 0 : index
    %c0_0 = arith.constant 0 : index
    %0 = vector.load %arg1[%c0, %c0_0] : memref<512x36xbf16, #tpu.memory_space<vmem>>, vector<512x36xbf16>
    %c0_1 = arith.constant 0 : index
    %c0_2 = arith.constant 0 : index
    %1 = vector.load %arg2[%c0_1, %c0_2] : memref<36x128xbf16, #tpu.memory_space<vmem>>, vector<36x128xbf16>
    %cst = arith.constant dense<0.000000e+00> : vector<512x128xf32>
    %2 = tpu.matmul %0, %1, %cst {dimension_numbers = #tpu.dot_dimension_numbers<[1], [0], [0], [1], [0, 0, 1, 1], [], []>} : vector<512x36xbf16>, vector<36x128xbf16>, vector<512x128xf32> -> vector<512x128xf32>
    %c0_3 = arith.constant 0 : index
    %c0_4 = arith.constant 0 : index
    %3 = vector.load %arg3[%c0_3, %c0_4] : memref<1x128xf32, #tpu.memory_space<vmem>>, vector<1x128xf32>
    %4 = vector.broadcast %3 : vector<1x128xf32> to vector<512x128xf32>
    %5 = arith.addf %2, %4 : vector<512x128xf32>
    %cst_5 = arith.constant 0.000000e+00 : f32
    %6 = vector.broadcast %cst_5 : f32 to vector<512x128xf32>
    %7 = arith.maximumf %5, %6 : vector<512x128xf32>
    %8 = vector.extract_strided_slice %7 {offsets = [0, 0], sizes = [512, 8], strides = [1, 1]} : vector<512x128xf32> to vector<512x8xf32>
    %c0_6 = arith.constant 0 : index
    %c0_7 = arith.constant 0 : index
    %9 = vector.load %arg4[%c0_6, %c0_7] : memref<512x8xf32, #tpu.memory_space<vmem>>, vector<512x8xf32>
    tpu.vector_store %arg4[%c0_6, %c0_7], %8 {strides = array<i32>} : memref<512x8xf32, #tpu.memory_space<vmem>>, vector<512x8xf32>,
    %c512_i32 = arith.constant 512 : i32
    %10 = arith.muli %arg0, %c512_i32 : i32
    %11 = tpu.iota {dimensions = array<i32: 0>} : vector<512x1xi32>
    %12 = vector.broadcast %10 : i32 to vector<512x1xi32>
    %13 = arith.addi %12, %11 : vector<512x1xi32>
    %c1922_i32 = arith.constant 1922 : i32
    %14 = vector.broadcast %c1922_i32 : i32 to vector<512x1xi32>
    %15 = arith.cmpi slt, %13, %14 : vector<512x1xi32>
    %cst_8 = arith.constant 0.000000e+00 : f32
    %16 = vector.shape_cast %15 : vector<512x1xi1> to vector<512x1xi1>
    %17 = vector.broadcast %16 : vector<512x1xi1> to vector<512x128xi1>
    %18 = vector.broadcast %cst_8 : f32 to vector<512x128xf32>
    %19 = arith.select %17, %7, %18 : vector<512x128xi1>, vector<512x128xf32>
    %cst_9 = arith.constant dense<0.000000e+00> : vector<128xf32>
    %20 = vector.multi_reduction <add>, %19, %cst_9 [0] : vector<512x128xf32> to vector<128xf32>
    %21 = vector.shape_cast %20 : vector<128xf32> to vector<1x128xf32>
    %22 = vector.extract_strided_slice %21 {offsets = [0, 0], sizes = [1, 8], strides = [1, 1]} : vector<1x128xf32> to vector<1x8xf32>
    %23 = arith.mulf %19, %19 : vector<512x128xf32>
    %cst_10 = arith.constant dense<0.000000e+00> : vector<128xf32>
    %24 = vector.multi_reduction <add>, %23, %cst_10 [0] : vector<512x128xf32> to vector<128xf32>
    %25 = vector.shape_cast %24 : vector<128xf32> to vector<1x128xf32>
    %26 = vector.extract_strided_slice %25 {offsets = [0, 0], sizes = [1, 8], strides = [1, 1]} : vector<1x128xf32> to vector<1x8xf32>
    %27 = vector.shape_cast %22 : vector<1x8xf32> to vector<1x8xf32>
    %28 = vector.broadcast %27 : vector<1x8xf32> to vector<8x8xf32>
    %c0_11 = arith.constant 0 : index
    %c0_12 = arith.constant 0 : index
    %29 = vector.load %arg5[%c0_11, %c0_12] : memref<8x8xf32, #tpu.memory_space<vmem>>, vector<8x8xf32>
    tpu.vector_store %arg5[%c0_11, %c0_12], %28 {strides = array<i32>} : memref<8x8xf32, #tpu.memory_space<vmem>>, vector<8x8xf32>,
    %30 = vector.shape_cast %26 : vector<1x8xf32> to vector<1x8xf32>
    %31 = vector.broadcast %30 : vector<1x8xf32> to vector<8x8xf32>
    %c0_13 = arith.constant 0 : index
    %c0_14 = arith.constant 0 : index
    %32 = vector.load %arg6[%c0_13, %c0_14] : memref<8x8xf32, #tpu.memory_space<vmem>>, vector<8x8xf32>
    tpu.vector_store %arg6[%c0_13, %c0_14], %31 {strides = array<i32>} : memref<8x8xf32, #tpu.memory_space<vmem>>, vector<8x8xf32>,
    return
  }
  func.func @transform_0(%arg0: i32) -> (i32, i32) {
    %c0_i32 = arith.constant 0 : i32
    %c0_i32_0 = arith.constant 0 : i32
    return %arg0, %c0_i32 : i32, i32
  }
  func.func @transform_1(%arg0: i32) -> (i32, i32) {
    %c0_i32 = arith.constant 0 : i32
    %c0_i32_0 = arith.constant 0 : i32
    %c0_i32_1 = arith.constant 0 : i32
    return %c0_i32, %c0_i32_0 : i32, i32
  }
  func.func @transform_2(%arg0: i32) -> (i32, i32) {
    %c0_i32 = arith.constant 0 : i32
    %c0_i32_0 = arith.constant 0 : i32
    %c0_i32_1 = arith.constant 0 : i32
    return %c0_i32, %c0_i32_0 : i32, i32
  }
  func.func @transform_3(%arg0: i32) -> (i32, i32) {
    %c0_i32 = arith.constant 0 : i32
    %c0_i32_0 = arith.constant 0 : i32
    return %arg0, %c0_i32 : i32, i32
  }
  func.func @transform_4(%arg0: i32) -> (i32, i32) {
    %c0_i32 = arith.constant 0 : i32
    %c0_i32_0 = arith.constant 0 : i32
    return %arg0, %c0_i32 : i32, i32
  }
  func.func @transform_5(%arg0: i32) -> (i32, i32) {
    %c0_i32 = arith.constant 0 : i32
    %c0_i32_0 = arith.constant 0 : i32
    return %arg0, %c0_i32 : i32, i32
  }
}

module attributes {stable_mosaic.version = 11 : i64} {
  func.func @_gemm_relu_stats_kernel(%arg0: i32, %arg1: memref<512x72xbf16, #tpu.memory_space<vmem>>, %arg2: memref<72x128xbf16, #tpu.memory_space<vmem>>, %arg3: memref<1x128xf32, #tpu.memory_space<vmem>>, %arg4: memref<512x8xf32, #tpu.memory_space<vmem>>, %arg5: memref<8x8xf32, #tpu.memory_space<vmem>>, %arg6: memref<8x8xf32, #tpu.memory_space<vmem>>) attributes {dimension_semantics = [#tpu.dimension_semantics<parallel>], iteration_bounds = array<i64: 5>, scalar_prefetch = 0 : i64, scratch_operands = 0 : i64, tpu.core_type = #tpu.core_type<tc>, window_params = [{transform_indices = @transform_0, window_bounds = array<i64: 512, 72>}, {pipeline_mode = #tpu.pipeline_mode<synchronous>, transform_indices = @transform_1, window_bounds = array<i64: 72, 128>}, {pipeline_mode = #tpu.pipeline_mode<synchronous>, transform_indices = @transform_2, window_bounds = array<i64: 1, 128>}, {transform_indices = @transform_3, window_bounds = array<i64: 512, 8>}, {transform_indices = @transform_4, window_bounds = array<i64: 8, 8>}, {transform_indices = @transform_5, window_bounds = array<i64: 8, 8>}]} {
    %c0 = arith.constant 0 : index
    %c0_0 = arith.constant 0 : index
    %0 = vector.load %arg1[%c0, %c0_0] : memref<512x72xbf16, #tpu.memory_space<vmem>>, vector<512x72xbf16>
    %c0_1 = arith.constant 0 : index
    %c0_2 = arith.constant 0 : index
    %1 = vector.load %arg2[%c0_1, %c0_2] : memref<72x128xbf16, #tpu.memory_space<vmem>>, vector<72x128xbf16>
    %cst = arith.constant dense<0.000000e+00> : vector<512x128xf32>
    %2 = tpu.matmul %0, %1, %cst {dimension_numbers = #tpu.dot_dimension_numbers<[1], [0], [0], [1], [0, 0, 1, 1], [], []>} : vector<512x72xbf16>, vector<72x128xbf16>, vector<512x128xf32> -> vector<512x128xf32>
    %c0_3 = arith.constant 0 : index
    %c0_4 = arith.constant 0 : index
    %3 = vector.load %arg3[%c0_3, %c0_4] : memref<1x128xf32, #tpu.memory_space<vmem>>, vector<1x128xf32>
    %4 = vector.broadcast %3 : vector<1x128xf32> to vector<512x128xf32>
    %5 = arith.addf %2, %4 : vector<512x128xf32>
    %cst_5 = arith.constant 0.000000e+00 : f32
    %6 = vector.broadcast %cst_5 : f32 to vector<512x128xf32>
    %7 = arith.maximumf %5, %6 : vector<512x128xf32>
    %8 = vector.extract_strided_slice %7 {offsets = [0, 0], sizes = [512, 8], strides = [1, 1]} : vector<512x128xf32> to vector<512x8xf32>
    %c0_6 = arith.constant 0 : index
    %c0_7 = arith.constant 0 : index
    %9 = vector.load %arg4[%c0_6, %c0_7] : memref<512x8xf32, #tpu.memory_space<vmem>>, vector<512x8xf32>
    tpu.vector_store %arg4[%c0_6, %c0_7], %8 {strides = array<i32>} : memref<512x8xf32, #tpu.memory_space<vmem>>, vector<512x8xf32>,
    %c512_i32 = arith.constant 512 : i32
    %10 = arith.muli %arg0, %c512_i32 : i32
    %11 = tpu.iota {dimensions = array<i32: 0>} : vector<512x1xi32>
    %12 = vector.broadcast %10 : i32 to vector<512x1xi32>
    %13 = arith.addi %12, %11 : vector<512x1xi32>
    %c2178_i32 = arith.constant 2178 : i32
    %14 = vector.broadcast %c2178_i32 : i32 to vector<512x1xi32>
    %15 = arith.cmpi slt, %13, %14 : vector<512x1xi32>
    %cst_8 = arith.constant 0.000000e+00 : f32
    %16 = vector.shape_cast %15 : vector<512x1xi1> to vector<512x1xi1>
    %17 = vector.broadcast %16 : vector<512x1xi1> to vector<512x128xi1>
    %18 = vector.broadcast %cst_8 : f32 to vector<512x128xf32>
    %19 = arith.select %17, %7, %18 : vector<512x128xi1>, vector<512x128xf32>
    %cst_9 = arith.constant dense<0.000000e+00> : vector<128xf32>
    %20 = vector.multi_reduction <add>, %19, %cst_9 [0] : vector<512x128xf32> to vector<128xf32>
    %21 = vector.shape_cast %20 : vector<128xf32> to vector<1x128xf32>
    %22 = vector.extract_strided_slice %21 {offsets = [0, 0], sizes = [1, 8], strides = [1, 1]} : vector<1x128xf32> to vector<1x8xf32>
    %23 = arith.mulf %19, %19 : vector<512x128xf32>
    %cst_10 = arith.constant dense<0.000000e+00> : vector<128xf32>
    %24 = vector.multi_reduction <add>, %23, %cst_10 [0] : vector<512x128xf32> to vector<128xf32>
    %25 = vector.shape_cast %24 : vector<128xf32> to vector<1x128xf32>
    %26 = vector.extract_strided_slice %25 {offsets = [0, 0], sizes = [1, 8], strides = [1, 1]} : vector<1x128xf32> to vector<1x8xf32>
    %27 = vector.shape_cast %22 : vector<1x8xf32> to vector<1x8xf32>
    %28 = vector.broadcast %27 : vector<1x8xf32> to vector<8x8xf32>
    %c0_11 = arith.constant 0 : index
    %c0_12 = arith.constant 0 : index
    %29 = vector.load %arg5[%c0_11, %c0_12] : memref<8x8xf32, #tpu.memory_space<vmem>>, vector<8x8xf32>
    tpu.vector_store %arg5[%c0_11, %c0_12], %28 {strides = array<i32>} : memref<8x8xf32, #tpu.memory_space<vmem>>, vector<8x8xf32>,
    %30 = vector.shape_cast %26 : vector<1x8xf32> to vector<1x8xf32>
    %31 = vector.broadcast %30 : vector<1x8xf32> to vector<8x8xf32>
    %c0_13 = arith.constant 0 : index
    %c0_14 = arith.constant 0 : index
    %32 = vector.load %arg6[%c0_13, %c0_14] : memref<8x8xf32, #tpu.memory_space<vmem>>, vector<8x8xf32>
    tpu.vector_store %arg6[%c0_13, %c0_14], %31 {strides = array<i32>} : memref<8x8xf32, #tpu.memory_space<vmem>>, vector<8x8xf32>,
    return
  }
  func.func @transform_0(%arg0: i32) -> (i32, i32) {
    %c0_i32 = arith.constant 0 : i32
    %c0_i32_0 = arith.constant 0 : i32
    return %arg0, %c0_i32 : i32, i32
  }
  func.func @transform_1(%arg0: i32) -> (i32, i32) {
    %c0_i32 = arith.constant 0 : i32
    %c0_i32_0 = arith.constant 0 : i32
    %c0_i32_1 = arith.constant 0 : i32
    return %c0_i32, %c0_i32_0 : i32, i32
  }
  func.func @transform_2(%arg0: i32) -> (i32, i32) {
    %c0_i32 = arith.constant 0 : i32
    %c0_i32_0 = arith.constant 0 : i32
    %c0_i32_1 = arith.constant 0 : i32
    return %c0_i32, %c0_i32_0 : i32, i32
  }
  func.func @transform_3(%arg0: i32) -> (i32, i32) {
    %c0_i32 = arith.constant 0 : i32
    %c0_i32_0 = arith.constant 0 : i32
    return %arg0, %c0_i32 : i32, i32
  }
  func.func @transform_4(%arg0: i32) -> (i32, i32) {
    %c0_i32 = arith.constant 0 : i32
    %c0_i32_0 = arith.constant 0 : i32
    return %arg0, %c0_i32 : i32, i32
  }
  func.func @transform_5(%arg0: i32) -> (i32, i32) {
    %c0_i32 = arith.constant 0 : i32
    %c0_i32_0 = arith.constant 0 : i32
    return %arg0, %c0_i32 : i32, i32
  }
}

module attributes {stable_mosaic.version = 11 : i64} {
  func.func @_bn_affine_kernel(%arg0: i32, %arg1: memref<512x8xf32, #tpu.memory_space<vmem>>, %arg2: memref<1x8xf32, #tpu.memory_space<vmem>>, %arg3: memref<1x8xf32, #tpu.memory_space<vmem>>, %arg4: memref<512x8xf32, #tpu.memory_space<vmem>>) attributes {dimension_semantics = [#tpu.dimension_semantics<parallel>], iteration_bounds = array<i64: 5>, scalar_prefetch = 0 : i64, scratch_operands = 0 : i64, tpu.core_type = #tpu.core_type<tc>, window_params = [{transform_indices = @transform_0, window_bounds = array<i64: 512, 8>}, {pipeline_mode = #tpu.pipeline_mode<synchronous>, transform_indices = @transform_1, window_bounds = array<i64: 1, 8>}, {pipeline_mode = #tpu.pipeline_mode<synchronous>, transform_indices = @transform_2, window_bounds = array<i64: 1, 8>}, {transform_indices = @transform_3, window_bounds = array<i64: 512, 8>}]} {
    %c0 = arith.constant 0 : index
    %c0_0 = arith.constant 0 : index
    %0 = vector.load %arg1[%c0, %c0_0] : memref<512x8xf32, #tpu.memory_space<vmem>>, vector<512x8xf32>
    %c0_1 = arith.constant 0 : index
    %c0_2 = arith.constant 0 : index
    %1 = vector.load %arg2[%c0_1, %c0_2] : memref<1x8xf32, #tpu.memory_space<vmem>>, vector<1x8xf32>
    %2 = vector.broadcast %1 : vector<1x8xf32> to vector<512x8xf32>
    %3 = arith.mulf %0, %2 : vector<512x8xf32>
    %c0_3 = arith.constant 0 : index
    %c0_4 = arith.constant 0 : index
    %4 = vector.load %arg3[%c0_3, %c0_4] : memref<1x8xf32, #tpu.memory_space<vmem>>, vector<1x8xf32>
    %5 = vector.broadcast %4 : vector<1x8xf32> to vector<512x8xf32>
    %6 = arith.addf %3, %5 : vector<512x8xf32>
    %c0_5 = arith.constant 0 : index
    %c0_6 = arith.constant 0 : index
    %7 = vector.load %arg4[%c0_5, %c0_6] : memref<512x8xf32, #tpu.memory_space<vmem>>, vector<512x8xf32>
    tpu.vector_store %arg4[%c0_5, %c0_6], %6 {strides = array<i32>} : memref<512x8xf32, #tpu.memory_space<vmem>>, vector<512x8xf32>,
    return
  }
  func.func @transform_0(%arg0: i32) -> (i32, i32) {
    %c0_i32 = arith.constant 0 : i32
    %c0_i32_0 = arith.constant 0 : i32
    return %arg0, %c0_i32 : i32, i32
  }
  func.func @transform_1(%arg0: i32) -> (i32, i32) {
    %c0_i32 = arith.constant 0 : i32
    %c0_i32_0 = arith.constant 0 : i32
    %c0_i32_1 = arith.constant 0 : i32
    return %c0_i32, %c0_i32_0 : i32, i32
  }
  func.func @transform_2(%arg0: i32) -> (i32, i32) {
    %c0_i32 = arith.constant 0 : i32
    %c0_i32_0 = arith.constant 0 : i32
    %c0_i32_1 = arith.constant 0 : i32
    return %c0_i32, %c0_i32_0 : i32, i32
  }
  func.func @transform_3(%arg0: i32) -> (i32, i32) {
    %c0_i32 = arith.constant 0 : i32
    %c0_i32_0 = arith.constant 0 : i32
    return %arg0, %c0_i32 : i32, i32
  }
}

module attributes {stable_mosaic.version = 11 : i64} {
  func.func @_gemm_relu_stats_kernel(%arg0: i32, %arg1: memref<512x72xbf16, #tpu.memory_space<vmem>>, %arg2: memref<72x128xbf16, #tpu.memory_space<vmem>>, %arg3: memref<1x128xf32, #tpu.memory_space<vmem>>, %arg4: memref<512x4xf32, #tpu.memory_space<vmem>>, %arg5: memref<8x4xf32, #tpu.memory_space<vmem>>, %arg6: memref<8x4xf32, #tpu.memory_space<vmem>>) attributes {dimension_semantics = [#tpu.dimension_semantics<parallel>], iteration_bounds = array<i64: 17>, scalar_prefetch = 0 : i64, scratch_operands = 0 : i64, tpu.core_type = #tpu.core_type<tc>, window_params = [{transform_indices = @transform_0, window_bounds = array<i64: 512, 72>}, {pipeline_mode = #tpu.pipeline_mode<synchronous>, transform_indices = @transform_1, window_bounds = array<i64: 72, 128>}, {pipeline_mode = #tpu.pipeline_mode<synchronous>, transform_indices = @transform_2, window_bounds = array<i64: 1, 128>}, {transform_indices = @transform_3, window_bounds = array<i64: 512, 4>}, {transform_indices = @transform_4, window_bounds = array<i64: 8, 4>}, {transform_indices = @transform_5, window_bounds = array<i64: 8, 4>}]} {
    %c0 = arith.constant 0 : index
    %c0_0 = arith.constant 0 : index
    %0 = vector.load %arg1[%c0, %c0_0] : memref<512x72xbf16, #tpu.memory_space<vmem>>, vector<512x72xbf16>
    %c0_1 = arith.constant 0 : index
    %c0_2 = arith.constant 0 : index
    %1 = vector.load %arg2[%c0_1, %c0_2] : memref<72x128xbf16, #tpu.memory_space<vmem>>, vector<72x128xbf16>
    %cst = arith.constant dense<0.000000e+00> : vector<512x128xf32>
    %2 = tpu.matmul %0, %1, %cst {dimension_numbers = #tpu.dot_dimension_numbers<[1], [0], [0], [1], [0, 0, 1, 1], [], []>} : vector<512x72xbf16>, vector<72x128xbf16>, vector<512x128xf32> -> vector<512x128xf32>
    %c0_3 = arith.constant 0 : index
    %c0_4 = arith.constant 0 : index
    %3 = vector.load %arg3[%c0_3, %c0_4] : memref<1x128xf32, #tpu.memory_space<vmem>>, vector<1x128xf32>
    %4 = vector.broadcast %3 : vector<1x128xf32> to vector<512x128xf32>
    %5 = arith.addf %2, %4 : vector<512x128xf32>
    %cst_5 = arith.constant 0.000000e+00 : f32
    %6 = vector.broadcast %cst_5 : f32 to vector<512x128xf32>
    %7 = arith.maximumf %5, %6 : vector<512x128xf32>
    %8 = vector.extract_strided_slice %7 {offsets = [0, 0], sizes = [512, 4], strides = [1, 1]} : vector<512x128xf32> to vector<512x4xf32>
    %c0_6 = arith.constant 0 : index
    %c0_7 = arith.constant 0 : index
    %9 = vector.load %arg4[%c0_6, %c0_7] : memref<512x4xf32, #tpu.memory_space<vmem>>, vector<512x4xf32>
    tpu.vector_store %arg4[%c0_6, %c0_7], %8 {strides = array<i32>} : memref<512x4xf32, #tpu.memory_space<vmem>>, vector<512x4xf32>,
    %c512_i32 = arith.constant 512 : i32
    %10 = arith.muli %arg0, %c512_i32 : i32
    %11 = tpu.iota {dimensions = array<i32: 0>} : vector<512x1xi32>
    %12 = vector.broadcast %10 : i32 to vector<512x1xi32>
    %13 = arith.addi %12, %11 : vector<512x1xi32>
    %c8450_i32 = arith.constant 8450 : i32
    %14 = vector.broadcast %c8450_i32 : i32 to vector<512x1xi32>
    %15 = arith.cmpi slt, %13, %14 : vector<512x1xi32>
    %cst_8 = arith.constant 0.000000e+00 : f32
    %16 = vector.shape_cast %15 : vector<512x1xi1> to vector<512x1xi1>
    %17 = vector.broadcast %16 : vector<512x1xi1> to vector<512x128xi1>
    %18 = vector.broadcast %cst_8 : f32 to vector<512x128xf32>
    %19 = arith.select %17, %7, %18 : vector<512x128xi1>, vector<512x128xf32>
    %cst_9 = arith.constant dense<0.000000e+00> : vector<128xf32>
    %20 = vector.multi_reduction <add>, %19, %cst_9 [0] : vector<512x128xf32> to vector<128xf32>
    %21 = vector.shape_cast %20 : vector<128xf32> to vector<1x128xf32>
    %22 = vector.extract_strided_slice %21 {offsets = [0, 0], sizes = [1, 4], strides = [1, 1]} : vector<1x128xf32> to vector<1x4xf32>
    %23 = arith.mulf %19, %19 : vector<512x128xf32>
    %cst_10 = arith.constant dense<0.000000e+00> : vector<128xf32>
    %24 = vector.multi_reduction <add>, %23, %cst_10 [0] : vector<512x128xf32> to vector<128xf32>
    %25 = vector.shape_cast %24 : vector<128xf32> to vector<1x128xf32>
    %26 = vector.extract_strided_slice %25 {offsets = [0, 0], sizes = [1, 4], strides = [1, 1]} : vector<1x128xf32> to vector<1x4xf32>
    %27 = vector.shape_cast %22 : vector<1x4xf32> to vector<1x4xf32>
    %28 = vector.broadcast %27 : vector<1x4xf32> to vector<8x4xf32>
    %c0_11 = arith.constant 0 : index
    %c0_12 = arith.constant 0 : index
    %29 = vector.load %arg5[%c0_11, %c0_12] : memref<8x4xf32, #tpu.memory_space<vmem>>, vector<8x4xf32>
    tpu.vector_store %arg5[%c0_11, %c0_12], %28 {strides = array<i32>} : memref<8x4xf32, #tpu.memory_space<vmem>>, vector<8x4xf32>,
    %30 = vector.shape_cast %26 : vector<1x4xf32> to vector<1x4xf32>
    %31 = vector.broadcast %30 : vector<1x4xf32> to vector<8x4xf32>
    %c0_13 = arith.constant 0 : index
    %c0_14 = arith.constant 0 : index
    %32 = vector.load %arg6[%c0_13, %c0_14] : memref<8x4xf32, #tpu.memory_space<vmem>>, vector<8x4xf32>
    tpu.vector_store %arg6[%c0_13, %c0_14], %31 {strides = array<i32>} : memref<8x4xf32, #tpu.memory_space<vmem>>, vector<8x4xf32>,
    return
  }
  func.func @transform_0(%arg0: i32) -> (i32, i32) {
    %c0_i32 = arith.constant 0 : i32
    %c0_i32_0 = arith.constant 0 : i32
    return %arg0, %c0_i32 : i32, i32
  }
  func.func @transform_1(%arg0: i32) -> (i32, i32) {
    %c0_i32 = arith.constant 0 : i32
    %c0_i32_0 = arith.constant 0 : i32
    %c0_i32_1 = arith.constant 0 : i32
    return %c0_i32, %c0_i32_0 : i32, i32
  }
  func.func @transform_2(%arg0: i32) -> (i32, i32) {
    %c0_i32 = arith.constant 0 : i32
    %c0_i32_0 = arith.constant 0 : i32
    %c0_i32_1 = arith.constant 0 : i32
    return %c0_i32, %c0_i32_0 : i32, i32
  }
  func.func @transform_3(%arg0: i32) -> (i32, i32) {
    %c0_i32 = arith.constant 0 : i32
    %c0_i32_0 = arith.constant 0 : i32
    return %arg0, %c0_i32 : i32, i32
  }
  func.func @transform_4(%arg0: i32) -> (i32, i32) {
    %c0_i32 = arith.constant 0 : i32
    %c0_i32_0 = arith.constant 0 : i32
    return %arg0, %c0_i32 : i32, i32
  }
  func.func @transform_5(%arg0: i32) -> (i32, i32) {
    %c0_i32 = arith.constant 0 : i32
    %c0_i32_0 = arith.constant 0 : i32
    return %arg0, %c0_i32 : i32, i32
  }
}

module attributes {stable_mosaic.version = 11 : i64} {
  func.func @_bn_affine_kernel(%arg0: i32, %arg1: memref<512x4xf32, #tpu.memory_space<vmem>>, %arg2: memref<1x4xf32, #tpu.memory_space<vmem>>, %arg3: memref<1x4xf32, #tpu.memory_space<vmem>>, %arg4: memref<512x4xf32, #tpu.memory_space<vmem>>) attributes {dimension_semantics = [#tpu.dimension_semantics<parallel>], iteration_bounds = array<i64: 17>, scalar_prefetch = 0 : i64, scratch_operands = 0 : i64, tpu.core_type = #tpu.core_type<tc>, window_params = [{transform_indices = @transform_0, window_bounds = array<i64: 512, 4>}, {pipeline_mode = #tpu.pipeline_mode<synchronous>, transform_indices = @transform_1, window_bounds = array<i64: 1, 4>}, {pipeline_mode = #tpu.pipeline_mode<synchronous>, transform_indices = @transform_2, window_bounds = array<i64: 1, 4>}, {transform_indices = @transform_3, window_bounds = array<i64: 512, 4>}]} {
    %c0 = arith.constant 0 : index
    %c0_0 = arith.constant 0 : index
    %0 = vector.load %arg1[%c0, %c0_0] : memref<512x4xf32, #tpu.memory_space<vmem>>, vector<512x4xf32>
    %c0_1 = arith.constant 0 : index
    %c0_2 = arith.constant 0 : index
    %1 = vector.load %arg2[%c0_1, %c0_2] : memref<1x4xf32, #tpu.memory_space<vmem>>, vector<1x4xf32>
    %2 = vector.broadcast %1 : vector<1x4xf32> to vector<512x4xf32>
    %3 = arith.mulf %0, %2 : vector<512x4xf32>
    %c0_3 = arith.constant 0 : index
    %c0_4 = arith.constant 0 : index
    %4 = vector.load %arg3[%c0_3, %c0_4] : memref<1x4xf32, #tpu.memory_space<vmem>>, vector<1x4xf32>
    %5 = vector.broadcast %4 : vector<1x4xf32> to vector<512x4xf32>
    %6 = arith.addf %3, %5 : vector<512x4xf32>
    %c0_5 = arith.constant 0 : index
    %c0_6 = arith.constant 0 : index
    %7 = vector.load %arg4[%c0_5, %c0_6] : memref<512x4xf32, #tpu.memory_space<vmem>>, vector<512x4xf32>
    tpu.vector_store %arg4[%c0_5, %c0_6], %6 {strides = array<i32>} : memref<512x4xf32, #tpu.memory_space<vmem>>, vector<512x4xf32>,
    return
  }
  func.func @transform_0(%arg0: i32) -> (i32, i32) {
    %c0_i32 = arith.constant 0 : i32
    %c0_i32_0 = arith.constant 0 : i32
    return %arg0, %c0_i32 : i32, i32
  }
  func.func @transform_1(%arg0: i32) -> (i32, i32) {
    %c0_i32 = arith.constant 0 : i32
    %c0_i32_0 = arith.constant 0 : i32
    %c0_i32_1 = arith.constant 0 : i32
    return %c0_i32, %c0_i32_0 : i32, i32
  }
  func.func @transform_2(%arg0: i32) -> (i32, i32) {
    %c0_i32 = arith.constant 0 : i32
    %c0_i32_0 = arith.constant 0 : i32
    %c0_i32_1 = arith.constant 0 : i32
    return %c0_i32, %c0_i32_0 : i32, i32
  }
  func.func @transform_3(%arg0: i32) -> (i32, i32) {
    %c0_i32 = arith.constant 0 : i32
    %c0_i32_0 = arith.constant 0 : i32
    return %arg0, %c0_i32 : i32, i32
  }
}

</mosaic_0001>

<llo_original>
// kernel: deconv_nn_forward.7
$region0: #{deconv_nn_forward.7}
  #allocation0 [shape = 'u32[]', space=smem, size = 0x4, offset = 0x4, fixed_abs, tag = 'smem constant byte address 0x4 - core index']
  #allocation1 [shape = 'u32[144,128]{1,0:T(1,128)}', space=vmem, size = 0x12000, scoped, tag = 'internal scratch']
  %s0 = inlined_call_operand.vmem [shape: f32[2048,8], index: 0, kind: input, shape index: {}]
  %s1 = inlined_call_operand.vmem [shape: f32[1,8], index: 1, kind: input, shape index: {}]
  %s2 = inlined_call_operand.vmem [shape: f32[1,8], index: 2, kind: input, shape index: {}]
  %s3 = inlined_call_operand.vmem [shape: f32[2048,8], index: 3, kind: output, shape index: {}]
  %s4 = sld [smem:[#allocation0]]
  $region45: #{deconv_nn_forward.7} parent=0
    _
  %s6 = ssub.s32 1, %s4
  %s7 = scalar_select 0, %s6, %s4
  loop: start=0, step=1, limit=6
  $region2: #{deconv_nn_forward.7} parent=0 // loop_pre_header
    _
  $region3: #{deconv_nn_forward.7} parent=0 // loop_header
    %s9 = sphi 0, %s13
    %p10 = scmp.ge.s32.totalorder %s9, 6
    %s19 = sphi 0, %s21
    %s22 = sphi 0, %s19
    %s23 = sphi 0, %s22
    %s39 = sphi 0, %s23
    %s43 = sphi 0, %s43
    %s45 = sphi 0, %s43
    %s46 = sphi 0, %s45
    %s60 = sphi 0, %s46
    %s64 = sphi 0, %s64
    %s66 = sphi 0, %s64
    %s67 = sphi 0, %s66
    %s81 = sphi 0, %s67
    %s87 = sphi 0, %s89
    %s90 = sphi 0, %s87
    %s91 = sphi 0, %s90
    %s107 = sphi 0, %s91
  $region4: #{deconv_nn_forward.7} parent=0 // loop_header_branch
    %12 = sbr.rel (%p10) target = $region8
  $region5: #{deconv_nn_forward.7} parent=0 // loop_body
    %s14 = ssub.s32 %s9, 1
    %s15 = ssub.s32 %s9, 2
    %s16 = sadd.s32 %s9, 1
    %s17 = ssub.s32 %s9, %s16
    %p18 = scmp.eq.s32.totalorder %s17, 0
    %s20 = sadd.s32 %s19, 1
    %s21 = scalar_select %p18, %s19, %s20
    %p24 = pneg %p18
    %p25 = scmp.eq.s32.totalorder %s9, 3
    %p26 = por %p24, %p25
    %p27 = scmp.ne.s32.totalorder %s19, %s22
    %p28 = scmp.eq.s32.totalorder %s9, 0
    %p29 = por %p27, %p28
    %p30 = scmp.ne.s32.totalorder %s19, %s22
    %p31 = scmp.eq.s32.totalorder %s14, 3
    %p32 = por %p30, %p31
    %p33 = scmp.ne.s32.totalorder %s22, %s23
    %p34 = scmp.eq.s32.totalorder %s14, 0
    %p35 = por %p33, %p34
    %p36 = scmp.ne.s32.totalorder %s22, %s23
    %p37 = scmp.eq.s32.totalorder %s15, 3
    %p38 = por %p36, %p37
    %p40 = scmp.ne.s32.totalorder %s23, %s39
    %p41 = scmp.eq.s32.totalorder %s15, 0
    %p42 = por %p40, %p41
    %s44 = sadd.s32 %s43, 1
    %p47 = scmp.eq.s32.totalorder %s9, 3
    %p48 = scmp.ne.s32.totalorder %s43, %s45
    %p49 = scmp.eq.s32.totalorder %s9, 0
    %p50 = por %p48, %p49
    %p51 = scmp.ne.s32.totalorder %s43, %s45
    %p52 = scmp.eq.s32.totalorder %s14, 3
    %p53 = por %p51, %p52
    %p54 = scmp.ne.s32.totalorder %s45, %s46
    %p55 = scmp.eq.s32.totalorder %s14, 0
    %p56 = por %p54, %p55
    %p57 = scmp.ne.s32.totalorder %s45, %s46
    %p58 = scmp.eq.s32.totalorder %s15, 3
    %p59 = por %p57, %p58
    %p61 = scmp.ne.s32.totalorder %s46, %s60
    %p62 = scmp.eq.s32.totalorder %s15, 0
    %p63 = por %p61, %p62
    %s65 = sadd.s32 %s64, 1
    %p68 = scmp.eq.s32.totalorder %s9, 3
    %p69 = scmp.ne.s32.totalorder %s64, %s66
    %p70 = scmp.eq.s32.totalorder %s9, 0
    %p71 = por %p69, %p70
    %p72 = scmp.ne.s32.totalorder %s64, %s66
    %p73 = scmp.eq.s32.totalorder %s14, 3
    %p74 = por %p72, %p73
    %p75 = scmp.ne.s32.totalorder %s66, %s67
    %p76 = scmp.eq.s32.totalorder %s14, 0
    %p77 = por %p75, %p76
    %p78 = scmp.ne.s32.totalorder %s66, %s67
    %p79 = scmp.eq.s32.totalorder %s15, 3
    %p80 = por %p78, %p79
    %p82 = scmp.ne.s32.totalorder %s67, %s81
    %p83 = scmp.eq.s32.totalorder %s15, 0
    %p84 = por %p82, %p83
    %s85 = ssub.s32 %s9, %s16
    %p86 = scmp.eq.s32.totalorder %s85, 0
    %s88 = sadd.s32 %s87, 1
    %s89 = scalar_select %p86, %s87, %s88
    %p92 = pneg %p86
    %p93 = scmp.eq.s32.totalorder %s9, 3
    %p94 = por %p92, %p93
    %p95 = scmp.ne.s32.totalorder %s87, %s90
    %p96 = scmp.eq.s32.totalorder %s9, 0
    %p97 = por %p95, %p96
    %p98 = scmp.ne.s32.totalorder %s87, %s90
    %p99 = scmp.eq.s32.totalorder %s14, 3
    %p100 = por %p98, %p99
    %p101 = scmp.ne.s32.totalorder %s90, %s91
    %p102 = scmp.eq.s32.totalorder %s14, 0
    %p103 = por %p101, %p102
    %p104 = scmp.ne.s32.totalorder %s90, %s91
    %p105 = scmp.eq.s32.totalorder %s15, 3
    %p106 = por %p104, %p105
    %p108 = scmp.ne.s32.totalorder %s91, %s107
    %p109 = scmp.eq.s32.totalorder %s15, 0
    %p110 = por %p108, %p109
    %p111 = scmp.le.s32.totalorder 1, %s9
    %p112 = scmp.lt.s32.totalorder %s9, 5
    %p113 = pnand %p111, %p112
    %p114 = pneg %p113
    // Predicated region
    $region9: #{deconv_nn_forward.7} parent=5 // pred_check
      _
    $region10: #{deconv_nn_forward.7} parent=5 // pred_check_branch
      %116 = sbr.rel (%p113) target = $region12
    $region11: #{deconv_nn_forward.7} parent=5 // pred_region
      %s117 = ssub.s32 %s9, 1
      // Predicated region
      $region13: #{deconv_nn_forward.7} parent=11 // pred_check
        %p118 = pneg %p56
      $region14: #{deconv_nn_forward.7} parent=11 // pred_check_branch
        %120 = sbr.rel (%p118) target = $region16
      $region15: #{deconv_nn_forward.7} parent=11 // pred_region
        _
      $region16: #{deconv_nn_forward.7} parent=11 // pred_fallthru
        _
      // Predicated region
      $region17: #{deconv_nn_forward.7} parent=11 // pred_check
        %p121 = pneg %p77
      $region18: #{deconv_nn_forward.7} parent=11 // pred_check_branch
        %123 = sbr.rel (%p121) target = $region20
      $region19: #{deconv_nn_forward.7} parent=11 // pred_region
        _
      $region20: #{deconv_nn_forward.7} parent=11 // pred_fallthru
        _
    $region12: #{deconv_nn_forward.7} parent=5 // pred_fallthru
      _
    %p124 = scmp.lt.s32.totalorder %s9, 4
    // Predicated region
    $region21: #{deconv_nn_forward.7} parent=5 // pred_check
      %p125 = pneg %p124
    $region22: #{deconv_nn_forward.7} parent=5 // pred_check_branch
      %127 = sbr.rel (%p125) target = $region24
    $region23: #{deconv_nn_forward.7} parent=5 // pred_region
      // Predicated region
      $region25: #{deconv_nn_forward.7} parent=23 // pred_check
        %p128 = pneg %p29
      $region26: #{deconv_nn_forward.7} parent=23 // pred_check_branch
        %130 = sbr.rel (%p128) target = $region28
      $region27: #{deconv_nn_forward.7} parent=23 // pred_region
        %s131 = smul.u32 64, %s9
        %p132 = scmp.lt.s32.totalorder %s131, 255
        %s133 = scalar_select %p132, %s131, 255
        %s134 = smul.addr %s133, 8
        %s135 = scalar_lea.vmem %s0, %s134
        %s136 = smul.u32 64, %s9
      $region28: #{deconv_nn_forward.7} parent=23 // pred_fallthru
        _
    $region24: #{deconv_nn_forward.7} parent=5 // pred_fallthru
      _
    %p137 = scmp.le.s32.totalorder 1, %s9
    %p138 = scmp.lt.s32.totalorder %s9, 5
    %p139 = pnand %p137, %p138
    %p140 = pneg %p139
    // Predicated region
    $region29: #{deconv_nn_forward.7} parent=5 // pred_check
      _
    $region30: #{deconv_nn_forward.7} parent=5 // pred_check_branch
      %142 = sbr.rel (%p139) target = $region32
    $region31: #{deconv_nn_forward.7} parent=5 // pred_region
      %s143 = ssub.s32 %s9, 1
      %s144 = smul.u32 64, %s14
      %p145 = scmp.lt.s32.totalorder %s144, 255
      %s146 = scalar_select %p145, %s144, 255
      %s147 = smul.addr %s146, 8
      %s148 = scalar_lea.vmem %s0, %s147
      %p149 = pneg %p35
      %p150 = pneg %p32
      %p151 = pneg %p56
      %p152 = pneg %p53
      %p153 = pneg %p77
      %p154 = pneg %p74
      %p155 = pneg %p103
      %p156 = pneg %p100
      %s157 = smul.u32 64, %s14
      %p158 = scmp.lt.s32.totalorder %s157, 255
      %s159 = scalar_select %p158, %s157, 255
      %s160 = smul.addr %s159, 8
      %s161 = scalar_lea.vmem %s3, %s160
      %s162 = smul.u32 64, %s14
      %p163 = scmp.lt.s32.totalorder %s162, 255
      %s164 = scalar_select %p163, %s162, 255
      %s165 = smul.addr %s164, 8
      %s166 = scalar_lea.vmem %s0, %s165
      %s167 = smul.u32 64, %s14
      %s168 = smul.u32 64, %s14
      %p169 = scmp.lt.s32.totalorder %s168, 255
      %s170 = scalar_select %p169, %s168, 255
      %s171 = smul.addr %s170, 8
      %s172 = scalar_lea.vmem %s3, %s171
      %s173 = smul.u32 64, %s14
      %v174 = vld [vmem:[%s166] sm:$0xff]
      %v175 = vld [vmem:[%s166 + $0x8] sm:$0xff]
      %v176 = vld [vmem:[%s166 + $0x10] sm:$0xff]
      %v177 = vld [vmem:[%s166 + $0x18] sm:$0xff]
      %v178 = vld [vmem:[%s166 + $0x20] sm:$0xff]
      %v179 = vld [vmem:[%s166 + $0x28] sm:$0xff]
      %v180 = vld [vmem:[%s166 + $0x30] sm:$0xff]
      %v181 = vld [vmem:[%s166 + $0x38] sm:$0xff]
      %v182 = vld [vmem:[%s166 + $0x40] sm:$0xff]
      %v183 = vld [vmem:[%s166 + $0x48] sm:$0xff]
      %v184 = vld [vmem:[%s166 + $0x50] sm:$0xff]
      %v185 = vld [vmem:[%s166 + $0x58] sm:$0xff]
      %v186 = vld [vmem:[%s166 + $0x60] sm:$0xff]
      %v187 = vld [vmem:[%s166 + $0x68] sm:$0xff]
      %v188 = vld [vmem:[%s166 + $0x70] sm:$0xff]
      %v189 = vld [vmem:[%s166 + $0x78] sm:$0xff]
      %v190 = vld [vmem:[%s166 + $0x80] sm:$0xff]
      %v191 = vld [vmem:[%s166 + $0x88] sm:$0xff]
      %v192 = vld [vmem:[%s166 + $0x90] sm:$0xff]
      %v193 = vld [vmem:[%s166 + $0x98] sm:$0xff]
      %v194 = vld [vmem:[%s166 + $0xa0] sm:$0xff]
      %v195 = vld [vmem:[%s166 + $0xa8] sm:$0xff]
      %v196 = vld [vmem:[%s166 + $0xb0] sm:$0xff]
      %v197 = vld [vmem:[%s166 + $0xb8] sm:$0xff]
      %v198 = vld [vmem:[%s166 + $0xc0] sm:$0xff]
      %v199 = vld [vmem:[%s166 + $0xc8] sm:$0xff]
      %v200 = vld [vmem:[%s166 + $0xd0] sm:$0xff]
      %v201 = vld [vmem:[%s166 + $0xd8] sm:$0xff]
      %v202 = vld [vmem:[%s166 + $0xe0] sm:$0xff]
      %v203 = vld [vmem:[%s166 + $0xe8] sm:$0xff]
      %v204 = vld [vmem:[%s166 + $0xf0] sm:$0xff]
      %v205 = vld [vmem:[%s166 + $0xf8] sm:$0xff]
      %v206 = vld [vmem:[%s166 + $0x100] sm:$0xff]
      %v207 = vld [vmem:[%s166 + $0x108] sm:$0xff]
      %v208 = vld [vmem:[%s166 + $0x110] sm:$0xff]
      %v209 = vld [vmem:[%s166 + $0x118] sm:$0xff]
      %v210 = vld [vmem:[%s166 + $0x120] sm:$0xff]
      %v211 = vld [vmem:[%s166 + $0x128] sm:$0xff]
      %v212 = vld [vmem:[%s166 + $0x130] sm:$0xff]
      %v213 = vld [vmem:[%s166 + $0x138] sm:$0xff]
      %v214 = vld [vmem:[%s166 + $0x140] sm:$0xff]
      %v215 = vld [vmem:[%s166 + $0x148] sm:$0xff]
      %v216 = vld [vmem:[%s166 + $0x150] sm:$0xff]
      %v217 = vld [vmem:[%s166 + $0x158] sm:$0xff]
      %v218 = vld [vmem:[%s166 + $0x160] sm:$0xff]
      %v219 = vld [vmem:[%s166 + $0x168] sm:$0xff]
      %v220 = vld [vmem:[%s166 + $0x170] sm:$0xff]
      %v221 = vld [vmem:[%s166 + $0x178] sm:$0xff]
      %v222 = vld [vmem:[%s166 + $0x180] sm:$0xff]
      %v223 = vld [vmem:[%s166 + $0x188] sm:$0xff]
      %v224 = vld [vmem:[%s166 + $0x190] sm:$0xff]
      %v225 = vld [vmem:[%s166 + $0x198] sm:$0xff]
      %v226 = vld [vmem:[%s166 + $0x1a0] sm:$0xff]
      %v227 = vld [vmem:[%s166 + $0x1a8] sm:$0xff]
      %v228 = vld [vmem:[%s166 + $0x1b0] sm:$0xff]
      %v229 = vld [vmem:[%s166 + $0x1b8] sm:$0xff]
      %v230 = vld [vmem:[%s166 + $0x1c0] sm:$0xff]
      %v231 = vld [vmem:[%s166 + $0x1c8] sm:$0xff]
      %v232 = vld [vmem:[%s166 + $0x1d0] sm:$0xff]
      %v233 = vld [vmem:[%s166 + $0x1d8] sm:$0xff]
      %v234 = vld [vmem:[%s166 + $0x1e0] sm:$0xff]
      %v235 = vld [vmem:[%s166 + $0x1e8] sm:$0xff]
      %v236 = vld [vmem:[%s166 + $0x1f0] sm:$0xff]
      %v237 = vld [vmem:[%s166 + $0x1f8] sm:$0xff]
      %v238 = vld [vmem:[%s1] sm:$0x1]
      %v240 = vlaneseq
      %v241 = vshrl.u32 %v240, 7
      %v242 = vsub.s32 0, %v241
      %v243 = vrot.slane %v238, %v242
      %v245 = vmul.f32 %v174, %v243
      %v246 = vmul.f32 %v175, %v243
      %v247 = vmul.f32 %v176, %v243
      %v248 = vmul.f32 %v177, %v243
      %v249 = vmul.f32 %v178, %v243
      %v250 = vmul.f32 %v179, %v243
      %v251 = vmul.f32 %v180, %v243
      %v252 = vmul.f32 %v181, %v243
      %v253 = vmul.f32 %v182, %v243
      %v254 = vmul.f32 %v183, %v243
      %v255 = vmul.f32 %v184, %v243
      %v256 = vmul.f32 %v185, %v243
      %v257 = vmul.f32 %v186, %v243
      %v258 = vmul.f32 %v187, %v243
      %v259 = vmul.f32 %v188, %v243
      %v260 = vmul.f32 %v189, %v243
      %v261 = vmul.f32 %v190, %v243
      %v262 = vmul.f32 %v191, %v243
      %v263 = vmul.f32 %v192, %v243
      %v264 = vmul.f32 %v193, %v243
      %v265 = vmul.f32 %v194, %v243
      %v266 = vmul.f32 %v195, %v243
      %v267 = vmul.f32 %v196, %v243
      %v268 = vmul.f32 %v197, %v243
      %v269 = vmul.f32 %v198, %v243
      %v270 = vmul.f32 %v199, %v243
      %v271 = vmul.f32 %v200, %v243
      %v272 = vmul.f32 %v201, %v243
      %v273 = vmul.f32 %v202, %v243
      %v274 = vmul.f32 %v203, %v243
      %v275 = vmul.f32 %v204, %v243
      %v276 = vmul.f32 %v205, %v243
      %v277 = vmul.f32 %v206, %v243
      %v278 = vmul.f32 %v207, %v243
      %v279 = vmul.f32 %v208, %v243
      %v280 = vmul.f32 %v209, %v243
      %v281 = vmul.f32 %v210, %v243
      %v282 = vmul.f32 %v211, %v243
      %v283 = vmul.f32 %v212, %v243
      %v284 = vmul.f32 %v213, %v243
      %v285 = vmul.f32 %v214, %v243
      %v286 = vmul.f32 %v215, %v243
      %v287 = vmul.f32 %v216, %v243
      %v288 = vmul.f32 %v217, %v243
      %v289 = vmul.f32 %v218, %v243
      %v290 = vmul.f32 %v219, %v243
      %v291 = vmul.f32 %v220, %v243
      %v292 = vmul.f32 %v221, %v243
      %v293 = vmul.f32 %v222, %v243
      %v294 = vmul.f32 %v223, %v243
      %v295 = vmul.f32 %v224, %v243
      %v296 = vmul.f32 %v225, %v243
      %v297 = vmul.f32 %v226, %v243
      %v298 = vmul.f32 %v227, %v243
      %v299 = vmul.f32 %v228, %v243
      %v300 = vmul.f32 %v229, %v243
      %v301 = vmul.f32 %v230, %v243
      %v302 = vmul.f32 %v231, %v243
      %v303 = vmul.f32 %v232, %v243
      %v304 = vmul.f32 %v233, %v243
      %v305 = vmul.f32 %v234, %v243
      %v306 = vmul.f32 %v235, %v243
      %v307 = vmul.f32 %v236, %v243
      %v308 = vmul.f32 %v237, %v243
      %v309 = vld [vmem:[%s2] sm:$0x1]
      %v311 = vlaneseq
      %v312 = vshrl.u32 %v311, 7
      %v313 = vsub.s32 0, %v312
      %v314 = vrot.slane %v309, %v313
      %v316 = vadd.f32 %v245, %v314
      %v317 = vadd.f32 %v246, %v314
      %v318 = vadd.f32 %v247, %v314
      %v319 = vadd.f32 %v248, %v314
      %v320 = vadd.f32 %v249, %v314
      %v321 = vadd.f32 %v250, %v314
      %v322 = vadd.f32 %v251, %v314
      %v323 = vadd.f32 %v252, %v314
      %v324 = vadd.f32 %v253, %v314
      %v325 = vadd.f32 %v254, %v314
      %v326 = vadd.f32 %v255, %v314
      %v327 = vadd.f32 %v256, %v314
      %v328 = vadd.f32 %v257, %v314
      %v329 = vadd.f32 %v258, %v314
      %v330 = vadd.f32 %v259, %v314
      %v331 = vadd.f32 %v260, %v314
      %v332 = vadd.f32 %v261, %v314
      %v333 = vadd.f32 %v262, %v314
      %v334 = vadd.f32 %v263, %v314
      %v335 = vadd.f32 %v264, %v314
      %v336 = vadd.f32 %v265, %v314
      %v337 = vadd.f32 %v266, %v314
      %v338 = vadd.f32 %v267, %v314
      %v339 = vadd.f32 %v268, %v314
      %v340 = vadd.f32 %v269, %v314
      %v341 = vadd.f32 %v270, %v314
      %v342 = vadd.f32 %v271, %v314
      %v343 = vadd.f32 %v272, %v314
      %v344 = vadd.f32 %v273, %v314
      %v345 = vadd.f32 %v274, %v314
      %v346 = vadd.f32 %v275, %v314
      %v347 = vadd.f32 %v276, %v314
      %v348 = vadd.f32 %v277, %v314
      %v349 = vadd.f32 %v278, %v314
      %v350 = vadd.f32 %v279, %v314
      %v351 = vadd.f32 %v280, %v314
      %v352 = vadd.f32 %v281, %v314
      %v353 = vadd.f32 %v282, %v314
      %v354 = vadd.f32 %v283, %v314
      %v355 = vadd.f32 %v284, %v314
      %v356 = vadd.f32 %v285, %v314
      %v357 = vadd.f32 %v286, %v314
      %v358 = vadd.f32 %v287, %v314
      %v359 = vadd.f32 %v288, %v314
      %v360 = vadd.f32 %v289, %v314
      %v361 = vadd.f32 %v290, %v314
      %v362 = vadd.f32 %v291, %v314
      %v363 = vadd.f32 %v292, %v314
      %v364 = vadd.f32 %v293, %v314
      %v365 = vadd.f32 %v294, %v314
      %v366 = vadd.f32 %v295, %v314
      %v367 = vadd.f32 %v296, %v314
      %v368 = vadd.f32 %v297, %v314
      %v369 = vadd.f32 %v298, %v314
      %v370 = vadd.f32 %v299, %v314
      %v371 = vadd.f32 %v300, %v314
      %v372 = vadd.f32 %v301, %v314
      %v373 = vadd.f32 %v302, %v314
      %v374 = vadd.f32 %v303, %v314
      %v375 = vadd.f32 %v304, %v314
      %v376 = vadd.f32 %v305, %v314
      %v377 = vadd.f32 %v306, %v314
      %v378 = vadd.f32 %v307, %v314
      %v379 = vadd.f32 %v308, %v314
      %vm380 = vcmask 64512
      %381 = vst.msk [vmem:[%s172] sm:$0xff] %vm380, %v316
      %382 = vst.msk [vmem:[%s172 + $0x8] sm:$0xff] %vm380, %v317
      %383 = vst.msk [vmem:[%s172 + $0x10] sm:$0xff] %vm380, %v318
      %384 = vst.msk [vmem:[%s172 + $0x18] sm:$0xff] %vm380, %v319
      %385 = vst.msk [vmem:[%s172 + $0x20] sm:$0xff] %vm380, %v320
      %386 = vst.msk [vmem:[%s172 + $0x28] sm:$0xff] %vm380, %v321
      %387 = vst.msk [vmem:[%s172 + $0x30] sm:$0xff] %vm380, %v322
      %388 = vst.msk [vmem:[%s172 + $0x38] sm:$0xff] %vm380, %v323
      %389 = vst.msk [vmem:[%s172 + $0x40] sm:$0xff] %vm380, %v324
      %390 = vst.msk [vmem:[%s172 + $0x48] sm:$0xff] %vm380, %v325
      %391 = vst.msk [vmem:[%s172 + $0x50] sm:$0xff] %vm380, %v326
      %392 = vst.msk [vmem:[%s172 + $0x58] sm:$0xff] %vm380, %v327
      %393 = vst.msk [vmem:[%s172 + $0x60] sm:$0xff] %vm380, %v328
      %394 = vst.msk [vmem:[%s172 + $0x68] sm:$0xff] %vm380, %v329
      %395 = vst.msk [vmem:[%s172 + $0x70] sm:$0xff] %vm380, %v330
      %396 = vst.msk [vmem:[%s172 + $0x78] sm:$0xff] %vm380, %v331
      %397 = vst.msk [vmem:[%s172 + $0x80] sm:$0xff] %vm380, %v332
      %398 = vst.msk [vmem:[%s172 + $0x88] sm:$0xff] %vm380, %v333
      %399 = vst.msk [vmem:[%s172 + $0x90] sm:$0xff] %vm380, %v334
      %400 = vst.msk [vmem:[%s172 + $0x98] sm:$0xff] %vm380, %v335
      %401 = vst.msk [vmem:[%s172 + $0xa0] sm:$0xff] %vm380, %v336
      %402 = vst.msk [vmem:[%s172 + $0xa8] sm:$0xff] %vm380, %v337
      %403 = vst.msk [vmem:[%s172 + $0xb0] sm:$0xff] %vm380, %v338
      %404 = vst.msk [vmem:[%s172 + $0xb8] sm:$0xff] %vm380, %v339
      %405 = vst.msk [vmem:[%s172 + $0xc0] sm:$0xff] %vm380, %v340
      %406 = vst.msk [vmem:[%s172 + $0xc8] sm:$0xff] %vm380, %v341
      %407 = vst.msk [vmem:[%s172 + $0xd0] sm:$0xff] %vm380, %v342
      %408 = vst.msk [vmem:[%s172 + $0xd8] sm:$0xff] %vm380, %v343
      %409 = vst.msk [vmem:[%s172 + $0xe0] sm:$0xff] %vm380, %v344
      %410 = vst.msk [vmem:[%s172 + $0xe8] sm:$0xff] %vm380, %v345
      %411 = vst.msk [vmem:[%s172 + $0xf0] sm:$0xff] %vm380, %v346
      %412 = vst.msk [vmem:[%s172 + $0xf8] sm:$0xff] %vm380, %v347
      %413 = vst.msk [vmem:[%s172 + $0x100] sm:$0xff] %vm380, %v348
      %414 = vst.msk [vmem:[%s172 + $0x108] sm:$0xff] %vm380, %v349
      %415 = vst.msk [vmem:[%s172 + $0x110] sm:$0xff] %vm380, %v350
      %416 = vst.msk [vmem:[%s172 + $0x118] sm:$0xff] %vm380, %v351
      %417 = vst.msk [vmem:[%s172 + $0x120] sm:$0xff] %vm380, %v352
      %418 = vst.msk [vmem:[%s172 + $0x128] sm:$0xff] %vm380, %v353
      %419 = vst.msk [vmem:[%s172 + $0x130] sm:$0xff] %vm380, %v354
      %420 = vst.msk [vmem:[%s172 + $0x138] sm:$0xff] %vm380, %v355
      %421 = vst.msk [vmem:[%s172 + $0x140] sm:$0xff] %vm380, %v356
      %422 = vst.msk [vmem:[%s172 + $0x148] sm:$0xff] %vm380, %v357
      %423 = vst.msk [vmem:[%s172 + $0x150] sm:$0xff] %vm380, %v358
      %424 = vst.msk [vmem:[%s172 + $0x158] sm:$0xff] %vm380, %v359
      %425 = vst.msk [vmem:[%s172 + $0x160] sm:$0xff] %vm380, %v360
      %426 = vst.msk [vmem:[%s172 + $0x168] sm:$0xff] %vm380, %v361
      %427 = vst.msk [vmem:[%s172 + $0x170] sm:$0xff] %vm380, %v362
      %428 = vst.msk [vmem:[%s172 + $0x178] sm:$0xff] %vm380, %v363
      %429 = vst.msk [vmem:[%s172 + $0x180] sm:$0xff] %vm380, %v364
      %430 = vst.msk [vmem:[%s172 + $0x188] sm:$0xff] %vm380, %v365
      %431 = vst.msk [vmem:[%s172 + $0x190] sm:$0xff] %vm380, %v366
      %432 = vst.msk [vmem:[%s172 + $0x198] sm:$0xff] %vm380, %v367
      %433 = vst.msk [vmem:[%s172 + $0x1a0] sm:$0xff] %vm380, %v368
      %434 = vst.msk [vmem:[%s172 + $0x1a8] sm:$0xff] %vm380, %v369
      %435 = vst.msk [vmem:[%s172 + $0x1b0] sm:$0xff] %vm380, %v370
      %436 = vst.msk [vmem:[%s172 + $0x1b8] sm:$0xff] %vm380, %v371
      %437 = vst.msk [vmem:[%s172 + $0x1c0] sm:$0xff] %vm380, %v372
      %438 = vst.msk [vmem:[%s172 + $0x1c8] sm:$0xff] %vm380, %v373
      %439 = vst.msk [vmem:[%s172 + $0x1d0] sm:$0xff] %vm380, %v374
      %440 = vst.msk [vmem:[%s172 + $0x1d8] sm:$0xff] %vm380, %v375
      %441 = vst.msk [vmem:[%s172 + $0x1e0] sm:$0xff] %vm380, %v376
      %442 = vst.msk [vmem:[%s172 + $0x1e8] sm:$0xff] %vm380, %v377
      %443 = vst.msk [vmem:[%s172 + $0x1f0] sm:$0xff] %vm380, %v378
      %444 = vst.msk [vmem:[%s172 + $0x1f8] sm:$0xff] %vm380, %v379
      %s445 = smul.u32 64, %s14
      %p446 = scmp.lt.s32.totalorder %s445, 255
      %s447 = scalar_select %p446, %s445, 255
      %s448 = smul.addr %s447, 8
      %s449 = scalar_lea.vmem %s3, %s448
      // Predicated region
      $region33: #{deconv_nn_forward.7} parent=31 // pred_check
        %p450 = pneg %p100
      $region34: #{deconv_nn_forward.7} parent=31 // pred_check_branch
        %452 = sbr.rel (%p450) target = $region36
      $region35: #{deconv_nn_forward.7} parent=31 // pred_region
        %s453 = smul.u32 64, %s14
      $region36: #{deconv_nn_forward.7} parent=31 // pred_fallthru
        _
    $region32: #{deconv_nn_forward.7} parent=5 // pred_fallthru
      _
    %p454 = scmp.le.s32.totalorder 2, %s9
    // Predicated region
    $region37: #{deconv_nn_forward.7} parent=5 // pred_check
      %p455 = pneg %p454
    $region38: #{deconv_nn_forward.7} parent=5 // pred_check_branch
      %457 = sbr.rel (%p455) target = $region40
    $region39: #{deconv_nn_forward.7} parent=5 // pred_region
      %s458 = ssub.s32 %s9, 2
      // Predicated region
      $region41: #{deconv_nn_forward.7} parent=39 // pred_check
        %p459 = pneg %p106
      $region42: #{deconv_nn_forward.7} parent=39 // pred_check_branch
        %461 = sbr.rel (%p459) target = $region44
      $region43: #{deconv_nn_forward.7} parent=39 // pred_region
        %s462 = smul.u32 64, %s15
        %p463 = scmp.lt.s32.totalorder %s462, 255
        %s464 = scalar_select %p463, %s462, 255
        %s465 = smul.addr %s464, 8
        %s466 = scalar_lea.vmem %s3, %s465
      $region44: #{deconv_nn_forward.7} parent=39 // pred_fallthru
        _
    $region40: #{deconv_nn_forward.7} parent=5 // pred_fallthru
      _
  $region6: #{deconv_nn_forward.7} parent=0 // loop_footer
    %s13 = sadd.s32 1, %s9
  $region7: #{deconv_nn_forward.7} parent=0 // loop_footer_branch
    %8 = sbr.rel target = $region3
  $region8: #{deconv_nn_forward.7} parent=0 // loop_exit
    _

// kernel: deconv_nn_forward.6
$region0: #{deconv_nn_forward.6}
  #allocation0 [shape = 'u32[]', space=smem, size = 0x4, offset = 0x4, fixed_abs, tag = 'smem constant byte address 0x4 - core index']
  #allocation1 [shape = 'u32[144,128]{1,0:T(1,128)}', space=vmem, size = 0x12000, scoped, tag = 'internal scratch']
  %s0 = inlined_call_operand.vmem [shape: bf16[2048,36], index: 0, kind: input, shape index: {}]
  %s1 = inlined_call_operand.vmem [shape: bf16[36,128], index: 1, kind: input, shape index: {}]
  %s2 = inlined_call_operand.vmem [shape: f32[1,128], index: 2, kind: input, shape index: {}]
  %s3 = inlined_call_operand.vmem [shape: f32[2048,8], index: 3, kind: output, shape index: {0}]
  %s4 = inlined_call_operand.vmem [shape: f32[32,8], index: 4, kind: output, shape index: {1}]
  %s5 = inlined_call_operand.vmem [shape: f32[32,8], index: 5, kind: output, shape index: {2}]
  %6 = xla_tuple %s3, %s4, %s5
  %s7 = sld [smem:[#allocation0]]
  $region61: #{deconv_nn_forward.6} parent=0
    _
  %s9 = ssub.s32 1, %s7
  %s10 = scalar_select 0, %s9, %s7
  loop: start=0, step=1, limit=6
  $region2: #{deconv_nn_forward.6} parent=0 // loop_pre_header
    _
  $region3: #{deconv_nn_forward.6} parent=0 // loop_header
    %s12 = sphi 0, %s16
    %p13 = scmp.ge.s32.totalorder %s12, 6
    %s22 = sphi 0, %s24
    %s25 = sphi 0, %s22
    %s26 = sphi 0, %s25
    %s42 = sphi 0, %s26
    %s46 = sphi 0, %s46
    %s48 = sphi 0, %s46
    %s49 = sphi 0, %s48
    %s63 = sphi 0, %s49
    %s67 = sphi 0, %s67
    %s69 = sphi 0, %s67
    %s70 = sphi 0, %s69
    %s84 = sphi 0, %s70
    %s90 = sphi 0, %s92
    %s93 = sphi 0, %s90
    %s94 = sphi 0, %s93
    %s110 = sphi 0, %s94
    %s116 = sphi 0, %s118
    %s119 = sphi 0, %s116
    %s120 = sphi 0, %s119
    %s136 = sphi 0, %s120
    %s142 = sphi 0, %s144
    %s145 = sphi 0, %s142
    %s146 = sphi 0, %s145
    %s162 = sphi 0, %s146
  $region4: #{deconv_nn_forward.6} parent=0 // loop_header_branch
    %15 = sbr.rel (%p13) target = $region8
  $region5: #{deconv_nn_forward.6} parent=0 // loop_body
    %s17 = ssub.s32 %s12, 1
    %s18 = ssub.s32 %s12, 2
    %s19 = sadd.s32 %s12, 1
    %s20 = ssub.s32 %s12, %s19
    %p21 = scmp.eq.s32.totalorder %s20, 0
    %s23 = sadd.s32 %s22, 1
    %s24 = scalar_select %p21, %s22, %s23
    %p27 = pneg %p21
    %p28 = scmp.eq.s32.totalorder %s12, 3
    %p29 = por %p27, %p28
    %p30 = scmp.ne.s32.totalorder %s22, %s25
    %p31 = scmp.eq.s32.totalorder %s12, 0
    %p32 = por %p30, %p31
    %p33 = scmp.ne.s32.totalorder %s22, %s25
    %p34 = scmp.eq.s32.totalorder %s17, 3
    %p35 = por %p33, %p34
    %p36 = scmp.ne.s32.totalorder %s25, %s26
    %p37 = scmp.eq.s32.totalorder %s17, 0
    %p38 = por %p36, %p37
    %p39 = scmp.ne.s32.totalorder %s25, %s26
    %p40 = scmp.eq.s32.totalorder %s18, 3
    %p41 = por %p39, %p40
    %p43 = scmp.ne.s32.totalorder %s26, %s42
    %p44 = scmp.eq.s32.totalorder %s18, 0
    %p45 = por %p43, %p44
    %s47 = sadd.s32 %s46, 1
    %p50 = scmp.eq.s32.totalorder %s12, 3
    %p51 = scmp.ne.s32.totalorder %s46, %s48
    %p52 = scmp.eq.s32.totalorder %s12, 0
    %p53 = por %p51, %p52
    %p54 = scmp.ne.s32.totalorder %s46, %s48
    %p55 = scmp.eq.s32.totalorder %s17, 3
    %p56 = por %p54, %p55
    %p57 = scmp.ne.s32.totalorder %s48, %s49
    %p58 = scmp.eq.s32.totalorder %s17, 0
    %p59 = por %p57, %p58
    %p60 = scmp.ne.s32.totalorder %s48, %s49
    %p61 = scmp.eq.s32.totalorder %s18, 3
    %p62 = por %p60, %p61
    %p64 = scmp.ne.s32.totalorder %s49, %s63
    %p65 = scmp.eq.s32.totalorder %s18, 0
    %p66 = por %p64, %p65
    %s68 = sadd.s32 %s67, 1
    %p71 = scmp.eq.s32.totalorder %s12, 3
    %p72 = scmp.ne.s32.totalorder %s67, %s69
    %p73 = scmp.eq.s32.totalorder %s12, 0
    %p74 = por %p72, %p73
    %p75 = scmp.ne.s32.totalorder %s67, %s69
    %p76 = scmp.eq.s32.totalorder %s17, 3
    %p77 = por %p75, %p76
    %p78 = scmp.ne.s32.totalorder %s69, %s70
    %p79 = scmp.eq.s32.totalorder %s17, 0
    %p80 = por %p78, %p79
    %p81 = scmp.ne.s32.totalorder %s69, %s70
    %p82 = scmp.eq.s32.totalorder %s18, 3
    %p83 = por %p81, %p82
    %p85 = scmp.ne.s32.totalorder %s70, %s84
    %p86 = scmp.eq.s32.totalorder %s18, 0
    %p87 = por %p85, %p86
    %s88 = ssub.s32 %s12, %s19
    %p89 = scmp.eq.s32.totalorder %s88, 0
    %s91 = sadd.s32 %s90, 1
    %s92 = scalar_select %p89, %s90, %s91
    %p95 = pneg %p89
    %p96 = scmp.eq.s32.totalorder %s12, 3
    %p97 = por %p95, %p96
    %p98 = scmp.ne.s32.totalorder %s90, %s93
    %p99 = scmp.eq.s32.totalorder %s12, 0
    %p100 = por %p98, %p99
    %p101 = scmp.ne.s32.totalorder %s90, %s93
    %p102 = scmp.eq.s32.totalorder %s17, 3
    %p103 = por %p101, %p102
    %p104 = scmp.ne.s32.totalorder %s93, %s94
    %p105 = scmp.eq.s32.totalorder %s17, 0
    %p106 = por %p104, %p105
    %p107 = scmp.ne.s32.totalorder %s93, %s94
    %p108 = scmp.eq.s32.totalorder %s18, 3
    %p109 = por %p107, %p108
    %p111 = scmp.ne.s32.totalorder %s94, %s110
    %p112 = scmp.eq.s32.totalorder %s18, 0
    %p113 = por %p111, %p112
    %s114 = ssub.s32 %s12, %s19
    %p115 = scmp.eq.s32.totalorder %s114, 0
    %s117 = sadd.s32 %s116, 1
    %s118 = scalar_select %p115, %s116, %s117
    %p121 = pneg %p115
    %p122 = scmp.eq.s32.totalorder %s12, 3
    %p123 = por %p121, %p122
    %p124 = scmp.ne.s32.totalorder %s116, %s119
    %p125 = scmp.eq.s32.totalorder %s12, 0
    %p126 = por %p124, %p125
    %p127 = scmp.ne.s32.totalorder %s116, %s119
    %p128 = scmp.eq.s32.totalorder %s17, 3
    %p129 = por %p127, %p128
    %p130 = scmp.ne.s32.totalorder %s119, %s120
    %p131 = scmp.eq.s32.totalorder %s17, 0
    %p132 = por %p130, %p131
    %p133 = scmp.ne.s32.totalorder %s119, %s120
    %p134 = scmp.eq.s32.totalorder %s18, 3
    %p135 = por %p133, %p134
    %p137 = scmp.ne.s32.totalorder %s120, %s136
    %p138 = scmp.eq.s32.totalorder %s18, 0
    %p139 = por %p137, %p138
    %s140 = ssub.s32 %s12, %s19
    %p141 = scmp.eq.s32.totalorder %s140, 0
    %s143 = sadd.s32 %s142, 1
    %s144 = scalar_select %p141, %s142, %s143
    %p147 = pneg %p141
    %p148 = scmp.eq.s32.totalorder %s12, 3
    %p149 = por %p147, %p148
    %p150 = scmp.ne.s32.totalorder %s142, %s145
    %p151 = scmp.eq.s32.totalorder %s12, 0
    %p152 = por %p150, %p151
    %p153 = scmp.ne.s32.totalorder %s142, %s145
    %p154 = scmp.eq.s32.totalorder %s17, 3
    %p155 = por %p153, %p154
    %p156 = scmp.ne.s32.totalorder %s145, %s146
    %p157 = scmp.eq.s32.totalorder %s17, 0
    %p158 = por %p156, %p157
    %p159 = scmp.ne.s32.totalorder %s145, %s146
    %p160 = scmp.eq.s32.totalorder %s18, 3
    %p161 = por %p159, %p160
    %p163 = scmp.ne.s32.totalorder %s146, %s162
    %p164 = scmp.eq.s32.totalorder %s18, 0
    %p165 = por %p163, %p164
    %p166 = scmp.le.s32.totalorder 1, %s12
    %p167 = scmp.lt.s32.totalorder %s12, 5
    %p168 = pnand %p166, %p167
    %p169 = pneg %p168
    // Predicated region
    $region9: #{deconv_nn_forward.6} parent=5 // pred_check
      _
    $region10: #{deconv_nn_forward.6} parent=5 // pred_check_branch
      %171 = sbr.rel (%p168) target = $region12
    $region11: #{deconv_nn_forward.6} parent=5 // pred_region
      %s172 = ssub.s32 %s12, 1
      // Predicated region
      $region13: #{deconv_nn_forward.6} parent=11 // pred_check
        %p173 = pneg %p59
      $region14: #{deconv_nn_forward.6} parent=11 // pred_check_branch
        %175 = sbr.rel (%p173) target = $region16
      $region15: #{deconv_nn_forward.6} parent=11 // pred_region
        _
      $region16: #{deconv_nn_forward.6} parent=11 // pred_fallthru
        _
      // Predicated region
      $region17: #{deconv_nn_forward.6} parent=11 // pred_check
        %p176 = pneg %p80
      $region18: #{deconv_nn_forward.6} parent=11 // pred_check_branch
        %178 = sbr.rel (%p176) target = $region20
      $region19: #{deconv_nn_forward.6} parent=11 // pred_region
        _
      $region20: #{deconv_nn_forward.6} parent=11 // pred_fallthru
        _
    $region12: #{deconv_nn_forward.6} parent=5 // pred_fallthru
      _
    %p179 = scmp.lt.s32.totalorder %s12, 4
    // Predicated region
    $region21: #{deconv_nn_forward.6} parent=5 // pred_check
      %p180 = pneg %p179
    $region22: #{deconv_nn_forward.6} parent=5 // pred_check_branch
      %182 = sbr.rel (%p180) target = $region24
    $region23: #{deconv_nn_forward.6} parent=5 // pred_region
      // Predicated region
      $region25: #{deconv_nn_forward.6} parent=23 // pred_check
        %p183 = pneg %p32
      $region26: #{deconv_nn_forward.6} parent=23 // pred_check_branch
        %185 = sbr.rel (%p183) target = $region28
      $region27: #{deconv_nn_forward.6} parent=23 // pred_region
        %s186 = smul.u32 64, %s12
        %p187 = scmp.lt.s32.totalorder %s186, 255
        %s188 = scalar_select %p187, %s186, 255
        %s189 = smul.addr %s188, 4
        %s190 = scalar_lea.vmem %s0, %s189
        %s191 = smul.u32 64, %s12
      $region28: #{deconv_nn_forward.6} parent=23 // pred_fallthru
        _
    $region24: #{deconv_nn_forward.6} parent=5 // pred_fallthru
      _
    %p192 = scmp.le.s32.totalorder 1, %s12
    %p193 = scmp.lt.s32.totalorder %s12, 5
    %p194 = pnand %p192, %p193
    %p195 = pneg %p194
    // Predicated region
    $region29: #{deconv_nn_forward.6} parent=5 // pred_check
      _
    $region30: #{deconv_nn_forward.6} parent=5 // pred_check_branch
      %197 = sbr.rel (%p194) target = $region32
    $region31: #{deconv_nn_forward.6} parent=5 // pred_region
      %s198 = ssub.s32 %s12, 1
      %s199 = smul.u32 64, %s17
      %p200 = scmp.lt.s32.totalorder %s199, 255
      %s201 = scalar_select %p200, %s199, 255
      %s202 = smul.addr %s201, 4
      %s203 = scalar_lea.vmem %s0, %s202
      %p204 = pneg %p38
      %p205 = pneg %p35
      %p206 = pneg %p59
      %p207 = pneg %p56
      %p208 = pneg %p80
      %p209 = pneg %p77
      %p210 = pneg %p106
      %p211 = pneg %p103
      %s212 = smul.u32 64, %s17
      %p213 = scmp.lt.s32.totalorder %s212, 255
      %s214 = scalar_select %p213, %s212, 255
      %s215 = smul.addr %s214, 8
      %s216 = scalar_lea.vmem %s3, %s215
      %p217 = pneg %p132
      %p218 = pneg %p129
      %p219 = scmp.lt.s32.totalorder %s17, 3
      %s220 = scalar_select %p219, %s17, 3
      %s221 = smul.addr %s220, 8
      %s222 = scalar_lea.vmem %s4, %s221
      %p223 = pneg %p158
      %p224 = pneg %p155
      %p225 = scmp.lt.s32.totalorder %s17, 3
      %s226 = scalar_select %p225, %s17, 3
      %s227 = smul.addr %s226, 8
      %s228 = scalar_lea.vmem %s5, %s227
      %s229 = smul.u32 64, %s17
      %p230 = scmp.lt.s32.totalorder %s229, 255
      %s231 = scalar_select %p230, %s229, 255
      %s232 = smul.addr %s231, 4
      %s233 = scalar_lea.vmem %s0, %s232
      %s234 = smul.u32 64, %s17
      %s235 = smul.u32 64, %s17
      %p236 = scmp.lt.s32.totalorder %s235, 255
      %s237 = scalar_select %p236, %s235, 255
      %s238 = smul.addr %s237, 8
      %s239 = scalar_lea.vmem %s3, %s238
      %s240 = smul.u32 64, %s17
      %p241 = scmp.lt.s32.totalorder %s17, 3
      %s242 = scalar_select %p241, %s17, 3
      %s243 = smul.addr %s242, 8
      %s244 = scalar_lea.vmem %s4, %s243
      %p245 = scmp.lt.s32.totalorder %s17, 3
      %s246 = scalar_select %p245, %s17, 3
      %s247 = smul.addr %s246, 8
      %s248 = scalar_lea.vmem %s5, %s247
      %v250 = vld [vmem:[%s233] sm:$0xf]
      %v251 = vld [vmem:[%s233 + $0x4] sm:$0xf]
      %v252 = vld [vmem:[%s233 + $0x8] sm:$0xf]
      %v253 = vld [vmem:[%s233 + $0xc] sm:$0xf]
      %v254 = vld [vmem:[%s233 + $0x10] sm:$0xf]
      %v255 = vld [vmem:[%s233 + $0x14] sm:$0xf]
      %v256 = vld [vmem:[%s233 + $0x18] sm:$0xf]
      %v257 = vld [vmem:[%s233 + $0x1c] sm:$0xf]
      %v258 = vld [vmem:[%s233 + $0x20] sm:$0xf]
      %v259 = vld [vmem:[%s233 + $0x24] sm:$0xf]
      %v260 = vld [vmem:[%s233 + $0x28] sm:$0xf]
      %v261 = vld [vmem:[%s233 + $0x2c] sm:$0xf]
      %v262 = vld [vmem:[%s233 + $0x30] sm:$0xf]
      %v263 = vld [vmem:[%s233 + $0x34] sm:$0xf]
      %v264 = vld [vmem:[%s233 + $0x38] sm:$0xf]
      %v265 = vld [vmem:[%s233 + $0x3c] sm:$0xf]
      %v266 = vld [vmem:[%s233 + $0x40] sm:$0xf]
      %v267 = vld [vmem:[%s233 + $0x44] sm:$0xf]
      %v268 = vld [vmem:[%s233 + $0x48] sm:$0xf]
      %v269 = vld [vmem:[%s233 + $0x4c] sm:$0xf]
      %v270 = vld [vmem:[%s233 + $0x50] sm:$0xf]
      %v271 = vld [vmem:[%s233 + $0x54] sm:$0xf]
      %v272 = vld [vmem:[%s233 + $0x58] sm:$0xf]
      %v273 = vld [vmem:[%s233 + $0x5c] sm:$0xf]
      %v274 = vld [vmem:[%s233 + $0x60] sm:$0xf]
      %v275 = vld [vmem:[%s233 + $0x64] sm:$0xf]
      %v276 = vld [vmem:[%s233 + $0x68] sm:$0xf]
      %v277 = vld [vmem:[%s233 + $0x6c] sm:$0xf]
      %v278 = vld [vmem:[%s233 + $0x70] sm:$0xf]
      %v279 = vld [vmem:[%s233 + $0x74] sm:$0xf]
      %v280 = vld [vmem:[%s233 + $0x78] sm:$0xf]
      %v281 = vld [vmem:[%s233 + $0x7c] sm:$0xf]
      %v282 = vld [vmem:[%s233 + $0x80] sm:$0xf]
      %v283 = vld [vmem:[%s233 + $0x84] sm:$0xf]
      %v284 = vld [vmem:[%s233 + $0x88] sm:$0xf]
      %v285 = vld [vmem:[%s233 + $0x8c] sm:$0xf]
      %v286 = vld [vmem:[%s233 + $0x90] sm:$0xf]
      %v287 = vld [vmem:[%s233 + $0x94] sm:$0xf]
      %v288 = vld [vmem:[%s233 + $0x98] sm:$0xf]
      %v289 = vld [vmem:[%s233 + $0x9c] sm:$0xf]
      %v290 = vld [vmem:[%s233 + $0xa0] sm:$0xf]
      %v291 = vld [vmem:[%s233 + $0xa4] sm:$0xf]
      %v292 = vld [vmem:[%s233 + $0xa8] sm:$0xf]
      %v293 = vld [vmem:[%s233 + $0xac] sm:$0xf]
      %v294 = vld [vmem:[%s233 + $0xb0] sm:$0xf]
      %v295 = vld [vmem:[%s233 + $0xb4] sm:$0xf]
      %v296 = vld [vmem:[%s233 + $0xb8] sm:$0xf]
      %v297 = vld [vmem:[%s233 + $0xbc] sm:$0xf]
      %v298 = vld [vmem:[%s233 + $0xc0] sm:$0xf]
      %v299 = vld [vmem:[%s233 + $0xc4] sm:$0xf]
      %v300 = vld [vmem:[%s233 + $0xc8] sm:$0xf]
      %v301 = vld [vmem:[%s233 + $0xcc] sm:$0xf]
      %v302 = vld [vmem:[%s233 + $0xd0] sm:$0xf]
      %v303 = vld [vmem:[%s233 + $0xd4] sm:$0xf]
      %v304 = vld [vmem:[%s233 + $0xd8] sm:$0xf]
      %v305 = vld [vmem:[%s233 + $0xdc] sm:$0xf]
      %v306 = vld [vmem:[%s233 + $0xe0] sm:$0xf]
      %v307 = vld [vmem:[%s233 + $0xe4] sm:$0xf]
      %v308 = vld [vmem:[%s233 + $0xe8] sm:$0xf]
      %v309 = vld [vmem:[%s233 + $0xec] sm:$0xf]
      %v310 = vld [vmem:[%s233 + $0xf0] sm:$0xf]
      %v311 = vld [vmem:[%s233 + $0xf4] sm:$0xf]
      %v312 = vld [vmem:[%s233 + $0xf8] sm:$0xf]
      %v313 = vld [vmem:[%s233 + $0xfc] sm:$0xf]
      %v314 = vld [vmem:[%s1] sm:$0xf]
      %v315 = vld [vmem:[%s1 + $0x4] sm:$0xf]
      %v316 = vld [vmem:[%s1 + $0x8] sm:$0xf]
      %v317 = vld [vmem:[%s1 + $0xc] sm:$0xf]
      %v318 = vld [vmem:[%s1 + $0x10] sm:$0x3]
      %v319 = vld [vmem:[%s2] sm:$0x1]
      %v321 = vlaneseq
      %v322 = vshrl.u32 %v321, 7
      %v323 = vsub.s32 0, %v322
      %v324 = vrot.slane %v319, %v323
      %v390 = vunpack.c.l.b16 %v250
      %v391 = vunpack.c.l.b16 %v251
      %v392 = vunpack.c.l.b16 %v252
      %v393 = vunpack.c.l.b16 %v253
      %v394 = vunpack.c.l.b16 %v254
      %v395 = vunpack.c.l.b16 %v255
      %v396 = vunpack.c.l.b16 %v256
      %v397 = vunpack.c.l.b16 %v257
      %v398 = vunpack.c.l.b16 %v258
      %v399 = vunpack.c.l.b16 %v259
      %v400 = vunpack.c.l.b16 %v260
      %v401 = vunpack.c.l.b16 %v261
      %v402 = vunpack.c.l.b16 %v262
      %v403 = vunpack.c.l.b16 %v263
      %v404 = vunpack.c.l.b16 %v264
      %v405 = vunpack.c.l.b16 %v265
      %v406 = vunpack.c.l.b16 %v266
      %v407 = vunpack.c.l.b16 %v267
      %v408 = vunpack.c.l.b16 %v268
      %v409 = vunpack.c.l.b16 %v269
      %v410 = vunpack.c.l.b16 %v270
      %v411 = vunpack.c.l.b16 %v271
      %v412 = vunpack.c.l.b16 %v272
      %v413 = vunpack.c.l.b16 %v273
      %v414 = vunpack.c.l.b16 %v274
      %v415 = vunpack.c.l.b16 %v275
      %v416 = vunpack.c.l.b16 %v276
      %v417 = vunpack.c.l.b16 %v277
      %v418 = vunpack.c.l.b16 %v278
      %v419 = vunpack.c.l.b16 %v279
      %v420 = vunpack.c.l.b16 %v280
      %v421 = vunpack.c.l.b16 %v281
      %v422 = vunpack.c.l.b16 %v282
      %v423 = vunpack.c.l.b16 %v283
      %v424 = vunpack.c.l.b16 %v284
      %v425 = vunpack.c.l.b16 %v285
      %v426 = vunpack.c.l.b16 %v286
      %v427 = vunpack.c.l.b16 %v287
      %v428 = vunpack.c.l.b16 %v288
      %v429 = vunpack.c.l.b16 %v289
      %v430 = vunpack.c.l.b16 %v290
      %v431 = vunpack.c.l.b16 %v291
      %v432 = vunpack.c.l.b16 %v292
      %v433 = vunpack.c.l.b16 %v293
      %v434 = vunpack.c.l.b16 %v294
      %v435 = vunpack.c.l.b16 %v295
      %v436 = vunpack.c.l.b16 %v296
      %v437 = vunpack.c.l.b16 %v297
      %v438 = vunpack.c.l.b16 %v298
      %v439 = vunpack.c.l.b16 %v299
      %v440 = vunpack.c.l.b16 %v300
      %v441 = vunpack.c.l.b16 %v301
      %v442 = vunpack.c.l.b16 %v302
      %v443 = vunpack.c.l.b16 %v303
      %v444 = vunpack.c.l.b16 %v304
      %v445 = vunpack.c.l.b16 %v305
      %v446 = vunpack.c.l.b16 %v306
      %v447 = vunpack.c.l.b16 %v307
      %v448 = vunpack.c.l.b16 %v308
      %v449 = vunpack.c.l.b16 %v309
      %v450 = vunpack.c.l.b16 %v310
      %v451 = vunpack.c.l.b16 %v311
      %v452 = vunpack.c.l.b16 %v312
      %v453 = vunpack.c.l.b16 %v313
      %v454 = vpack.c.b16 %v391, %v390
      %v455 = vpack.c.b16 %v393, %v392
      %v456 = vpack.c.b16 %v395, %v394
      %v457 = vpack.c.b16 %v397, %v396
      %v458 = vpack.c.b16 %v399, %v398
      %v459 = vpack.c.b16 %v401, %v400
      %v460 = vpack.c.b16 %v403, %v402
      %v461 = vpack.c.b16 %v405, %v404
      %v462 = vpack.c.b16 %v407, %v406
      %v463 = vpack.c.b16 %v409, %v408
      %v464 = vpack.c.b16 %v411, %v410
      %v465 = vpack.c.b16 %v413, %v412
      %v466 = vpack.c.b16 %v415, %v414
      %v467 = vpack.c.b16 %v417, %v416
      %v468 = vpack.c.b16 %v419, %v418
      %v469 = vpack.c.b16 %v421, %v420
      %v470 = vpack.c.b16 %v423, %v422
      %v471 = vpack.c.b16 %v425, %v424
      %v472 = vpack.c.b16 %v427, %v426
      %v473 = vpack.c.b16 %v429, %v428
      %v474 = vpack.c.b16 %v431, %v430
      %v475 = vpack.c.b16 %v433, %v432
      %v476 = vpack.c.b16 %v435, %v434
      %v477 = vpack.c.b16 %v437, %v436
      %v478 = vpack.c.b16 %v439, %v438
      %v479 = vpack.c.b16 %v441, %v440
      %v480 = vpack.c.b16 %v443, %v442
      %v481 = vpack.c.b16 %v445, %v444
      %v482 = vpack.c.b16 %v447, %v446
      %v483 = vpack.c.b16 %v449, %v448
      %v484 = vpack.c.b16 %v451, %v450
      %v485 = vpack.c.b16 %v453, %v452
      %v491 = vunpack.c.l.b16 %v314
      %v492 = vunpack.c.l.b16 %v315
      %v493 = vunpack.c.l.b16 %v316
      %v494 = vunpack.c.l.b16 %v317
      %v495 = vunpack.c.l.b16 %v318
      %v496 = vpack.c.b16 %v492, %v491
      %v497 = vpack.c.b16 %v494, %v493
      %v498 = vpack.c.b16 %v495, %v495
      %vm501 = vcmask 293888
      %v503 = vsel %vm501, %v454, 0
      %v506 = vsel %vm501, %v455, 0
      %v509 = vsel %vm501, %v456, 0
      %v512 = vsel %vm501, %v457, 0
      %v515 = vsel %vm501, %v458, 0
      %v518 = vsel %vm501, %v459, 0
      %v521 = vsel %vm501, %v460, 0
      %v524 = vsel %vm501, %v461, 0
      %v527 = vsel %vm501, %v462, 0
      %v530 = vsel %vm501, %v463, 0
      %v533 = vsel %vm501, %v464, 0
      %v536 = vsel %vm501, %v465, 0
      %v539 = vsel %vm501, %v466, 0
      %v542 = vsel %vm501, %v467, 0
      %v545 = vsel %vm501, %v468, 0
      %v548 = vsel %vm501, %v469, 0
      %v551 = vsel %vm501, %v470, 0
      %v554 = vsel %vm501, %v471, 0
      %v557 = vsel %vm501, %v472, 0
      %v560 = vsel %vm501, %v473, 0
      %v563 = vsel %vm501, %v474, 0
      %v566 = vsel %vm501, %v475, 0
      %v569 = vsel %vm501, %v476, 0
      %v572 = vsel %vm501, %v477, 0
      %v575 = vsel %vm501, %v478, 0
      %v578 = vsel %vm501, %v479, 0
      %v581 = vsel %vm501, %v480, 0
      %v584 = vsel %vm501, %v481, 0
      %v587 = vsel %vm501, %v482, 0
      %v590 = vsel %vm501, %v483, 0
      %v593 = vsel %vm501, %v484, 0
      %v596 = vsel %vm501, %v485, 0
      %vm598 = vcmask 1041408
      %v600 = vsel %vm598, %v498, 0
      %602 = vmatprep.subr.bf16.mxu0 0
      %603 = vmatpush1.bf16.msra.mxu0 %v496
      %604 = vmatprep.subr.bf16.mxu0 0
      %605 = vmatpush1.bf16.msra.mxu0 %v497
      %606 = vmatprep.subr.bf16.mxu0 0
      %607 = vmatpush1.bf16.msra.mxu0 %v600
      %608 = vmatprep.subr.bf16.mxu0 0
      %609 = vmatpush1.bf16.msra.mxu0 0
      %610 = vmatprep.subr.bf16.mxu0 0
      %611 = vmatpush1.bf16.msra.mxu0 0
      %612 = vmatprep.subr.bf16.mxu0 0
      %613 = vmatpush1.bf16.msra.mxu0 0
      %614 = vmatprep.subr.bf16.mxu0 0
      %615 = vmatpush1.bf16.msra.mxu0 0
      %616 = vmatprep.subr.bf16.mxu0 0
      %617 = vmatpush1.bf16.msra.mxu0 0
      %618 = vmatprep.subr.bf16.mxu0 0
      %619 = vmatpush1.bf16.msra.mxu0 0
      %620 = vmatprep.subr.bf16.mxu0 0
      %621 = vmatpush1.bf16.msra.mxu0 0
      %622 = vmatprep.subr.bf16.mxu0 0
      %623 = vmatpush1.bf16.msra.mxu0 0
      %624 = vmatprep.subr.bf16.mxu0 0
      %625 = vmatpush1.bf16.msra.mxu0 0
      %626 = vmatprep.subr.bf16.mxu0 0
      %627 = vmatpush1.bf16.msra.mxu0 0
      %628 = vmatprep.subr.bf16.mxu0 0
      %629 = vmatpush1.bf16.msra.mxu0 0
      %630 = vmatprep.subr.bf16.mxu0 0
      %631 = vmatpush1.bf16.msra.mxu0 0
      %632 = vmatprep.subr.bf16.mxu0 0
      %633 = vmatpush1.bf16.msra.mxu0 0
      %634 = vmatprep.mubr.bf16.mxu0 0
      %635 = vmatmul.mubr.bf16.gmra.mrb[0].mxu0 %v503
      %v636 = vpop.f32.mrb[0].mxu0
      %v637 = vadd.f32 %v324, %v636
      %v638 = vpop.f32.mrb[0].mxu0
      %v639 = vpop.f32.mrb[0].mxu0
      %v640 = vadd.f32 %v324, %v639
      %v641 = vpop.f32.mrb[0].mxu0
      %642 = vmatprep.mubr.bf16.mxu0 0
      %643 = vmatmul.mubr.bf16.gmra.mrb[0].mxu0 %v506
      %v644 = vpop.f32.mrb[0].mxu0
      %v645 = vadd.f32 %v324, %v644
      %v646 = vpop.f32.mrb[0].mxu0
      %v647 = vpop.f32.mrb[0].mxu0
      %v648 = vadd.f32 %v324, %v647
      %v649 = vpop.f32.mrb[0].mxu0
      %650 = vmatprep.mubr.bf16.mxu0 0
      %651 = vmatmul.mubr.bf16.gmra.mrb[0].mxu0 %v509
      %v652 = vpop.f32.mrb[0].mxu0
      %v653 = vadd.f32 %v324, %v652
      %v654 = vpop.f32.mrb[0].mxu0
      %v655 = vpop.f32.mrb[0].mxu0
      %v656 = vadd.f32 %v324, %v655
      %v657 = vpop.f32.mrb[0].mxu0
      %658 = vmatprep.mubr.bf16.mxu0 0
      %659 = vmatmul.mubr.bf16.gmra.mrb[0].mxu0 %v512
      %v660 = vpop.f32.mrb[0].mxu0
      %v661 = vadd.f32 %v324, %v660
      %v662 = vpop.f32.mrb[0].mxu0
      %v663 = vpop.f32.mrb[0].mxu0
      %v664 = vadd.f32 %v324, %v663
      %v665 = vpop.f32.mrb[0].mxu0
      %666 = vmatprep.mubr.bf16.mxu0 0
      %667 = vmatmul.mubr.bf16.gmra.mrb[0].mxu0 %v515
      %v668 = vpop.f32.mrb[0].mxu0
      %v669 = vadd.f32 %v324, %v668
      %v670 = vpop.f32.mrb[0].mxu0
      %v671 = vpop.f32.mrb[0].mxu0
      %v672 = vadd.f32 %v324, %v671
      %v673 = vpop.f32.mrb[0].mxu0
      %674 = vmatprep.mubr.bf16.mxu0 0
      %675 = vmatmul.mubr.bf16.gmra.mrb[0].mxu0 %v518
      %v676 = vpop.f32.mrb[0].mxu0
      %v677 = vadd.f32 %v324, %v676
      %v678 = vpop.f32.mrb[0].mxu0
      %v679 = vpop.f32.mrb[0].mxu0
      %v680 = vadd.f32 %v324, %v679
      %v681 = vpop.f32.mrb[0].mxu0
      %682 = vmatprep.mubr.bf16.mxu0 0
      %683 = vmatmul.mubr.bf16.gmra.mrb[0].mxu0 %v521
      %v684 = vpop.f32.mrb[0].mxu0
      %v685 = vadd.f32 %v324, %v684
      %v686 = vpop.f32.mrb[0].mxu0
      %v687 = vpop.f32.mrb[0].mxu0
      %v688 = vadd.f32 %v324, %v687
      %v689 = vpop.f32.mrb[0].mxu0
      %690 = vmatprep.mubr.bf16.mxu0 0
      %691 = vmatmul.mubr.bf16.gmra.mrb[0].mxu0 %v524
      %v692 = vpop.f32.mrb[0].mxu0
      %v693 = vadd.f32 %v324, %v692
      %v694 = vpop.f32.mrb[0].mxu0
      %v695 = vpop.f32.mrb[0].mxu0
      %v696 = vadd.f32 %v324, %v695
      %v697 = vpop.f32.mrb[0].mxu0
      %698 = vmatprep.mubr.bf16.mxu0 0
      %699 = vmatmul.mubr.bf16.gmra.mrb[0].mxu0 %v527
      %v700 = vpop.f32.mrb[0].mxu0
      %v701 = vadd.f32 %v324, %v700
      %v702 = vpop.f32.mrb[0].mxu0
      %v703 = vpop.f32.mrb[0].mxu0
      %v704 = vadd.f32 %v324, %v703
      %v705 = vpop.f32.mrb[0].mxu0
      %706 = vmatprep.mubr.bf16.mxu0 0
      %707 = vmatmul.mubr.bf16.gmra.mrb[0].mxu0 %v530
      %v708 = vpop.f32.mrb[0].mxu0
      %v709 = vadd.f32 %v324, %v708
      %v710 = vpop.f32.mrb[0].mxu0
      %v711 = vpop.f32.mrb[0].mxu0
      %v712 = vadd.f32 %v324, %v711
      %v713 = vpop.f32.mrb[0].mxu0
      %714 = vmatprep.mubr.bf16.mxu0 0
      %715 = vmatmul.mubr.bf16.gmra.mrb[0].mxu0 %v533
      %v716 = vpop.f32.mrb[0].mxu0
      %v717 = vadd.f32 %v324, %v716
      %v718 = vpop.f32.mrb[0].mxu0
      %v719 = vpop.f32.mrb[0].mxu0
      %v720 = vadd.f32 %v324, %v719
      %v721 = vpop.f32.mrb[0].mxu0
      %722 = vmatprep.mubr.bf16.mxu0 0
      %723 = vmatmul.mubr.bf16.gmra.mrb[0].mxu0 %v536
      %v724 = vpop.f32.mrb[0].mxu0
      %v725 = vadd.f32 %v324, %v724
      %v726 = vpop.f32.mrb[0].mxu0
      %v727 = vpop.f32.mrb[0].mxu0
      %v728 = vadd.f32 %v324, %v727
      %v729 = vpop.f32.mrb[0].mxu0
      %730 = vmatprep.mubr.bf16.mxu0 0
      %731 = vmatmul.mubr.bf16.gmra.mrb[0].mxu0 %v539
      %v732 = vpop.f32.mrb[0].mxu0
      %v733 = vadd.f32 %v324, %v732
      %v734 = vpop.f32.mrb[0].mxu0
      %v735 = vpop.f32.mrb[0].mxu0
      %v736 = vadd.f32 %v324, %v735
      %v737 = vpop.f32.mrb[0].mxu0
      %738 = vmatprep.mubr.bf16.mxu0 0
      %739 = vmatmul.mubr.bf16.gmra.mrb[0].mxu0 %v542
      %v740 = vpop.f32.mrb[0].mxu0
      %v741 = vadd.f32 %v324, %v740
      %v742 = vpop.f32.mrb[0].mxu0
      %v743 = vpop.f32.mrb[0].mxu0
      %v744 = vadd.f32 %v324, %v743
      %v745 = vpop.f32.mrb[0].mxu0
      %746 = vmatprep.mubr.bf16.mxu0 0
      %747 = vmatmul.mubr.bf16.gmra.mrb[0].mxu0 %v545
      %v748 = vpop.f32.mrb[0].mxu0
      %v749 = vadd.f32 %v324, %v748
      %v750 = vpop.f32.mrb[0].mxu0
      %v751 = vpop.f32.mrb[0].mxu0
      %v752 = vadd.f32 %v324, %v751
      %v753 = vpop.f32.mrb[0].mxu0
      %754 = vmatprep.mubr.bf16.mxu0 0
      %755 = vmatmul.mubr.bf16.gmra.mrb[0].mxu0 %v548
      %v756 = vpop.f32.mrb[0].mxu0
      %v757 = vadd.f32 %v324, %v756
      %v758 = vpop.f32.mrb[0].mxu0
      %v759 = vpop.f32.mrb[0].mxu0
      %v760 = vadd.f32 %v324, %v759
      %v761 = vpop.f32.mrb[0].mxu0
      %762 = vmatprep.mubr.bf16.mxu0 0
      %763 = vmatmul.mubr.bf16.gmra.mrb[0].mxu0 %v551
      %v764 = vpop.f32.mrb[0].mxu0
      %v765 = vadd.f32 %v324, %v764
      %v766 = vpop.f32.mrb[0].mxu0
      %v767 = vpop.f32.mrb[0].mxu0
      %v768 = vadd.f32 %v324, %v767
      %v769 = vpop.f32.mrb[0].mxu0
      %770 = vmatprep.mubr.bf16.mxu0 0
      %771 = vmatmul.mubr.bf16.gmra.mrb[0].mxu0 %v554
      %v772 = vpop.f32.mrb[0].mxu0
      %v773 = vadd.f32 %v324, %v772
      %v774 = vpop.f32.mrb[0].mxu0
      %v775 = vpop.f32.mrb[0].mxu0
      %v776 = vadd.f32 %v324, %v775
      %v777 = vpop.f32.mrb[0].mxu0
      %778 = vmatprep.mubr.bf16.mxu0 0
      %779 = vmatmul.mubr.bf16.gmra.mrb[0].mxu0 %v557
      %v780 = vpop.f32.mrb[0].mxu0
      %v781 = vadd.f32 %v324, %v780
      %v782 = vpop.f32.mrb[0].mxu0
      %v783 = vpop.f32.mrb[0].mxu0
      %v784 = vadd.f32 %v324, %v783
      %v785 = vpop.f32.mrb[0].mxu0
      %786 = vmatprep.mubr.bf16.mxu0 0
      %787 = vmatmul.mubr.bf16.gmra.mrb[0].mxu0 %v560
      %v788 = vpop.f32.mrb[0].mxu0
      %v789 = vadd.f32 %v324, %v788
      %v790 = vpop.f32.mrb[0].mxu0
      %v791 = vpop.f32.mrb[0].mxu0
      %v792 = vadd.f32 %v324, %v791
      %v793 = vpop.f32.mrb[0].mxu0
      %794 = vmatprep.mubr.bf16.mxu0 0
      %795 = vmatmul.mubr.bf16.gmra.mrb[0].mxu0 %v563
      %v796 = vpop.f32.mrb[0].mxu0
      %v797 = vadd.f32 %v324, %v796
      %v798 = vpop.f32.mrb[0].mxu0
      %v799 = vpop.f32.mrb[0].mxu0
      %v800 = vadd.f32 %v324, %v799
      %v801 = vpop.f32.mrb[0].mxu0
      %802 = vmatprep.mubr.bf16.mxu0 0
      %803 = vmatmul.mubr.bf16.gmra.mrb[0].mxu0 %v566
      %v804 = vpop.f32.mrb[0].mxu0
      %v805 = vadd.f32 %v324, %v804
      %v806 = vpop.f32.mrb[0].mxu0
      %v807 = vpop.f32.mrb[0].mxu0
      %v808 = vadd.f32 %v324, %v807
      %v809 = vpop.f32.mrb[0].mxu0
      %810 = vmatprep.mubr.bf16.mxu0 0
      %811 = vmatmul.mubr.bf16.gmra.mrb[0].mxu0 %v569
      %v812 = vpop.f32.mrb[0].mxu0
      %v813 = vadd.f32 %v324, %v812
      %v814 = vpop.f32.mrb[0].mxu0
      %v815 = vpop.f32.mrb[0].mxu0
      %v816 = vadd.f32 %v324, %v815
      %v817 = vpop.f32.mrb[0].mxu0
      %818 = vmatprep.mubr.bf16.mxu0 0
      %819 = vmatmul.mubr.bf16.gmra.mrb[0].mxu0 %v572
      %v820 = vpop.f32.mrb[0].mxu0
      %v821 = vadd.f32 %v324, %v820
      %v822 = vpop.f32.mrb[0].mxu0
      %v823 = vpop.f32.mrb[0].mxu0
      %v824 = vadd.f32 %v324, %v823
      %v825 = vpop.f32.mrb[0].mxu0
      %826 = vmatprep.mubr.bf16.mxu0 0
      %827 = vmatmul.mubr.bf16.gmra.mrb[0].mxu0 %v575
      %v828 = vpop.f32.mrb[0].mxu0
      %v829 = vadd.f32 %v324, %v828
      %v830 = vpop.f32.mrb[0].mxu0
      %v831 = vpop.f32.mrb[0].mxu0
      %v832 = vadd.f32 %v324, %v831
      %v833 = vpop.f32.mrb[0].mxu0
      %834 = vmatprep.mubr.bf16.mxu0 0
      %835 = vmatmul.mubr.bf16.gmra.mrb[0].mxu0 %v578
      %v836 = vpop.f32.mrb[0].mxu0
      %v837 = vadd.f32 %v324, %v836
      %v838 = vpop.f32.mrb[0].mxu0
      %v839 = vpop.f32.mrb[0].mxu0
      %v840 = vadd.f32 %v324, %v839
      %v841 = vpop.f32.mrb[0].mxu0
      %842 = vmatprep.mubr.bf16.mxu0 0
      %843 = vmatmul.mubr.bf16.gmra.mrb[0].mxu0 %v581
      %v844 = vpop.f32.mrb[0].mxu0
      %v845 = vadd.f32 %v324, %v844
      %v846 = vpop.f32.mrb[0].mxu0
      %v847 = vpop.f32.mrb[0].mxu0
      %v848 = vadd.f32 %v324, %v847
      %v849 = vpop.f32.mrb[0].mxu0
      %850 = vmatprep.mubr.bf16.mxu0 0
      %851 = vmatmul.mubr.bf16.gmra.mrb[0].mxu0 %v584
      %v852 = vpop.f32.mrb[0].mxu0
      %v853 = vadd.f32 %v324, %v852
      %v854 = vpop.f32.mrb[0].mxu0
      %v855 = vpop.f32.mrb[0].mxu0
      %v856 = vadd.f32 %v324, %v855
      %v857 = vpop.f32.mrb[0].mxu0
      %858 = vmatprep.mubr.bf16.mxu0 0
      %859 = vmatmul.mubr.bf16.gmra.mrb[0].mxu0 %v587
      %v860 = vpop.f32.mrb[0].mxu0
      %v861 = vadd.f32 %v324, %v860
      %v862 = vpop.f32.mrb[0].mxu0
      %v863 = vpop.f32.mrb[0].mxu0
      %v864 = vadd.f32 %v324, %v863
      %v865 = vpop.f32.mrb[0].mxu0
      %866 = vmatprep.mubr.bf16.mxu0 0
      %867 = vmatmul.mubr.bf16.gmra.mrb[0].mxu0 %v590
      %v868 = vpop.f32.mrb[0].mxu0
      %v869 = vadd.f32 %v324, %v868
      %v870 = vpop.f32.mrb[0].mxu0
      %v871 = vpop.f32.mrb[0].mxu0
      %v872 = vadd.f32 %v324, %v871
      %v873 = vpop.f32.mrb[0].mxu0
      %874 = vmatprep.mubr.bf16.mxu0 0
      %875 = vmatmul.mubr.bf16.gmra.mrb[0].mxu0 %v593
      %v876 = vpop.f32.mrb[0].mxu0
      %v877 = vadd.f32 %v324, %v876
      %v878 = vpop.f32.mrb[0].mxu0
      %v879 = vpop.f32.mrb[0].mxu0
      %v880 = vadd.f32 %v324, %v879
      %v881 = vpop.f32.mrb[0].mxu0
      %882 = vmatprep.mubr.bf16.mxu0 0
      %883 = vmatmul.mubr.bf16.gmra.mrb[0].mxu0 %v596
      %v884 = vpop.f32.mrb[0].mxu0
      %v885 = vadd.f32 %v324, %v884
      %v886 = vpop.f32.mrb[0].mxu0
      %v887 = vpop.f32.mrb[0].mxu0
      %v888 = vadd.f32 %v324, %v887
      %v889 = vpop.f32.mrb[0].mxu0
      %890 = vdwg.mxu0
      %v891 = vmax.f32 %v637, 0.0
      %v892 = vmax.f32 %v640, 0.0
      %v893 = vmax.f32 %v645, 0.0
      %v894 = vmax.f32 %v648, 0.0
      %v895 = vmax.f32 %v653, 0.0
      %v896 = vmax.f32 %v656, 0.0
      %v897 = vmax.f32 %v661, 0.0
      %v898 = vmax.f32 %v664, 0.0
      %v899 = vmax.f32 %v669, 0.0
      %v900 = vmax.f32 %v672, 0.0
      %v901 = vmax.f32 %v677, 0.0
      %v902 = vmax.f32 %v680, 0.0
      %v903 = vmax.f32 %v685, 0.0
      %v904 = vmax.f32 %v688, 0.0
      %v905 = vmax.f32 %v693, 0.0
      %v906 = vmax.f32 %v696, 0.0
      %v907 = vmax.f32 %v701, 0.0
      %v908 = vmax.f32 %v704, 0.0
      %v909 = vmax.f32 %v709, 0.0
      %v910 = vmax.f32 %v712, 0.0
      %v911 = vmax.f32 %v717, 0.0
      %v912 = vmax.f32 %v720, 0.0
      %v913 = vmax.f32 %v725, 0.0
      %v914 = vmax.f32 %v728, 0.0
      %v915 = vmax.f32 %v733, 0.0
      %v916 = vmax.f32 %v736, 0.0
      %v917 = vmax.f32 %v741, 0.0
      %v918 = vmax.f32 %v744, 0.0
      %v919 = vmax.f32 %v749, 0.0
      %v920 = vmax.f32 %v752, 0.0
      %v921 = vmax.f32 %v757, 0.0
      %v922 = vmax.f32 %v760, 0.0
      %v923 = vmax.f32 %v765, 0.0
      %v924 = vmax.f32 %v768, 0.0
      %v925 = vmax.f32 %v773, 0.0
      %v926 = vmax.f32 %v776, 0.0
      %v927 = vmax.f32 %v781, 0.0
      %v928 = vmax.f32 %v784, 0.0
      %v929 = vmax.f32 %v789, 0.0
      %v930 = vmax.f32 %v792, 0.0
      %v931 = vmax.f32 %v797, 0.0
      %v932 = vmax.f32 %v800, 0.0
      %v933 = vmax.f32 %v805, 0.0
      %v934 = vmax.f32 %v808, 0.0
      %v935 = vmax.f32 %v813, 0.0
      %v936 = vmax.f32 %v816, 0.0
      %v937 = vmax.f32 %v821, 0.0
      %v938 = vmax.f32 %v824, 0.0
      %v939 = vmax.f32 %v829, 0.0
      %v940 = vmax.f32 %v832, 0.0
      %v941 = vmax.f32 %v837, 0.0
      %v942 = vmax.f32 %v840, 0.0
      %v943 = vmax.f32 %v845, 0.0
      %v944 = vmax.f32 %v848, 0.0
      %v945 = vmax.f32 %v853, 0.0
      %v946 = vmax.f32 %v856, 0.0
      %v947 = vmax.f32 %v861, 0.0
      %v948 = vmax.f32 %v864, 0.0
      %v949 = vmax.f32 %v869, 0.0
      %v950 = vmax.f32 %v872, 0.0
      %v951 = vmax.f32 %v877, 0.0
      %v952 = vmax.f32 %v880, 0.0
      %v953 = vmax.f32 %v885, 0.0
      %v954 = vmax.f32 %v888, 0.0
      %vm955 = vcmask 64512
      %956 = vst.msk [vmem:[%s239] sm:$0xff] %vm955, %v891
      %957 = vst.msk [vmem:[%s239 + $0x8] sm:$0xff] %vm955, %v892
      %958 = vst.msk [vmem:[%s239 + $0x10] sm:$0xff] %vm955, %v893
      %959 = vst.msk [vmem:[%s239 + $0x18] sm:$0xff] %vm955, %v894
      %960 = vst.msk [vmem:[%s239 + $0x20] sm:$0xff] %vm955, %v895
      %961 = vst.msk [vmem:[%s239 + $0x28] sm:$0xff] %vm955, %v896
      %962 = vst.msk [vmem:[%s239 + $0x30] sm:$0xff] %vm955, %v897
      %963 = vst.msk [vmem:[%s239 + $0x38] sm:$0xff] %vm955, %v898
      %964 = vst.msk [vmem:[%s239 + $0x40] sm:$0xff] %vm955, %v899
      %965 = vst.msk [vmem:[%s239 + $0x48] sm:$0xff] %vm955, %v900
      %966 = vst.msk [vmem:[%s239 + $0x50] sm:$0xff] %vm955, %v901
      %967 = vst.msk [vmem:[%s239 + $0x58] sm:$0xff] %vm955, %v902
      %968 = vst.msk [vmem:[%s239 + $0x60] sm:$0xff] %vm955, %v903
      %969 = vst.msk [vmem:[%s239 + $0x68] sm:$0xff] %vm955, %v904
      %970 = vst.msk [vmem:[%s239 + $0x70] sm:$0xff] %vm955, %v905
      %971 = vst.msk [vmem:[%s239 + $0x78] sm:$0xff] %vm955, %v906
      %972 = vst.msk [vmem:[%s239 + $0x80] sm:$0xff] %vm955, %v907
      %973 = vst.msk [vmem:[%s239 + $0x88] sm:$0xff] %vm955, %v908
      %974 = vst.msk [vmem:[%s239 + $0x90] sm:$0xff] %vm955, %v909
      %975 = vst.msk [vmem:[%s239 + $0x98] sm:$0xff] %vm955, %v910
      %976 = vst.msk [vmem:[%s239 + $0xa0] sm:$0xff] %vm955, %v911
      %977 = vst.msk [vmem:[%s239 + $0xa8] sm:$0xff] %vm955, %v912
      %978 = vst.msk [vmem:[%s239 + $0xb0] sm:$0xff] %vm955, %v913
      %979 = vst.msk [vmem:[%s239 + $0xb8] sm:$0xff] %vm955, %v914
      %980 = vst.msk [vmem:[%s239 + $0xc0] sm:$0xff] %vm955, %v915
      %981 = vst.msk [vmem:[%s239 + $0xc8] sm:$0xff] %vm955, %v916
      %982 = vst.msk [vmem:[%s239 + $0xd0] sm:$0xff] %vm955, %v917
      %983 = vst.msk [vmem:[%s239 + $0xd8] sm:$0xff] %vm955, %v918
      %984 = vst.msk [vmem:[%s239 + $0xe0] sm:$0xff] %vm955, %v919
      %985 = vst.msk [vmem:[%s239 + $0xe8] sm:$0xff] %vm955, %v920
      %986 = vst.msk [vmem:[%s239 + $0xf0] sm:$0xff] %vm955, %v921
      %987 = vst.msk [vmem:[%s239 + $0xf8] sm:$0xff] %vm955, %v922
      %988 = vst.msk [vmem:[%s239 + $0x100] sm:$0xff] %vm955, %v923
      %989 = vst.msk [vmem:[%s239 + $0x108] sm:$0xff] %vm955, %v924
      %990 = vst.msk [vmem:[%s239 + $0x110] sm:$0xff] %vm955, %v925
      %991 = vst.msk [vmem:[%s239 + $0x118] sm:$0xff] %vm955, %v926
      %992 = vst.msk [vmem:[%s239 + $0x120] sm:$0xff] %vm955, %v927
      %993 = vst.msk [vmem:[%s239 + $0x128] sm:$0xff] %vm955, %v928
      %994 = vst.msk [vmem:[%s239 + $0x130] sm:$0xff] %vm955, %v929
      %995 = vst.msk [vmem:[%s239 + $0x138] sm:$0xff] %vm955, %v930
      %996 = vst.msk [vmem:[%s239 + $0x140] sm:$0xff] %vm955, %v931
      %997 = vst.msk [vmem:[%s239 + $0x148] sm:$0xff] %vm955, %v932
      %998 = vst.msk [vmem:[%s239 + $0x150] sm:$0xff] %vm955, %v933
      %999 = vst.msk [vmem:[%s239 + $0x158] sm:$0xff] %vm955, %v934
      %1000 = vst.msk [vmem:[%s239 + $0x160] sm:$0xff] %vm955, %v935
      %1001 = vst.msk [vmem:[%s239 + $0x168] sm:$0xff] %vm955, %v936
      %1002 = vst.msk [vmem:[%s239 + $0x170] sm:$0xff] %vm955, %v937
      %1003 = vst.msk [vmem:[%s239 + $0x178] sm:$0xff] %vm955, %v938
      %1004 = vst.msk [vmem:[%s239 + $0x180] sm:$0xff] %vm955, %v939
      %1005 = vst.msk [vmem:[%s239 + $0x188] sm:$0xff] %vm955, %v940
      %1006 = vst.msk [vmem:[%s239 + $0x190] sm:$0xff] %vm955, %v941
      %1007 = vst.msk [vmem:[%s239 + $0x198] sm:$0xff] %vm955, %v942
      %1008 = vst.msk [vmem:[%s239 + $0x1a0] sm:$0xff] %vm955, %v943
      %1009 = vst.msk [vmem:[%s239 + $0x1a8] sm:$0xff] %vm955, %v944
      %1010 = vst.msk [vmem:[%s239 + $0x1b0] sm:$0xff] %vm955, %v945
      %1011 = vst.msk [vmem:[%s239 + $0x1b8] sm:$0xff] %vm955, %v946
      %1012 = vst.msk [vmem:[%s239 + $0x1c0] sm:$0xff] %vm955, %v947
      %1013 = vst.msk [vmem:[%s239 + $0x1c8] sm:$0xff] %vm955, %v948
      %1014 = vst.msk [vmem:[%s239 + $0x1d0] sm:$0xff] %vm955, %v949
      %1015 = vst.msk [vmem:[%s239 + $0x1d8] sm:$0xff] %vm955, %v950
      %1016 = vst.msk [vmem:[%s239 + $0x1e0] sm:$0xff] %vm955, %v951
      %1017 = vst.msk [vmem:[%s239 + $0x1e8] sm:$0xff] %vm955, %v952
      %1018 = vst.msk [vmem:[%s239 + $0x1f0] sm:$0xff] %vm955, %v953
      %1019 = vst.msk [vmem:[%s239 + $0x1f8] sm:$0xff] %vm955, %v954
      %s1020 = smul.u32 %s17, 512
      %v1021 = vlaneseq
      %v1022 = vshrl.u32 %v1021, 7
      %v1023 = vadd.s32 %v1022, 8
      %v1024 = vadd.s32 %v1022, 16
      %v1025 = vadd.s32 %v1022, 24
      %v1026 = vadd.s32 %v1022, 32
      %v1027 = vadd.s32 %v1022, 40
      %v1028 = vadd.s32 %v1022, 48
      %v1029 = vadd.s32 %v1022, 56
      %v1030 = vadd.s32 %v1022, 64
      %v1031 = vadd.s32 %v1022, 72
      %v1032 = vadd.s32 %v1022, 80
      %v1033 = vadd.s32 %v1022, 88
      %v1034 = vadd.s32 %v1022, 96
      %v1035 = vadd.s32 %v1022, 104
      %v1036 = vadd.s32 %v1022, 112
      %v1037 = vadd.s32 %v1022, 120
      %v1038 = vadd.s32 %v1022, 128
      %v1039 = vadd.s32 %v1022, 136
      %v1040 = vadd.s32 %v1022, 144
      %v1041 = vadd.s32 %v1022, 152
      %v1042 = vadd.s32 %v1022, 160
      %v1043 = vadd.s32 %v1022, 168
      %v1044 = vadd.s32 %v1022, 176
      %v1045 = vadd.s32 %v1022, 184
      %v1046 = vadd.s32 %v1022, 192
      %v1047 = vadd.s32 %v1022, 200
      %v1048 = vadd.s32 %v1022, 208
      %v1049 = vadd.s32 %v1022, 216
      %v1050 = vadd.s32 %v1022, 224
      %v1051 = vadd.s32 %v1022, 232
      %v1052 = vadd.s32 %v1022, 240
      %v1053 = vadd.s32 %v1022, 248
      %v1054 = vadd.s32 %v1022, 256
      %v1055 = vadd.s32 %v1022, 264
      %v1056 = vadd.s32 %v1022, 272
      %v1057 = vadd.s32 %v1022, 280
      %v1058 = vadd.s32 %v1022, 288
      %v1059 = vadd.s32 %v1022, 296
      %v1060 = vadd.s32 %v1022, 304
      %v1061 = vadd.s32 %v1022, 312
      %v1062 = vadd.s32 %v1022, 320
      %v1063 = vadd.s32 %v1022, 328
      %v1064 = vadd.s32 %v1022, 336
      %v1065 = vadd.s32 %v1022, 344
      %v1066 = vadd.s32 %v1022, 352
      %v1067 = vadd.s32 %v1022, 360
      %v1068 = vadd.s32 %v1022, 368
      %v1069 = vadd.s32 %v1022, 376
      %v1070 = vadd.s32 %v1022, 384
      %v1071 = vadd.s32 %v1022, 392
      %v1072 = vadd.s32 %v1022, 400
      %v1073 = vadd.s32 %v1022, 408
      %v1074 = vadd.s32 %v1022, 416
      %v1075 = vadd.s32 %v1022, 424
      %v1076 = vadd.s32 %v1022, 432
      %v1077 = vadd.s32 %v1022, 440
      %v1078 = vadd.s32 %v1022, 448
      %v1079 = vadd.s32 %v1022, 456
      %v1080 = vadd.s32 %v1022, 464
      %v1081 = vadd.s32 %v1022, 472
      %v1082 = vadd.s32 %v1022, 480
      %v1083 = vadd.s32 %v1022, 488
      %v1084 = vadd.s32 %v1022, 496
      %v1085 = vadd.s32 %v1022, 504
      %v1086 = vstv %s1020
      %v1087 = vadd.s32 %v1086, %v1022
      %v1088 = vadd.s32 %v1086, %v1023
      %v1089 = vadd.s32 %v1086, %v1024
      %v1090 = vadd.s32 %v1086, %v1025
      %v1091 = vadd.s32 %v1086, %v1026
      %v1092 = vadd.s32 %v1086, %v1027
      %v1093 = vadd.s32 %v1086, %v1028
      %v1094 = vadd.s32 %v1086, %v1029
      %v1095 = vadd.s32 %v1086, %v1030
      %v1096 = vadd.s32 %v1086, %v1031
      %v1097 = vadd.s32 %v1086, %v1032
      %v1098 = vadd.s32 %v1086, %v1033
      %v1099 = vadd.s32 %v1086, %v1034
      %v1100 = vadd.s32 %v1086, %v1035
      %v1101 = vadd.s32 %v1086, %v1036
      %v1102 = vadd.s32 %v1086, %v1037
      %v1103 = vadd.s32 %v1086, %v1038
      %v1104 = vadd.s32 %v1086, %v1039
      %v1105 = vadd.s32 %v1086, %v1040
      %v1106 = vadd.s32 %v1086, %v1041
      %v1107 = vadd.s32 %v1086, %v1042
      %v1108 = vadd.s32 %v1086, %v1043
      %v1109 = vadd.s32 %v1086, %v1044
      %v1110 = vadd.s32 %v1086, %v1045
      %v1111 = vadd.s32 %v1086, %v1046
      %v1112 = vadd.s32 %v1086, %v1047
      %v1113 = vadd.s32 %v1086, %v1048
      %v1114 = vadd.s32 %v1086, %v1049
      %v1115 = vadd.s32 %v1086, %v1050
      %v1116 = vadd.s32 %v1086, %v1051
      %v1117 = vadd.s32 %v1086, %v1052
      %v1118 = vadd.s32 %v1086, %v1053
      %v1119 = vadd.s32 %v1086, %v1054
      %v1120 = vadd.s32 %v1086, %v1055
      %v1121 = vadd.s32 %v1086, %v1056
      %v1122 = vadd.s32 %v1086, %v1057
      %v1123 = vadd.s32 %v1086, %v1058
      %v1124 = vadd.s32 %v1086, %v1059
      %v1125 = vadd.s32 %v1086, %v1060
      %v1126 = vadd.s32 %v1086, %v1061
      %v1127 = vadd.s32 %v1086, %v1062
      %v1128 = vadd.s32 %v1086, %v1063
      %v1129 = vadd.s32 %v1086, %v1064
      %v1130 = vadd.s32 %v1086, %v1065
      %v1131 = vadd.s32 %v1086, %v1066
      %v1132 = vadd.s32 %v1086, %v1067
      %v1133 = vadd.s32 %v1086, %v1068
      %v1134 = vadd.s32 %v1086, %v1069
      %v1135 = vadd.s32 %v1086, %v1070
      %v1136 = vadd.s32 %v1086, %v1071
      %v1137 = vadd.s32 %v1086, %v1072
      %v1138 = vadd.s32 %v1086, %v1073
      %v1139 = vadd.s32 %v1086, %v1074
      %v1140 = vadd.s32 %v1086, %v1075
      %v1141 = vadd.s32 %v1086, %v1076
      %v1142 = vadd.s32 %v1086, %v1077
      %v1143 = vadd.s32 %v1086, %v1078
      %v1144 = vadd.s32 %v1086, %v1079
      %v1145 = vadd.s32 %v1086, %v1080
      %v1146 = vadd.s32 %v1086, %v1081
      %v1147 = vadd.s32 %v1086, %v1082
      %v1148 = vadd.s32 %v1086, %v1083
      %v1149 = vadd.s32 %v1086, %v1084
      %v1150 = vadd.s32 %v1086, %v1085
      %vm1151 = vcmp.lt.s32.totalorder %v1087, 1922
      %vm1152 = vcmp.lt.s32.totalorder %v1088, 1922
      %vm1153 = vcmp.lt.s32.totalorder %v1089, 1922
      %vm1154 = vcmp.lt.s32.totalorder %v1090, 1922
      %vm1155 = vcmp.lt.s32.totalorder %v1091, 1922
      %vm1156 = vcmp.lt.s32.totalorder %v1092, 1922
      %vm1157 = vcmp.lt.s32.totalorder %v1093, 1922
      %vm1158 = vcmp.lt.s32.totalorder %v1094, 1922
      %vm1159 = vcmp.lt.s32.totalorder %v1095, 1922
      %vm1160 = vcmp.lt.s32.totalorder %v1096, 1922
      %vm1161 = vcmp.lt.s32.totalorder %v1097, 1922
      %vm1162 = vcmp.lt.s32.totalorder %v1098, 1922
      %vm1163 = vcmp.lt.s32.totalorder %v1099, 1922
      %vm1164 = vcmp.lt.s32.totalorder %v1100, 1922
      %vm1165 = vcmp.lt.s32.totalorder %v1101, 1922
      %vm1166 = vcmp.lt.s32.totalorder %v1102, 1922
      %vm1167 = vcmp.lt.s32.totalorder %v1103, 1922
      %vm1168 = vcmp.lt.s32.totalorder %v1104, 1922
      %vm1169 = vcmp.lt.s32.totalorder %v1105, 1922
      %vm1170 = vcmp.lt.s32.totalorder %v1106, 1922
      %vm1171 = vcmp.lt.s32.totalorder %v1107, 1922
      %vm1172 = vcmp.lt.s32.totalorder %v1108, 1922
      %vm1173 = vcmp.lt.s32.totalorder %v1109, 1922
      %vm1174 = vcmp.lt.s32.totalorder %v1110, 1922
      %vm1175 = vcmp.lt.s32.totalorder %v1111, 1922
      %vm1176 = vcmp.lt.s32.totalorder %v1112, 1922
      %vm1177 = vcmp.lt.s32.totalorder %v1113, 1922
      %vm1178 = vcmp.lt.s32.totalorder %v1114, 1922
      %vm1179 = vcmp.lt.s32.totalorder %v1115, 1922
      %vm1180 = vcmp.lt.s32.totalorder %v1116, 1922
      %vm1181 = vcmp.lt.s32.totalorder %v1117, 1922
      %vm1182 = vcmp.lt.s32.totalorder %v1118, 1922
      %vm1183 = vcmp.lt.s32.totalorder %v1119, 1922
      %vm1184 = vcmp.lt.s32.totalorder %v1120, 1922
      %vm1185 = vcmp.lt.s32.totalorder %v1121, 1922
      %vm1186 = vcmp.lt.s32.totalorder %v1122, 1922
      %vm1187 = vcmp.lt.s32.totalorder %v1123, 1922
      %vm1188 = vcmp.lt.s32.totalorder %v1124, 1922
      %vm1189 = vcmp.lt.s32.totalorder %v1125, 1922
      %vm1190 = vcmp.lt.s32.totalorder %v1126, 1922
      %vm1191 = vcmp.lt.s32.totalorder %v1127, 1922
      %vm1192 = vcmp.lt.s32.totalorder %v1128, 1922
      %vm1193 = vcmp.lt.s32.totalorder %v1129, 1922
      %vm1194 = vcmp.lt.s32.totalorder %v1130, 1922
      %vm1195 = vcmp.lt.s32.totalorder %v1131, 1922
      %vm1196 = vcmp.lt.s32.totalorder %v1132, 1922
      %vm1197 = vcmp.lt.s32.totalorder %v1133, 1922
      %vm1198 = vcmp.lt.s32.totalorder %v1134, 1922
      %vm1199 = vcmp.lt.s32.totalorder %v1135, 1922
      %vm1200 = vcmp.lt.s32.totalorder %v1136, 1922
      %vm1201 = vcmp.lt.s32.totalorder %v1137, 1922
      %vm1202 = vcmp.lt.s32.totalorder %v1138, 1922
      %vm1203 = vcmp.lt.s32.totalorder %v1139, 1922
      %vm1204 = vcmp.lt.s32.totalorder %v1140, 1922
      %vm1205 = vcmp.lt.s32.totalorder %v1141, 1922
      %vm1206 = vcmp.lt.s32.totalorder %v1142, 1922
      %vm1207 = vcmp.lt.s32.totalorder %v1143, 1922
      %vm1208 = vcmp.lt.s32.totalorder %v1144, 1922
      %vm1209 = vcmp.lt.s32.totalorder %v1145, 1922
      %vm1210 = vcmp.lt.s32.totalorder %v1146, 1922
      %vm1211 = vcmp.lt.s32.totalorder %v1147, 1922
      %vm1212 = vcmp.lt.s32.totalorder %v1148, 1922
      %vm1213 = vcmp.lt.s32.totalorder %v1149, 1922
      %vm1214 = vcmp.lt.s32.totalorder %v1150, 1922
      %v1215 = vsel %vm1151, 1, 0
      %v1216 = vsel %vm1152, 1, 0
      %v1217 = vsel %vm1153, 1, 0
      %v1218 = vsel %vm1154, 1, 0
      %v1219 = vsel %vm1155, 1, 0
      %v1220 = vsel %vm1156, 1, 0
      %v1221 = vsel %vm1157, 1, 0
      %v1222 = vsel %vm1158, 1, 0
      %v1223 = vsel %vm1159, 1, 0
      %v1224 = vsel %vm1160, 1, 0
      %v1225 = vsel %vm1161, 1, 0
      %v1226 = vsel %vm1162, 1, 0
      %v1227 = vsel %vm1163, 1, 0
      %v1228 = vsel %vm1164, 1, 0
      %v1229 = vsel %vm1165, 1, 0
      %v1230 = vsel %vm1166, 1, 0
      %v1231 = vsel %vm1167, 1, 0
      %v1232 = vsel %vm1168, 1, 0
      %v1233 = vsel %vm1169, 1, 0
      %v1234 = vsel %vm1170, 1, 0
      %v1235 = vsel %vm1171, 1, 0
      %v1236 = vsel %vm1172, 1, 0
      %v1237 = vsel %vm1173, 1, 0
      %v1238 = vsel %vm1174, 1, 0
      %v1239 = vsel %vm1175, 1, 0
      %v1240 = vsel %vm1176, 1, 0
      %v1241 = vsel %vm1177, 1, 0
      %v1242 = vsel %vm1178, 1, 0
      %v1243 = vsel %vm1179, 1, 0
      %v1244 = vsel %vm1180, 1, 0
      %v1245 = vsel %vm1181, 1, 0
      %v1246 = vsel %vm1182, 1, 0
      %v1247 = vsel %vm1183, 1, 0
      %v1248 = vsel %vm1184, 1, 0
      %v1249 = vsel %vm1185, 1, 0
      %v1250 = vsel %vm1186, 1, 0
      %v1251 = vsel %vm1187, 1, 0
      %v1252 = vsel %vm1188, 1, 0
      %v1253 = vsel %vm1189, 1, 0
      %v1254 = vsel %vm1190, 1, 0
      %v1255 = vsel %vm1191, 1, 0
      %v1256 = vsel %vm1192, 1, 0
      %v1257 = vsel %vm1193, 1, 0
      %v1258 = vsel %vm1194, 1, 0
      %v1259 = vsel %vm1195, 1, 0
      %v1260 = vsel %vm1196, 1, 0
      %v1261 = vsel %vm1197, 1, 0
      %v1262 = vsel %vm1198, 1, 0
      %v1263 = vsel %vm1199, 1, 0
      %v1264 = vsel %vm1200, 1, 0
      %v1265 = vsel %vm1201, 1, 0
      %v1266 = vsel %vm1202, 1, 0
      %v1267 = vsel %vm1203, 1, 0
      %v1268 = vsel %vm1204, 1, 0
      %v1269 = vsel %vm1205, 1, 0
      %v1270 = vsel %vm1206, 1, 0
      %v1271 = vsel %vm1207, 1, 0
      %v1272 = vsel %vm1208, 1, 0
      %v1273 = vsel %vm1209, 1, 0
      %v1274 = vsel %vm1210, 1, 0
      %v1275 = vsel %vm1211, 1, 0
      %v1276 = vsel %vm1212, 1, 0
      %v1277 = vsel %vm1213, 1, 0
      %v1278 = vsel %vm1214, 1, 0
      %vm1279 = vcmp.eq.s32.totalorder %v1215, 1
      %vm1280 = vcmp.eq.s32.totalorder %v1216, 1
      %vm1281 = vcmp.eq.s32.totalorder %v1217, 1
      %vm1282 = vcmp.eq.s32.totalorder %v1218, 1
      %vm1283 = vcmp.eq.s32.totalorder %v1219, 1
      %vm1284 = vcmp.eq.s32.totalorder %v1220, 1
      %vm1285 = vcmp.eq.s32.totalorder %v1221, 1
      %vm1286 = vcmp.eq.s32.totalorder %v1222, 1
      %vm1287 = vcmp.eq.s32.totalorder %v1223, 1
      %vm1288 = vcmp.eq.s32.totalorder %v1224, 1
      %vm1289 = vcmp.eq.s32.totalorder %v1225, 1
      %vm1290 = vcmp.eq.s32.totalorder %v1226, 1
      %vm1291 = vcmp.eq.s32.totalorder %v1227, 1
      %vm1292 = vcmp.eq.s32.totalorder %v1228, 1
      %vm1293 = vcmp.eq.s32.totalorder %v1229, 1
      %vm1294 = vcmp.eq.s32.totalorder %v1230, 1
      %vm1295 = vcmp.eq.s32.totalorder %v1231, 1
      %vm1296 = vcmp.eq.s32.totalorder %v1232, 1
      %vm1297 = vcmp.eq.s32.totalorder %v1233, 1
      %vm1298 = vcmp.eq.s32.totalorder %v1234, 1
      %vm1299 = vcmp.eq.s32.totalorder %v1235, 1
      %vm1300 = vcmp.eq.s32.totalorder %v1236, 1
      %vm1301 = vcmp.eq.s32.totalorder %v1237, 1
      %vm1302 = vcmp.eq.s32.totalorder %v1238, 1
      %vm1303 = vcmp.eq.s32.totalorder %v1239, 1
      %vm1304 = vcmp.eq.s32.totalorder %v1240, 1
      %vm1305 = vcmp.eq.s32.totalorder %v1241, 1
      %vm1306 = vcmp.eq.s32.totalorder %v1242, 1
      %vm1307 = vcmp.eq.s32.totalorder %v1243, 1
      %vm1308 = vcmp.eq.s32.totalorder %v1244, 1
      %vm1309 = vcmp.eq.s32.totalorder %v1245, 1
      %vm1310 = vcmp.eq.s32.totalorder %v1246, 1
      %vm1311 = vcmp.eq.s32.totalorder %v1247, 1
      %vm1312 = vcmp.eq.s32.totalorder %v1248, 1
      %vm1313 = vcmp.eq.s32.totalorder %v1249, 1
      %vm1314 = vcmp.eq.s32.totalorder %v1250, 1
      %vm1315 = vcmp.eq.s32.totalorder %v1251, 1
      %vm1316 = vcmp.eq.s32.totalorder %v1252, 1
      %vm1317 = vcmp.eq.s32.totalorder %v1253, 1
      %vm1318 = vcmp.eq.s32.totalorder %v1254, 1
      %vm1319 = vcmp.eq.s32.totalorder %v1255, 1
      %vm1320 = vcmp.eq.s32.totalorder %v1256, 1
      %vm1321 = vcmp.eq.s32.totalorder %v1257, 1
      %vm1322 = vcmp.eq.s32.totalorder %v1258, 1
      %vm1323 = vcmp.eq.s32.totalorder %v1259, 1
      %vm1324 = vcmp.eq.s32.totalorder %v1260, 1
      %vm1325 = vcmp.eq.s32.totalorder %v1261, 1
      %vm1326 = vcmp.eq.s32.totalorder %v1262, 1
      %vm1327 = vcmp.eq.s32.totalorder %v1263, 1
      %vm1328 = vcmp.eq.s32.totalorder %v1264, 1
      %vm1329 = vcmp.eq.s32.totalorder %v1265, 1
      %vm1330 = vcmp.eq.s32.totalorder %v1266, 1
      %vm1331 = vcmp.eq.s32.totalorder %v1267, 1
      %vm1332 = vcmp.eq.s32.totalorder %v1268, 1
      %vm1333 = vcmp.eq.s32.totalorder %v1269, 1
      %vm1334 = vcmp.eq.s32.totalorder %v1270, 1
      %vm1335 = vcmp.eq.s32.totalorder %v1271, 1
      %vm1336 = vcmp.eq.s32.totalorder %v1272, 1
      %vm1337 = vcmp.eq.s32.totalorder %v1273, 1
      %vm1338 = vcmp.eq.s32.totalorder %v1274, 1
      %vm1339 = vcmp.eq.s32.totalorder %v1275, 1
      %vm1340 = vcmp.eq.s32.totalorder %v1276, 1
      %vm1341 = vcmp.eq.s32.totalorder %v1277, 1
      %vm1342 = vcmp.eq.s32.totalorder %v1278, 1
      %v1343 = vsel %vm1279, %v891, 0.0
      %v1344 = vsel %vm1280, %v892, 0.0
      %v1345 = vsel %vm1281, %v893, 0.0
      %v1346 = vsel %vm1282, %v894, 0.0
      %v1347 = vsel %vm1283, %v895, 0.0
      %v1348 = vsel %vm1284, %v896, 0.0
      %v1349 = vsel %vm1285, %v897, 0.0
      %v1350 = vsel %vm1286, %v898, 0.0
      %v1351 = vsel %vm1287, %v899, 0.0
      %v1352 = vsel %vm1288, %v900, 0.0
      %v1353 = vsel %vm1289, %v901, 0.0
      %v1354 = vsel %vm1290, %v902, 0.0
      %v1355 = vsel %vm1291, %v903, 0.0
      %v1356 = vsel %vm1292, %v904, 0.0
      %v1357 = vsel %vm1293, %v905, 0.0
      %v1358 = vsel %vm1294, %v906, 0.0
      %v1359 = vsel %vm1295, %v907, 0.0
      %v1360 = vsel %vm1296, %v908, 0.0
      %v1361 = vsel %vm1297, %v909, 0.0
      %v1362 = vsel %vm1298, %v910, 0.0
      %v1363 = vsel %vm1299, %v911, 0.0
      %v1364 = vsel %vm1300, %v912, 0.0
      %v1365 = vsel %vm1301, %v913, 0.0
      %v1366 = vsel %vm1302, %v914, 0.0
      %v1367 = vsel %vm1303, %v915, 0.0
      %v1368 = vsel %vm1304, %v916, 0.0
      %v1369 = vsel %vm1305, %v917, 0.0
      %v1370 = vsel %vm1306, %v918, 0.0
      %v1371 = vsel %vm1307, %v919, 0.0
      %v1372 = vsel %vm1308, %v920, 0.0
      %v1373 = vsel %vm1309, %v921, 0.0
      %v1374 = vsel %vm1310, %v922, 0.0
      %v1375 = vsel %vm1311, %v923, 0.0
      %v1376 = vsel %vm1312, %v924, 0.0
      %v1377 = vsel %vm1313, %v925, 0.0
      %v1378 = vsel %vm1314, %v926, 0.0
      %v1379 = vsel %vm1315, %v927, 0.0
      %v1380 = vsel %vm1316, %v928, 0.0
      %v1381 = vsel %vm1317, %v929, 0.0
      %v1382 = vsel %vm1318, %v930, 0.0
      %v1383 = vsel %vm1319, %v931, 0.0
      %v1384 = vsel %vm1320, %v932, 0.0
      %v1385 = vsel %vm1321, %v933, 0.0
      %v1386 = vsel %vm1322, %v934, 0.0
      %v1387 = vsel %vm1323, %v935, 0.0
      %v1388 = vsel %vm1324, %v936, 0.0
      %v1389 = vsel %vm1325, %v937, 0.0
      %v1390 = vsel %vm1326, %v938, 0.0
      %v1391 = vsel %vm1327, %v939, 0.0
      %v1392 = vsel %vm1328, %v940, 0.0
      %v1393 = vsel %vm1329, %v941, 0.0
      %v1394 = vsel %vm1330, %v942, 0.0
      %v1395 = vsel %vm1331, %v943, 0.0
      %v1396 = vsel %vm1332, %v944, 0.0
      %v1397 = vsel %vm1333, %v945, 0.0
      %v1398 = vsel %vm1334, %v946, 0.0
      %v1399 = vsel %vm1335, %v947, 0.0
      %v1400 = vsel %vm1336, %v948, 0.0
      %v1401 = vsel %vm1337, %v949, 0.0
      %v1402 = vsel %vm1338, %v950, 0.0
      %v1403 = vsel %vm1339, %v951, 0.0
      %v1404 = vsel %vm1340, %v952, 0.0
      %v1405 = vsel %vm1341, %v953, 0.0
      %v1406 = vsel %vm1342, %v954, 0.0
      %v1407 = vadd.f32 %v1343, %v1344
      %v1408 = vadd.f32 %v1407, %v1345
      %v1409 = vadd.f32 %v1408, %v1346
      %v1410 = vadd.f32 %v1409, %v1347
      %v1411 = vadd.f32 %v1410, %v1348
      %v1412 = vadd.f32 %v1411, %v1349
      %v1413 = vadd.f32 %v1412, %v1350
      %v1414 = vadd.f32 %v1413, %v1351
      %v1415 = vadd.f32 %v1414, %v1352
      %v1416 = vadd.f32 %v1415, %v1353
      %v1417 = vadd.f32 %v1416, %v1354
      %v1418 = vadd.f32 %v1417, %v1355
      %v1419 = vadd.f32 %v1418, %v1356
      %v1420 = vadd.f32 %v1419, %v1357
      %v1421 = vadd.f32 %v1420, %v1358
      %v1422 = vadd.f32 %v1421, %v1359
      %v1423 = vadd.f32 %v1422, %v1360
      %v1424 = vadd.f32 %v1423, %v1361
      %v1425 = vadd.f32 %v1424, %v1362
      %v1426 = vadd.f32 %v1425, %v1363
      %v1427 = vadd.f32 %v1426, %v1364
      %v1428 = vadd.f32 %v1427, %v1365
      %v1429 = vadd.f32 %v1428, %v1366
      %v1430 = vadd.f32 %v1429, %v1367
      %v1431 = vadd.f32 %v1430, %v1368
      %v1432 = vadd.f32 %v1431, %v1369
      %v1433 = vadd.f32 %v1432, %v1370
      %v1434 = vadd.f32 %v1433, %v1371
      %v1435 = vadd.f32 %v1434, %v1372
      %v1436 = vadd.f32 %v1435, %v1373
      %v1437 = vadd.f32 %v1436, %v1374
      %v1438 = vadd.f32 %v1437, %v1375
      %v1439 = vadd.f32 %v1438, %v1376
      %v1440 = vadd.f32 %v1439, %v1377
      %v1441 = vadd.f32 %v1440, %v1378
      %v1442 = vadd.f32 %v1441, %v1379
      %v1443 = vadd.f32 %v1442, %v1380
      %v1444 = vadd.f32 %v1443, %v1381
      %v1445 = vadd.f32 %v1444, %v1382
      %v1446 = vadd.f32 %v1445, %v1383
      %v1447 = vadd.f32 %v1446, %v1384
      %v1448 = vadd.f32 %v1447, %v1385
      %v1449 = vadd.f32 %v1448, %v1386
      %v1450 = vadd.f32 %v1449, %v1387
      %v1451 = vadd.f32 %v1450, %v1388
      %v1452 = vadd.f32 %v1451, %v1389
      %v1453 = vadd.f32 %v1452, %v1390
      %v1454 = vadd.f32 %v1453, %v1391
      %v1455 = vadd.f32 %v1454, %v1392
      %v1456 = vadd.f32 %v1455, %v1393
      %v1457 = vadd.f32 %v1456, %v1394
      %v1458 = vadd.f32 %v1457, %v1395
      %v1459 = vadd.f32 %v1458, %v1396
      %v1460 = vadd.f32 %v1459, %v1397
      %v1461 = vadd.f32 %v1460, %v1398
      %v1462 = vadd.f32 %v1461, %v1399
      %v1463 = vadd.f32 %v1462, %v1400
      %v1464 = vadd.f32 %v1463, %v1401
      %v1465 = vadd.f32 %v1464, %v1402
      %v1466 = vadd.f32 %v1465, %v1403
      %v1467 = vadd.f32 %v1466, %v1404
      %v1468 = vadd.f32 %v1467, %v1405
      %v1469 = vadd.f32 %v1468, %v1406
      %v1470 = vrot.slane %v1469, 4
      %v1471 = vadd.f32 %v1469, %v1470
      %v1472 = vrot.slane %v1471, 2
      %v1473 = vadd.f32 %v1471, %v1472
      %v1474 = vrot.slane %v1473, 1
      %v1475 = vadd.f32 %v1473, %v1474
      %v1476 = vmul.f32 %v1343, %v1343
      %v1477 = vmul.f32 %v1344, %v1344
      %v1478 = vmul.f32 %v1345, %v1345
      %v1479 = vmul.f32 %v1346, %v1346
      %v1480 = vmul.f32 %v1347, %v1347
      %v1481 = vmul.f32 %v1348, %v1348
      %v1482 = vmul.f32 %v1349, %v1349
      %v1483 = vmul.f32 %v1350, %v1350
      %v1484 = vmul.f32 %v1351, %v1351
      %v1485 = vmul.f32 %v1352, %v1352
      %v1486 = vmul.f32 %v1353, %v1353
      %v1487 = vmul.f32 %v1354, %v1354
      %v1488 = vmul.f32 %v1355, %v1355
      %v1489 = vmul.f32 %v1356, %v1356
      %v1490 = vmul.f32 %v1357, %v1357
      %v1491 = vmul.f32 %v1358, %v1358
      %v1492 = vmul.f32 %v1359, %v1359
      %v1493 = vmul.f32 %v1360, %v1360
      %v1494 = vmul.f32 %v1361, %v1361
      %v1495 = vmul.f32 %v1362, %v1362
      %v1496 = vmul.f32 %v1363, %v1363
      %v1497 = vmul.f32 %v1364, %v1364
      %v1498 = vmul.f32 %v1365, %v1365
      %v1499 = vmul.f32 %v1366, %v1366
      %v1500 = vmul.f32 %v1367, %v1367
      %v1501 = vmul.f32 %v1368, %v1368
      %v1502 = vmul.f32 %v1369, %v1369
      %v1503 = vmul.f32 %v1370, %v1370
      %v1504 = vmul.f32 %v1371, %v1371
      %v1505 = vmul.f32 %v1372, %v1372
      %v1506 = vmul.f32 %v1373, %v1373
      %v1507 = vmul.f32 %v1374, %v1374
      %v1508 = vmul.f32 %v1375, %v1375
      %v1509 = vmul.f32 %v1376, %v1376
      %v1510 = vmul.f32 %v1377, %v1377
      %v1511 = vmul.f32 %v1378, %v1378
      %v1512 = vmul.f32 %v1379, %v1379
      %v1513 = vmul.f32 %v1380, %v1380
      %v1514 = vmul.f32 %v1381, %v1381
      %v1515 = vmul.f32 %v1382, %v1382
      %v1516 = vmul.f32 %v1383, %v1383
      %v1517 = vmul.f32 %v1384, %v1384
      %v1518 = vmul.f32 %v1385, %v1385
      %v1519 = vmul.f32 %v1386, %v1386
      %v1520 = vmul.f32 %v1387, %v1387
      %v1521 = vmul.f32 %v1388, %v1388
      %v1522 = vmul.f32 %v1389, %v1389
      %v1523 = vmul.f32 %v1390, %v1390
      %v1524 = vmul.f32 %v1391, %v1391
      %v1525 = vmul.f32 %v1392, %v1392
      %v1526 = vmul.f32 %v1393, %v1393
      %v1527 = vmul.f32 %v1394, %v1394
      %v1528 = vmul.f32 %v1395, %v1395
      %v1529 = vmul.f32 %v1396, %v1396
      %v1530 = vmul.f32 %v1397, %v1397
      %v1531 = vmul.f32 %v1398, %v1398
      %v1532 = vmul.f32 %v1399, %v1399
      %v1533 = vmul.f32 %v1400, %v1400
      %v1534 = vmul.f32 %v1401, %v1401
      %v1535 = vmul.f32 %v1402, %v1402
      %v1536 = vmul.f32 %v1403, %v1403
      %v1537 = vmul.f32 %v1404, %v1404
      %v1538 = vmul.f32 %v1405, %v1405
      %v1539 = vmul.f32 %v1406, %v1406
      %v1540 = vadd.f32 %v1476, %v1477
      %v1541 = vadd.f32 %v1540, %v1478
      %v1542 = vadd.f32 %v1541, %v1479
      %v1543 = vadd.f32 %v1542, %v1480
      %v1544 = vadd.f32 %v1543, %v1481
      %v1545 = vadd.f32 %v1544, %v1482
      %v1546 = vadd.f32 %v1545, %v1483
      %v1547 = vadd.f32 %v1546, %v1484
      %v1548 = vadd.f32 %v1547, %v1485
      %v1549 = vadd.f32 %v1548, %v1486
      %v1550 = vadd.f32 %v1549, %v1487
      %v1551 = vadd.f32 %v1550, %v1488
      %v1552 = vadd.f32 %v1551, %v1489
      %v1553 = vadd.f32 %v1552, %v1490
      %v1554 = vadd.f32 %v1553, %v1491
      %v1555 = vadd.f32 %v1554, %v1492
      %v1556 = vadd.f32 %v1555, %v1493
      %v1557 = vadd.f32 %v1556, %v1494
      %v1558 = vadd.f32 %v1557, %v1495
      %v1559 = vadd.f32 %v1558, %v1496
      %v1560 = vadd.f32 %v1559, %v1497
      %v1561 = vadd.f32 %v1560, %v1498
      %v1562 = vadd.f32 %v1561, %v1499
      %v1563 = vadd.f32 %v1562, %v1500
      %v1564 = vadd.f32 %v1563, %v1501
      %v1565 = vadd.f32 %v1564, %v1502
      %v1566 = vadd.f32 %v1565, %v1503
      %v1567 = vadd.f32 %v1566, %v1504
      %v1568 = vadd.f32 %v1567, %v1505
      %v1569 = vadd.f32 %v1568, %v1506
      %v1570 = vadd.f32 %v1569, %v1507
      %v1571 = vadd.f32 %v1570, %v1508
      %v1572 = vadd.f32 %v1571, %v1509
      %v1573 = vadd.f32 %v1572, %v1510
      %v1574 = vadd.f32 %v1573, %v1511
      %v1575 = vadd.f32 %v1574, %v1512
      %v1576 = vadd.f32 %v1575, %v1513
      %v1577 = vadd.f32 %v1576, %v1514
      %v1578 = vadd.f32 %v1577, %v1515
      %v1579 = vadd.f32 %v1578, %v1516
      %v1580 = vadd.f32 %v1579, %v1517
      %v1581 = vadd.f32 %v1580, %v1518
      %v1582 = vadd.f32 %v1581, %v1519
      %v1583 = vadd.f32 %v1582, %v1520
      %v1584 = vadd.f32 %v1583, %v1521
      %v1585 = vadd.f32 %v1584, %v1522
      %v1586 = vadd.f32 %v1585, %v1523
      %v1587 = vadd.f32 %v1586, %v1524
      %v1588 = vadd.f32 %v1587, %v1525
      %v1589 = vadd.f32 %v1588, %v1526
      %v1590 = vadd.f32 %v1589, %v1527
      %v1591 = vadd.f32 %v1590, %v1528
      %v1592 = vadd.f32 %v1591, %v1529
      %v1593 = vadd.f32 %v1592, %v1530
      %v1594 = vadd.f32 %v1593, %v1531
      %v1595 = vadd.f32 %v1594, %v1532
      %v1596 = vadd.f32 %v1595, %v1533
      %v1597 = vadd.f32 %v1596, %v1534
      %v1598 = vadd.f32 %v1597, %v1535
      %v1599 = vadd.f32 %v1598, %v1536
      %v1600 = vadd.f32 %v1599, %v1537
      %v1601 = vadd.f32 %v1600, %v1538
      %v1602 = vadd.f32 %v1601, %v1539
      %v1603 = vrot.slane %v1602, 4
      %v1604 = vadd.f32 %v1602, %v1603
      %v1605 = vrot.slane %v1604, 2
      %v1606 = vadd.f32 %v1604, %v1605
      %v1607 = vrot.slane %v1606, 1
      %v1608 = vadd.f32 %v1606, %v1607
      %1609 = vst.msk [vmem:[%s244] sm:$0xff] %vm955, %v1475
      %1610 = vst.msk [vmem:[%s248] sm:$0xff] %vm955, %v1608
      %s1611 = smul.u32 64, %s17
      %p1612 = scmp.lt.s32.totalorder %s1611, 255
      %s1613 = scalar_select %p1612, %s1611, 255
      %s1614 = smul.addr %s1613, 8
      %s1615 = scalar_lea.vmem %s3, %s1614
      %p1616 = scmp.lt.s32.totalorder %s17, 3
      %s1617 = scalar_select %p1616, %s17, 3
      %s1618 = smul.addr %s1617, 8
      %s1619 = scalar_lea.vmem %s4, %s1618
      %p1620 = scmp.lt.s32.totalorder %s17, 3
      %s1621 = scalar_select %p1620, %s17, 3
      %s1622 = smul.addr %s1621, 8
      %s1623 = scalar_lea.vmem %s5, %s1622
      // Predicated region
      $region33: #{deconv_nn_forward.6} parent=31 // pred_check
        %p1624 = pneg %p103
      $region34: #{deconv_nn_forward.6} parent=31 // pred_check_branch
        %1626 = sbr.rel (%p1624) target = $region36
      $region35: #{deconv_nn_forward.6} parent=31 // pred_region
        %s1627 = smul.u32 64, %s17
      $region36: #{deconv_nn_forward.6} parent=31 // pred_fallthru
        _
      // Predicated region
      $region37: #{deconv_nn_forward.6} parent=31 // pred_check
        %p1628 = pneg %p129
      $region38: #{deconv_nn_forward.6} parent=31 // pred_check_branch
        %1630 = sbr.rel (%p1628) target = $region40
      $region39: #{deconv_nn_forward.6} parent=31 // pred_region
        _
      $region40: #{deconv_nn_forward.6} parent=31 // pred_fallthru
        _
      // Predicated region
      $region41: #{deconv_nn_forward.6} parent=31 // pred_check
        %p1631 = pneg %p155
      $region42: #{deconv_nn_forward.6} parent=31 // pred_check_branch
        %1633 = sbr.rel (%p1631) target = $region44
      $region43: #{deconv_nn_forward.6} parent=31 // pred_region
        _
      $region44: #{deconv_nn_forward.6} parent=31 // pred_fallthru
        _
    $region32: #{deconv_nn_forward.6} parent=5 // pred_fallthru
      _
    %p1634 = scmp.le.s32.totalorder 2, %s12
    // Predicated region
    $region45: #{deconv_nn_forward.6} parent=5 // pred_check
      %p1635 = pneg %p1634
    $region46: #{deconv_nn_forward.6} parent=5 // pred_check_branch
      %1637 = sbr.rel (%p1635) target = $region48
    $region47: #{deconv_nn_forward.6} parent=5 // pred_region
      %s1638 = ssub.s32 %s12, 2
      // Predicated region
      $region49: #{deconv_nn_forward.6} parent=47 // pred_check
        %p1639 = pneg %p109
      $region50: #{deconv_nn_forward.6} parent=47 // pred_check_branch
        %1641 = sbr.rel (%p1639) target = $region52
      $region51: #{deconv_nn_forward.6} parent=47 // pred_region
        %s1642 = smul.u32 64, %s18
        %p1643 = scmp.lt.s32.totalorder %s1642, 255
        %s1644 = scalar_select %p1643, %s1642, 255
        %s1645 = smul.addr %s1644, 8
        %s1646 = scalar_lea.vmem %s3, %s1645
      $region52: #{deconv_nn_forward.6} parent=47 // pred_fallthru
        _
      // Predicated region
      $region53: #{deconv_nn_forward.6} parent=47 // pred_check
        %p1647 = pneg %p135
      $region54: #{deconv_nn_forward.6} parent=47 // pred_check_branch
        %1649 = sbr.rel (%p1647) target = $region56
      $region55: #{deconv_nn_forward.6} parent=47 // pred_region
        %p1650 = scmp.lt.s32.totalorder %s18, 3
        %s1651 = scalar_select %p1650, %s18, 3
        %s1652 = smul.addr %s1651, 8
        %s1653 = scalar_lea.vmem %s4, %s1652
      $region56: #{deconv_nn_forward.6} parent=47 // pred_fallthru
        _
      // Predicated region
      $region57: #{deconv_nn_forward.6} parent=47 // pred_check
        %p1654 = pneg %p161
      $region58: #{deconv_nn_forward.6} parent=47 // pred_check_branch
        %1656 = sbr.rel (%p1654) target = $region60
      $region59: #{deconv_nn_forward.6} parent=47 // pred_region
        %p1657 = scmp.lt.s32.totalorder %s18, 3
        %s1658 = scalar_select %p1657, %s18, 3
        %s1659 = smul.addr %s1658, 8
        %s1660 = scalar_lea.vmem %s5, %s1659
      $region60: #{deconv_nn_forward.6} parent=47 // pred_fallthru
        _
    $region48: #{deconv_nn_forward.6} parent=5 // pred_fallthru
      _
  $region6: #{deconv_nn_forward.6} parent=0 // loop_footer
    %s16 = sadd.s32 1, %s12
  $region7: #{deconv_nn_forward.6} parent=0 // loop_footer_branch
    %11 = sbr.rel target = $region3
  $region8: #{deconv_nn_forward.6} parent=0 // loop_exit
    _

// kernel: deconv_nn_forward.8
$region0: #{deconv_nn_forward.8}
  #allocation0 [shape = 'u32[]', space=smem, size = 0x4, offset = 0x4, fixed_abs, tag = 'smem constant byte address 0x4 - core index']
  #allocation1 [shape = 'u32[144,128]{1,0:T(1,128)}', space=vmem, size = 0x12000, scoped, tag = 'internal scratch']
  %s0 = inlined_call_operand.vmem [shape: bf16[2560,72], index: 0, kind: input, shape index: {}]
  %s1 = inlined_call_operand.vmem [shape: bf16[72,128], index: 1, kind: input, shape index: {}]
  %s2 = inlined_call_operand.vmem [shape: f32[1,128], index: 2, kind: input, shape index: {}]
  %s3 = inlined_call_operand.vmem [shape: f32[2560,8], index: 3, kind: output, shape index: {0}]
  %s4 = inlined_call_operand.vmem [shape: f32[40,8], index: 4, kind: output, shape index: {1}]
  %s5 = inlined_call_operand.vmem [shape: f32[40,8], index: 5, kind: output, shape index: {2}]
  %6 = xla_tuple %s3, %s4, %s5
  %s7 = sld [smem:[#allocation0]]
  $region61: #{deconv_nn_forward.8} parent=0
    _
  %s9 = ssub.s32 1, %s7
  %s10 = scalar_select 0, %s9, %s7
  loop: start=0, step=1, limit=7
  $region2: #{deconv_nn_forward.8} parent=0 // loop_pre_header
    _
  $region3: #{deconv_nn_forward.8} parent=0 // loop_header
    %s12 = sphi 0, %s16
    %p13 = scmp.ge.s32.totalorder %s12, 7
    %s22 = sphi 0, %s24
    %s25 = sphi 0, %s22
    %s26 = sphi 0, %s25
    %s42 = sphi 0, %s26
    %s46 = sphi 0, %s46
    %s48 = sphi 0, %s46
    %s49 = sphi 0, %s48
    %s63 = sphi 0, %s49
    %s67 = sphi 0, %s67
    %s69 = sphi 0, %s67
    %s70 = sphi 0, %s69
    %s84 = sphi 0, %s70
    %s90 = sphi 0, %s92
    %s93 = sphi 0, %s90
    %s94 = sphi 0, %s93
    %s110 = sphi 0, %s94
    %s116 = sphi 0, %s118
    %s119 = sphi 0, %s116
    %s120 = sphi 0, %s119
    %s136 = sphi 0, %s120
    %s142 = sphi 0, %s144
    %s145 = sphi 0, %s142
    %s146 = sphi 0, %s145
    %s162 = sphi 0, %s146
  $region4: #{deconv_nn_forward.8} parent=0 // loop_header_branch
    %15 = sbr.rel (%p13) target = $region8
  $region5: #{deconv_nn_forward.8} parent=0 // loop_body
    %s17 = ssub.s32 %s12, 1
    %s18 = ssub.s32 %s12, 2
    %s19 = sadd.s32 %s12, 1
    %s20 = ssub.s32 %s12, %s19
    %p21 = scmp.eq.s32.totalorder %s20, 0
    %s23 = sadd.s32 %s22, 1
    %s24 = scalar_select %p21, %s22, %s23
    %p27 = pneg %p21
    %p28 = scmp.eq.s32.totalorder %s12, 4
    %p29 = por %p27, %p28
    %p30 = scmp.ne.s32.totalorder %s22, %s25
    %p31 = scmp.eq.s32.totalorder %s12, 0
    %p32 = por %p30, %p31
    %p33 = scmp.ne.s32.totalorder %s22, %s25
    %p34 = scmp.eq.s32.totalorder %s17, 4
    %p35 = por %p33, %p34
    %p36 = scmp.ne.s32.totalorder %s25, %s26
    %p37 = scmp.eq.s32.totalorder %s17, 0
    %p38 = por %p36, %p37
    %p39 = scmp.ne.s32.totalorder %s25, %s26
    %p40 = scmp.eq.s32.totalorder %s18, 4
    %p41 = por %p39, %p40
    %p43 = scmp.ne.s32.totalorder %s26, %s42
    %p44 = scmp.eq.s32.totalorder %s18, 0
    %p45 = por %p43, %p44
    %s47 = sadd.s32 %s46, 1
    %p50 = scmp.eq.s32.totalorder %s12, 4
    %p51 = scmp.ne.s32.totalorder %s46, %s48
    %p52 = scmp.eq.s32.totalorder %s12, 0
    %p53 = por %p51, %p52
    %p54 = scmp.ne.s32.totalorder %s46, %s48
    %p55 = scmp.eq.s32.totalorder %s17, 4
    %p56 = por %p54, %p55
    %p57 = scmp.ne.s32.totalorder %s48, %s49
    %p58 = scmp.eq.s32.totalorder %s17, 0
    %p59 = por %p57, %p58
    %p60 = scmp.ne.s32.totalorder %s48, %s49
    %p61 = scmp.eq.s32.totalorder %s18, 4
    %p62 = por %p60, %p61
    %p64 = scmp.ne.s32.totalorder %s49, %s63
    %p65 = scmp.eq.s32.totalorder %s18, 0
    %p66 = por %p64, %p65
    %s68 = sadd.s32 %s67, 1
    %p71 = scmp.eq.s32.totalorder %s12, 4
    %p72 = scmp.ne.s32.totalorder %s67, %s69
    %p73 = scmp.eq.s32.totalorder %s12, 0
    %p74 = por %p72, %p73
    %p75 = scmp.ne.s32.totalorder %s67, %s69
    %p76 = scmp.eq.s32.totalorder %s17, 4
    %p77 = por %p75, %p76
    %p78 = scmp.ne.s32.totalorder %s69, %s70
    %p79 = scmp.eq.s32.totalorder %s17, 0
    %p80 = por %p78, %p79
    %p81 = scmp.ne.s32.totalorder %s69, %s70
    %p82 = scmp.eq.s32.totalorder %s18, 4
    %p83 = por %p81, %p82
    %p85 = scmp.ne.s32.totalorder %s70, %s84
    %p86 = scmp.eq.s32.totalorder %s18, 0
    %p87 = por %p85, %p86
    %s88 = ssub.s32 %s12, %s19
    %p89 = scmp.eq.s32.totalorder %s88, 0
    %s91 = sadd.s32 %s90, 1
    %s92 = scalar_select %p89, %s90, %s91
    %p95 = pneg %p89
    %p96 = scmp.eq.s32.totalorder %s12, 4
    %p97 = por %p95, %p96
    %p98 = scmp.ne.s32.totalorder %s90, %s93
    %p99 = scmp.eq.s32.totalorder %s12, 0
    %p100 = por %p98, %p99
    %p101 = scmp.ne.s32.totalorder %s90, %s93
    %p102 = scmp.eq.s32.totalorder %s17, 4
    %p103 = por %p101, %p102
    %p104 = scmp.ne.s32.totalorder %s93, %s94
    %p105 = scmp.eq.s32.totalorder %s17, 0
    %p106 = por %p104, %p105
    %p107 = scmp.ne.s32.totalorder %s93, %s94
    %p108 = scmp.eq.s32.totalorder %s18, 4
    %p109 = por %p107, %p108
    %p111 = scmp.ne.s32.totalorder %s94, %s110
    %p112 = scmp.eq.s32.totalorder %s18, 0
    %p113 = por %p111, %p112
    %s114 = ssub.s32 %s12, %s19
    %p115 = scmp.eq.s32.totalorder %s114, 0
    %s117 = sadd.s32 %s116, 1
    %s118 = scalar_select %p115, %s116, %s117
    %p121 = pneg %p115
    %p122 = scmp.eq.s32.totalorder %s12, 4
    %p123 = por %p121, %p122
    %p124 = scmp.ne.s32.totalorder %s116, %s119
    %p125 = scmp.eq.s32.totalorder %s12, 0
    %p126 = por %p124, %p125
    %p127 = scmp.ne.s32.totalorder %s116, %s119
    %p128 = scmp.eq.s32.totalorder %s17, 4
    %p129 = por %p127, %p128
    %p130 = scmp.ne.s32.totalorder %s119, %s120
    %p131 = scmp.eq.s32.totalorder %s17, 0
    %p132 = por %p130, %p131
    %p133 = scmp.ne.s32.totalorder %s119, %s120
    %p134 = scmp.eq.s32.totalorder %s18, 4
    %p135 = por %p133, %p134
    %p137 = scmp.ne.s32.totalorder %s120, %s136
    %p138 = scmp.eq.s32.totalorder %s18, 0
    %p139 = por %p137, %p138
    %s140 = ssub.s32 %s12, %s19
    %p141 = scmp.eq.s32.totalorder %s140, 0
    %s143 = sadd.s32 %s142, 1
    %s144 = scalar_select %p141, %s142, %s143
    %p147 = pneg %p141
    %p148 = scmp.eq.s32.totalorder %s12, 4
    %p149 = por %p147, %p148
    %p150 = scmp.ne.s32.totalorder %s142, %s145
    %p151 = scmp.eq.s32.totalorder %s12, 0
    %p152 = por %p150, %p151
    %p153 = scmp.ne.s32.totalorder %s142, %s145
    %p154 = scmp.eq.s32.totalorder %s17, 4
    %p155 = por %p153, %p154
    %p156 = scmp.ne.s32.totalorder %s145, %s146
    %p157 = scmp.eq.s32.totalorder %s17, 0
    %p158 = por %p156, %p157
    %p159 = scmp.ne.s32.totalorder %s145, %s146
    %p160 = scmp.eq.s32.totalorder %s18, 4
    %p161 = por %p159, %p160
    %p163 = scmp.ne.s32.totalorder %s146, %s162
    %p164 = scmp.eq.s32.totalorder %s18, 0
    %p165 = por %p163, %p164
    %p166 = scmp.le.s32.totalorder 1, %s12
    %p167 = scmp.lt.s32.totalorder %s12, 6
    %p168 = pnand %p166, %p167
    %p169 = pneg %p168
    // Predicated region
    $region9: #{deconv_nn_forward.8} parent=5 // pred_check
      _
    $region10: #{deconv_nn_forward.8} parent=5 // pred_check_branch
      %171 = sbr.rel (%p168) target = $region12
    $region11: #{deconv_nn_forward.8} parent=5 // pred_region
      %s172 = ssub.s32 %s12, 1
      // Predicated region
      $region13: #{deconv_nn_forward.8} parent=11 // pred_check
        %p173 = pneg %p59
      $region14: #{deconv_nn_forward.8} parent=11 // pred_check_branch
        %175 = sbr.rel (%p173) target = $region16
      $region15: #{deconv_nn_forward.8} parent=11 // pred_region
        _
      $region16: #{deconv_nn_forward.8} parent=11 // pred_fallthru
        _
      // Predicated region
      $region17: #{deconv_nn_forward.8} parent=11 // pred_check
        %p176 = pneg %p80
      $region18: #{deconv_nn_forward.8} parent=11 // pred_check_branch
        %178 = sbr.rel (%p176) target = $region20
      $region19: #{deconv_nn_forward.8} parent=11 // pred_region
        _
      $region20: #{deconv_nn_forward.8} parent=11 // pred_fallthru
        _
    $region12: #{deconv_nn_forward.8} parent=5 // pred_fallthru
      _
    %p179 = scmp.lt.s32.totalorder %s12, 5
    // Predicated region
    $region21: #{deconv_nn_forward.8} parent=5 // pred_check
      %p180 = pneg %p179
    $region22: #{deconv_nn_forward.8} parent=5 // pred_check_branch
      %182 = sbr.rel (%p180) target = $region24
    $region23: #{deconv_nn_forward.8} parent=5 // pred_region
      // Predicated region
      $region25: #{deconv_nn_forward.8} parent=23 // pred_check
        %p183 = pneg %p32
      $region26: #{deconv_nn_forward.8} parent=23 // pred_check_branch
        %185 = sbr.rel (%p183) target = $region28
      $region27: #{deconv_nn_forward.8} parent=23 // pred_region
        %s186 = smul.u32 64, %s12
        %p187 = scmp.lt.s32.totalorder %s186, 319
        %s188 = scalar_select %p187, %s186, 319
        %s189 = smul.addr %s188, 4
        %s190 = scalar_lea.vmem %s0, %s189
        %s191 = smul.u32 64, %s12
      $region28: #{deconv_nn_forward.8} parent=23 // pred_fallthru
        _
    $region24: #{deconv_nn_forward.8} parent=5 // pred_fallthru
      _
    %p192 = scmp.le.s32.totalorder 1, %s12
    %p193 = scmp.lt.s32.totalorder %s12, 6
    %p194 = pnand %p192, %p193
    %p195 = pneg %p194
    // Predicated region
    $region29: #{deconv_nn_forward.8} parent=5 // pred_check
      _
    $region30: #{deconv_nn_forward.8} parent=5 // pred_check_branch
      %197 = sbr.rel (%p194) target = $region32
    $region31: #{deconv_nn_forward.8} parent=5 // pred_region
      %s198 = ssub.s32 %s12, 1
      %s199 = smul.u32 64, %s17
      %p200 = scmp.lt.s32.totalorder %s199, 319
      %s201 = scalar_select %p200, %s199, 319
      %s202 = smul.addr %s201, 4
      %s203 = scalar_lea.vmem %s0, %s202
      %p204 = pneg %p38
      %p205 = pneg %p35
      %p206 = pneg %p59
      %p207 = pneg %p56
      %p208 = pneg %p80
      %p209 = pneg %p77
      %p210 = pneg %p106
      %p211 = pneg %p103
      %s212 = smul.u32 64, %s17
      %p213 = scmp.lt.s32.totalorder %s212, 319
      %s214 = scalar_select %p213, %s212, 319
      %s215 = smul.addr %s214, 8
      %s216 = scalar_lea.vmem %s3, %s215
      %p217 = pneg %p132
      %p218 = pneg %p129
      %p219 = scmp.lt.s32.totalorder %s17, 4
      %s220 = scalar_select %p219, %s17, 4
      %s221 = smul.addr %s220, 8
      %s222 = scalar_lea.vmem %s4, %s221
      %p223 = pneg %p158
      %p224 = pneg %p155
      %p225 = scmp.lt.s32.totalorder %s17, 4
      %s226 = scalar_select %p225, %s17, 4
      %s227 = smul.addr %s226, 8
      %s228 = scalar_lea.vmem %s5, %s227
      %s229 = smul.u32 64, %s17
      %p230 = scmp.lt.s32.totalorder %s229, 319
      %s231 = scalar_select %p230, %s229, 319
      %s232 = smul.addr %s231, 4
      %s233 = scalar_lea.vmem %s0, %s232
      %s234 = smul.u32 64, %s17
      %s235 = smul.u32 64, %s17
      %p236 = scmp.lt.s32.totalorder %s235, 319
      %s237 = scalar_select %p236, %s235, 319
      %s238 = smul.addr %s237, 8
      %s239 = scalar_lea.vmem %s3, %s238
      %s240 = smul.u32 64, %s17
      %p241 = scmp.lt.s32.totalorder %s17, 4
      %s242 = scalar_select %p241, %s17, 4
      %s243 = smul.addr %s242, 8
      %s244 = scalar_lea.vmem %s4, %s243
      %p245 = scmp.lt.s32.totalorder %s17, 4
      %s246 = scalar_select %p245, %s17, 4
      %s247 = smul.addr %s246, 8
      %s248 = scalar_lea.vmem %s5, %s247
      %v250 = vld [vmem:[%s233] sm:$0xf]
      %v251 = vld [vmem:[%s233 + $0x4] sm:$0xf]
      %v252 = vld [vmem:[%s233 + $0x8] sm:$0xf]
      %v253 = vld [vmem:[%s233 + $0xc] sm:$0xf]
      %v254 = vld [vmem:[%s233 + $0x10] sm:$0xf]
      %v255 = vld [vmem:[%s233 + $0x14] sm:$0xf]
      %v256 = vld [vmem:[%s233 + $0x18] sm:$0xf]
      %v257 = vld [vmem:[%s233 + $0x1c] sm:$0xf]
      %v258 = vld [vmem:[%s233 + $0x20] sm:$0xf]
      %v259 = vld [vmem:[%s233 + $0x24] sm:$0xf]
      %v260 = vld [vmem:[%s233 + $0x28] sm:$0xf]
      %v261 = vld [vmem:[%s233 + $0x2c] sm:$0xf]
      %v262 = vld [vmem:[%s233 + $0x30] sm:$0xf]
      %v263 = vld [vmem:[%s233 + $0x34] sm:$0xf]
      %v264 = vld [vmem:[%s233 + $0x38] sm:$0xf]
      %v265 = vld [vmem:[%s233 + $0x3c] sm:$0xf]
      %v266 = vld [vmem:[%s233 + $0x40] sm:$0xf]
      %v267 = vld [vmem:[%s233 + $0x44] sm:$0xf]
      %v268 = vld [vmem:[%s233 + $0x48] sm:$0xf]
      %v269 = vld [vmem:[%s233 + $0x4c] sm:$0xf]
      %v270 = vld [vmem:[%s233 + $0x50] sm:$0xf]
      %v271 = vld [vmem:[%s233 + $0x54] sm:$0xf]
      %v272 = vld [vmem:[%s233 + $0x58] sm:$0xf]
      %v273 = vld [vmem:[%s233 + $0x5c] sm:$0xf]
      %v274 = vld [vmem:[%s233 + $0x60] sm:$0xf]
      %v275 = vld [vmem:[%s233 + $0x64] sm:$0xf]
      %v276 = vld [vmem:[%s233 + $0x68] sm:$0xf]
      %v277 = vld [vmem:[%s233 + $0x6c] sm:$0xf]
      %v278 = vld [vmem:[%s233 + $0x70] sm:$0xf]
      %v279 = vld [vmem:[%s233 + $0x74] sm:$0xf]
      %v280 = vld [vmem:[%s233 + $0x78] sm:$0xf]
      %v281 = vld [vmem:[%s233 + $0x7c] sm:$0xf]
      %v282 = vld [vmem:[%s233 + $0x80] sm:$0xf]
      %v283 = vld [vmem:[%s233 + $0x84] sm:$0xf]
      %v284 = vld [vmem:[%s233 + $0x88] sm:$0xf]
      %v285 = vld [vmem:[%s233 + $0x8c] sm:$0xf]
      %v286 = vld [vmem:[%s233 + $0x90] sm:$0xf]
      %v287 = vld [vmem:[%s233 + $0x94] sm:$0xf]
      %v288 = vld [vmem:[%s233 + $0x98] sm:$0xf]
      %v289 = vld [vmem:[%s233 + $0x9c] sm:$0xf]
      %v290 = vld [vmem:[%s233 + $0xa0] sm:$0xf]
      %v291 = vld [vmem:[%s233 + $0xa4] sm:$0xf]
      %v292 = vld [vmem:[%s233 + $0xa8] sm:$0xf]
      %v293 = vld [vmem:[%s233 + $0xac] sm:$0xf]
      %v294 = vld [vmem:[%s233 + $0xb0] sm:$0xf]
      %v295 = vld [vmem:[%s233 + $0xb4] sm:$0xf]
      %v296 = vld [vmem:[%s233 + $0xb8] sm:$0xf]
      %v297 = vld [vmem:[%s233 + $0xbc] sm:$0xf]
      %v298 = vld [vmem:[%s233 + $0xc0] sm:$0xf]
      %v299 = vld [vmem:[%s233 + $0xc4] sm:$0xf]
      %v300 = vld [vmem:[%s233 + $0xc8] sm:$0xf]
      %v301 = vld [vmem:[%s233 + $0xcc] sm:$0xf]
      %v302 = vld [vmem:[%s233 + $0xd0] sm:$0xf]
      %v303 = vld [vmem:[%s233 + $0xd4] sm:$0xf]
      %v304 = vld [vmem:[%s233 + $0xd8] sm:$0xf]
      %v305 = vld [vmem:[%s233 + $0xdc] sm:$0xf]
      %v306 = vld [vmem:[%s233 + $0xe0] sm:$0xf]
      %v307 = vld [vmem:[%s233 + $0xe4] sm:$0xf]
      %v308 = vld [vmem:[%s233 + $0xe8] sm:$0xf]
      %v309 = vld [vmem:[%s233 + $0xec] sm:$0xf]
      %v310 = vld [vmem:[%s233 + $0xf0] sm:$0xf]
      %v311 = vld [vmem:[%s233 + $0xf4] sm:$0xf]
      %v312 = vld [vmem:[%s233 + $0xf8] sm:$0xf]
      %v313 = vld [vmem:[%s233 + $0xfc] sm:$0xf]
      %v314 = vld [vmem:[%s1] sm:$0xf]
      %v315 = vld [vmem:[%s1 + $0x4] sm:$0xf]
      %v316 = vld [vmem:[%s1 + $0x8] sm:$0xf]
      %v317 = vld [vmem:[%s1 + $0xc] sm:$0xf]
      %v318 = vld [vmem:[%s1 + $0x10] sm:$0xf]
      %v319 = vld [vmem:[%s1 + $0x14] sm:$0xf]
      %v320 = vld [vmem:[%s1 + $0x18] sm:$0xf]
      %v321 = vld [vmem:[%s1 + $0x1c] sm:$0xf]
      %v322 = vld [vmem:[%s1 + $0x20] sm:$0xf]
      %v323 = vld [vmem:[%s2] sm:$0x1]
      %v325 = vlaneseq
      %v326 = vshrl.u32 %v325, 7
      %v327 = vsub.s32 0, %v326
      %v328 = vrot.slane %v323, %v327
      %v394 = vunpack.c.l.b16 %v250
      %v395 = vunpack.c.l.b16 %v251
      %v396 = vunpack.c.l.b16 %v252
      %v397 = vunpack.c.l.b16 %v253
      %v398 = vunpack.c.l.b16 %v254
      %v399 = vunpack.c.l.b16 %v255
      %v400 = vunpack.c.l.b16 %v256
      %v401 = vunpack.c.l.b16 %v257
      %v402 = vunpack.c.l.b16 %v258
      %v403 = vunpack.c.l.b16 %v259
      %v404 = vunpack.c.l.b16 %v260
      %v405 = vunpack.c.l.b16 %v261
      %v406 = vunpack.c.l.b16 %v262
      %v407 = vunpack.c.l.b16 %v263
      %v408 = vunpack.c.l.b16 %v264
      %v409 = vunpack.c.l.b16 %v265
      %v410 = vunpack.c.l.b16 %v266
      %v411 = vunpack.c.l.b16 %v267
      %v412 = vunpack.c.l.b16 %v268
      %v413 = vunpack.c.l.b16 %v269
      %v414 = vunpack.c.l.b16 %v270
      %v415 = vunpack.c.l.b16 %v271
      %v416 = vunpack.c.l.b16 %v272
      %v417 = vunpack.c.l.b16 %v273
      %v418 = vunpack.c.l.b16 %v274
      %v419 = vunpack.c.l.b16 %v275
      %v420 = vunpack.c.l.b16 %v276
      %v421 = vunpack.c.l.b16 %v277
      %v422 = vunpack.c.l.b16 %v278
      %v423 = vunpack.c.l.b16 %v279
      %v424 = vunpack.c.l.b16 %v280
      %v425 = vunpack.c.l.b16 %v281
      %v426 = vunpack.c.l.b16 %v282
      %v427 = vunpack.c.l.b16 %v283
      %v428 = vunpack.c.l.b16 %v284
      %v429 = vunpack.c.l.b16 %v285
      %v430 = vunpack.c.l.b16 %v286
      %v431 = vunpack.c.l.b16 %v287
      %v432 = vunpack.c.l.b16 %v288
      %v433 = vunpack.c.l.b16 %v289
      %v434 = vunpack.c.l.b16 %v290
      %v435 = vunpack.c.l.b16 %v291
      %v436 = vunpack.c.l.b16 %v292
      %v437 = vunpack.c.l.b16 %v293
      %v438 = vunpack.c.l.b16 %v294
      %v439 = vunpack.c.l.b16 %v295
      %v440 = vunpack.c.l.b16 %v296
      %v441 = vunpack.c.l.b16 %v297
      %v442 = vunpack.c.l.b16 %v298
      %v443 = vunpack.c.l.b16 %v299
      %v444 = vunpack.c.l.b16 %v300
      %v445 = vunpack.c.l.b16 %v301
      %v446 = vunpack.c.l.b16 %v302
      %v447 = vunpack.c.l.b16 %v303
      %v448 = vunpack.c.l.b16 %v304
      %v449 = vunpack.c.l.b16 %v305
      %v450 = vunpack.c.l.b16 %v306
      %v451 = vunpack.c.l.b16 %v307
      %v452 = vunpack.c.l.b16 %v308
      %v453 = vunpack.c.l.b16 %v309
      %v454 = vunpack.c.l.b16 %v310
      %v455 = vunpack.c.l.b16 %v311
      %v456 = vunpack.c.l.b16 %v312
      %v457 = vunpack.c.l.b16 %v313
      %v458 = vpack.c.b16 %v395, %v394
      %v459 = vpack.c.b16 %v397, %v396
      %v460 = vpack.c.b16 %v399, %v398
      %v461 = vpack.c.b16 %v401, %v400
      %v462 = vpack.c.b16 %v403, %v402
      %v463 = vpack.c.b16 %v405, %v404
      %v464 = vpack.c.b16 %v407, %v406
      %v465 = vpack.c.b16 %v409, %v408
      %v466 = vpack.c.b16 %v411, %v410
      %v467 = vpack.c.b16 %v413, %v412
      %v468 = vpack.c.b16 %v415, %v414
      %v469 = vpack.c.b16 %v417, %v416
      %v470 = vpack.c.b16 %v419, %v418
      %v471 = vpack.c.b16 %v421, %v420
      %v472 = vpack.c.b16 %v423, %v422
      %v473 = vpack.c.b16 %v425, %v424
      %v474 = vpack.c.b16 %v427, %v426
      %v475 = vpack.c.b16 %v429, %v428
      %v476 = vpack.c.b16 %v431, %v430
      %v477 = vpack.c.b16 %v433, %v432
      %v478 = vpack.c.b16 %v435, %v434
      %v479 = vpack.c.b16 %v437, %v436
      %v480 = vpack.c.b16 %v439, %v438
      %v481 = vpack.c.b16 %v441, %v440
      %v482 = vpack.c.b16 %v443, %v442
      %v483 = vpack.c.b16 %v445, %v444
      %v484 = vpack.c.b16 %v447, %v446
      %v485 = vpack.c.b16 %v449, %v448
      %v486 = vpack.c.b16 %v451, %v450
      %v487 = vpack.c.b16 %v453, %v452
      %v488 = vpack.c.b16 %v455, %v454
      %v489 = vpack.c.b16 %v457, %v456
      %v499 = vunpack.c.l.b16 %v314
      %v500 = vunpack.c.l.b16 %v315
      %v501 = vunpack.c.l.b16 %v316
      %v502 = vunpack.c.l.b16 %v317
      %v503 = vunpack.c.l.b16 %v318
      %v504 = vunpack.c.l.b16 %v319
      %v505 = vunpack.c.l.b16 %v320
      %v506 = vunpack.c.l.b16 %v321
      %v507 = vunpack.c.l.b16 %v322
      %v508 = vpack.c.b16 %v500, %v499
      %v509 = vpack.c.b16 %v502, %v501
      %v510 = vpack.c.b16 %v504, %v503
      %v511 = vpack.c.b16 %v506, %v505
      %v512 = vpack.c.b16 %v507, %v507
      %vm517 = vcmask 588800
      %v519 = vsel %vm517, %v458, 0
      %v522 = vsel %vm517, %v459, 0
      %v525 = vsel %vm517, %v460, 0
      %v528 = vsel %vm517, %v461, 0
      %v531 = vsel %vm517, %v462, 0
      %v534 = vsel %vm517, %v463, 0
      %v537 = vsel %vm517, %v464, 0
      %v540 = vsel %vm517, %v465, 0
      %v543 = vsel %vm517, %v466, 0
      %v546 = vsel %vm517, %v467, 0
      %v549 = vsel %vm517, %v468, 0
      %v552 = vsel %vm517, %v469, 0
      %v555 = vsel %vm517, %v470, 0
      %v558 = vsel %vm517, %v471, 0
      %v561 = vsel %vm517, %v472, 0
      %v564 = vsel %vm517, %v473, 0
      %v567 = vsel %vm517, %v474, 0
      %v570 = vsel %vm517, %v475, 0
      %v573 = vsel %vm517, %v476, 0
      %v576 = vsel %vm517, %v477, 0
      %v579 = vsel %vm517, %v478, 0
      %v582 = vsel %vm517, %v479, 0
      %v585 = vsel %vm517, %v480, 0
      %v588 = vsel %vm517, %v481, 0
      %v591 = vsel %vm517, %v482, 0
      %v594 = vsel %vm517, %v483, 0
      %v597 = vsel %vm517, %v484, 0
      %v600 = vsel %vm517, %v485, 0
      %v603 = vsel %vm517, %v486, 0
      %v606 = vsel %vm517, %v487, 0
      %v609 = vsel %vm517, %v488, 0
      %v612 = vsel %vm517, %v489, 0
      %vm614 = vcmask 1043456
      %v616 = vsel %vm614, %v512, 0
      %618 = vmatprep.subr.bf16.mxu0 0
      %619 = vmatpush1.bf16.msra.mxu0 %v508
      %620 = vmatprep.subr.bf16.mxu0 0
      %621 = vmatpush1.bf16.msra.mxu0 %v509
      %622 = vmatprep.subr.bf16.mxu0 0
      %623 = vmatpush1.bf16.msra.mxu0 %v510
      %624 = vmatprep.subr.bf16.mxu0 0
      %625 = vmatpush1.bf16.msra.mxu0 %v511
      %626 = vmatprep.subr.bf16.mxu0 0
      %627 = vmatpush1.bf16.msra.mxu0 %v616
      %628 = vmatprep.subr.bf16.mxu0 0
      %629 = vmatpush1.bf16.msra.mxu0 0
      %630 = vmatprep.subr.bf16.mxu0 0
      %631 = vmatpush1.bf16.msra.mxu0 0
      %632 = vmatprep.subr.bf16.mxu0 0
      %633 = vmatpush1.bf16.msra.mxu0 0
      %634 = vmatprep.subr.bf16.mxu0 0
      %635 = vmatpush1.bf16.msra.mxu0 0
      %636 = vmatprep.subr.bf16.mxu0 0
      %637 = vmatpush1.bf16.msra.mxu0 0
      %638 = vmatprep.subr.bf16.mxu0 0
      %639 = vmatpush1.bf16.msra.mxu0 0
      %640 = vmatprep.subr.bf16.mxu0 0
      %641 = vmatpush1.bf16.msra.mxu0 0
      %642 = vmatprep.subr.bf16.mxu0 0
      %643 = vmatpush1.bf16.msra.mxu0 0
      %644 = vmatprep.subr.bf16.mxu0 0
      %645 = vmatpush1.bf16.msra.mxu0 0
      %646 = vmatprep.subr.bf16.mxu0 0
      %647 = vmatpush1.bf16.msra.mxu0 0
      %648 = vmatprep.subr.bf16.mxu0 0
      %649 = vmatpush1.bf16.msra.mxu0 0
      %650 = vmatprep.mubr.bf16.mxu0 0
      %651 = vmatmul.mubr.bf16.gmra.mrb[0].mxu0 %v519
      %v652 = vpop.f32.mrb[0].mxu0
      %v653 = vadd.f32 %v328, %v652
      %v654 = vpop.f32.mrb[0].mxu0
      %v655 = vpop.f32.mrb[0].mxu0
      %v656 = vadd.f32 %v328, %v655
      %v657 = vpop.f32.mrb[0].mxu0
      %658 = vmatprep.mubr.bf16.mxu0 0
      %659 = vmatmul.mubr.bf16.gmra.mrb[0].mxu0 %v522
      %v660 = vpop.f32.mrb[0].mxu0
      %v661 = vadd.f32 %v328, %v660
      %v662 = vpop.f32.mrb[0].mxu0
      %v663 = vpop.f32.mrb[0].mxu0
      %v664 = vadd.f32 %v328, %v663
      %v665 = vpop.f32.mrb[0].mxu0
      %666 = vmatprep.mubr.bf16.mxu0 0
      %667 = vmatmul.mubr.bf16.gmra.mrb[0].mxu0 %v525
      %v668 = vpop.f32.mrb[0].mxu0
      %v669 = vadd.f32 %v328, %v668
      %v670 = vpop.f32.mrb[0].mxu0
      %v671 = vpop.f32.mrb[0].mxu0
      %v672 = vadd.f32 %v328, %v671
      %v673 = vpop.f32.mrb[0].mxu0
      %674 = vmatprep.mubr.bf16.mxu0 0
      %675 = vmatmul.mubr.bf16.gmra.mrb[0].mxu0 %v528
      %v676 = vpop.f32.mrb[0].mxu0
      %v677 = vadd.f32 %v328, %v676
      %v678 = vpop.f32.mrb[0].mxu0
      %v679 = vpop.f32.mrb[0].mxu0
      %v680 = vadd.f32 %v328, %v679
      %v681 = vpop.f32.mrb[0].mxu0
      %682 = vmatprep.mubr.bf16.mxu0 0
      %683 = vmatmul.mubr.bf16.gmra.mrb[0].mxu0 %v531
      %v684 = vpop.f32.mrb[0].mxu0
      %v685 = vadd.f32 %v328, %v684
      %v686 = vpop.f32.mrb[0].mxu0
      %v687 = vpop.f32.mrb[0].mxu0
      %v688 = vadd.f32 %v328, %v687
      %v689 = vpop.f32.mrb[0].mxu0
      %690 = vmatprep.mubr.bf16.mxu0 0
      %691 = vmatmul.mubr.bf16.gmra.mrb[0].mxu0 %v534
      %v692 = vpop.f32.mrb[0].mxu0
      %v693 = vadd.f32 %v328, %v692
      %v694 = vpop.f32.mrb[0].mxu0
      %v695 = vpop.f32.mrb[0].mxu0
      %v696 = vadd.f32 %v328, %v695
      %v697 = vpop.f32.mrb[0].mxu0
      %698 = vmatprep.mubr.bf16.mxu0 0
      %699 = vmatmul.mubr.bf16.gmra.mrb[0].mxu0 %v537
      %v700 = vpop.f32.mrb[0].mxu0
      %v701 = vadd.f32 %v328, %v700
      %v702 = vpop.f32.mrb[0].mxu0
      %v703 = vpop.f32.mrb[0].mxu0
      %v704 = vadd.f32 %v328, %v703
      %v705 = vpop.f32.mrb[0].mxu0
      %706 = vmatprep.mubr.bf16.mxu0 0
      %707 = vmatmul.mubr.bf16.gmra.mrb[0].mxu0 %v540
      %v708 = vpop.f32.mrb[0].mxu0
      %v709 = vadd.f32 %v328, %v708
      %v710 = vpop.f32.mrb[0].mxu0
      %v711 = vpop.f32.mrb[0].mxu0
      %v712 = vadd.f32 %v328, %v711
      %v713 = vpop.f32.mrb[0].mxu0
      %714 = vmatprep.mubr.bf16.mxu0 0
      %715 = vmatmul.mubr.bf16.gmra.mrb[0].mxu0 %v543
      %v716 = vpop.f32.mrb[0].mxu0
      %v717 = vadd.f32 %v328, %v716
      %v718 = vpop.f32.mrb[0].mxu0
      %v719 = vpop.f32.mrb[0].mxu0
      %v720 = vadd.f32 %v328, %v719
      %v721 = vpop.f32.mrb[0].mxu0
      %722 = vmatprep.mubr.bf16.mxu0 0
      %723 = vmatmul.mubr.bf16.gmra.mrb[0].mxu0 %v546
      %v724 = vpop.f32.mrb[0].mxu0
      %v725 = vadd.f32 %v328, %v724
      %v726 = vpop.f32.mrb[0].mxu0
      %v727 = vpop.f32.mrb[0].mxu0
      %v728 = vadd.f32 %v328, %v727
      %v729 = vpop.f32.mrb[0].mxu0
      %730 = vmatprep.mubr.bf16.mxu0 0
      %731 = vmatmul.mubr.bf16.gmra.mrb[0].mxu0 %v549
      %v732 = vpop.f32.mrb[0].mxu0
      %v733 = vadd.f32 %v328, %v732
      %v734 = vpop.f32.mrb[0].mxu0
      %v735 = vpop.f32.mrb[0].mxu0
      %v736 = vadd.f32 %v328, %v735
      %v737 = vpop.f32.mrb[0].mxu0
      %738 = vmatprep.mubr.bf16.mxu0 0
      %739 = vmatmul.mubr.bf16.gmra.mrb[0].mxu0 %v552
      %v740 = vpop.f32.mrb[0].mxu0
      %v741 = vadd.f32 %v328, %v740
      %v742 = vpop.f32.mrb[0].mxu0
      %v743 = vpop.f32.mrb[0].mxu0
      %v744 = vadd.f32 %v328, %v743
      %v745 = vpop.f32.mrb[0].mxu0
      %746 = vmatprep.mubr.bf16.mxu0 0
      %747 = vmatmul.mubr.bf16.gmra.mrb[0].mxu0 %v555
      %v748 = vpop.f32.mrb[0].mxu0
      %v749 = vadd.f32 %v328, %v748
      %v750 = vpop.f32.mrb[0].mxu0
      %v751 = vpop.f32.mrb[0].mxu0
      %v752 = vadd.f32 %v328, %v751
      %v753 = vpop.f32.mrb[0].mxu0
      %754 = vmatprep.mubr.bf16.mxu0 0
      %755 = vmatmul.mubr.bf16.gmra.mrb[0].mxu0 %v558
      %v756 = vpop.f32.mrb[0].mxu0
      %v757 = vadd.f32 %v328, %v756
      %v758 = vpop.f32.mrb[0].mxu0
      %v759 = vpop.f32.mrb[0].mxu0
      %v760 = vadd.f32 %v328, %v759
      %v761 = vpop.f32.mrb[0].mxu0
      %762 = vmatprep.mubr.bf16.mxu0 0
      %763 = vmatmul.mubr.bf16.gmra.mrb[0].mxu0 %v561
      %v764 = vpop.f32.mrb[0].mxu0
      %v765 = vadd.f32 %v328, %v764
      %v766 = vpop.f32.mrb[0].mxu0
      %v767 = vpop.f32.mrb[0].mxu0
      %v768 = vadd.f32 %v328, %v767
      %v769 = vpop.f32.mrb[0].mxu0
      %770 = vmatprep.mubr.bf16.mxu0 0
      %771 = vmatmul.mubr.bf16.gmra.mrb[0].mxu0 %v564
      %v772 = vpop.f32.mrb[0].mxu0
      %v773 = vadd.f32 %v328, %v772
      %v774 = vpop.f32.mrb[0].mxu0
      %v775 = vpop.f32.mrb[0].mxu0
      %v776 = vadd.f32 %v328, %v775
      %v777 = vpop.f32.mrb[0].mxu0
      %778 = vmatprep.mubr.bf16.mxu0 0
      %779 = vmatmul.mubr.bf16.gmra.mrb[0].mxu0 %v567
      %v780 = vpop.f32.mrb[0].mxu0
      %v781 = vadd.f32 %v328, %v780
      %v782 = vpop.f32.mrb[0].mxu0
      %v783 = vpop.f32.mrb[0].mxu0
      %v784 = vadd.f32 %v328, %v783
      %v785 = vpop.f32.mrb[0].mxu0
      %786 = vmatprep.mubr.bf16.mxu0 0
      %787 = vmatmul.mubr.bf16.gmra.mrb[0].mxu0 %v570
      %v788 = vpop.f32.mrb[0].mxu0
      %v789 = vadd.f32 %v328, %v788
      %v790 = vpop.f32.mrb[0].mxu0
      %v791 = vpop.f32.mrb[0].mxu0
      %v792 = vadd.f32 %v328, %v791
      %v793 = vpop.f32.mrb[0].mxu0
      %794 = vmatprep.mubr.bf16.mxu0 0
      %795 = vmatmul.mubr.bf16.gmra.mrb[0].mxu0 %v573
      %v796 = vpop.f32.mrb[0].mxu0
      %v797 = vadd.f32 %v328, %v796
      %v798 = vpop.f32.mrb[0].mxu0
      %v799 = vpop.f32.mrb[0].mxu0
      %v800 = vadd.f32 %v328, %v799
      %v801 = vpop.f32.mrb[0].mxu0
      %802 = vmatprep.mubr.bf16.mxu0 0
      %803 = vmatmul.mubr.bf16.gmra.mrb[0].mxu0 %v576
      %v804 = vpop.f32.mrb[0].mxu0
      %v805 = vadd.f32 %v328, %v804
      %v806 = vpop.f32.mrb[0].mxu0
      %v807 = vpop.f32.mrb[0].mxu0
      %v808 = vadd.f32 %v328, %v807
      %v809 = vpop.f32.mrb[0].mxu0
      %810 = vmatprep.mubr.bf16.mxu0 0
      %811 = vmatmul.mubr.bf16.gmra.mrb[0].mxu0 %v579
      %v812 = vpop.f32.mrb[0].mxu0
      %v813 = vadd.f32 %v328, %v812
      %v814 = vpop.f32.mrb[0].mxu0
      %v815 = vpop.f32.mrb[0].mxu0
      %v816 = vadd.f32 %v328, %v815
      %v817 = vpop.f32.mrb[0].mxu0
      %818 = vmatprep.mubr.bf16.mxu0 0
      %819 = vmatmul.mubr.bf16.gmra.mrb[0].mxu0 %v582
      %v820 = vpop.f32.mrb[0].mxu0
      %v821 = vadd.f32 %v328, %v820
      %v822 = vpop.f32.mrb[0].mxu0
      %v823 = vpop.f32.mrb[0].mxu0
      %v824 = vadd.f32 %v328, %v823
      %v825 = vpop.f32.mrb[0].mxu0
      %826 = vmatprep.mubr.bf16.mxu0 0
      %827 = vmatmul.mubr.bf16.gmra.mrb[0].mxu0 %v585
      %v828 = vpop.f32.mrb[0].mxu0
      %v829 = vadd.f32 %v328, %v828
      %v830 = vpop.f32.mrb[0].mxu0
      %v831 = vpop.f32.mrb[0].mxu0
      %v832 = vadd.f32 %v328, %v831
      %v833 = vpop.f32.mrb[0].mxu0
      %834 = vmatprep.mubr.bf16.mxu0 0
      %835 = vmatmul.mubr.bf16.gmra.mrb[0].mxu0 %v588
      %v836 = vpop.f32.mrb[0].mxu0
      %v837 = vadd.f32 %v328, %v836
      %v838 = vpop.f32.mrb[0].mxu0
      %v839 = vpop.f32.mrb[0].mxu0
      %v840 = vadd.f32 %v328, %v839
      %v841 = vpop.f32.mrb[0].mxu0
      %842 = vmatprep.mubr.bf16.mxu0 0
      %843 = vmatmul.mubr.bf16.gmra.mrb[0].mxu0 %v591
      %v844 = vpop.f32.mrb[0].mxu0
      %v845 = vadd.f32 %v328, %v844
      %v846 = vpop.f32.mrb[0].mxu0
      %v847 = vpop.f32.mrb[0].mxu0
      %v848 = vadd.f32 %v328, %v847
      %v849 = vpop.f32.mrb[0].mxu0
      %850 = vmatprep.mubr.bf16.mxu0 0
      %851 = vmatmul.mubr.bf16.gmra.mrb[0].mxu0 %v594
      %v852 = vpop.f32.mrb[0].mxu0
      %v853 = vadd.f32 %v328, %v852
      %v854 = vpop.f32.mrb[0].mxu0
      %v855 = vpop.f32.mrb[0].mxu0
      %v856 = vadd.f32 %v328, %v855
      %v857 = vpop.f32.mrb[0].mxu0
      %858 = vmatprep.mubr.bf16.mxu0 0
      %859 = vmatmul.mubr.bf16.gmra.mrb[0].mxu0 %v597
      %v860 = vpop.f32.mrb[0].mxu0
      %v861 = vadd.f32 %v328, %v860
      %v862 = vpop.f32.mrb[0].mxu0
      %v863 = vpop.f32.mrb[0].mxu0
      %v864 = vadd.f32 %v328, %v863
      %v865 = vpop.f32.mrb[0].mxu0
      %866 = vmatprep.mubr.bf16.mxu0 0
      %867 = vmatmul.mubr.bf16.gmra.mrb[0].mxu0 %v600
      %v868 = vpop.f32.mrb[0].mxu0
      %v869 = vadd.f32 %v328, %v868
      %v870 = vpop.f32.mrb[0].mxu0
      %v871 = vpop.f32.mrb[0].mxu0
      %v872 = vadd.f32 %v328, %v871
      %v873 = vpop.f32.mrb[0].mxu0
      %874 = vmatprep.mubr.bf16.mxu0 0
      %875 = vmatmul.mubr.bf16.gmra.mrb[0].mxu0 %v603
      %v876 = vpop.f32.mrb[0].mxu0
      %v877 = vadd.f32 %v328, %v876
      %v878 = vpop.f32.mrb[0].mxu0
      %v879 = vpop.f32.mrb[0].mxu0
      %v880 = vadd.f32 %v328, %v879
      %v881 = vpop.f32.mrb[0].mxu0
      %882 = vmatprep.mubr.bf16.mxu0 0
      %883 = vmatmul.mubr.bf16.gmra.mrb[0].mxu0 %v606
      %v884 = vpop.f32.mrb[0].mxu0
      %v885 = vadd.f32 %v328, %v884
      %v886 = vpop.f32.mrb[0].mxu0
      %v887 = vpop.f32.mrb[0].mxu0
      %v888 = vadd.f32 %v328, %v887
      %v889 = vpop.f32.mrb[0].mxu0
      %890 = vmatprep.mubr.bf16.mxu0 0
      %891 = vmatmul.mubr.bf16.gmra.mrb[0].mxu0 %v609
      %v892 = vpop.f32.mrb[0].mxu0
      %v893 = vadd.f32 %v328, %v892
      %v894 = vpop.f32.mrb[0].mxu0
      %v895 = vpop.f32.mrb[0].mxu0
      %v896 = vadd.f32 %v328, %v895
      %v897 = vpop.f32.mrb[0].mxu0
      %898 = vmatprep.mubr.bf16.mxu0 0
      %899 = vmatmul.mubr.bf16.gmra.mrb[0].mxu0 %v612
      %v900 = vpop.f32.mrb[0].mxu0
      %v901 = vadd.f32 %v328, %v900
      %v902 = vpop.f32.mrb[0].mxu0
      %v903 = vpop.f32.mrb[0].mxu0
      %v904 = vadd.f32 %v328, %v903
      %v905 = vpop.f32.mrb[0].mxu0
      %906 = vdwg.mxu0
      %v907 = vmax.f32 %v653, 0.0
      %v908 = vmax.f32 %v656, 0.0
      %v909 = vmax.f32 %v661, 0.0
      %v910 = vmax.f32 %v664, 0.0
      %v911 = vmax.f32 %v669, 0.0
      %v912 = vmax.f32 %v672, 0.0
      %v913 = vmax.f32 %v677, 0.0
      %v914 = vmax.f32 %v680, 0.0
      %v915 = vmax.f32 %v685, 0.0
      %v916 = vmax.f32 %v688, 0.0
      %v917 = vmax.f32 %v693, 0.0
      %v918 = vmax.f32 %v696, 0.0
      %v919 = vmax.f32 %v701, 0.0
      %v920 = vmax.f32 %v704, 0.0
      %v921 = vmax.f32 %v709, 0.0
      %v922 = vmax.f32 %v712, 0.0
      %v923 = vmax.f32 %v717, 0.0
      %v924 = vmax.f32 %v720, 0.0
      %v925 = vmax.f32 %v725, 0.0
      %v926 = vmax.f32 %v728, 0.0
      %v927 = vmax.f32 %v733, 0.0
      %v928 = vmax.f32 %v736, 0.0
      %v929 = vmax.f32 %v741, 0.0
      %v930 = vmax.f32 %v744, 0.0
      %v931 = vmax.f32 %v749, 0.0
      %v932 = vmax.f32 %v752, 0.0
      %v933 = vmax.f32 %v757, 0.0
      %v934 = vmax.f32 %v760, 0.0
      %v935 = vmax.f32 %v765, 0.0
      %v936 = vmax.f32 %v768, 0.0
      %v937 = vmax.f32 %v773, 0.0
      %v938 = vmax.f32 %v776, 0.0
      %v939 = vmax.f32 %v781, 0.0
      %v940 = vmax.f32 %v784, 0.0
      %v941 = vmax.f32 %v789, 0.0
      %v942 = vmax.f32 %v792, 0.0
      %v943 = vmax.f32 %v797, 0.0
      %v944 = vmax.f32 %v800, 0.0
      %v945 = vmax.f32 %v805, 0.0
      %v946 = vmax.f32 %v808, 0.0
      %v947 = vmax.f32 %v813, 0.0
      %v948 = vmax.f32 %v816, 0.0
      %v949 = vmax.f32 %v821, 0.0
      %v950 = vmax.f32 %v824, 0.0
      %v951 = vmax.f32 %v829, 0.0
      %v952 = vmax.f32 %v832, 0.0
      %v953 = vmax.f32 %v837, 0.0
      %v954 = vmax.f32 %v840, 0.0
      %v955 = vmax.f32 %v845, 0.0
      %v956 = vmax.f32 %v848, 0.0
      %v957 = vmax.f32 %v853, 0.0
      %v958 = vmax.f32 %v856, 0.0
      %v959 = vmax.f32 %v861, 0.0
      %v960 = vmax.f32 %v864, 0.0
      %v961 = vmax.f32 %v869, 0.0
      %v962 = vmax.f32 %v872, 0.0
      %v963 = vmax.f32 %v877, 0.0
      %v964 = vmax.f32 %v880, 0.0
      %v965 = vmax.f32 %v885, 0.0
      %v966 = vmax.f32 %v888, 0.0
      %v967 = vmax.f32 %v893, 0.0
      %v968 = vmax.f32 %v896, 0.0
      %v969 = vmax.f32 %v901, 0.0
      %v970 = vmax.f32 %v904, 0.0
      %vm971 = vcmask 64512
      %972 = vst.msk [vmem:[%s239] sm:$0xff] %vm971, %v907
      %973 = vst.msk [vmem:[%s239 + $0x8] sm:$0xff] %vm971, %v908
      %974 = vst.msk [vmem:[%s239 + $0x10] sm:$0xff] %vm971, %v909
      %975 = vst.msk [vmem:[%s239 + $0x18] sm:$0xff] %vm971, %v910
      %976 = vst.msk [vmem:[%s239 + $0x20] sm:$0xff] %vm971, %v911
      %977 = vst.msk [vmem:[%s239 + $0x28] sm:$0xff] %vm971, %v912
      %978 = vst.msk [vmem:[%s239 + $0x30] sm:$0xff] %vm971, %v913
      %979 = vst.msk [vmem:[%s239 + $0x38] sm:$0xff] %vm971, %v914
      %980 = vst.msk [vmem:[%s239 + $0x40] sm:$0xff] %vm971, %v915
      %981 = vst.msk [vmem:[%s239 + $0x48] sm:$0xff] %vm971, %v916
      %982 = vst.msk [vmem:[%s239 + $0x50] sm:$0xff] %vm971, %v917
      %983 = vst.msk [vmem:[%s239 + $0x58] sm:$0xff] %vm971, %v918
      %984 = vst.msk [vmem:[%s239 + $0x60] sm:$0xff] %vm971, %v919
      %985 = vst.msk [vmem:[%s239 + $0x68] sm:$0xff] %vm971, %v920
      %986 = vst.msk [vmem:[%s239 + $0x70] sm:$0xff] %vm971, %v921
      %987 = vst.msk [vmem:[%s239 + $0x78] sm:$0xff] %vm971, %v922
      %988 = vst.msk [vmem:[%s239 + $0x80] sm:$0xff] %vm971, %v923
      %989 = vst.msk [vmem:[%s239 + $0x88] sm:$0xff] %vm971, %v924
      %990 = vst.msk [vmem:[%s239 + $0x90] sm:$0xff] %vm971, %v925
      %991 = vst.msk [vmem:[%s239 + $0x98] sm:$0xff] %vm971, %v926
      %992 = vst.msk [vmem:[%s239 + $0xa0] sm:$0xff] %vm971, %v927
      %993 = vst.msk [vmem:[%s239 + $0xa8] sm:$0xff] %vm971, %v928
      %994 = vst.msk [vmem:[%s239 + $0xb0] sm:$0xff] %vm971, %v929
      %995 = vst.msk [vmem:[%s239 + $0xb8] sm:$0xff] %vm971, %v930
      %996 = vst.msk [vmem:[%s239 + $0xc0] sm:$0xff] %vm971, %v931
      %997 = vst.msk [vmem:[%s239 + $0xc8] sm:$0xff] %vm971, %v932
      %998 = vst.msk [vmem:[%s239 + $0xd0] sm:$0xff] %vm971, %v933
      %999 = vst.msk [vmem:[%s239 + $0xd8] sm:$0xff] %vm971, %v934
      %1000 = vst.msk [vmem:[%s239 + $0xe0] sm:$0xff] %vm971, %v935
      %1001 = vst.msk [vmem:[%s239 + $0xe8] sm:$0xff] %vm971, %v936
      %1002 = vst.msk [vmem:[%s239 + $0xf0] sm:$0xff] %vm971, %v937
      %1003 = vst.msk [vmem:[%s239 + $0xf8] sm:$0xff] %vm971, %v938
      %1004 = vst.msk [vmem:[%s239 + $0x100] sm:$0xff] %vm971, %v939
      %1005 = vst.msk [vmem:[%s239 + $0x108] sm:$0xff] %vm971, %v940
      %1006 = vst.msk [vmem:[%s239 + $0x110] sm:$0xff] %vm971, %v941
      %1007 = vst.msk [vmem:[%s239 + $0x118] sm:$0xff] %vm971, %v942
      %1008 = vst.msk [vmem:[%s239 + $0x120] sm:$0xff] %vm971, %v943
      %1009 = vst.msk [vmem:[%s239 + $0x128] sm:$0xff] %vm971, %v944
      %1010 = vst.msk [vmem:[%s239 + $0x130] sm:$0xff] %vm971, %v945
      %1011 = vst.msk [vmem:[%s239 + $0x138] sm:$0xff] %vm971, %v946
      %1012 = vst.msk [vmem:[%s239 + $0x140] sm:$0xff] %vm971, %v947
      %1013 = vst.msk [vmem:[%s239 + $0x148] sm:$0xff] %vm971, %v948
      %1014 = vst.msk [vmem:[%s239 + $0x150] sm:$0xff] %vm971, %v949
      %1015 = vst.msk [vmem:[%s239 + $0x158] sm:$0xff] %vm971, %v950
      %1016 = vst.msk [vmem:[%s239 + $0x160] sm:$0xff] %vm971, %v951
      %1017 = vst.msk [vmem:[%s239 + $0x168] sm:$0xff] %vm971, %v952
      %1018 = vst.msk [vmem:[%s239 + $0x170] sm:$0xff] %vm971, %v953
      %1019 = vst.msk [vmem:[%s239 + $0x178] sm:$0xff] %vm971, %v954
      %1020 = vst.msk [vmem:[%s239 + $0x180] sm:$0xff] %vm971, %v955
      %1021 = vst.msk [vmem:[%s239 + $0x188] sm:$0xff] %vm971, %v956
      %1022 = vst.msk [vmem:[%s239 + $0x190] sm:$0xff] %vm971, %v957
      %1023 = vst.msk [vmem:[%s239 + $0x198] sm:$0xff] %vm971, %v958
      %1024 = vst.msk [vmem:[%s239 + $0x1a0] sm:$0xff] %vm971, %v959
      %1025 = vst.msk [vmem:[%s239 + $0x1a8] sm:$0xff] %vm971, %v960
      %1026 = vst.msk [vmem:[%s239 + $0x1b0] sm:$0xff] %vm971, %v961
      %1027 = vst.msk [vmem:[%s239 + $0x1b8] sm:$0xff] %vm971, %v962
      %1028 = vst.msk [vmem:[%s239 + $0x1c0] sm:$0xff] %vm971, %v963
      %1029 = vst.msk [vmem:[%s239 + $0x1c8] sm:$0xff] %vm971, %v964
      %1030 = vst.msk [vmem:[%s239 + $0x1d0] sm:$0xff] %vm971, %v965
      %1031 = vst.msk [vmem:[%s239 + $0x1d8] sm:$0xff] %vm971, %v966
      %1032 = vst.msk [vmem:[%s239 + $0x1e0] sm:$0xff] %vm971, %v967
      %1033 = vst.msk [vmem:[%s239 + $0x1e8] sm:$0xff] %vm971, %v968
      %1034 = vst.msk [vmem:[%s239 + $0x1f0] sm:$0xff] %vm971, %v969
      %1035 = vst.msk [vmem:[%s239 + $0x1f8] sm:$0xff] %vm971, %v970
      %s1036 = smul.u32 %s17, 512
      %v1037 = vlaneseq
      %v1038 = vshrl.u32 %v1037, 7
      %v1039 = vadd.s32 %v1038, 8
      %v1040 = vadd.s32 %v1038, 16
      %v1041 = vadd.s32 %v1038, 24
      %v1042 = vadd.s32 %v1038, 32
      %v1043 = vadd.s32 %v1038, 40
      %v1044 = vadd.s32 %v1038, 48
      %v1045 = vadd.s32 %v1038, 56
      %v1046 = vadd.s32 %v1038, 64
      %v1047 = vadd.s32 %v1038, 72
      %v1048 = vadd.s32 %v1038, 80
      %v1049 = vadd.s32 %v1038, 88
      %v1050 = vadd.s32 %v1038, 96
      %v1051 = vadd.s32 %v1038, 104
      %v1052 = vadd.s32 %v1038, 112
      %v1053 = vadd.s32 %v1038, 120
      %v1054 = vadd.s32 %v1038, 128
      %v1055 = vadd.s32 %v1038, 136
      %v1056 = vadd.s32 %v1038, 144
      %v1057 = vadd.s32 %v1038, 152
      %v1058 = vadd.s32 %v1038, 160
      %v1059 = vadd.s32 %v1038, 168
      %v1060 = vadd.s32 %v1038, 176
      %v1061 = vadd.s32 %v1038, 184
      %v1062 = vadd.s32 %v1038, 192
      %v1063 = vadd.s32 %v1038, 200
      %v1064 = vadd.s32 %v1038, 208
      %v1065 = vadd.s32 %v1038, 216
      %v1066 = vadd.s32 %v1038, 224
      %v1067 = vadd.s32 %v1038, 232
      %v1068 = vadd.s32 %v1038, 240
      %v1069 = vadd.s32 %v1038, 248
      %v1070 = vadd.s32 %v1038, 256
      %v1071 = vadd.s32 %v1038, 264
      %v1072 = vadd.s32 %v1038, 272
      %v1073 = vadd.s32 %v1038, 280
      %v1074 = vadd.s32 %v1038, 288
      %v1075 = vadd.s32 %v1038, 296
      %v1076 = vadd.s32 %v1038, 304
      %v1077 = vadd.s32 %v1038, 312
      %v1078 = vadd.s32 %v1038, 320
      %v1079 = vadd.s32 %v1038, 328
      %v1080 = vadd.s32 %v1038, 336
      %v1081 = vadd.s32 %v1038, 344
      %v1082 = vadd.s32 %v1038, 352
      %v1083 = vadd.s32 %v1038, 360
      %v1084 = vadd.s32 %v1038, 368
      %v1085 = vadd.s32 %v1038, 376
      %v1086 = vadd.s32 %v1038, 384
      %v1087 = vadd.s32 %v1038, 392
      %v1088 = vadd.s32 %v1038, 400
      %v1089 = vadd.s32 %v1038, 408
      %v1090 = vadd.s32 %v1038, 416
      %v1091 = vadd.s32 %v1038, 424
      %v1092 = vadd.s32 %v1038, 432
      %v1093 = vadd.s32 %v1038, 440
      %v1094 = vadd.s32 %v1038, 448
      %v1095 = vadd.s32 %v1038, 456
      %v1096 = vadd.s32 %v1038, 464
      %v1097 = vadd.s32 %v1038, 472
      %v1098 = vadd.s32 %v1038, 480
      %v1099 = vadd.s32 %v1038, 488
      %v1100 = vadd.s32 %v1038, 496
      %v1101 = vadd.s32 %v1038, 504
      %v1102 = vstv %s1036
      %v1103 = vadd.s32 %v1102, %v1038
      %v1104 = vadd.s32 %v1102, %v1039
      %v1105 = vadd.s32 %v1102, %v1040
      %v1106 = vadd.s32 %v1102, %v1041
      %v1107 = vadd.s32 %v1102, %v1042
      %v1108 = vadd.s32 %v1102, %v1043
      %v1109 = vadd.s32 %v1102, %v1044
      %v1110 = vadd.s32 %v1102, %v1045
      %v1111 = vadd.s32 %v1102, %v1046
      %v1112 = vadd.s32 %v1102, %v1047
      %v1113 = vadd.s32 %v1102, %v1048
      %v1114 = vadd.s32 %v1102, %v1049
      %v1115 = vadd.s32 %v1102, %v1050
      %v1116 = vadd.s32 %v1102, %v1051
      %v1117 = vadd.s32 %v1102, %v1052
      %v1118 = vadd.s32 %v1102, %v1053
      %v1119 = vadd.s32 %v1102, %v1054
      %v1120 = vadd.s32 %v1102, %v1055
      %v1121 = vadd.s32 %v1102, %v1056
      %v1122 = vadd.s32 %v1102, %v1057
      %v1123 = vadd.s32 %v1102, %v1058
      %v1124 = vadd.s32 %v1102, %v1059
      %v1125 = vadd.s32 %v1102, %v1060
      %v1126 = vadd.s32 %v1102, %v1061
      %v1127 = vadd.s32 %v1102, %v1062
      %v1128 = vadd.s32 %v1102, %v1063
      %v1129 = vadd.s32 %v1102, %v1064
      %v1130 = vadd.s32 %v1102, %v1065
      %v1131 = vadd.s32 %v1102, %v1066
      %v1132 = vadd.s32 %v1102, %v1067
      %v1133 = vadd.s32 %v1102, %v1068
      %v1134 = vadd.s32 %v1102, %v1069
      %v1135 = vadd.s32 %v1102, %v1070
      %v1136 = vadd.s32 %v1102, %v1071
      %v1137 = vadd.s32 %v1102, %v1072
      %v1138 = vadd.s32 %v1102, %v1073
      %v1139 = vadd.s32 %v1102, %v1074
      %v1140 = vadd.s32 %v1102, %v1075
      %v1141 = vadd.s32 %v1102, %v1076
      %v1142 = vadd.s32 %v1102, %v1077
      %v1143 = vadd.s32 %v1102, %v1078
      %v1144 = vadd.s32 %v1102, %v1079
      %v1145 = vadd.s32 %v1102, %v1080
      %v1146 = vadd.s32 %v1102, %v1081
      %v1147 = vadd.s32 %v1102, %v1082
      %v1148 = vadd.s32 %v1102, %v1083
      %v1149 = vadd.s32 %v1102, %v1084
      %v1150 = vadd.s32 %v1102, %v1085
      %v1151 = vadd.s32 %v1102, %v1086
      %v1152 = vadd.s32 %v1102, %v1087
      %v1153 = vadd.s32 %v1102, %v1088
      %v1154 = vadd.s32 %v1102, %v1089
      %v1155 = vadd.s32 %v1102, %v1090
      %v1156 = vadd.s32 %v1102, %v1091
      %v1157 = vadd.s32 %v1102, %v1092
      %v1158 = vadd.s32 %v1102, %v1093
      %v1159 = vadd.s32 %v1102, %v1094
      %v1160 = vadd.s32 %v1102, %v1095
      %v1161 = vadd.s32 %v1102, %v1096
      %v1162 = vadd.s32 %v1102, %v1097
      %v1163 = vadd.s32 %v1102, %v1098
      %v1164 = vadd.s32 %v1102, %v1099
      %v1165 = vadd.s32 %v1102, %v1100
      %v1166 = vadd.s32 %v1102, %v1101
      %vm1167 = vcmp.lt.s32.totalorder %v1103, 2178
      %vm1168 = vcmp.lt.s32.totalorder %v1104, 2178
      %vm1169 = vcmp.lt.s32.totalorder %v1105, 2178
      %vm1170 = vcmp.lt.s32.totalorder %v1106, 2178
      %vm1171 = vcmp.lt.s32.totalorder %v1107, 2178
      %vm1172 = vcmp.lt.s32.totalorder %v1108, 2178
      %vm1173 = vcmp.lt.s32.totalorder %v1109, 2178
      %vm1174 = vcmp.lt.s32.totalorder %v1110, 2178
      %vm1175 = vcmp.lt.s32.totalorder %v1111, 2178
      %vm1176 = vcmp.lt.s32.totalorder %v1112, 2178
      %vm1177 = vcmp.lt.s32.totalorder %v1113, 2178
      %vm1178 = vcmp.lt.s32.totalorder %v1114, 2178
      %vm1179 = vcmp.lt.s32.totalorder %v1115, 2178
      %vm1180 = vcmp.lt.s32.totalorder %v1116, 2178
      %vm1181 = vcmp.lt.s32.totalorder %v1117, 2178
      %vm1182 = vcmp.lt.s32.totalorder %v1118, 2178
      %vm1183 = vcmp.lt.s32.totalorder %v1119, 2178
      %vm1184 = vcmp.lt.s32.totalorder %v1120, 2178
      %vm1185 = vcmp.lt.s32.totalorder %v1121, 2178
      %vm1186 = vcmp.lt.s32.totalorder %v1122, 2178
      %vm1187 = vcmp.lt.s32.totalorder %v1123, 2178
      %vm1188 = vcmp.lt.s32.totalorder %v1124, 2178
      %vm1189 = vcmp.lt.s32.totalorder %v1125, 2178
      %vm1190 = vcmp.lt.s32.totalorder %v1126, 2178
      %vm1191 = vcmp.lt.s32.totalorder %v1127, 2178
      %vm1192 = vcmp.lt.s32.totalorder %v1128, 2178
      %vm1193 = vcmp.lt.s32.totalorder %v1129, 2178
      %vm1194 = vcmp.lt.s32.totalorder %v1130, 2178
      %vm1195 = vcmp.lt.s32.totalorder %v1131, 2178
      %vm1196 = vcmp.lt.s32.totalorder %v1132, 2178
      %vm1197 = vcmp.lt.s32.totalorder %v1133, 2178
      %vm1198 = vcmp.lt.s32.totalorder %v1134, 2178
      %vm1199 = vcmp.lt.s32.totalorder %v1135, 2178
      %vm1200 = vcmp.lt.s32.totalorder %v1136, 2178
      %vm1201 = vcmp.lt.s32.totalorder %v1137, 2178
      %vm1202 = vcmp.lt.s32.totalorder %v1138, 2178
      %vm1203 = vcmp.lt.s32.totalorder %v1139, 2178
      %vm1204 = vcmp.lt.s32.totalorder %v1140, 2178
      %vm1205 = vcmp.lt.s32.totalorder %v1141, 2178
      %vm1206 = vcmp.lt.s32.totalorder %v1142, 2178
      %vm1207 = vcmp.lt.s32.totalorder %v1143, 2178
      %vm1208 = vcmp.lt.s32.totalorder %v1144, 2178
      %vm1209 = vcmp.lt.s32.totalorder %v1145, 2178
      %vm1210 = vcmp.lt.s32.totalorder %v1146, 2178
      %vm1211 = vcmp.lt.s32.totalorder %v1147, 2178
      %vm1212 = vcmp.lt.s32.totalorder %v1148, 2178
      %vm1213 = vcmp.lt.s32.totalorder %v1149, 2178
      %vm1214 = vcmp.lt.s32.totalorder %v1150, 2178
      %vm1215 = vcmp.lt.s32.totalorder %v1151, 2178
      %vm1216 = vcmp.lt.s32.totalorder %v1152, 2178
      %vm1217 = vcmp.lt.s32.totalorder %v1153, 2178
      %vm1218 = vcmp.lt.s32.totalorder %v1154, 2178
      %vm1219 = vcmp.lt.s32.totalorder %v1155, 2178
      %vm1220 = vcmp.lt.s32.totalorder %v1156, 2178
      %vm1221 = vcmp.lt.s32.totalorder %v1157, 2178
      %vm1222 = vcmp.lt.s32.totalorder %v1158, 2178
      %vm1223 = vcmp.lt.s32.totalorder %v1159, 2178
      %vm1224 = vcmp.lt.s32.totalorder %v1160, 2178
      %vm1225 = vcmp.lt.s32.totalorder %v1161, 2178
      %vm1226 = vcmp.lt.s32.totalorder %v1162, 2178
      %vm1227 = vcmp.lt.s32.totalorder %v1163, 2178
      %vm1228 = vcmp.lt.s32.totalorder %v1164, 2178
      %vm1229 = vcmp.lt.s32.totalorder %v1165, 2178
      %vm1230 = vcmp.lt.s32.totalorder %v1166, 2178
      %v1231 = vsel %vm1167, 1, 0
      %v1232 = vsel %vm1168, 1, 0
      %v1233 = vsel %vm1169, 1, 0
      %v1234 = vsel %vm1170, 1, 0
      %v1235 = vsel %vm1171, 1, 0
      %v1236 = vsel %vm1172, 1, 0
      %v1237 = vsel %vm1173, 1, 0
      %v1238 = vsel %vm1174, 1, 0
      %v1239 = vsel %vm1175, 1, 0
      %v1240 = vsel %vm1176, 1, 0
      %v1241 = vsel %vm1177, 1, 0
      %v1242 = vsel %vm1178, 1, 0
      %v1243 = vsel %vm1179, 1, 0
      %v1244 = vsel %vm1180, 1, 0
      %v1245 = vsel %vm1181, 1, 0
      %v1246 = vsel %vm1182, 1, 0
      %v1247 = vsel %vm1183, 1, 0
      %v1248 = vsel %vm1184, 1, 0
      %v1249 = vsel %vm1185, 1, 0
      %v1250 = vsel %vm1186, 1, 0
      %v1251 = vsel %vm1187, 1, 0
      %v1252 = vsel %vm1188, 1, 0
      %v1253 = vsel %vm1189, 1, 0
      %v1254 = vsel %vm1190, 1, 0
      %v1255 = vsel %vm1191, 1, 0
      %v1256 = vsel %vm1192, 1, 0
      %v1257 = vsel %vm1193, 1, 0
      %v1258 = vsel %vm1194, 1, 0
      %v1259 = vsel %vm1195, 1, 0
      %v1260 = vsel %vm1196, 1, 0
      %v1261 = vsel %vm1197, 1, 0
      %v1262 = vsel %vm1198, 1, 0
      %v1263 = vsel %vm1199, 1, 0
      %v1264 = vsel %vm1200, 1, 0
      %v1265 = vsel %vm1201, 1, 0
      %v1266 = vsel %vm1202, 1, 0
      %v1267 = vsel %vm1203, 1, 0
      %v1268 = vsel %vm1204, 1, 0
      %v1269 = vsel %vm1205, 1, 0
      %v1270 = vsel %vm1206, 1, 0
      %v1271 = vsel %vm1207, 1, 0
      %v1272 = vsel %vm1208, 1, 0
      %v1273 = vsel %vm1209, 1, 0
      %v1274 = vsel %vm1210, 1, 0
      %v1275 = vsel %vm1211, 1, 0
      %v1276 = vsel %vm1212, 1, 0
      %v1277 = vsel %vm1213, 1, 0
      %v1278 = vsel %vm1214, 1, 0
      %v1279 = vsel %vm1215, 1, 0
      %v1280 = vsel %vm1216, 1, 0
      %v1281 = vsel %vm1217, 1, 0
      %v1282 = vsel %vm1218, 1, 0
      %v1283 = vsel %vm1219, 1, 0
      %v1284 = vsel %vm1220, 1, 0
      %v1285 = vsel %vm1221, 1, 0
      %v1286 = vsel %vm1222, 1, 0
      %v1287 = vsel %vm1223, 1, 0
      %v1288 = vsel %vm1224, 1, 0
      %v1289 = vsel %vm1225, 1, 0
      %v1290 = vsel %vm1226, 1, 0
      %v1291 = vsel %vm1227, 1, 0
      %v1292 = vsel %vm1228, 1, 0
      %v1293 = vsel %vm1229, 1, 0
      %v1294 = vsel %vm1230, 1, 0
      %vm1295 = vcmp.eq.s32.totalorder %v1231, 1
      %vm1296 = vcmp.eq.s32.totalorder %v1232, 1
      %vm1297 = vcmp.eq.s32.totalorder %v1233, 1
      %vm1298 = vcmp.eq.s32.totalorder %v1234, 1
      %vm1299 = vcmp.eq.s32.totalorder %v1235, 1
      %vm1300 = vcmp.eq.s32.totalorder %v1236, 1
      %vm1301 = vcmp.eq.s32.totalorder %v1237, 1
      %vm1302 = vcmp.eq.s32.totalorder %v1238, 1
      %vm1303 = vcmp.eq.s32.totalorder %v1239, 1
      %vm1304 = vcmp.eq.s32.totalorder %v1240, 1
      %vm1305 = vcmp.eq.s32.totalorder %v1241, 1
      %vm1306 = vcmp.eq.s32.totalorder %v1242, 1
      %vm1307 = vcmp.eq.s32.totalorder %v1243, 1
      %vm1308 = vcmp.eq.s32.totalorder %v1244, 1
      %vm1309 = vcmp.eq.s32.totalorder %v1245, 1
      %vm1310 = vcmp.eq.s32.totalorder %v1246, 1
      %vm1311 = vcmp.eq.s32.totalorder %v1247, 1
      %vm1312 = vcmp.eq.s32.totalorder %v1248, 1
      %vm1313 = vcmp.eq.s32.totalorder %v1249, 1
      %vm1314 = vcmp.eq.s32.totalorder %v1250, 1
      %vm1315 = vcmp.eq.s32.totalorder %v1251, 1
      %vm1316 = vcmp.eq.s32.totalorder %v1252, 1
      %vm1317 = vcmp.eq.s32.totalorder %v1253, 1
      %vm1318 = vcmp.eq.s32.totalorder %v1254, 1
      %vm1319 = vcmp.eq.s32.totalorder %v1255, 1
      %vm1320 = vcmp.eq.s32.totalorder %v1256, 1
      %vm1321 = vcmp.eq.s32.totalorder %v1257, 1
      %vm1322 = vcmp.eq.s32.totalorder %v1258, 1
      %vm1323 = vcmp.eq.s32.totalorder %v1259, 1
      %vm1324 = vcmp.eq.s32.totalorder %v1260, 1
      %vm1325 = vcmp.eq.s32.totalorder %v1261, 1
      %vm1326 = vcmp.eq.s32.totalorder %v1262, 1
      %vm1327 = vcmp.eq.s32.totalorder %v1263, 1
      %vm1328 = vcmp.eq.s32.totalorder %v1264, 1
      %vm1329 = vcmp.eq.s32.totalorder %v1265, 1
      %vm1330 = vcmp.eq.s32.totalorder %v1266, 1
      %vm1331 = vcmp.eq.s32.totalorder %v1267, 1
      %vm1332 = vcmp.eq.s32.totalorder %v1268, 1
      %vm1333 = vcmp.eq.s32.totalorder %v1269, 1
      %vm1334 = vcmp.eq.s32.totalorder %v1270, 1
      %vm1335 = vcmp.eq.s32.totalorder %v1271, 1
      %vm1336 = vcmp.eq.s32.totalorder %v1272, 1
      %vm1337 = vcmp.eq.s32.totalorder %v1273, 1
      %vm1338 = vcmp.eq.s32.totalorder %v1274, 1
      %vm1339 = vcmp.eq.s32.totalorder %v1275, 1
      %vm1340 = vcmp.eq.s32.totalorder %v1276, 1
      %vm1341 = vcmp.eq.s32.totalorder %v1277, 1
      %vm1342 = vcmp.eq.s32.totalorder %v1278, 1
      %vm1343 = vcmp.eq.s32.totalorder %v1279, 1
      %vm1344 = vcmp.eq.s32.totalorder %v1280, 1
      %vm1345 = vcmp.eq.s32.totalorder %v1281, 1
      %vm1346 = vcmp.eq.s32.totalorder %v1282, 1
      %vm1347 = vcmp.eq.s32.totalorder %v1283, 1
      %vm1348 = vcmp.eq.s32.totalorder %v1284, 1
      %vm1349 = vcmp.eq.s32.totalorder %v1285, 1
      %vm1350 = vcmp.eq.s32.totalorder %v1286, 1
      %vm1351 = vcmp.eq.s32.totalorder %v1287, 1
      %vm1352 = vcmp.eq.s32.totalorder %v1288, 1
      %vm1353 = vcmp.eq.s32.totalorder %v1289, 1
      %vm1354 = vcmp.eq.s32.totalorder %v1290, 1
      %vm1355 = vcmp.eq.s32.totalorder %v1291, 1
      %vm1356 = vcmp.eq.s32.totalorder %v1292, 1
      %vm1357 = vcmp.eq.s32.totalorder %v1293, 1
      %vm1358 = vcmp.eq.s32.totalorder %v1294, 1
      %v1359 = vsel %vm1295, %v907, 0.0
      %v1360 = vsel %vm1296, %v908, 0.0
      %v1361 = vsel %vm1297, %v909, 0.0
      %v1362 = vsel %vm1298, %v910, 0.0
      %v1363 = vsel %vm1299, %v911, 0.0
      %v1364 = vsel %vm1300, %v912, 0.0
      %v1365 = vsel %vm1301, %v913, 0.0
      %v1366 = vsel %vm1302, %v914, 0.0
      %v1367 = vsel %vm1303, %v915, 0.0
      %v1368 = vsel %vm1304, %v916, 0.0
      %v1369 = vsel %vm1305, %v917, 0.0
      %v1370 = vsel %vm1306, %v918, 0.0
      %v1371 = vsel %vm1307, %v919, 0.0
      %v1372 = vsel %vm1308, %v920, 0.0
      %v1373 = vsel %vm1309, %v921, 0.0
      %v1374 = vsel %vm1310, %v922, 0.0
      %v1375 = vsel %vm1311, %v923, 0.0
      %v1376 = vsel %vm1312, %v924, 0.0
      %v1377 = vsel %vm1313, %v925, 0.0
      %v1378 = vsel %vm1314, %v926, 0.0
      %v1379 = vsel %vm1315, %v927, 0.0
      %v1380 = vsel %vm1316, %v928, 0.0
      %v1381 = vsel %vm1317, %v929, 0.0
      %v1382 = vsel %vm1318, %v930, 0.0
      %v1383 = vsel %vm1319, %v931, 0.0
      %v1384 = vsel %vm1320, %v932, 0.0
      %v1385 = vsel %vm1321, %v933, 0.0
      %v1386 = vsel %vm1322, %v934, 0.0
      %v1387 = vsel %vm1323, %v935, 0.0
      %v1388 = vsel %vm1324, %v936, 0.0
      %v1389 = vsel %vm1325, %v937, 0.0
      %v1390 = vsel %vm1326, %v938, 0.0
      %v1391 = vsel %vm1327, %v939, 0.0
      %v1392 = vsel %vm1328, %v940, 0.0
      %v1393 = vsel %vm1329, %v941, 0.0
      %v1394 = vsel %vm1330, %v942, 0.0
      %v1395 = vsel %vm1331, %v943, 0.0
      %v1396 = vsel %vm1332, %v944, 0.0
      %v1397 = vsel %vm1333, %v945, 0.0
      %v1398 = vsel %vm1334, %v946, 0.0
      %v1399 = vsel %vm1335, %v947, 0.0
      %v1400 = vsel %vm1336, %v948, 0.0
      %v1401 = vsel %vm1337, %v949, 0.0
      %v1402 = vsel %vm1338, %v950, 0.0
      %v1403 = vsel %vm1339, %v951, 0.0
      %v1404 = vsel %vm1340, %v952, 0.0
      %v1405 = vsel %vm1341, %v953, 0.0
      %v1406 = vsel %vm1342, %v954, 0.0
      %v1407 = vsel %vm1343, %v955, 0.0
      %v1408 = vsel %vm1344, %v956, 0.0
      %v1409 = vsel %vm1345, %v957, 0.0
      %v1410 = vsel %vm1346, %v958, 0.0
      %v1411 = vsel %vm1347, %v959, 0.0
      %v1412 = vsel %vm1348, %v960, 0.0
      %v1413 = vsel %vm1349, %v961, 0.0
      %v1414 = vsel %vm1350, %v962, 0.0
      %v1415 = vsel %vm1351, %v963, 0.0
      %v1416 = vsel %vm1352, %v964, 0.0
      %v1417 = vsel %vm1353, %v965, 0.0
      %v1418 = vsel %vm1354, %v966, 0.0
      %v1419 = vsel %vm1355, %v967, 0.0
      %v1420 = vsel %vm1356, %v968, 0.0
      %v1421 = vsel %vm1357, %v969, 0.0
      %v1422 = vsel %vm1358, %v970, 0.0
      %v1423 = vadd.f32 %v1359, %v1360
      %v1424 = vadd.f32 %v1423, %v1361
      %v1425 = vadd.f32 %v1424, %v1362
      %v1426 = vadd.f32 %v1425, %v1363
      %v1427 = vadd.f32 %v1426, %v1364
      %v1428 = vadd.f32 %v1427, %v1365
      %v1429 = vadd.f32 %v1428, %v1366
      %v1430 = vadd.f32 %v1429, %v1367
      %v1431 = vadd.f32 %v1430, %v1368
      %v1432 = vadd.f32 %v1431, %v1369
      %v1433 = vadd.f32 %v1432, %v1370
      %v1434 = vadd.f32 %v1433, %v1371
      %v1435 = vadd.f32 %v1434, %v1372
      %v1436 = vadd.f32 %v1435, %v1373
      %v1437 = vadd.f32 %v1436, %v1374
      %v1438 = vadd.f32 %v1437, %v1375
      %v1439 = vadd.f32 %v1438, %v1376
      %v1440 = vadd.f32 %v1439, %v1377
      %v1441 = vadd.f32 %v1440, %v1378
      %v1442 = vadd.f32 %v1441, %v1379
      %v1443 = vadd.f32 %v1442, %v1380
      %v1444 = vadd.f32 %v1443, %v1381
      %v1445 = vadd.f32 %v1444, %v1382
      %v1446 = vadd.f32 %v1445, %v1383
      %v1447 = vadd.f32 %v1446, %v1384
      %v1448 = vadd.f32 %v1447, %v1385
      %v1449 = vadd.f32 %v1448, %v1386
      %v1450 = vadd.f32 %v1449, %v1387
      %v1451 = vadd.f32 %v1450, %v1388
      %v1452 = vadd.f32 %v1451, %v1389
      %v1453 = vadd.f32 %v1452, %v1390
      %v1454 = vadd.f32 %v1453, %v1391
      %v1455 = vadd.f32 %v1454, %v1392
      %v1456 = vadd.f32 %v1455, %v1393
      %v1457 = vadd.f32 %v1456, %v1394
      %v1458 = vadd.f32 %v1457, %v1395
      %v1459 = vadd.f32 %v1458, %v1396
      %v1460 = vadd.f32 %v1459, %v1397
      %v1461 = vadd.f32 %v1460, %v1398
      %v1462 = vadd.f32 %v1461, %v1399
      %v1463 = vadd.f32 %v1462, %v1400
      %v1464 = vadd.f32 %v1463, %v1401
      %v1465 = vadd.f32 %v1464, %v1402
      %v1466 = vadd.f32 %v1465, %v1403
      %v1467 = vadd.f32 %v1466, %v1404
      %v1468 = vadd.f32 %v1467, %v1405
      %v1469 = vadd.f32 %v1468, %v1406
      %v1470 = vadd.f32 %v1469, %v1407
      %v1471 = vadd.f32 %v1470, %v1408
      %v1472 = vadd.f32 %v1471, %v1409
      %v1473 = vadd.f32 %v1472, %v1410
      %v1474 = vadd.f32 %v1473, %v1411
      %v1475 = vadd.f32 %v1474, %v1412
      %v1476 = vadd.f32 %v1475, %v1413
      %v1477 = vadd.f32 %v1476, %v1414
      %v1478 = vadd.f32 %v1477, %v1415
      %v1479 = vadd.f32 %v1478, %v1416
      %v1480 = vadd.f32 %v1479, %v1417
      %v1481 = vadd.f32 %v1480, %v1418
      %v1482 = vadd.f32 %v1481, %v1419
      %v1483 = vadd.f32 %v1482, %v1420
      %v1484 = vadd.f32 %v1483, %v1421
      %v1485 = vadd.f32 %v1484, %v1422
      %v1486 = vrot.slane %v1485, 4
      %v1487 = vadd.f32 %v1485, %v1486
      %v1488 = vrot.slane %v1487, 2
      %v1489 = vadd.f32 %v1487, %v1488
      %v1490 = vrot.slane %v1489, 1
      %v1491 = vadd.f32 %v1489, %v1490
      %v1492 = vmul.f32 %v1359, %v1359
      %v1493 = vmul.f32 %v1360, %v1360
      %v1494 = vmul.f32 %v1361, %v1361
      %v1495 = vmul.f32 %v1362, %v1362
      %v1496 = vmul.f32 %v1363, %v1363
      %v1497 = vmul.f32 %v1364, %v1364
      %v1498 = vmul.f32 %v1365, %v1365
      %v1499 = vmul.f32 %v1366, %v1366
      %v1500 = vmul.f32 %v1367, %v1367
      %v1501 = vmul.f32 %v1368, %v1368
      %v1502 = vmul.f32 %v1369, %v1369
      %v1503 = vmul.f32 %v1370, %v1370
      %v1504 = vmul.f32 %v1371, %v1371
      %v1505 = vmul.f32 %v1372, %v1372
      %v1506 = vmul.f32 %v1373, %v1373
      %v1507 = vmul.f32 %v1374, %v1374
      %v1508 = vmul.f32 %v1375, %v1375
      %v1509 = vmul.f32 %v1376, %v1376
      %v1510 = vmul.f32 %v1377, %v1377
      %v1511 = vmul.f32 %v1378, %v1378
      %v1512 = vmul.f32 %v1379, %v1379
      %v1513 = vmul.f32 %v1380, %v1380
      %v1514 = vmul.f32 %v1381, %v1381
      %v1515 = vmul.f32 %v1382, %v1382
      %v1516 = vmul.f32 %v1383, %v1383
      %v1517 = vmul.f32 %v1384, %v1384
      %v1518 = vmul.f32 %v1385, %v1385
      %v1519 = vmul.f32 %v1386, %v1386
      %v1520 = vmul.f32 %v1387, %v1387
      %v1521 = vmul.f32 %v1388, %v1388
      %v1522 = vmul.f32 %v1389, %v1389
      %v1523 = vmul.f32 %v1390, %v1390
      %v1524 = vmul.f32 %v1391, %v1391
      %v1525 = vmul.f32 %v1392, %v1392
      %v1526 = vmul.f32 %v1393, %v1393
      %v1527 = vmul.f32 %v1394, %v1394
      %v1528 = vmul.f32 %v1395, %v1395
      %v1529 = vmul.f32 %v1396, %v1396
      %v1530 = vmul.f32 %v1397, %v1397
      %v1531 = vmul.f32 %v1398, %v1398
      %v1532 = vmul.f32 %v1399, %v1399
      %v1533 = vmul.f32 %v1400, %v1400
      %v1534 = vmul.f32 %v1401, %v1401
      %v1535 = vmul.f32 %v1402, %v1402
      %v1536 = vmul.f32 %v1403, %v1403
      %v1537 = vmul.f32 %v1404, %v1404
      %v1538 = vmul.f32 %v1405, %v1405
      %v1539 = vmul.f32 %v1406, %v1406
      %v1540 = vmul.f32 %v1407, %v1407
      %v1541 = vmul.f32 %v1408, %v1408
      %v1542 = vmul.f32 %v1409, %v1409
      %v1543 = vmul.f32 %v1410, %v1410
      %v1544 = vmul.f32 %v1411, %v1411
      %v1545 = vmul.f32 %v1412, %v1412
      %v1546 = vmul.f32 %v1413, %v1413
      %v1547 = vmul.f32 %v1414, %v1414
      %v1548 = vmul.f32 %v1415, %v1415
      %v1549 = vmul.f32 %v1416, %v1416
      %v1550 = vmul.f32 %v1417, %v1417
      %v1551 = vmul.f32 %v1418, %v1418
      %v1552 = vmul.f32 %v1419, %v1419
      %v1553 = vmul.f32 %v1420, %v1420
      %v1554 = vmul.f32 %v1421, %v1421
      %v1555 = vmul.f32 %v1422, %v1422
      %v1556 = vadd.f32 %v1492, %v1493
      %v1557 = vadd.f32 %v1556, %v1494
      %v1558 = vadd.f32 %v1557, %v1495
      %v1559 = vadd.f32 %v1558, %v1496
      %v1560 = vadd.f32 %v1559, %v1497
      %v1561 = vadd.f32 %v1560, %v1498
      %v1562 = vadd.f32 %v1561, %v1499
      %v1563 = vadd.f32 %v1562, %v1500
      %v1564 = vadd.f32 %v1563, %v1501
      %v1565 = vadd.f32 %v1564, %v1502
      %v1566 = vadd.f32 %v1565, %v1503
      %v1567 = vadd.f32 %v1566, %v1504
      %v1568 = vadd.f32 %v1567, %v1505
      %v1569 = vadd.f32 %v1568, %v1506
      %v1570 = vadd.f32 %v1569, %v1507
      %v1571 = vadd.f32 %v1570, %v1508
      %v1572 = vadd.f32 %v1571, %v1509
      %v1573 = vadd.f32 %v1572, %v1510
      %v1574 = vadd.f32 %v1573, %v1511
      %v1575 = vadd.f32 %v1574, %v1512
      %v1576 = vadd.f32 %v1575, %v1513
      %v1577 = vadd.f32 %v1576, %v1514
      %v1578 = vadd.f32 %v1577, %v1515
      %v1579 = vadd.f32 %v1578, %v1516
      %v1580 = vadd.f32 %v1579, %v1517
      %v1581 = vadd.f32 %v1580, %v1518
      %v1582 = vadd.f32 %v1581, %v1519
      %v1583 = vadd.f32 %v1582, %v1520
      %v1584 = vadd.f32 %v1583, %v1521
      %v1585 = vadd.f32 %v1584, %v1522
      %v1586 = vadd.f32 %v1585, %v1523
      %v1587 = vadd.f32 %v1586, %v1524
      %v1588 = vadd.f32 %v1587, %v1525
      %v1589 = vadd.f32 %v1588, %v1526
      %v1590 = vadd.f32 %v1589, %v1527
      %v1591 = vadd.f32 %v1590, %v1528
      %v1592 = vadd.f32 %v1591, %v1529
      %v1593 = vadd.f32 %v1592, %v1530
      %v1594 = vadd.f32 %v1593, %v1531
      %v1595 = vadd.f32 %v1594, %v1532
      %v1596 = vadd.f32 %v1595, %v1533
      %v1597 = vadd.f32 %v1596, %v1534
      %v1598 = vadd.f32 %v1597, %v1535
      %v1599 = vadd.f32 %v1598, %v1536
      %v1600 = vadd.f32 %v1599, %v1537
      %v1601 = vadd.f32 %v1600, %v1538
      %v1602 = vadd.f32 %v1601, %v1539
      %v1603 = vadd.f32 %v1602, %v1540
      %v1604 = vadd.f32 %v1603, %v1541
      %v1605 = vadd.f32 %v1604, %v1542
      %v1606 = vadd.f32 %v1605, %v1543
      %v1607 = vadd.f32 %v1606, %v1544
      %v1608 = vadd.f32 %v1607, %v1545
      %v1609 = vadd.f32 %v1608, %v1546
      %v1610 = vadd.f32 %v1609, %v1547
      %v1611 = vadd.f32 %v1610, %v1548
      %v1612 = vadd.f32 %v1611, %v1549
      %v1613 = vadd.f32 %v1612, %v1550
      %v1614 = vadd.f32 %v1613, %v1551
      %v1615 = vadd.f32 %v1614, %v1552
      %v1616 = vadd.f32 %v1615, %v1553
      %v1617 = vadd.f32 %v1616, %v1554
      %v1618 = vadd.f32 %v1617, %v1555
      %v1619 = vrot.slane %v1618, 4
      %v1620 = vadd.f32 %v1618, %v1619
      %v1621 = vrot.slane %v1620, 2
      %v1622 = vadd.f32 %v1620, %v1621
      %v1623 = vrot.slane %v1622, 1
      %v1624 = vadd.f32 %v1622, %v1623
      %1625 = vst.msk [vmem:[%s244] sm:$0xff] %vm971, %v1491
      %1626 = vst.msk [vmem:[%s248] sm:$0xff] %vm971, %v1624
      %s1627 = smul.u32 64, %s17
      %p1628 = scmp.lt.s32.totalorder %s1627, 319
      %s1629 = scalar_select %p1628, %s1627, 319
      %s1630 = smul.addr %s1629, 8
      %s1631 = scalar_lea.vmem %s3, %s1630
      %p1632 = scmp.lt.s32.totalorder %s17, 4
      %s1633 = scalar_select %p1632, %s17, 4
      %s1634 = smul.addr %s1633, 8
      %s1635 = scalar_lea.vmem %s4, %s1634
      %p1636 = scmp.lt.s32.totalorder %s17, 4
      %s1637 = scalar_select %p1636, %s17, 4
      %s1638 = smul.addr %s1637, 8
      %s1639 = scalar_lea.vmem %s5, %s1638
      // Predicated region
      $region33: #{deconv_nn_forward.8} parent=31 // pred_check
        %p1640 = pneg %p103
      $region34: #{deconv_nn_forward.8} parent=31 // pred_check_branch
        %1642 = sbr.rel (%p1640) target = $region36
      $region35: #{deconv_nn_forward.8} parent=31 // pred_region
        %s1643 = smul.u32 64, %s17
      $region36: #{deconv_nn_forward.8} parent=31 // pred_fallthru
        _
      // Predicated region
      $region37: #{deconv_nn_forward.8} parent=31 // pred_check
        %p1644 = pneg %p129
      $region38: #{deconv_nn_forward.8} parent=31 // pred_check_branch
        %1646 = sbr.rel (%p1644) target = $region40
      $region39: #{deconv_nn_forward.8} parent=31 // pred_region
        _
      $region40: #{deconv_nn_forward.8} parent=31 // pred_fallthru
        _
      // Predicated region
      $region41: #{deconv_nn_forward.8} parent=31 // pred_check
        %p1647 = pneg %p155
      $region42: #{deconv_nn_forward.8} parent=31 // pred_check_branch
        %1649 = sbr.rel (%p1647) target = $region44
      $region43: #{deconv_nn_forward.8} parent=31 // pred_region
        _
      $region44: #{deconv_nn_forward.8} parent=31 // pred_fallthru
        _
    $region32: #{deconv_nn_forward.8} parent=5 // pred_fallthru
      _
    %p1650 = scmp.le.s32.totalorder 2, %s12
    // Predicated region
    $region45: #{deconv_nn_forward.8} parent=5 // pred_check
      %p1651 = pneg %p1650
    $region46: #{deconv_nn_forward.8} parent=5 // pred_check_branch
      %1653 = sbr.rel (%p1651) target = $region48
    $region47: #{deconv_nn_forward.8} parent=5 // pred_region
      %s1654 = ssub.s32 %s12, 2
      // Predicated region
      $region49: #{deconv_nn_forward.8} parent=47 // pred_check
        %p1655 = pneg %p109
      $region50: #{deconv_nn_forward.8} parent=47 // pred_check_branch
        %1657 = sbr.rel (%p1655) target = $region52
      $region51: #{deconv_nn_forward.8} parent=47 // pred_region
        %s1658 = smul.u32 64, %s18
        %p1659 = scmp.lt.s32.totalorder %s1658, 319
        %s1660 = scalar_select %p1659, %s1658, 319
        %s1661 = smul.addr %s1660, 8
        %s1662 = scalar_lea.vmem %s3, %s1661
      $region52: #{deconv_nn_forward.8} parent=47 // pred_fallthru
        _
      // Predicated region
      $region53: #{deconv_nn_forward.8} parent=47 // pred_check
        %p1663 = pneg %p135
      $region54: #{deconv_nn_forward.8} parent=47 // pred_check_branch
        %1665 = sbr.rel (%p1663) target = $region56
      $region55: #{deconv_nn_forward.8} parent=47 // pred_region
        %p1666 = scmp.lt.s32.totalorder %s18, 4
        %s1667 = scalar_select %p1666, %s18, 4
        %s1668 = smul.addr %s1667, 8
        %s1669 = scalar_lea.vmem %s4, %s1668
      $region56: #{deconv_nn_forward.8} parent=47 // pred_fallthru
        _
      // Predicated region
      $region57: #{deconv_nn_forward.8} parent=47 // pred_check
        %p1670 = pneg %p161
      $region58: #{deconv_nn_forward.8} parent=47 // pred_check_branch
        %1672 = sbr.rel (%p1670) target = $region60
      $region59: #{deconv_nn_forward.8} parent=47 // pred_region
        %p1673 = scmp.lt.s32.totalorder %s18, 4
        %s1674 = scalar_select %p1673, %s18, 4
        %s1675 = smul.addr %s1674, 8
        %s1676 = scalar_lea.vmem %s5, %s1675
      $region60: #{deconv_nn_forward.8} parent=47 // pred_fallthru
        _
    $region48: #{deconv_nn_forward.8} parent=5 // pred_fallthru
      _
  $region6: #{deconv_nn_forward.8} parent=0 // loop_footer
    %s16 = sadd.s32 1, %s12
  $region7: #{deconv_nn_forward.8} parent=0 // loop_footer_branch
    %11 = sbr.rel target = $region3
  $region8: #{deconv_nn_forward.8} parent=0 // loop_exit
    _

// kernel: deconv_nn_forward.9
$region0: #{deconv_nn_forward.9}
  #allocation0 [shape = 'u32[]', space=smem, size = 0x4, offset = 0x4, fixed_abs, tag = 'smem constant byte address 0x4 - core index']
  #allocation1 [shape = 'u32[144,128]{1,0:T(1,128)}', space=vmem, size = 0x12000, scoped, tag = 'internal scratch']
  %s0 = inlined_call_operand.vmem [shape: f32[2560,8], index: 0, kind: input, shape index: {}]
  %s1 = inlined_call_operand.vmem [shape: f32[1,8], index: 1, kind: input, shape index: {}]
  %s2 = inlined_call_operand.vmem [shape: f32[1,8], index: 2, kind: input, shape index: {}]
  %s3 = inlined_call_operand.vmem [shape: f32[2560,8], index: 3, kind: output, shape index: {}]
  %s4 = sld [smem:[#allocation0]]
  $region45: #{deconv_nn_forward.9} parent=0
    _
  %s6 = ssub.s32 1, %s4
  %s7 = scalar_select 0, %s6, %s4
  loop: start=0, step=1, limit=7
  $region2: #{deconv_nn_forward.9} parent=0 // loop_pre_header
    _
  $region3: #{deconv_nn_forward.9} parent=0 // loop_header
    %s9 = sphi 0, %s13
    %p10 = scmp.ge.s32.totalorder %s9, 7
    %s19 = sphi 0, %s21
    %s22 = sphi 0, %s19
    %s23 = sphi 0, %s22
    %s39 = sphi 0, %s23
    %s43 = sphi 0, %s43
    %s45 = sphi 0, %s43
    %s46 = sphi 0, %s45
    %s60 = sphi 0, %s46
    %s64 = sphi 0, %s64
    %s66 = sphi 0, %s64
    %s67 = sphi 0, %s66
    %s81 = sphi 0, %s67
    %s87 = sphi 0, %s89
    %s90 = sphi 0, %s87
    %s91 = sphi 0, %s90
    %s107 = sphi 0, %s91
  $region4: #{deconv_nn_forward.9} parent=0 // loop_header_branch
    %12 = sbr.rel (%p10) target = $region8
  $region5: #{deconv_nn_forward.9} parent=0 // loop_body
    %s14 = ssub.s32 %s9, 1
    %s15 = ssub.s32 %s9, 2
    %s16 = sadd.s32 %s9, 1
    %s17 = ssub.s32 %s9, %s16
    %p18 = scmp.eq.s32.totalorder %s17, 0
    %s20 = sadd.s32 %s19, 1
    %s21 = scalar_select %p18, %s19, %s20
    %p24 = pneg %p18
    %p25 = scmp.eq.s32.totalorder %s9, 4
    %p26 = por %p24, %p25
    %p27 = scmp.ne.s32.totalorder %s19, %s22
    %p28 = scmp.eq.s32.totalorder %s9, 0
    %p29 = por %p27, %p28
    %p30 = scmp.ne.s32.totalorder %s19, %s22
    %p31 = scmp.eq.s32.totalorder %s14, 4
    %p32 = por %p30, %p31
    %p33 = scmp.ne.s32.totalorder %s22, %s23
    %p34 = scmp.eq.s32.totalorder %s14, 0
    %p35 = por %p33, %p34
    %p36 = scmp.ne.s32.totalorder %s22, %s23
    %p37 = scmp.eq.s32.totalorder %s15, 4
    %p38 = por %p36, %p37
    %p40 = scmp.ne.s32.totalorder %s23, %s39
    %p41 = scmp.eq.s32.totalorder %s15, 0
    %p42 = por %p40, %p41
    %s44 = sadd.s32 %s43, 1
    %p47 = scmp.eq.s32.totalorder %s9, 4
    %p48 = scmp.ne.s32.totalorder %s43, %s45
    %p49 = scmp.eq.s32.totalorder %s9, 0
    %p50 = por %p48, %p49
    %p51 = scmp.ne.s32.totalorder %s43, %s45
    %p52 = scmp.eq.s32.totalorder %s14, 4
    %p53 = por %p51, %p52
    %p54 = scmp.ne.s32.totalorder %s45, %s46
    %p55 = scmp.eq.s32.totalorder %s14, 0
    %p56 = por %p54, %p55
    %p57 = scmp.ne.s32.totalorder %s45, %s46
    %p58 = scmp.eq.s32.totalorder %s15, 4
    %p59 = por %p57, %p58
    %p61 = scmp.ne.s32.totalorder %s46, %s60
    %p62 = scmp.eq.s32.totalorder %s15, 0
    %p63 = por %p61, %p62
    %s65 = sadd.s32 %s64, 1
    %p68 = scmp.eq.s32.totalorder %s9, 4
    %p69 = scmp.ne.s32.totalorder %s64, %s66
    %p70 = scmp.eq.s32.totalorder %s9, 0
    %p71 = por %p69, %p70
    %p72 = scmp.ne.s32.totalorder %s64, %s66
    %p73 = scmp.eq.s32.totalorder %s14, 4
    %p74 = por %p72, %p73
    %p75 = scmp.ne.s32.totalorder %s66, %s67
    %p76 = scmp.eq.s32.totalorder %s14, 0
    %p77 = por %p75, %p76
    %p78 = scmp.ne.s32.totalorder %s66, %s67
    %p79 = scmp.eq.s32.totalorder %s15, 4
    %p80 = por %p78, %p79
    %p82 = scmp.ne.s32.totalorder %s67, %s81
    %p83 = scmp.eq.s32.totalorder %s15, 0
    %p84 = por %p82, %p83
    %s85 = ssub.s32 %s9, %s16
    %p86 = scmp.eq.s32.totalorder %s85, 0
    %s88 = sadd.s32 %s87, 1
    %s89 = scalar_select %p86, %s87, %s88
    %p92 = pneg %p86
    %p93 = scmp.eq.s32.totalorder %s9, 4
    %p94 = por %p92, %p93
    %p95 = scmp.ne.s32.totalorder %s87, %s90
    %p96 = scmp.eq.s32.totalorder %s9, 0
    %p97 = por %p95, %p96
    %p98 = scmp.ne.s32.totalorder %s87, %s90
    %p99 = scmp.eq.s32.totalorder %s14, 4
    %p100 = por %p98, %p99
    %p101 = scmp.ne.s32.totalorder %s90, %s91
    %p102 = scmp.eq.s32.totalorder %s14, 0
    %p103 = por %p101, %p102
    %p104 = scmp.ne.s32.totalorder %s90, %s91
    %p105 = scmp.eq.s32.totalorder %s15, 4
    %p106 = por %p104, %p105
    %p108 = scmp.ne.s32.totalorder %s91, %s107
    %p109 = scmp.eq.s32.totalorder %s15, 0
    %p110 = por %p108, %p109
    %p111 = scmp.le.s32.totalorder 1, %s9
    %p112 = scmp.lt.s32.totalorder %s9, 6
    %p113 = pnand %p111, %p112
    %p114 = pneg %p113
    // Predicated region
    $region9: #{deconv_nn_forward.9} parent=5 // pred_check
      _
    $region10: #{deconv_nn_forward.9} parent=5 // pred_check_branch
      %116 = sbr.rel (%p113) target = $region12
    $region11: #{deconv_nn_forward.9} parent=5 // pred_region
      %s117 = ssub.s32 %s9, 1
      // Predicated region
      $region13: #{deconv_nn_forward.9} parent=11 // pred_check
        %p118 = pneg %p56
      $region14: #{deconv_nn_forward.9} parent=11 // pred_check_branch
        %120 = sbr.rel (%p118) target = $region16
      $region15: #{deconv_nn_forward.9} parent=11 // pred_region
        _
      $region16: #{deconv_nn_forward.9} parent=11 // pred_fallthru
        _
      // Predicated region
      $region17: #{deconv_nn_forward.9} parent=11 // pred_check
        %p121 = pneg %p77
      $region18: #{deconv_nn_forward.9} parent=11 // pred_check_branch
        %123 = sbr.rel (%p121) target = $region20
      $region19: #{deconv_nn_forward.9} parent=11 // pred_region
        _
      $region20: #{deconv_nn_forward.9} parent=11 // pred_fallthru
        _
    $region12: #{deconv_nn_forward.9} parent=5 // pred_fallthru
      _
    %p124 = scmp.lt.s32.totalorder %s9, 5
    // Predicated region
    $region21: #{deconv_nn_forward.9} parent=5 // pred_check
      %p125 = pneg %p124
    $region22: #{deconv_nn_forward.9} parent=5 // pred_check_branch
      %127 = sbr.rel (%p125) target = $region24
    $region23: #{deconv_nn_forward.9} parent=5 // pred_region
      // Predicated region
      $region25: #{deconv_nn_forward.9} parent=23 // pred_check
        %p128 = pneg %p29
      $region26: #{deconv_nn_forward.9} parent=23 // pred_check_branch
        %130 = sbr.rel (%p128) target = $region28
      $region27: #{deconv_nn_forward.9} parent=23 // pred_region
        %s131 = smul.u32 64, %s9
        %p132 = scmp.lt.s32.totalorder %s131, 319
        %s133 = scalar_select %p132, %s131, 319
        %s134 = smul.addr %s133, 8
        %s135 = scalar_lea.vmem %s0, %s134
        %s136 = smul.u32 64, %s9
      $region28: #{deconv_nn_forward.9} parent=23 // pred_fallthru
        _
    $region24: #{deconv_nn_forward.9} parent=5 // pred_fallthru
      _
    %p137 = scmp.le.s32.totalorder 1, %s9
    %p138 = scmp.lt.s32.totalorder %s9, 6
    %p139 = pnand %p137, %p138
    %p140 = pneg %p139
    // Predicated region
    $region29: #{deconv_nn_forward.9} parent=5 // pred_check
      _
    $region30: #{deconv_nn_forward.9} parent=5 // pred_check_branch
      %142 = sbr.rel (%p139) target = $region32
    $region31: #{deconv_nn_forward.9} parent=5 // pred_region
      %s143 = ssub.s32 %s9, 1
      %s144 = smul.u32 64, %s14
      %p145 = scmp.lt.s32.totalorder %s144, 319
      %s146 = scalar_select %p145, %s144, 319
      %s147 = smul.addr %s146, 8
      %s148 = scalar_lea.vmem %s0, %s147
      %p149 = pneg %p35
      %p150 = pneg %p32
      %p151 = pneg %p56
      %p152 = pneg %p53
      %p153 = pneg %p77
      %p154 = pneg %p74
      %p155 = pneg %p103
      %p156 = pneg %p100
      %s157 = smul.u32 64, %s14
      %p158 = scmp.lt.s32.totalorder %s157, 319
      %s159 = scalar_select %p158, %s157, 319
      %s160 = smul.addr %s159, 8
      %s161 = scalar_lea.vmem %s3, %s160
      %s162 = smul.u32 64, %s14
      %p163 = scmp.lt.s32.totalorder %s162, 319
      %s164 = scalar_select %p163, %s162, 319
      %s165 = smul.addr %s164, 8
      %s166 = scalar_lea.vmem %s0, %s165
      %s167 = smul.u32 64, %s14
      %s168 = smul.u32 64, %s14
      %p169 = scmp.lt.s32.totalorder %s168, 319
      %s170 = scalar_select %p169, %s168, 319
      %s171 = smul.addr %s170, 8
      %s172 = scalar_lea.vmem %s3, %s171
      %s173 = smul.u32 64, %s14
      %v174 = vld [vmem:[%s166] sm:$0xff]
      %v175 = vld [vmem:[%s166 + $0x8] sm:$0xff]
      %v176 = vld [vmem:[%s166 + $0x10] sm:$0xff]
      %v177 = vld [vmem:[%s166 + $0x18] sm:$0xff]
      %v178 = vld [vmem:[%s166 + $0x20] sm:$0xff]
      %v179 = vld [vmem:[%s166 + $0x28] sm:$0xff]
      %v180 = vld [vmem:[%s166 + $0x30] sm:$0xff]
      %v181 = vld [vmem:[%s166 + $0x38] sm:$0xff]
      %v182 = vld [vmem:[%s166 + $0x40] sm:$0xff]
      %v183 = vld [vmem:[%s166 + $0x48] sm:$0xff]
      %v184 = vld [vmem:[%s166 + $0x50] sm:$0xff]
      %v185 = vld [vmem:[%s166 + $0x58] sm:$0xff]
      %v186 = vld [vmem:[%s166 + $0x60] sm:$0xff]
      %v187 = vld [vmem:[%s166 + $0x68] sm:$0xff]
      %v188 = vld [vmem:[%s166 + $0x70] sm:$0xff]
      %v189 = vld [vmem:[%s166 + $0x78] sm:$0xff]
      %v190 = vld [vmem:[%s166 + $0x80] sm:$0xff]
      %v191 = vld [vmem:[%s166 + $0x88] sm:$0xff]
      %v192 = vld [vmem:[%s166 + $0x90] sm:$0xff]
      %v193 = vld [vmem:[%s166 + $0x98] sm:$0xff]
      %v194 = vld [vmem:[%s166 + $0xa0] sm:$0xff]
      %v195 = vld [vmem:[%s166 + $0xa8] sm:$0xff]
      %v196 = vld [vmem:[%s166 + $0xb0] sm:$0xff]
      %v197 = vld [vmem:[%s166 + $0xb8] sm:$0xff]
      %v198 = vld [vmem:[%s166 + $0xc0] sm:$0xff]
      %v199 = vld [vmem:[%s166 + $0xc8] sm:$0xff]
      %v200 = vld [vmem:[%s166 + $0xd0] sm:$0xff]
      %v201 = vld [vmem:[%s166 + $0xd8] sm:$0xff]
      %v202 = vld [vmem:[%s166 + $0xe0] sm:$0xff]
      %v203 = vld [vmem:[%s166 + $0xe8] sm:$0xff]
      %v204 = vld [vmem:[%s166 + $0xf0] sm:$0xff]
      %v205 = vld [vmem:[%s166 + $0xf8] sm:$0xff]
      %v206 = vld [vmem:[%s166 + $0x100] sm:$0xff]
      %v207 = vld [vmem:[%s166 + $0x108] sm:$0xff]
      %v208 = vld [vmem:[%s166 + $0x110] sm:$0xff]
      %v209 = vld [vmem:[%s166 + $0x118] sm:$0xff]
      %v210 = vld [vmem:[%s166 + $0x120] sm:$0xff]
      %v211 = vld [vmem:[%s166 + $0x128] sm:$0xff]
      %v212 = vld [vmem:[%s166 + $0x130] sm:$0xff]
      %v213 = vld [vmem:[%s166 + $0x138] sm:$0xff]
      %v214 = vld [vmem:[%s166 + $0x140] sm:$0xff]
      %v215 = vld [vmem:[%s166 + $0x148] sm:$0xff]
      %v216 = vld [vmem:[%s166 + $0x150] sm:$0xff]
      %v217 = vld [vmem:[%s166 + $0x158] sm:$0xff]
      %v218 = vld [vmem:[%s166 + $0x160] sm:$0xff]
      %v219 = vld [vmem:[%s166 + $0x168] sm:$0xff]
      %v220 = vld [vmem:[%s166 + $0x170] sm:$0xff]
      %v221 = vld [vmem:[%s166 + $0x178] sm:$0xff]
      %v222 = vld [vmem:[%s166 + $0x180] sm:$0xff]
      %v223 = vld [vmem:[%s166 + $0x188] sm:$0xff]
      %v224 = vld [vmem:[%s166 + $0x190] sm:$0xff]
      %v225 = vld [vmem:[%s166 + $0x198] sm:$0xff]
      %v226 = vld [vmem:[%s166 + $0x1a0] sm:$0xff]
      %v227 = vld [vmem:[%s166 + $0x1a8] sm:$0xff]
      %v228 = vld [vmem:[%s166 + $0x1b0] sm:$0xff]
      %v229 = vld [vmem:[%s166 + $0x1b8] sm:$0xff]
      %v230 = vld [vmem:[%s166 + $0x1c0] sm:$0xff]
      %v231 = vld [vmem:[%s166 + $0x1c8] sm:$0xff]
      %v232 = vld [vmem:[%s166 + $0x1d0] sm:$0xff]
      %v233 = vld [vmem:[%s166 + $0x1d8] sm:$0xff]
      %v234 = vld [vmem:[%s166 + $0x1e0] sm:$0xff]
      %v235 = vld [vmem:[%s166 + $0x1e8] sm:$0xff]
      %v236 = vld [vmem:[%s166 + $0x1f0] sm:$0xff]
      %v237 = vld [vmem:[%s166 + $0x1f8] sm:$0xff]
      %v238 = vld [vmem:[%s1] sm:$0x1]
      %v240 = vlaneseq
      %v241 = vshrl.u32 %v240, 7
      %v242 = vsub.s32 0, %v241
      %v243 = vrot.slane %v238, %v242
      %v245 = vmul.f32 %v174, %v243
      %v246 = vmul.f32 %v175, %v243
      %v247 = vmul.f32 %v176, %v243
      %v248 = vmul.f32 %v177, %v243
      %v249 = vmul.f32 %v178, %v243
      %v250 = vmul.f32 %v179, %v243
      %v251 = vmul.f32 %v180, %v243
      %v252 = vmul.f32 %v181, %v243
      %v253 = vmul.f32 %v182, %v243
      %v254 = vmul.f32 %v183, %v243
      %v255 = vmul.f32 %v184, %v243
      %v256 = vmul.f32 %v185, %v243
      %v257 = vmul.f32 %v186, %v243
      %v258 = vmul.f32 %v187, %v243
      %v259 = vmul.f32 %v188, %v243
      %v260 = vmul.f32 %v189, %v243
      %v261 = vmul.f32 %v190, %v243
      %v262 = vmul.f32 %v191, %v243
      %v263 = vmul.f32 %v192, %v243
      %v264 = vmul.f32 %v193, %v243
      %v265 = vmul.f32 %v194, %v243
      %v266 = vmul.f32 %v195, %v243
      %v267 = vmul.f32 %v196, %v243
      %v268 = vmul.f32 %v197, %v243
      %v269 = vmul.f32 %v198, %v243
      %v270 = vmul.f32 %v199, %v243
      %v271 = vmul.f32 %v200, %v243
      %v272 = vmul.f32 %v201, %v243
      %v273 = vmul.f32 %v202, %v243
      %v274 = vmul.f32 %v203, %v243
      %v275 = vmul.f32 %v204, %v243
      %v276 = vmul.f32 %v205, %v243
      %v277 = vmul.f32 %v206, %v243
      %v278 = vmul.f32 %v207, %v243
      %v279 = vmul.f32 %v208, %v243
      %v280 = vmul.f32 %v209, %v243
      %v281 = vmul.f32 %v210, %v243
      %v282 = vmul.f32 %v211, %v243
      %v283 = vmul.f32 %v212, %v243
      %v284 = vmul.f32 %v213, %v243
      %v285 = vmul.f32 %v214, %v243
      %v286 = vmul.f32 %v215, %v243
      %v287 = vmul.f32 %v216, %v243
      %v288 = vmul.f32 %v217, %v243
      %v289 = vmul.f32 %v218, %v243
      %v290 = vmul.f32 %v219, %v243
      %v291 = vmul.f32 %v220, %v243
      %v292 = vmul.f32 %v221, %v243
      %v293 = vmul.f32 %v222, %v243
      %v294 = vmul.f32 %v223, %v243
      %v295 = vmul.f32 %v224, %v243
      %v296 = vmul.f32 %v225, %v243
      %v297 = vmul.f32 %v226, %v243
      %v298 = vmul.f32 %v227, %v243
      %v299 = vmul.f32 %v228, %v243
      %v300 = vmul.f32 %v229, %v243
      %v301 = vmul.f32 %v230, %v243
      %v302 = vmul.f32 %v231, %v243
      %v303 = vmul.f32 %v232, %v243
      %v304 = vmul.f32 %v233, %v243
      %v305 = vmul.f32 %v234, %v243
      %v306 = vmul.f32 %v235, %v243
      %v307 = vmul.f32 %v236, %v243
      %v308 = vmul.f32 %v237, %v243
      %v309 = vld [vmem:[%s2] sm:$0x1]
      %v311 = vlaneseq
      %v312 = vshrl.u32 %v311, 7
      %v313 = vsub.s32 0, %v312
      %v314 = vrot.slane %v309, %v313
      %v316 = vadd.f32 %v245, %v314
      %v317 = vadd.f32 %v246, %v314
      %v318 = vadd.f32 %v247, %v314
      %v319 = vadd.f32 %v248, %v314
      %v320 = vadd.f32 %v249, %v314
      %v321 = vadd.f32 %v250, %v314
      %v322 = vadd.f32 %v251, %v314
      %v323 = vadd.f32 %v252, %v314
      %v324 = vadd.f32 %v253, %v314
      %v325 = vadd.f32 %v254, %v314
      %v326 = vadd.f32 %v255, %v314
      %v327 = vadd.f32 %v256, %v314
      %v328 = vadd.f32 %v257, %v314
      %v329 = vadd.f32 %v258, %v314
      %v330 = vadd.f32 %v259, %v314
      %v331 = vadd.f32 %v260, %v314
      %v332 = vadd.f32 %v261, %v314
      %v333 = vadd.f32 %v262, %v314
      %v334 = vadd.f32 %v263, %v314
      %v335 = vadd.f32 %v264, %v314
      %v336 = vadd.f32 %v265, %v314
      %v337 = vadd.f32 %v266, %v314
      %v338 = vadd.f32 %v267, %v314
      %v339 = vadd.f32 %v268, %v314
      %v340 = vadd.f32 %v269, %v314
      %v341 = vadd.f32 %v270, %v314
      %v342 = vadd.f32 %v271, %v314
      %v343 = vadd.f32 %v272, %v314
      %v344 = vadd.f32 %v273, %v314
      %v345 = vadd.f32 %v274, %v314
      %v346 = vadd.f32 %v275, %v314
      %v347 = vadd.f32 %v276, %v314
      %v348 = vadd.f32 %v277, %v314
      %v349 = vadd.f32 %v278, %v314
      %v350 = vadd.f32 %v279, %v314
      %v351 = vadd.f32 %v280, %v314
      %v352 = vadd.f32 %v281, %v314
      %v353 = vadd.f32 %v282, %v314
      %v354 = vadd.f32 %v283, %v314
      %v355 = vadd.f32 %v284, %v314
      %v356 = vadd.f32 %v285, %v314
      %v357 = vadd.f32 %v286, %v314
      %v358 = vadd.f32 %v287, %v314
      %v359 = vadd.f32 %v288, %v314
      %v360 = vadd.f32 %v289, %v314
      %v361 = vadd.f32 %v290, %v314
      %v362 = vadd.f32 %v291, %v314
      %v363 = vadd.f32 %v292, %v314
      %v364 = vadd.f32 %v293, %v314
      %v365 = vadd.f32 %v294, %v314
      %v366 = vadd.f32 %v295, %v314
      %v367 = vadd.f32 %v296, %v314
      %v368 = vadd.f32 %v297, %v314
      %v369 = vadd.f32 %v298, %v314
      %v370 = vadd.f32 %v299, %v314
      %v371 = vadd.f32 %v300, %v314
      %v372 = vadd.f32 %v301, %v314
      %v373 = vadd.f32 %v302, %v314
      %v374 = vadd.f32 %v303, %v314
      %v375 = vadd.f32 %v304, %v314
      %v376 = vadd.f32 %v305, %v314
      %v377 = vadd.f32 %v306, %v314
      %v378 = vadd.f32 %v307, %v314
      %v379 = vadd.f32 %v308, %v314
      %vm380 = vcmask 64512
      %381 = vst.msk [vmem:[%s172] sm:$0xff] %vm380, %v316
      %382 = vst.msk [vmem:[%s172 + $0x8] sm:$0xff] %vm380, %v317
      %383 = vst.msk [vmem:[%s172 + $0x10] sm:$0xff] %vm380, %v318
      %384 = vst.msk [vmem:[%s172 + $0x18] sm:$0xff] %vm380, %v319
      %385 = vst.msk [vmem:[%s172 + $0x20] sm:$0xff] %vm380, %v320
      %386 = vst.msk [vmem:[%s172 + $0x28] sm:$0xff] %vm380, %v321
      %387 = vst.msk [vmem:[%s172 + $0x30] sm:$0xff] %vm380, %v322
      %388 = vst.msk [vmem:[%s172 + $0x38] sm:$0xff] %vm380, %v323
      %389 = vst.msk [vmem:[%s172 + $0x40] sm:$0xff] %vm380, %v324
      %390 = vst.msk [vmem:[%s172 + $0x48] sm:$0xff] %vm380, %v325
      %391 = vst.msk [vmem:[%s172 + $0x50] sm:$0xff] %vm380, %v326
      %392 = vst.msk [vmem:[%s172 + $0x58] sm:$0xff] %vm380, %v327
      %393 = vst.msk [vmem:[%s172 + $0x60] sm:$0xff] %vm380, %v328
      %394 = vst.msk [vmem:[%s172 + $0x68] sm:$0xff] %vm380, %v329
      %395 = vst.msk [vmem:[%s172 + $0x70] sm:$0xff] %vm380, %v330
      %396 = vst.msk [vmem:[%s172 + $0x78] sm:$0xff] %vm380, %v331
      %397 = vst.msk [vmem:[%s172 + $0x80] sm:$0xff] %vm380, %v332
      %398 = vst.msk [vmem:[%s172 + $0x88] sm:$0xff] %vm380, %v333
      %399 = vst.msk [vmem:[%s172 + $0x90] sm:$0xff] %vm380, %v334
      %400 = vst.msk [vmem:[%s172 + $0x98] sm:$0xff] %vm380, %v335
      %401 = vst.msk [vmem:[%s172 + $0xa0] sm:$0xff] %vm380, %v336
      %402 = vst.msk [vmem:[%s172 + $0xa8] sm:$0xff] %vm380, %v337
      %403 = vst.msk [vmem:[%s172 + $0xb0] sm:$0xff] %vm380, %v338
      %404 = vst.msk [vmem:[%s172 + $0xb8] sm:$0xff] %vm380, %v339
      %405 = vst.msk [vmem:[%s172 + $0xc0] sm:$0xff] %vm380, %v340
      %406 = vst.msk [vmem:[%s172 + $0xc8] sm:$0xff] %vm380, %v341
      %407 = vst.msk [vmem:[%s172 + $0xd0] sm:$0xff] %vm380, %v342
      %408 = vst.msk [vmem:[%s172 + $0xd8] sm:$0xff] %vm380, %v343
      %409 = vst.msk [vmem:[%s172 + $0xe0] sm:$0xff] %vm380, %v344
      %410 = vst.msk [vmem:[%s172 + $0xe8] sm:$0xff] %vm380, %v345
      %411 = vst.msk [vmem:[%s172 + $0xf0] sm:$0xff] %vm380, %v346
      %412 = vst.msk [vmem:[%s172 + $0xf8] sm:$0xff] %vm380, %v347
      %413 = vst.msk [vmem:[%s172 + $0x100] sm:$0xff] %vm380, %v348
      %414 = vst.msk [vmem:[%s172 + $0x108] sm:$0xff] %vm380, %v349
      %415 = vst.msk [vmem:[%s172 + $0x110] sm:$0xff] %vm380, %v350
      %416 = vst.msk [vmem:[%s172 + $0x118] sm:$0xff] %vm380, %v351
      %417 = vst.msk [vmem:[%s172 + $0x120] sm:$0xff] %vm380, %v352
      %418 = vst.msk [vmem:[%s172 + $0x128] sm:$0xff] %vm380, %v353
      %419 = vst.msk [vmem:[%s172 + $0x130] sm:$0xff] %vm380, %v354
      %420 = vst.msk [vmem:[%s172 + $0x138] sm:$0xff] %vm380, %v355
      %421 = vst.msk [vmem:[%s172 + $0x140] sm:$0xff] %vm380, %v356
      %422 = vst.msk [vmem:[%s172 + $0x148] sm:$0xff] %vm380, %v357
      %423 = vst.msk [vmem:[%s172 + $0x150] sm:$0xff] %vm380, %v358
      %424 = vst.msk [vmem:[%s172 + $0x158] sm:$0xff] %vm380, %v359
      %425 = vst.msk [vmem:[%s172 + $0x160] sm:$0xff] %vm380, %v360
      %426 = vst.msk [vmem:[%s172 + $0x168] sm:$0xff] %vm380, %v361
      %427 = vst.msk [vmem:[%s172 + $0x170] sm:$0xff] %vm380, %v362
      %428 = vst.msk [vmem:[%s172 + $0x178] sm:$0xff] %vm380, %v363
      %429 = vst.msk [vmem:[%s172 + $0x180] sm:$0xff] %vm380, %v364
      %430 = vst.msk [vmem:[%s172 + $0x188] sm:$0xff] %vm380, %v365
      %431 = vst.msk [vmem:[%s172 + $0x190] sm:$0xff] %vm380, %v366
      %432 = vst.msk [vmem:[%s172 + $0x198] sm:$0xff] %vm380, %v367
      %433 = vst.msk [vmem:[%s172 + $0x1a0] sm:$0xff] %vm380, %v368
      %434 = vst.msk [vmem:[%s172 + $0x1a8] sm:$0xff] %vm380, %v369
      %435 = vst.msk [vmem:[%s172 + $0x1b0] sm:$0xff] %vm380, %v370
      %436 = vst.msk [vmem:[%s172 + $0x1b8] sm:$0xff] %vm380, %v371
      %437 = vst.msk [vmem:[%s172 + $0x1c0] sm:$0xff] %vm380, %v372
      %438 = vst.msk [vmem:[%s172 + $0x1c8] sm:$0xff] %vm380, %v373
      %439 = vst.msk [vmem:[%s172 + $0x1d0] sm:$0xff] %vm380, %v374
      %440 = vst.msk [vmem:[%s172 + $0x1d8] sm:$0xff] %vm380, %v375
      %441 = vst.msk [vmem:[%s172 + $0x1e0] sm:$0xff] %vm380, %v376
      %442 = vst.msk [vmem:[%s172 + $0x1e8] sm:$0xff] %vm380, %v377
      %443 = vst.msk [vmem:[%s172 + $0x1f0] sm:$0xff] %vm380, %v378
      %444 = vst.msk [vmem:[%s172 + $0x1f8] sm:$0xff] %vm380, %v379
      %s445 = smul.u32 64, %s14
      %p446 = scmp.lt.s32.totalorder %s445, 319
      %s447 = scalar_select %p446, %s445, 319
      %s448 = smul.addr %s447, 8
      %s449 = scalar_lea.vmem %s3, %s448
      // Predicated region
      $region33: #{deconv_nn_forward.9} parent=31 // pred_check
        %p450 = pneg %p100
      $region34: #{deconv_nn_forward.9} parent=31 // pred_check_branch
        %452 = sbr.rel (%p450) target = $region36
      $region35: #{deconv_nn_forward.9} parent=31 // pred_region
        %s453 = smul.u32 64, %s14
      $region36: #{deconv_nn_forward.9} parent=31 // pred_fallthru
        _
    $region32: #{deconv_nn_forward.9} parent=5 // pred_fallthru
      _
    %p454 = scmp.le.s32.totalorder 2, %s9
    // Predicated region
    $region37: #{deconv_nn_forward.9} parent=5 // pred_check
      %p455 = pneg %p454
    $region38: #{deconv_nn_forward.9} parent=5 // pred_check_branch
      %457 = sbr.rel (%p455) target = $region40
    $region39: #{deconv_nn_forward.9} parent=5 // pred_region
      %s458 = ssub.s32 %s9, 2
      // Predicated region
      $region41: #{deconv_nn_forward.9} parent=39 // pred_check
        %p459 = pneg %p106
      $region42: #{deconv_nn_forward.9} parent=39 // pred_check_branch
        %461 = sbr.rel (%p459) target = $region44
      $region43: #{deconv_nn_forward.9} parent=39 // pred_region
        %s462 = smul.u32 64, %s15
        %p463 = scmp.lt.s32.totalorder %s462, 319
        %s464 = scalar_select %p463, %s462, 319
        %s465 = smul.addr %s464, 8
        %s466 = scalar_lea.vmem %s3, %s465
      $region44: #{deconv_nn_forward.9} parent=39 // pred_fallthru
        _
    $region40: #{deconv_nn_forward.9} parent=5 // pred_fallthru
      _
  $region6: #{deconv_nn_forward.9} parent=0 // loop_footer
    %s13 = sadd.s32 1, %s9
  $region7: #{deconv_nn_forward.9} parent=0 // loop_footer_branch
    %8 = sbr.rel target = $region3
  $region8: #{deconv_nn_forward.9} parent=0 // loop_exit
    _

// kernel: deconv_nn_forward.10
$region0: #{deconv_nn_forward.10}
  #allocation0 [shape = 'u32[]', space=smem, size = 0x4, offset = 0x4, fixed_abs, tag = 'smem constant byte address 0x4 - core index']
  #allocation1 [shape = 'u32[144,128]{1,0:T(1,128)}', space=vmem, size = 0x12000, scoped, tag = 'internal scratch']
  %s0 = inlined_call_operand.vmem [shape: bf16[8704,72], index: 0, kind: input, shape index: {}]
  %s1 = inlined_call_operand.vmem [shape: bf16[72,128], index: 1, kind: input, shape index: {}]
  %s2 = inlined_call_operand.vmem [shape: f32[1,128], index: 2, kind: input, shape index: {}]
  %s3 = inlined_call_operand.vmem [shape: f32[8704,4], index: 3, kind: output, shape index: {0}]
  %s4 = inlined_call_operand.vmem [shape: f32[136,4], index: 4, kind: output, shape index: {1}]
  %s5 = inlined_call_operand.vmem [shape: f32[136,4], index: 5, kind: output, shape index: {2}]
  %6 = xla_tuple %s3, %s4, %s5
  %s7 = sld [smem:[#allocation0]]
  $region61: #{deconv_nn_forward.10} parent=0
    _
  %s9 = ssub.s32 1, %s7
  %s10 = scalar_select 0, %s9, %s7
  loop: start=0, step=1, limit=19
  $region2: #{deconv_nn_forward.10} parent=0 // loop_pre_header
    _
  $region3: #{deconv_nn_forward.10} parent=0 // loop_header
    %s12 = sphi 0, %s16
    %p13 = scmp.ge.s32.totalorder %s12, 19
    %s22 = sphi 0, %s24
    %s25 = sphi 0, %s22
    %s26 = sphi 0, %s25
    %s42 = sphi 0, %s26
    %s46 = sphi 0, %s46
    %s48 = sphi 0, %s46
    %s49 = sphi 0, %s48
    %s63 = sphi 0, %s49
    %s67 = sphi 0, %s67
    %s69 = sphi 0, %s67
    %s70 = sphi 0, %s69
    %s84 = sphi 0, %s70
    %s90 = sphi 0, %s92
    %s93 = sphi 0, %s90
    %s94 = sphi 0, %s93
    %s110 = sphi 0, %s94
    %s116 = sphi 0, %s118
    %s119 = sphi 0, %s116
    %s120 = sphi 0, %s119
    %s136 = sphi 0, %s120
    %s142 = sphi 0, %s144
    %s145 = sphi 0, %s142
    %s146 = sphi 0, %s145
    %s162 = sphi 0, %s146
  $region4: #{deconv_nn_forward.10} parent=0 // loop_header_branch
    %15 = sbr.rel (%p13) target = $region8
  $region5: #{deconv_nn_forward.10} parent=0 // loop_body
    %s17 = ssub.s32 %s12, 1
    %s18 = ssub.s32 %s12, 2
    %s19 = sadd.s32 %s12, 1
    %s20 = ssub.s32 %s12, %s19
    %p21 = scmp.eq.s32.totalorder %s20, 0
    %s23 = sadd.s32 %s22, 1
    %s24 = scalar_select %p21, %s22, %s23
    %p27 = pneg %p21
    %p28 = scmp.eq.s32.totalorder %s12, 16
    %p29 = por %p27, %p28
    %p30 = scmp.ne.s32.totalorder %s22, %s25
    %p31 = scmp.eq.s32.totalorder %s12, 0
    %p32 = por %p30, %p31
    %p33 = scmp.ne.s32.totalorder %s22, %s25
    %p34 = scmp.eq.s32.totalorder %s17, 16
    %p35 = por %p33, %p34
    %p36 = scmp.ne.s32.totalorder %s25, %s26
    %p37 = scmp.eq.s32.totalorder %s17, 0
    %p38 = por %p36, %p37
    %p39 = scmp.ne.s32.totalorder %s25, %s26
    %p40 = scmp.eq.s32.totalorder %s18, 16
    %p41 = por %p39, %p40
    %p43 = scmp.ne.s32.totalorder %s26, %s42
    %p44 = scmp.eq.s32.totalorder %s18, 0
    %p45 = por %p43, %p44
    %s47 = sadd.s32 %s46, 1
    %p50 = scmp.eq.s32.totalorder %s12, 16
    %p51 = scmp.ne.s32.totalorder %s46, %s48
    %p52 = scmp.eq.s32.totalorder %s12, 0
    %p53 = por %p51, %p52
    %p54 = scmp.ne.s32.totalorder %s46, %s48
    %p55 = scmp.eq.s32.totalorder %s17, 16
    %p56 = por %p54, %p55
    %p57 = scmp.ne.s32.totalorder %s48, %s49
    %p58 = scmp.eq.s32.totalorder %s17, 0
    %p59 = por %p57, %p58
    %p60 = scmp.ne.s32.totalorder %s48, %s49
    %p61 = scmp.eq.s32.totalorder %s18, 16
    %p62 = por %p60, %p61
    %p64 = scmp.ne.s32.totalorder %s49, %s63
    %p65 = scmp.eq.s32.totalorder %s18, 0
    %p66 = por %p64, %p65
    %s68 = sadd.s32 %s67, 1
    %p71 = scmp.eq.s32.totalorder %s12, 16
    %p72 = scmp.ne.s32.totalorder %s67, %s69
    %p73 = scmp.eq.s32.totalorder %s12, 0
    %p74 = por %p72, %p73
    %p75 = scmp.ne.s32.totalorder %s67, %s69
    %p76 = scmp.eq.s32.totalorder %s17, 16
    %p77 = por %p75, %p76
    %p78 = scmp.ne.s32.totalorder %s69, %s70
    %p79 = scmp.eq.s32.totalorder %s17, 0
    %p80 = por %p78, %p79
    %p81 = scmp.ne.s32.totalorder %s69, %s70
    %p82 = scmp.eq.s32.totalorder %s18, 16
    %p83 = por %p81, %p82
    %p85 = scmp.ne.s32.totalorder %s70, %s84
    %p86 = scmp.eq.s32.totalorder %s18, 0
    %p87 = por %p85, %p86
    %s88 = ssub.s32 %s12, %s19
    %p89 = scmp.eq.s32.totalorder %s88, 0
    %s91 = sadd.s32 %s90, 1
    %s92 = scalar_select %p89, %s90, %s91
    %p95 = pneg %p89
    %p96 = scmp.eq.s32.totalorder %s12, 16
    %p97 = por %p95, %p96
    %p98 = scmp.ne.s32.totalorder %s90, %s93
    %p99 = scmp.eq.s32.totalorder %s12, 0
    %p100 = por %p98, %p99
    %p101 = scmp.ne.s32.totalorder %s90, %s93
    %p102 = scmp.eq.s32.totalorder %s17, 16
    %p103 = por %p101, %p102
    %p104 = scmp.ne.s32.totalorder %s93, %s94
    %p105 = scmp.eq.s32.totalorder %s17, 0
    %p106 = por %p104, %p105
    %p107 = scmp.ne.s32.totalorder %s93, %s94
    %p108 = scmp.eq.s32.totalorder %s18, 16
    %p109 = por %p107, %p108
    %p111 = scmp.ne.s32.totalorder %s94, %s110
    %p112 = scmp.eq.s32.totalorder %s18, 0
    %p113 = por %p111, %p112
    %s114 = ssub.s32 %s12, %s19
    %p115 = scmp.eq.s32.totalorder %s114, 0
    %s117 = sadd.s32 %s116, 1
    %s118 = scalar_select %p115, %s116, %s117
    %p121 = pneg %p115
    %p122 = scmp.eq.s32.totalorder %s12, 16
    %p123 = por %p121, %p122
    %p124 = scmp.ne.s32.totalorder %s116, %s119
    %p125 = scmp.eq.s32.totalorder %s12, 0
    %p126 = por %p124, %p125
    %p127 = scmp.ne.s32.totalorder %s116, %s119
    %p128 = scmp.eq.s32.totalorder %s17, 16
    %p129 = por %p127, %p128
    %p130 = scmp.ne.s32.totalorder %s119, %s120
    %p131 = scmp.eq.s32.totalorder %s17, 0
    %p132 = por %p130, %p131
    %p133 = scmp.ne.s32.totalorder %s119, %s120
    %p134 = scmp.eq.s32.totalorder %s18, 16
    %p135 = por %p133, %p134
    %p137 = scmp.ne.s32.totalorder %s120, %s136
    %p138 = scmp.eq.s32.totalorder %s18, 0
    %p139 = por %p137, %p138
    %s140 = ssub.s32 %s12, %s19
    %p141 = scmp.eq.s32.totalorder %s140, 0
    %s143 = sadd.s32 %s142, 1
    %s144 = scalar_select %p141, %s142, %s143
    %p147 = pneg %p141
    %p148 = scmp.eq.s32.totalorder %s12, 16
    %p149 = por %p147, %p148
    %p150 = scmp.ne.s32.totalorder %s142, %s145
    %p151 = scmp.eq.s32.totalorder %s12, 0
    %p152 = por %p150, %p151
    %p153 = scmp.ne.s32.totalorder %s142, %s145
    %p154 = scmp.eq.s32.totalorder %s17, 16
    %p155 = por %p153, %p154
    %p156 = scmp.ne.s32.totalorder %s145, %s146
    %p157 = scmp.eq.s32.totalorder %s17, 0
    %p158 = por %p156, %p157
    %p159 = scmp.ne.s32.totalorder %s145, %s146
    %p160 = scmp.eq.s32.totalorder %s18, 16
    %p161 = por %p159, %p160
    %p163 = scmp.ne.s32.totalorder %s146, %s162
    %p164 = scmp.eq.s32.totalorder %s18, 0
    %p165 = por %p163, %p164
    %p166 = scmp.le.s32.totalorder 1, %s12
    %p167 = scmp.lt.s32.totalorder %s12, 18
    %p168 = pnand %p166, %p167
    %p169 = pneg %p168
    // Predicated region
    $region9: #{deconv_nn_forward.10} parent=5 // pred_check
      _
    $region10: #{deconv_nn_forward.10} parent=5 // pred_check_branch
      %171 = sbr.rel (%p168) target = $region12
    $region11: #{deconv_nn_forward.10} parent=5 // pred_region
      %s172 = ssub.s32 %s12, 1
      // Predicated region
      $region13: #{deconv_nn_forward.10} parent=11 // pred_check
        %p173 = pneg %p59
      $region14: #{deconv_nn_forward.10} parent=11 // pred_check_branch
        %175 = sbr.rel (%p173) target = $region16
      $region15: #{deconv_nn_forward.10} parent=11 // pred_region
        _
      $region16: #{deconv_nn_forward.10} parent=11 // pred_fallthru
        _
      // Predicated region
      $region17: #{deconv_nn_forward.10} parent=11 // pred_check
        %p176 = pneg %p80
      $region18: #{deconv_nn_forward.10} parent=11 // pred_check_branch
        %178 = sbr.rel (%p176) target = $region20
      $region19: #{deconv_nn_forward.10} parent=11 // pred_region
        _
      $region20: #{deconv_nn_forward.10} parent=11 // pred_fallthru
        _
    $region12: #{deconv_nn_forward.10} parent=5 // pred_fallthru
      _
    %p179 = scmp.lt.s32.totalorder %s12, 17
    // Predicated region
    $region21: #{deconv_nn_forward.10} parent=5 // pred_check
      %p180 = pneg %p179
    $region22: #{deconv_nn_forward.10} parent=5 // pred_check_branch
      %182 = sbr.rel (%p180) target = $region24
    $region23: #{deconv_nn_forward.10} parent=5 // pred_region
      // Predicated region
      $region25: #{deconv_nn_forward.10} parent=23 // pred_check
        %p183 = pneg %p32
      $region26: #{deconv_nn_forward.10} parent=23 // pred_check_branch
        %185 = sbr.rel (%p183) target = $region28
      $region27: #{deconv_nn_forward.10} parent=23 // pred_region
        %s186 = smul.u32 64, %s12
        %p187 = scmp.lt.s32.totalorder %s186, 1087
        %s188 = scalar_select %p187, %s186, 1087
        %s189 = smul.addr %s188, 4
        %s190 = scalar_lea.vmem %s0, %s189
        %s191 = smul.u32 64, %s12
      $region28: #{deconv_nn_forward.10} parent=23 // pred_fallthru
        _
    $region24: #{deconv_nn_forward.10} parent=5 // pred_fallthru
      _
    %p192 = scmp.le.s32.totalorder 1, %s12
    %p193 = scmp.lt.s32.totalorder %s12, 18
    %p194 = pnand %p192, %p193
    %p195 = pneg %p194
    // Predicated region
    $region29: #{deconv_nn_forward.10} parent=5 // pred_check
      _
    $region30: #{deconv_nn_forward.10} parent=5 // pred_check_branch
      %197 = sbr.rel (%p194) target = $region32
    $region31: #{deconv_nn_forward.10} parent=5 // pred_region
      %s198 = ssub.s32 %s12, 1
      %s199 = smul.u32 64, %s17
      %p200 = scmp.lt.s32.totalorder %s199, 1087
      %s201 = scalar_select %p200, %s199, 1087
      %s202 = smul.addr %s201, 4
      %s203 = scalar_lea.vmem %s0, %s202
      %p204 = pneg %p38
      %p205 = pneg %p35
      %p206 = pneg %p59
      %p207 = pneg %p56
      %p208 = pneg %p80
      %p209 = pneg %p77
      %p210 = pneg %p106
      %p211 = pneg %p103
      %s212 = smul.u32 64, %s17
      %p213 = scmp.lt.s32.totalorder %s212, 1087
      %s214 = scalar_select %p213, %s212, 1087
      %s215 = smul.addr %s214, 8
      %s216 = scalar_lea.vmem %s3, %s215
      %p217 = pneg %p132
      %p218 = pneg %p129
      %p219 = scmp.lt.s32.totalorder %s17, 16
      %s220 = scalar_select %p219, %s17, 16
      %s221 = smul.addr %s220, 8
      %s222 = scalar_lea.vmem %s4, %s221
      %p223 = pneg %p158
      %p224 = pneg %p155
      %p225 = scmp.lt.s32.totalorder %s17, 16
      %s226 = scalar_select %p225, %s17, 16
      %s227 = smul.addr %s226, 8
      %s228 = scalar_lea.vmem %s5, %s227
      %s229 = smul.u32 64, %s17
      %p230 = scmp.lt.s32.totalorder %s229, 1087
      %s231 = scalar_select %p230, %s229, 1087
      %s232 = smul.addr %s231, 4
      %s233 = scalar_lea.vmem %s0, %s232
      %s234 = smul.u32 64, %s17
      %s235 = smul.u32 64, %s17
      %p236 = scmp.lt.s32.totalorder %s235, 1087
      %s237 = scalar_select %p236, %s235, 1087
      %s238 = smul.addr %s237, 8
      %s239 = scalar_lea.vmem %s3, %s238
      %s240 = smul.u32 64, %s17
      %p241 = scmp.lt.s32.totalorder %s17, 16
      %s242 = scalar_select %p241, %s17, 16
      %s243 = smul.addr %s242, 8
      %s244 = scalar_lea.vmem %s4, %s243
      %p245 = scmp.lt.s32.totalorder %s17, 16
      %s246 = scalar_select %p245, %s17, 16
      %s247 = smul.addr %s246, 8
      %s248 = scalar_lea.vmem %s5, %s247
      %v250 = vld [vmem:[%s233] sm:$0xf]
      %v251 = vld [vmem:[%s233 + $0x4] sm:$0xf]
      %v252 = vld [vmem:[%s233 + $0x8] sm:$0xf]
      %v253 = vld [vmem:[%s233 + $0xc] sm:$0xf]
      %v254 = vld [vmem:[%s233 + $0x10] sm:$0xf]
      %v255 = vld [vmem:[%s233 + $0x14] sm:$0xf]
      %v256 = vld [vmem:[%s233 + $0x18] sm:$0xf]
      %v257 = vld [vmem:[%s233 + $0x1c] sm:$0xf]
      %v258 = vld [vmem:[%s233 + $0x20] sm:$0xf]
      %v259 = vld [vmem:[%s233 + $0x24] sm:$0xf]
      %v260 = vld [vmem:[%s233 + $0x28] sm:$0xf]
      %v261 = vld [vmem:[%s233 + $0x2c] sm:$0xf]
      %v262 = vld [vmem:[%s233 + $0x30] sm:$0xf]
      %v263 = vld [vmem:[%s233 + $0x34] sm:$0xf]
      %v264 = vld [vmem:[%s233 + $0x38] sm:$0xf]
      %v265 = vld [vmem:[%s233 + $0x3c] sm:$0xf]
      %v266 = vld [vmem:[%s233 + $0x40] sm:$0xf]
      %v267 = vld [vmem:[%s233 + $0x44] sm:$0xf]
      %v268 = vld [vmem:[%s233 + $0x48] sm:$0xf]
      %v269 = vld [vmem:[%s233 + $0x4c] sm:$0xf]
      %v270 = vld [vmem:[%s233 + $0x50] sm:$0xf]
      %v271 = vld [vmem:[%s233 + $0x54] sm:$0xf]
      %v272 = vld [vmem:[%s233 + $0x58] sm:$0xf]
      %v273 = vld [vmem:[%s233 + $0x5c] sm:$0xf]
      %v274 = vld [vmem:[%s233 + $0x60] sm:$0xf]
      %v275 = vld [vmem:[%s233 + $0x64] sm:$0xf]
      %v276 = vld [vmem:[%s233 + $0x68] sm:$0xf]
      %v277 = vld [vmem:[%s233 + $0x6c] sm:$0xf]
      %v278 = vld [vmem:[%s233 + $0x70] sm:$0xf]
      %v279 = vld [vmem:[%s233 + $0x74] sm:$0xf]
      %v280 = vld [vmem:[%s233 + $0x78] sm:$0xf]
      %v281 = vld [vmem:[%s233 + $0x7c] sm:$0xf]
      %v282 = vld [vmem:[%s233 + $0x80] sm:$0xf]
      %v283 = vld [vmem:[%s233 + $0x84] sm:$0xf]
      %v284 = vld [vmem:[%s233 + $0x88] sm:$0xf]
      %v285 = vld [vmem:[%s233 + $0x8c] sm:$0xf]
      %v286 = vld [vmem:[%s233 + $0x90] sm:$0xf]
      %v287 = vld [vmem:[%s233 + $0x94] sm:$0xf]
      %v288 = vld [vmem:[%s233 + $0x98] sm:$0xf]
      %v289 = vld [vmem:[%s233 + $0x9c] sm:$0xf]
      %v290 = vld [vmem:[%s233 + $0xa0] sm:$0xf]
      %v291 = vld [vmem:[%s233 + $0xa4] sm:$0xf]
      %v292 = vld [vmem:[%s233 + $0xa8] sm:$0xf]
      %v293 = vld [vmem:[%s233 + $0xac] sm:$0xf]
      %v294 = vld [vmem:[%s233 + $0xb0] sm:$0xf]
      %v295 = vld [vmem:[%s233 + $0xb4] sm:$0xf]
      %v296 = vld [vmem:[%s233 + $0xb8] sm:$0xf]
      %v297 = vld [vmem:[%s233 + $0xbc] sm:$0xf]
      %v298 = vld [vmem:[%s233 + $0xc0] sm:$0xf]
      %v299 = vld [vmem:[%s233 + $0xc4] sm:$0xf]
      %v300 = vld [vmem:[%s233 + $0xc8] sm:$0xf]
      %v301 = vld [vmem:[%s233 + $0xcc] sm:$0xf]
      %v302 = vld [vmem:[%s233 + $0xd0] sm:$0xf]
      %v303 = vld [vmem:[%s233 + $0xd4] sm:$0xf]
      %v304 = vld [vmem:[%s233 + $0xd8] sm:$0xf]
      %v305 = vld [vmem:[%s233 + $0xdc] sm:$0xf]
      %v306 = vld [vmem:[%s233 + $0xe0] sm:$0xf]
      %v307 = vld [vmem:[%s233 + $0xe4] sm:$0xf]
      %v308 = vld [vmem:[%s233 + $0xe8] sm:$0xf]
      %v309 = vld [vmem:[%s233 + $0xec] sm:$0xf]
      %v310 = vld [vmem:[%s233 + $0xf0] sm:$0xf]
      %v311 = vld [vmem:[%s233 + $0xf4] sm:$0xf]
      %v312 = vld [vmem:[%s233 + $0xf8] sm:$0xf]
      %v313 = vld [vmem:[%s233 + $0xfc] sm:$0xf]
      %v314 = vld [vmem:[%s1] sm:$0xf]
      %v315 = vld [vmem:[%s1 + $0x4] sm:$0xf]
      %v316 = vld [vmem:[%s1 + $0x8] sm:$0xf]
      %v317 = vld [vmem:[%s1 + $0xc] sm:$0xf]
      %v318 = vld [vmem:[%s1 + $0x10] sm:$0xf]
      %v319 = vld [vmem:[%s1 + $0x14] sm:$0xf]
      %v320 = vld [vmem:[%s1 + $0x18] sm:$0xf]
      %v321 = vld [vmem:[%s1 + $0x1c] sm:$0xf]
      %v322 = vld [vmem:[%s1 + $0x20] sm:$0xf]
      %v323 = vld [vmem:[%s2] sm:$0x1]
      %v325 = vlaneseq
      %v326 = vshrl.u32 %v325, 7
      %v327 = vsub.s32 0, %v326
      %v328 = vrot.slane %v323, %v327
      %v394 = vunpack.c.l.b16 %v250
      %v395 = vunpack.c.l.b16 %v251
      %v396 = vunpack.c.l.b16 %v252
      %v397 = vunpack.c.l.b16 %v253
      %v398 = vunpack.c.l.b16 %v254
      %v399 = vunpack.c.l.b16 %v255
      %v400 = vunpack.c.l.b16 %v256
      %v401 = vunpack.c.l.b16 %v257
      %v402 = vunpack.c.l.b16 %v258
      %v403 = vunpack.c.l.b16 %v259
      %v404 = vunpack.c.l.b16 %v260
      %v405 = vunpack.c.l.b16 %v261
      %v406 = vunpack.c.l.b16 %v262
      %v407 = vunpack.c.l.b16 %v263
      %v408 = vunpack.c.l.b16 %v264
      %v409 = vunpack.c.l.b16 %v265
      %v410 = vunpack.c.l.b16 %v266
      %v411 = vunpack.c.l.b16 %v267
      %v412 = vunpack.c.l.b16 %v268
      %v413 = vunpack.c.l.b16 %v269
      %v414 = vunpack.c.l.b16 %v270
      %v415 = vunpack.c.l.b16 %v271
      %v416 = vunpack.c.l.b16 %v272
      %v417 = vunpack.c.l.b16 %v273
      %v418 = vunpack.c.l.b16 %v274
      %v419 = vunpack.c.l.b16 %v275
      %v420 = vunpack.c.l.b16 %v276
      %v421 = vunpack.c.l.b16 %v277
      %v422 = vunpack.c.l.b16 %v278
      %v423 = vunpack.c.l.b16 %v279
      %v424 = vunpack.c.l.b16 %v280
      %v425 = vunpack.c.l.b16 %v281
      %v426 = vunpack.c.l.b16 %v282
      %v427 = vunpack.c.l.b16 %v283
      %v428 = vunpack.c.l.b16 %v284
      %v429 = vunpack.c.l.b16 %v285
      %v430 = vunpack.c.l.b16 %v286
      %v431 = vunpack.c.l.b16 %v287
      %v432 = vunpack.c.l.b16 %v288
      %v433 = vunpack.c.l.b16 %v289
      %v434 = vunpack.c.l.b16 %v290
      %v435 = vunpack.c.l.b16 %v291
      %v436 = vunpack.c.l.b16 %v292
      %v437 = vunpack.c.l.b16 %v293
      %v438 = vunpack.c.l.b16 %v294
      %v439 = vunpack.c.l.b16 %v295
      %v440 = vunpack.c.l.b16 %v296
      %v441 = vunpack.c.l.b16 %v297
      %v442 = vunpack.c.l.b16 %v298
      %v443 = vunpack.c.l.b16 %v299
      %v444 = vunpack.c.l.b16 %v300
      %v445 = vunpack.c.l.b16 %v301
      %v446 = vunpack.c.l.b16 %v302
      %v447 = vunpack.c.l.b16 %v303
      %v448 = vunpack.c.l.b16 %v304
      %v449 = vunpack.c.l.b16 %v305
      %v450 = vunpack.c.l.b16 %v306
      %v451 = vunpack.c.l.b16 %v307
      %v452 = vunpack.c.l.b16 %v308
      %v453 = vunpack.c.l.b16 %v309
      %v454 = vunpack.c.l.b16 %v310
      %v455 = vunpack.c.l.b16 %v311
      %v456 = vunpack.c.l.b16 %v312
      %v457 = vunpack.c.l.b16 %v313
      %v458 = vpack.c.b16 %v395, %v394
      %v459 = vpack.c.b16 %v397, %v396
      %v460 = vpack.c.b16 %v399, %v398
      %v461 = vpack.c.b16 %v401, %v400
      %v462 = vpack.c.b16 %v403, %v402
      %v463 = vpack.c.b16 %v405, %v404
      %v464 = vpack.c.b16 %v407, %v406
      %v465 = vpack.c.b16 %v409, %v408
      %v466 = vpack.c.b16 %v411, %v410
      %v467 = vpack.c.b16 %v413, %v412
      %v468 = vpack.c.b16 %v415, %v414
      %v469 = vpack.c.b16 %v417, %v416
      %v470 = vpack.c.b16 %v419, %v418
      %v471 = vpack.c.b16 %v421, %v420
      %v472 = vpack.c.b16 %v423, %v422
      %v473 = vpack.c.b16 %v425, %v424
      %v474 = vpack.c.b16 %v427, %v426
      %v475 = vpack.c.b16 %v429, %v428
      %v476 = vpack.c.b16 %v431, %v430
      %v477 = vpack.c.b16 %v433, %v432
      %v478 = vpack.c.b16 %v435, %v434
      %v479 = vpack.c.b16 %v437, %v436
      %v480 = vpack.c.b16 %v439, %v438
      %v481 = vpack.c.b16 %v441, %v440
      %v482 = vpack.c.b16 %v443, %v442
      %v483 = vpack.c.b16 %v445, %v444
      %v484 = vpack.c.b16 %v447, %v446
      %v485 = vpack.c.b16 %v449, %v448
      %v486 = vpack.c.b16 %v451, %v450
      %v487 = vpack.c.b16 %v453, %v452
      %v488 = vpack.c.b16 %v455, %v454
      %v489 = vpack.c.b16 %v457, %v456
      %v499 = vunpack.c.l.b16 %v314
      %v500 = vunpack.c.l.b16 %v315
      %v501 = vunpack.c.l.b16 %v316
      %v502 = vunpack.c.l.b16 %v317
      %v503 = vunpack.c.l.b16 %v318
      %v504 = vunpack.c.l.b16 %v319
      %v505 = vunpack.c.l.b16 %v320
      %v506 = vunpack.c.l.b16 %v321
      %v507 = vunpack.c.l.b16 %v322
      %v508 = vpack.c.b16 %v500, %v499
      %v509 = vpack.c.b16 %v502, %v501
      %v510 = vpack.c.b16 %v504, %v503
      %v511 = vpack.c.b16 %v506, %v505
      %v512 = vpack.c.b16 %v507, %v507
      %vm517 = vcmask 588800
      %v519 = vsel %vm517, %v458, 0
      %v522 = vsel %vm517, %v459, 0
      %v525 = vsel %vm517, %v460, 0
      %v528 = vsel %vm517, %v461, 0
      %v531 = vsel %vm517, %v462, 0
      %v534 = vsel %vm517, %v463, 0
      %v537 = vsel %vm517, %v464, 0
      %v540 = vsel %vm517, %v465, 0
      %v543 = vsel %vm517, %v466, 0
      %v546 = vsel %vm517, %v467, 0
      %v549 = vsel %vm517, %v468, 0
      %v552 = vsel %vm517, %v469, 0
      %v555 = vsel %vm517, %v470, 0
      %v558 = vsel %vm517, %v471, 0
      %v561 = vsel %vm517, %v472, 0
      %v564 = vsel %vm517, %v473, 0
      %v567 = vsel %vm517, %v474, 0
      %v570 = vsel %vm517, %v475, 0
      %v573 = vsel %vm517, %v476, 0
      %v576 = vsel %vm517, %v477, 0
      %v579 = vsel %vm517, %v478, 0
      %v582 = vsel %vm517, %v479, 0
      %v585 = vsel %vm517, %v480, 0
      %v588 = vsel %vm517, %v481, 0
      %v591 = vsel %vm517, %v482, 0
      %v594 = vsel %vm517, %v483, 0
      %v597 = vsel %vm517, %v484, 0
      %v600 = vsel %vm517, %v485, 0
      %v603 = vsel %vm517, %v486, 0
      %v606 = vsel %vm517, %v487, 0
      %v609 = vsel %vm517, %v488, 0
      %v612 = vsel %vm517, %v489, 0
      %vm614 = vcmask 1043456
      %v616 = vsel %vm614, %v512, 0
      %618 = vmatprep.subr.bf16.mxu0 0
      %619 = vmatpush1.bf16.msra.mxu0 %v508
      %620 = vmatprep.subr.bf16.mxu0 0
      %621 = vmatpush1.bf16.msra.mxu0 %v509
      %622 = vmatprep.subr.bf16.mxu0 0
      %623 = vmatpush1.bf16.msra.mxu0 %v510
      %624 = vmatprep.subr.bf16.mxu0 0
      %625 = vmatpush1.bf16.msra.mxu0 %v511
      %626 = vmatprep.subr.bf16.mxu0 0
      %627 = vmatpush1.bf16.msra.mxu0 %v616
      %628 = vmatprep.subr.bf16.mxu0 0
      %629 = vmatpush1.bf16.msra.mxu0 0
      %630 = vmatprep.subr.bf16.mxu0 0
      %631 = vmatpush1.bf16.msra.mxu0 0
      %632 = vmatprep.subr.bf16.mxu0 0
      %633 = vmatpush1.bf16.msra.mxu0 0
      %634 = vmatprep.subr.bf16.mxu0 0
      %635 = vmatpush1.bf16.msra.mxu0 0
      %636 = vmatprep.subr.bf16.mxu0 0
      %637 = vmatpush1.bf16.msra.mxu0 0
      %638 = vmatprep.subr.bf16.mxu0 0
      %639 = vmatpush1.bf16.msra.mxu0 0
      %640 = vmatprep.subr.bf16.mxu0 0
      %641 = vmatpush1.bf16.msra.mxu0 0
      %642 = vmatprep.subr.bf16.mxu0 0
      %643 = vmatpush1.bf16.msra.mxu0 0
      %644 = vmatprep.subr.bf16.mxu0 0
      %645 = vmatpush1.bf16.msra.mxu0 0
      %646 = vmatprep.subr.bf16.mxu0 0
      %647 = vmatpush1.bf16.msra.mxu0 0
      %648 = vmatprep.subr.bf16.mxu0 0
      %649 = vmatpush1.bf16.msra.mxu0 0
      %650 = vmatprep.mubr.bf16.mxu0 0
      %651 = vmatmul.mubr.bf16.gmra.mrb[0].mxu0 %v519
      %v652 = vpop.f32.mrb[0].mxu0
      %v653 = vadd.f32 %v328, %v652
      %v654 = vpop.f32.mrb[0].mxu0
      %v655 = vpop.f32.mrb[0].mxu0
      %v656 = vadd.f32 %v328, %v655
      %v657 = vpop.f32.mrb[0].mxu0
      %658 = vmatprep.mubr.bf16.mxu0 0
      %659 = vmatmul.mubr.bf16.gmra.mrb[0].mxu0 %v522
      %v660 = vpop.f32.mrb[0].mxu0
      %v661 = vadd.f32 %v328, %v660
      %v662 = vpop.f32.mrb[0].mxu0
      %v663 = vpop.f32.mrb[0].mxu0
      %v664 = vadd.f32 %v328, %v663
      %v665 = vpop.f32.mrb[0].mxu0
      %666 = vmatprep.mubr.bf16.mxu0 0
      %667 = vmatmul.mubr.bf16.gmra.mrb[0].mxu0 %v525
      %v668 = vpop.f32.mrb[0].mxu0
      %v669 = vadd.f32 %v328, %v668
      %v670 = vpop.f32.mrb[0].mxu0
      %v671 = vpop.f32.mrb[0].mxu0
      %v672 = vadd.f32 %v328, %v671
      %v673 = vpop.f32.mrb[0].mxu0
      %674 = vmatprep.mubr.bf16.mxu0 0
      %675 = vmatmul.mubr.bf16.gmra.mrb[0].mxu0 %v528
      %v676 = vpop.f32.mrb[0].mxu0
      %v677 = vadd.f32 %v328, %v676
      %v678 = vpop.f32.mrb[0].mxu0
      %v679 = vpop.f32.mrb[0].mxu0
      %v680 = vadd.f32 %v328, %v679
      %v681 = vpop.f32.mrb[0].mxu0
      %682 = vmatprep.mubr.bf16.mxu0 0
      %683 = vmatmul.mubr.bf16.gmra.mrb[0].mxu0 %v531
      %v684 = vpop.f32.mrb[0].mxu0
      %v685 = vadd.f32 %v328, %v684
      %v686 = vpop.f32.mrb[0].mxu0
      %v687 = vpop.f32.mrb[0].mxu0
      %v688 = vadd.f32 %v328, %v687
      %v689 = vpop.f32.mrb[0].mxu0
      %690 = vmatprep.mubr.bf16.mxu0 0
      %691 = vmatmul.mubr.bf16.gmra.mrb[0].mxu0 %v534
      %v692 = vpop.f32.mrb[0].mxu0
      %v693 = vadd.f32 %v328, %v692
      %v694 = vpop.f32.mrb[0].mxu0
      %v695 = vpop.f32.mrb[0].mxu0
      %v696 = vadd.f32 %v328, %v695
      %v697 = vpop.f32.mrb[0].mxu0
      %698 = vmatprep.mubr.bf16.mxu0 0
      %699 = vmatmul.mubr.bf16.gmra.mrb[0].mxu0 %v537
      %v700 = vpop.f32.mrb[0].mxu0
      %v701 = vadd.f32 %v328, %v700
      %v702 = vpop.f32.mrb[0].mxu0
      %v703 = vpop.f32.mrb[0].mxu0
      %v704 = vadd.f32 %v328, %v703
      %v705 = vpop.f32.mrb[0].mxu0
      %706 = vmatprep.mubr.bf16.mxu0 0
      %707 = vmatmul.mubr.bf16.gmra.mrb[0].mxu0 %v540
      %v708 = vpop.f32.mrb[0].mxu0
      %v709 = vadd.f32 %v328, %v708
      %v710 = vpop.f32.mrb[0].mxu0
      %v711 = vpop.f32.mrb[0].mxu0
      %v712 = vadd.f32 %v328, %v711
      %v713 = vpop.f32.mrb[0].mxu0
      %714 = vmatprep.mubr.bf16.mxu0 0
      %715 = vmatmul.mubr.bf16.gmra.mrb[0].mxu0 %v543
      %v716 = vpop.f32.mrb[0].mxu0
      %v717 = vadd.f32 %v328, %v716
      %v718 = vpop.f32.mrb[0].mxu0
      %v719 = vpop.f32.mrb[0].mxu0
      %v720 = vadd.f32 %v328, %v719
      %v721 = vpop.f32.mrb[0].mxu0
      %722 = vmatprep.mubr.bf16.mxu0 0
      %723 = vmatmul.mubr.bf16.gmra.mrb[0].mxu0 %v546
      %v724 = vpop.f32.mrb[0].mxu0
      %v725 = vadd.f32 %v328, %v724
      %v726 = vpop.f32.mrb[0].mxu0
      %v727 = vpop.f32.mrb[0].mxu0
      %v728 = vadd.f32 %v328, %v727
      %v729 = vpop.f32.mrb[0].mxu0
      %730 = vmatprep.mubr.bf16.mxu0 0
      %731 = vmatmul.mubr.bf16.gmra.mrb[0].mxu0 %v549
      %v732 = vpop.f32.mrb[0].mxu0
      %v733 = vadd.f32 %v328, %v732
      %v734 = vpop.f32.mrb[0].mxu0
      %v735 = vpop.f32.mrb[0].mxu0
      %v736 = vadd.f32 %v328, %v735
      %v737 = vpop.f32.mrb[0].mxu0
      %738 = vmatprep.mubr.bf16.mxu0 0
      %739 = vmatmul.mubr.bf16.gmra.mrb[0].mxu0 %v552
      %v740 = vpop.f32.mrb[0].mxu0
      %v741 = vadd.f32 %v328, %v740
      %v742 = vpop.f32.mrb[0].mxu0
      %v743 = vpop.f32.mrb[0].mxu0
      %v744 = vadd.f32 %v328, %v743
      %v745 = vpop.f32.mrb[0].mxu0
      %746 = vmatprep.mubr.bf16.mxu0 0
      %747 = vmatmul.mubr.bf16.gmra.mrb[0].mxu0 %v555
      %v748 = vpop.f32.mrb[0].mxu0
      %v749 = vadd.f32 %v328, %v748
      %v750 = vpop.f32.mrb[0].mxu0
      %v751 = vpop.f32.mrb[0].mxu0
      %v752 = vadd.f32 %v328, %v751
      %v753 = vpop.f32.mrb[0].mxu0
      %754 = vmatprep.mubr.bf16.mxu0 0
      %755 = vmatmul.mubr.bf16.gmra.mrb[0].mxu0 %v558
      %v756 = vpop.f32.mrb[0].mxu0
      %v757 = vadd.f32 %v328, %v756
      %v758 = vpop.f32.mrb[0].mxu0
      %v759 = vpop.f32.mrb[0].mxu0
      %v760 = vadd.f32 %v328, %v759
      %v761 = vpop.f32.mrb[0].mxu0
      %762 = vmatprep.mubr.bf16.mxu0 0
      %763 = vmatmul.mubr.bf16.gmra.mrb[0].mxu0 %v561
      %v764 = vpop.f32.mrb[0].mxu0
      %v765 = vadd.f32 %v328, %v764
      %v766 = vpop.f32.mrb[0].mxu0
      %v767 = vpop.f32.mrb[0].mxu0
      %v768 = vadd.f32 %v328, %v767
      %v769 = vpop.f32.mrb[0].mxu0
      %770 = vmatprep.mubr.bf16.mxu0 0
      %771 = vmatmul.mubr.bf16.gmra.mrb[0].mxu0 %v564
      %v772 = vpop.f32.mrb[0].mxu0
      %v773 = vadd.f32 %v328, %v772
      %v774 = vpop.f32.mrb[0].mxu0
      %v775 = vpop.f32.mrb[0].mxu0
      %v776 = vadd.f32 %v328, %v775
      %v777 = vpop.f32.mrb[0].mxu0
      %778 = vmatprep.mubr.bf16.mxu0 0
      %779 = vmatmul.mubr.bf16.gmra.mrb[0].mxu0 %v567
      %v780 = vpop.f32.mrb[0].mxu0
      %v781 = vadd.f32 %v328, %v780
      %v782 = vpop.f32.mrb[0].mxu0
      %v783 = vpop.f32.mrb[0].mxu0
      %v784 = vadd.f32 %v328, %v783
      %v785 = vpop.f32.mrb[0].mxu0
      %786 = vmatprep.mubr.bf16.mxu0 0
      %787 = vmatmul.mubr.bf16.gmra.mrb[0].mxu0 %v570
      %v788 = vpop.f32.mrb[0].mxu0
      %v789 = vadd.f32 %v328, %v788
      %v790 = vpop.f32.mrb[0].mxu0
      %v791 = vpop.f32.mrb[0].mxu0
      %v792 = vadd.f32 %v328, %v791
      %v793 = vpop.f32.mrb[0].mxu0
      %794 = vmatprep.mubr.bf16.mxu0 0
      %795 = vmatmul.mubr.bf16.gmra.mrb[0].mxu0 %v573
      %v796 = vpop.f32.mrb[0].mxu0
      %v797 = vadd.f32 %v328, %v796
      %v798 = vpop.f32.mrb[0].mxu0
      %v799 = vpop.f32.mrb[0].mxu0
      %v800 = vadd.f32 %v328, %v799
      %v801 = vpop.f32.mrb[0].mxu0
      %802 = vmatprep.mubr.bf16.mxu0 0
      %803 = vmatmul.mubr.bf16.gmra.mrb[0].mxu0 %v576
      %v804 = vpop.f32.mrb[0].mxu0
      %v805 = vadd.f32 %v328, %v804
      %v806 = vpop.f32.mrb[0].mxu0
      %v807 = vpop.f32.mrb[0].mxu0
      %v808 = vadd.f32 %v328, %v807
      %v809 = vpop.f32.mrb[0].mxu0
      %810 = vmatprep.mubr.bf16.mxu0 0
      %811 = vmatmul.mubr.bf16.gmra.mrb[0].mxu0 %v579
      %v812 = vpop.f32.mrb[0].mxu0
      %v813 = vadd.f32 %v328, %v812
      %v814 = vpop.f32.mrb[0].mxu0
      %v815 = vpop.f32.mrb[0].mxu0
      %v816 = vadd.f32 %v328, %v815
      %v817 = vpop.f32.mrb[0].mxu0
      %818 = vmatprep.mubr.bf16.mxu0 0
      %819 = vmatmul.mubr.bf16.gmra.mrb[0].mxu0 %v582
      %v820 = vpop.f32.mrb[0].mxu0
      %v821 = vadd.f32 %v328, %v820
      %v822 = vpop.f32.mrb[0].mxu0
      %v823 = vpop.f32.mrb[0].mxu0
      %v824 = vadd.f32 %v328, %v823
      %v825 = vpop.f32.mrb[0].mxu0
      %826 = vmatprep.mubr.bf16.mxu0 0
      %827 = vmatmul.mubr.bf16.gmra.mrb[0].mxu0 %v585
      %v828 = vpop.f32.mrb[0].mxu0
      %v829 = vadd.f32 %v328, %v828
      %v830 = vpop.f32.mrb[0].mxu0
      %v831 = vpop.f32.mrb[0].mxu0
      %v832 = vadd.f32 %v328, %v831
      %v833 = vpop.f32.mrb[0].mxu0
      %834 = vmatprep.mubr.bf16.mxu0 0
      %835 = vmatmul.mubr.bf16.gmra.mrb[0].mxu0 %v588
      %v836 = vpop.f32.mrb[0].mxu0
      %v837 = vadd.f32 %v328, %v836
      %v838 = vpop.f32.mrb[0].mxu0
      %v839 = vpop.f32.mrb[0].mxu0
      %v840 = vadd.f32 %v328, %v839
      %v841 = vpop.f32.mrb[0].mxu0
      %842 = vmatprep.mubr.bf16.mxu0 0
      %843 = vmatmul.mubr.bf16.gmra.mrb[0].mxu0 %v591
      %v844 = vpop.f32.mrb[0].mxu0
      %v845 = vadd.f32 %v328, %v844
      %v846 = vpop.f32.mrb[0].mxu0
      %v847 = vpop.f32.mrb[0].mxu0
      %v848 = vadd.f32 %v328, %v847
      %v849 = vpop.f32.mrb[0].mxu0
      %850 = vmatprep.mubr.bf16.mxu0 0
      %851 = vmatmul.mubr.bf16.gmra.mrb[0].mxu0 %v594
      %v852 = vpop.f32.mrb[0].mxu0
      %v853 = vadd.f32 %v328, %v852
      %v854 = vpop.f32.mrb[0].mxu0
      %v855 = vpop.f32.mrb[0].mxu0
      %v856 = vadd.f32 %v328, %v855
      %v857 = vpop.f32.mrb[0].mxu0
      %858 = vmatprep.mubr.bf16.mxu0 0
      %859 = vmatmul.mubr.bf16.gmra.mrb[0].mxu0 %v597
      %v860 = vpop.f32.mrb[0].mxu0
      %v861 = vadd.f32 %v328, %v860
      %v862 = vpop.f32.mrb[0].mxu0
      %v863 = vpop.f32.mrb[0].mxu0
      %v864 = vadd.f32 %v328, %v863
      %v865 = vpop.f32.mrb[0].mxu0
      %866 = vmatprep.mubr.bf16.mxu0 0
      %867 = vmatmul.mubr.bf16.gmra.mrb[0].mxu0 %v600
      %v868 = vpop.f32.mrb[0].mxu0
      %v869 = vadd.f32 %v328, %v868
      %v870 = vpop.f32.mrb[0].mxu0
      %v871 = vpop.f32.mrb[0].mxu0
      %v872 = vadd.f32 %v328, %v871
      %v873 = vpop.f32.mrb[0].mxu0
      %874 = vmatprep.mubr.bf16.mxu0 0
      %875 = vmatmul.mubr.bf16.gmra.mrb[0].mxu0 %v603
      %v876 = vpop.f32.mrb[0].mxu0
      %v877 = vadd.f32 %v328, %v876
      %v878 = vpop.f32.mrb[0].mxu0
      %v879 = vpop.f32.mrb[0].mxu0
      %v880 = vadd.f32 %v328, %v879
      %v881 = vpop.f32.mrb[0].mxu0
      %882 = vmatprep.mubr.bf16.mxu0 0
      %883 = vmatmul.mubr.bf16.gmra.mrb[0].mxu0 %v606
      %v884 = vpop.f32.mrb[0].mxu0
      %v885 = vadd.f32 %v328, %v884
      %v886 = vpop.f32.mrb[0].mxu0
      %v887 = vpop.f32.mrb[0].mxu0
      %v888 = vadd.f32 %v328, %v887
      %v889 = vpop.f32.mrb[0].mxu0
      %890 = vmatprep.mubr.bf16.mxu0 0
      %891 = vmatmul.mubr.bf16.gmra.mrb[0].mxu0 %v609
      %v892 = vpop.f32.mrb[0].mxu0
      %v893 = vadd.f32 %v328, %v892
      %v894 = vpop.f32.mrb[0].mxu0
      %v895 = vpop.f32.mrb[0].mxu0
      %v896 = vadd.f32 %v328, %v895
      %v897 = vpop.f32.mrb[0].mxu0
      %898 = vmatprep.mubr.bf16.mxu0 0
      %899 = vmatmul.mubr.bf16.gmra.mrb[0].mxu0 %v612
      %v900 = vpop.f32.mrb[0].mxu0
      %v901 = vadd.f32 %v328, %v900
      %v902 = vpop.f32.mrb[0].mxu0
      %v903 = vpop.f32.mrb[0].mxu0
      %v904 = vadd.f32 %v328, %v903
      %v905 = vpop.f32.mrb[0].mxu0
      %906 = vdwg.mxu0
      %v907 = vmax.f32 %v653, 0.0
      %v908 = vmax.f32 %v656, 0.0
      %v909 = vmax.f32 %v661, 0.0
      %v910 = vmax.f32 %v664, 0.0
      %v911 = vmax.f32 %v669, 0.0
      %v912 = vmax.f32 %v672, 0.0
      %v913 = vmax.f32 %v677, 0.0
      %v914 = vmax.f32 %v680, 0.0
      %v915 = vmax.f32 %v685, 0.0
      %v916 = vmax.f32 %v688, 0.0
      %v917 = vmax.f32 %v693, 0.0
      %v918 = vmax.f32 %v696, 0.0
      %v919 = vmax.f32 %v701, 0.0
      %v920 = vmax.f32 %v704, 0.0
      %v921 = vmax.f32 %v709, 0.0
      %v922 = vmax.f32 %v712, 0.0
      %v923 = vmax.f32 %v717, 0.0
      %v924 = vmax.f32 %v720, 0.0
      %v925 = vmax.f32 %v725, 0.0
      %v926 = vmax.f32 %v728, 0.0
      %v927 = vmax.f32 %v733, 0.0
      %v928 = vmax.f32 %v736, 0.0
      %v929 = vmax.f32 %v741, 0.0
      %v930 = vmax.f32 %v744, 0.0
      %v931 = vmax.f32 %v749, 0.0
      %v932 = vmax.f32 %v752, 0.0
      %v933 = vmax.f32 %v757, 0.0
      %v934 = vmax.f32 %v760, 0.0
      %v935 = vmax.f32 %v765, 0.0
      %v936 = vmax.f32 %v768, 0.0
      %v937 = vmax.f32 %v773, 0.0
      %v938 = vmax.f32 %v776, 0.0
      %v939 = vmax.f32 %v781, 0.0
      %v940 = vmax.f32 %v784, 0.0
      %v941 = vmax.f32 %v789, 0.0
      %v942 = vmax.f32 %v792, 0.0
      %v943 = vmax.f32 %v797, 0.0
      %v944 = vmax.f32 %v800, 0.0
      %v945 = vmax.f32 %v805, 0.0
      %v946 = vmax.f32 %v808, 0.0
      %v947 = vmax.f32 %v813, 0.0
      %v948 = vmax.f32 %v816, 0.0
      %v949 = vmax.f32 %v821, 0.0
      %v950 = vmax.f32 %v824, 0.0
      %v951 = vmax.f32 %v829, 0.0
      %v952 = vmax.f32 %v832, 0.0
      %v953 = vmax.f32 %v837, 0.0
      %v954 = vmax.f32 %v840, 0.0
      %v955 = vmax.f32 %v845, 0.0
      %v956 = vmax.f32 %v848, 0.0
      %v957 = vmax.f32 %v853, 0.0
      %v958 = vmax.f32 %v856, 0.0
      %v959 = vmax.f32 %v861, 0.0
      %v960 = vmax.f32 %v864, 0.0
      %v961 = vmax.f32 %v869, 0.0
      %v962 = vmax.f32 %v872, 0.0
      %v963 = vmax.f32 %v877, 0.0
      %v964 = vmax.f32 %v880, 0.0
      %v965 = vmax.f32 %v885, 0.0
      %v966 = vmax.f32 %v888, 0.0
      %v967 = vmax.f32 %v893, 0.0
      %v968 = vmax.f32 %v896, 0.0
      %v969 = vmax.f32 %v901, 0.0
      %v970 = vmax.f32 %v904, 0.0
      %vm971 = vcmask 31744
      %972 = vst.msk [vmem:[%s239] sm:$0xff] %vm971, %v907
      %973 = vst.msk [vmem:[%s239 + $0x8] sm:$0xff] %vm971, %v908
      %974 = vst.msk [vmem:[%s239 + $0x10] sm:$0xff] %vm971, %v909
      %975 = vst.msk [vmem:[%s239 + $0x18] sm:$0xff] %vm971, %v910
      %976 = vst.msk [vmem:[%s239 + $0x20] sm:$0xff] %vm971, %v911
      %977 = vst.msk [vmem:[%s239 + $0x28] sm:$0xff] %vm971, %v912
      %978 = vst.msk [vmem:[%s239 + $0x30] sm:$0xff] %vm971, %v913
      %979 = vst.msk [vmem:[%s239 + $0x38] sm:$0xff] %vm971, %v914
      %980 = vst.msk [vmem:[%s239 + $0x40] sm:$0xff] %vm971, %v915
      %981 = vst.msk [vmem:[%s239 + $0x48] sm:$0xff] %vm971, %v916
      %982 = vst.msk [vmem:[%s239 + $0x50] sm:$0xff] %vm971, %v917
      %983 = vst.msk [vmem:[%s239 + $0x58] sm:$0xff] %vm971, %v918
      %984 = vst.msk [vmem:[%s239 + $0x60] sm:$0xff] %vm971, %v919
      %985 = vst.msk [vmem:[%s239 + $0x68] sm:$0xff] %vm971, %v920
      %986 = vst.msk [vmem:[%s239 + $0x70] sm:$0xff] %vm971, %v921
      %987 = vst.msk [vmem:[%s239 + $0x78] sm:$0xff] %vm971, %v922
      %988 = vst.msk [vmem:[%s239 + $0x80] sm:$0xff] %vm971, %v923
      %989 = vst.msk [vmem:[%s239 + $0x88] sm:$0xff] %vm971, %v924
      %990 = vst.msk [vmem:[%s239 + $0x90] sm:$0xff] %vm971, %v925
      %991 = vst.msk [vmem:[%s239 + $0x98] sm:$0xff] %vm971, %v926
      %992 = vst.msk [vmem:[%s239 + $0xa0] sm:$0xff] %vm971, %v927
      %993 = vst.msk [vmem:[%s239 + $0xa8] sm:$0xff] %vm971, %v928
      %994 = vst.msk [vmem:[%s239 + $0xb0] sm:$0xff] %vm971, %v929
      %995 = vst.msk [vmem:[%s239 + $0xb8] sm:$0xff] %vm971, %v930
      %996 = vst.msk [vmem:[%s239 + $0xc0] sm:$0xff] %vm971, %v931
      %997 = vst.msk [vmem:[%s239 + $0xc8] sm:$0xff] %vm971, %v932
      %998 = vst.msk [vmem:[%s239 + $0xd0] sm:$0xff] %vm971, %v933
      %999 = vst.msk [vmem:[%s239 + $0xd8] sm:$0xff] %vm971, %v934
      %1000 = vst.msk [vmem:[%s239 + $0xe0] sm:$0xff] %vm971, %v935
      %1001 = vst.msk [vmem:[%s239 + $0xe8] sm:$0xff] %vm971, %v936
      %1002 = vst.msk [vmem:[%s239 + $0xf0] sm:$0xff] %vm971, %v937
      %1003 = vst.msk [vmem:[%s239 + $0xf8] sm:$0xff] %vm971, %v938
      %1004 = vst.msk [vmem:[%s239 + $0x100] sm:$0xff] %vm971, %v939
      %1005 = vst.msk [vmem:[%s239 + $0x108] sm:$0xff] %vm971, %v940
      %1006 = vst.msk [vmem:[%s239 + $0x110] sm:$0xff] %vm971, %v941
      %1007 = vst.msk [vmem:[%s239 + $0x118] sm:$0xff] %vm971, %v942
      %1008 = vst.msk [vmem:[%s239 + $0x120] sm:$0xff] %vm971, %v943
      %1009 = vst.msk [vmem:[%s239 + $0x128] sm:$0xff] %vm971, %v944
      %1010 = vst.msk [vmem:[%s239 + $0x130] sm:$0xff] %vm971, %v945
      %1011 = vst.msk [vmem:[%s239 + $0x138] sm:$0xff] %vm971, %v946
      %1012 = vst.msk [vmem:[%s239 + $0x140] sm:$0xff] %vm971, %v947
      %1013 = vst.msk [vmem:[%s239 + $0x148] sm:$0xff] %vm971, %v948
      %1014 = vst.msk [vmem:[%s239 + $0x150] sm:$0xff] %vm971, %v949
      %1015 = vst.msk [vmem:[%s239 + $0x158] sm:$0xff] %vm971, %v950
      %1016 = vst.msk [vmem:[%s239 + $0x160] sm:$0xff] %vm971, %v951
      %1017 = vst.msk [vmem:[%s239 + $0x168] sm:$0xff] %vm971, %v952
      %1018 = vst.msk [vmem:[%s239 + $0x170] sm:$0xff] %vm971, %v953
      %1019 = vst.msk [vmem:[%s239 + $0x178] sm:$0xff] %vm971, %v954
      %1020 = vst.msk [vmem:[%s239 + $0x180] sm:$0xff] %vm971, %v955
      %1021 = vst.msk [vmem:[%s239 + $0x188] sm:$0xff] %vm971, %v956
      %1022 = vst.msk [vmem:[%s239 + $0x190] sm:$0xff] %vm971, %v957
      %1023 = vst.msk [vmem:[%s239 + $0x198] sm:$0xff] %vm971, %v958
      %1024 = vst.msk [vmem:[%s239 + $0x1a0] sm:$0xff] %vm971, %v959
      %1025 = vst.msk [vmem:[%s239 + $0x1a8] sm:$0xff] %vm971, %v960
      %1026 = vst.msk [vmem:[%s239 + $0x1b0] sm:$0xff] %vm971, %v961
      %1027 = vst.msk [vmem:[%s239 + $0x1b8] sm:$0xff] %vm971, %v962
      %1028 = vst.msk [vmem:[%s239 + $0x1c0] sm:$0xff] %vm971, %v963
      %1029 = vst.msk [vmem:[%s239 + $0x1c8] sm:$0xff] %vm971, %v964
      %1030 = vst.msk [vmem:[%s239 + $0x1d0] sm:$0xff] %vm971, %v965
      %1031 = vst.msk [vmem:[%s239 + $0x1d8] sm:$0xff] %vm971, %v966
      %1032 = vst.msk [vmem:[%s239 + $0x1e0] sm:$0xff] %vm971, %v967
      %1033 = vst.msk [vmem:[%s239 + $0x1e8] sm:$0xff] %vm971, %v968
      %1034 = vst.msk [vmem:[%s239 + $0x1f0] sm:$0xff] %vm971, %v969
      %1035 = vst.msk [vmem:[%s239 + $0x1f8] sm:$0xff] %vm971, %v970
      %s1036 = smul.u32 %s17, 512
      %v1037 = vlaneseq
      %v1038 = vshrl.u32 %v1037, 7
      %v1039 = vadd.s32 %v1038, 8
      %v1040 = vadd.s32 %v1038, 16
      %v1041 = vadd.s32 %v1038, 24
      %v1042 = vadd.s32 %v1038, 32
      %v1043 = vadd.s32 %v1038, 40
      %v1044 = vadd.s32 %v1038, 48
      %v1045 = vadd.s32 %v1038, 56
      %v1046 = vadd.s32 %v1038, 64
      %v1047 = vadd.s32 %v1038, 72
      %v1048 = vadd.s32 %v1038, 80
      %v1049 = vadd.s32 %v1038, 88
      %v1050 = vadd.s32 %v1038, 96
      %v1051 = vadd.s32 %v1038, 104
      %v1052 = vadd.s32 %v1038, 112
      %v1053 = vadd.s32 %v1038, 120
      %v1054 = vadd.s32 %v1038, 128
      %v1055 = vadd.s32 %v1038, 136
      %v1056 = vadd.s32 %v1038, 144
      %v1057 = vadd.s32 %v1038, 152
      %v1058 = vadd.s32 %v1038, 160
      %v1059 = vadd.s32 %v1038, 168
      %v1060 = vadd.s32 %v1038, 176
      %v1061 = vadd.s32 %v1038, 184
      %v1062 = vadd.s32 %v1038, 192
      %v1063 = vadd.s32 %v1038, 200
      %v1064 = vadd.s32 %v1038, 208
      %v1065 = vadd.s32 %v1038, 216
      %v1066 = vadd.s32 %v1038, 224
      %v1067 = vadd.s32 %v1038, 232
      %v1068 = vadd.s32 %v1038, 240
      %v1069 = vadd.s32 %v1038, 248
      %v1070 = vadd.s32 %v1038, 256
      %v1071 = vadd.s32 %v1038, 264
      %v1072 = vadd.s32 %v1038, 272
      %v1073 = vadd.s32 %v1038, 280
      %v1074 = vadd.s32 %v1038, 288
      %v1075 = vadd.s32 %v1038, 296
      %v1076 = vadd.s32 %v1038, 304
      %v1077 = vadd.s32 %v1038, 312
      %v1078 = vadd.s32 %v1038, 320
      %v1079 = vadd.s32 %v1038, 328
      %v1080 = vadd.s32 %v1038, 336
      %v1081 = vadd.s32 %v1038, 344
      %v1082 = vadd.s32 %v1038, 352
      %v1083 = vadd.s32 %v1038, 360
      %v1084 = vadd.s32 %v1038, 368
      %v1085 = vadd.s32 %v1038, 376
      %v1086 = vadd.s32 %v1038, 384
      %v1087 = vadd.s32 %v1038, 392
      %v1088 = vadd.s32 %v1038, 400
      %v1089 = vadd.s32 %v1038, 408
      %v1090 = vadd.s32 %v1038, 416
      %v1091 = vadd.s32 %v1038, 424
      %v1092 = vadd.s32 %v1038, 432
      %v1093 = vadd.s32 %v1038, 440
      %v1094 = vadd.s32 %v1038, 448
      %v1095 = vadd.s32 %v1038, 456
      %v1096 = vadd.s32 %v1038, 464
      %v1097 = vadd.s32 %v1038, 472
      %v1098 = vadd.s32 %v1038, 480
      %v1099 = vadd.s32 %v1038, 488
      %v1100 = vadd.s32 %v1038, 496
      %v1101 = vadd.s32 %v1038, 504
      %v1102 = vstv %s1036
      %v1103 = vadd.s32 %v1102, %v1038
      %v1104 = vadd.s32 %v1102, %v1039
      %v1105 = vadd.s32 %v1102, %v1040
      %v1106 = vadd.s32 %v1102, %v1041
      %v1107 = vadd.s32 %v1102, %v1042
      %v1108 = vadd.s32 %v1102, %v1043
      %v1109 = vadd.s32 %v1102, %v1044
      %v1110 = vadd.s32 %v1102, %v1045
      %v1111 = vadd.s32 %v1102, %v1046
      %v1112 = vadd.s32 %v1102, %v1047
      %v1113 = vadd.s32 %v1102, %v1048
      %v1114 = vadd.s32 %v1102, %v1049
      %v1115 = vadd.s32 %v1102, %v1050
      %v1116 = vadd.s32 %v1102, %v1051
      %v1117 = vadd.s32 %v1102, %v1052
      %v1118 = vadd.s32 %v1102, %v1053
      %v1119 = vadd.s32 %v1102, %v1054
      %v1120 = vadd.s32 %v1102, %v1055
      %v1121 = vadd.s32 %v1102, %v1056
      %v1122 = vadd.s32 %v1102, %v1057
      %v1123 = vadd.s32 %v1102, %v1058
      %v1124 = vadd.s32 %v1102, %v1059
      %v1125 = vadd.s32 %v1102, %v1060
      %v1126 = vadd.s32 %v1102, %v1061
      %v1127 = vadd.s32 %v1102, %v1062
      %v1128 = vadd.s32 %v1102, %v1063
      %v1129 = vadd.s32 %v1102, %v1064
      %v1130 = vadd.s32 %v1102, %v1065
      %v1131 = vadd.s32 %v1102, %v1066
      %v1132 = vadd.s32 %v1102, %v1067
      %v1133 = vadd.s32 %v1102, %v1068
      %v1134 = vadd.s32 %v1102, %v1069
      %v1135 = vadd.s32 %v1102, %v1070
      %v1136 = vadd.s32 %v1102, %v1071
      %v1137 = vadd.s32 %v1102, %v1072
      %v1138 = vadd.s32 %v1102, %v1073
      %v1139 = vadd.s32 %v1102, %v1074
      %v1140 = vadd.s32 %v1102, %v1075
      %v1141 = vadd.s32 %v1102, %v1076
      %v1142 = vadd.s32 %v1102, %v1077
      %v1143 = vadd.s32 %v1102, %v1078
      %v1144 = vadd.s32 %v1102, %v1079
      %v1145 = vadd.s32 %v1102, %v1080
      %v1146 = vadd.s32 %v1102, %v1081
      %v1147 = vadd.s32 %v1102, %v1082
      %v1148 = vadd.s32 %v1102, %v1083
      %v1149 = vadd.s32 %v1102, %v1084
      %v1150 = vadd.s32 %v1102, %v1085
      %v1151 = vadd.s32 %v1102, %v1086
      %v1152 = vadd.s32 %v1102, %v1087
      %v1153 = vadd.s32 %v1102, %v1088
      %v1154 = vadd.s32 %v1102, %v1089
      %v1155 = vadd.s32 %v1102, %v1090
      %v1156 = vadd.s32 %v1102, %v1091
      %v1157 = vadd.s32 %v1102, %v1092
      %v1158 = vadd.s32 %v1102, %v1093
      %v1159 = vadd.s32 %v1102, %v1094
      %v1160 = vadd.s32 %v1102, %v1095
      %v1161 = vadd.s32 %v1102, %v1096
      %v1162 = vadd.s32 %v1102, %v1097
      %v1163 = vadd.s32 %v1102, %v1098
      %v1164 = vadd.s32 %v1102, %v1099
      %v1165 = vadd.s32 %v1102, %v1100
      %v1166 = vadd.s32 %v1102, %v1101
      %vm1167 = vcmp.lt.s32.totalorder %v1103, 8450
      %vm1168 = vcmp.lt.s32.totalorder %v1104, 8450
      %vm1169 = vcmp.lt.s32.totalorder %v1105, 8450
      %vm1170 = vcmp.lt.s32.totalorder %v1106, 8450
      %vm1171 = vcmp.lt.s32.totalorder %v1107, 8450
      %vm1172 = vcmp.lt.s32.totalorder %v1108, 8450
      %vm1173 = vcmp.lt.s32.totalorder %v1109, 8450
      %vm1174 = vcmp.lt.s32.totalorder %v1110, 8450
      %vm1175 = vcmp.lt.s32.totalorder %v1111, 8450
      %vm1176 = vcmp.lt.s32.totalorder %v1112, 8450
      %vm1177 = vcmp.lt.s32.totalorder %v1113, 8450
      %vm1178 = vcmp.lt.s32.totalorder %v1114, 8450
      %vm1179 = vcmp.lt.s32.totalorder %v1115, 8450
      %vm1180 = vcmp.lt.s32.totalorder %v1116, 8450
      %vm1181 = vcmp.lt.s32.totalorder %v1117, 8450
      %vm1182 = vcmp.lt.s32.totalorder %v1118, 8450
      %vm1183 = vcmp.lt.s32.totalorder %v1119, 8450
      %vm1184 = vcmp.lt.s32.totalorder %v1120, 8450
      %vm1185 = vcmp.lt.s32.totalorder %v1121, 8450
      %vm1186 = vcmp.lt.s32.totalorder %v1122, 8450
      %vm1187 = vcmp.lt.s32.totalorder %v1123, 8450
      %vm1188 = vcmp.lt.s32.totalorder %v1124, 8450
      %vm1189 = vcmp.lt.s32.totalorder %v1125, 8450
      %vm1190 = vcmp.lt.s32.totalorder %v1126, 8450
      %vm1191 = vcmp.lt.s32.totalorder %v1127, 8450
      %vm1192 = vcmp.lt.s32.totalorder %v1128, 8450
      %vm1193 = vcmp.lt.s32.totalorder %v1129, 8450
      %vm1194 = vcmp.lt.s32.totalorder %v1130, 8450
      %vm1195 = vcmp.lt.s32.totalorder %v1131, 8450
      %vm1196 = vcmp.lt.s32.totalorder %v1132, 8450
      %vm1197 = vcmp.lt.s32.totalorder %v1133, 8450
      %vm1198 = vcmp.lt.s32.totalorder %v1134, 8450
      %vm1199 = vcmp.lt.s32.totalorder %v1135, 8450
      %vm1200 = vcmp.lt.s32.totalorder %v1136, 8450
      %vm1201 = vcmp.lt.s32.totalorder %v1137, 8450
      %vm1202 = vcmp.lt.s32.totalorder %v1138, 8450
      %vm1203 = vcmp.lt.s32.totalorder %v1139, 8450
      %vm1204 = vcmp.lt.s32.totalorder %v1140, 8450
      %vm1205 = vcmp.lt.s32.totalorder %v1141, 8450
      %vm1206 = vcmp.lt.s32.totalorder %v1142, 8450
      %vm1207 = vcmp.lt.s32.totalorder %v1143, 8450
      %vm1208 = vcmp.lt.s32.totalorder %v1144, 8450
      %vm1209 = vcmp.lt.s32.totalorder %v1145, 8450
      %vm1210 = vcmp.lt.s32.totalorder %v1146, 8450
      %vm1211 = vcmp.lt.s32.totalorder %v1147, 8450
      %vm1212 = vcmp.lt.s32.totalorder %v1148, 8450
      %vm1213 = vcmp.lt.s32.totalorder %v1149, 8450
      %vm1214 = vcmp.lt.s32.totalorder %v1150, 8450
      %vm1215 = vcmp.lt.s32.totalorder %v1151, 8450
      %vm1216 = vcmp.lt.s32.totalorder %v1152, 8450
      %vm1217 = vcmp.lt.s32.totalorder %v1153, 8450
      %vm1218 = vcmp.lt.s32.totalorder %v1154, 8450
      %vm1219 = vcmp.lt.s32.totalorder %v1155, 8450
      %vm1220 = vcmp.lt.s32.totalorder %v1156, 8450
      %vm1221 = vcmp.lt.s32.totalorder %v1157, 8450
      %vm1222 = vcmp.lt.s32.totalorder %v1158, 8450
      %vm1223 = vcmp.lt.s32.totalorder %v1159, 8450
      %vm1224 = vcmp.lt.s32.totalorder %v1160, 8450
      %vm1225 = vcmp.lt.s32.totalorder %v1161, 8450
      %vm1226 = vcmp.lt.s32.totalorder %v1162, 8450
      %vm1227 = vcmp.lt.s32.totalorder %v1163, 8450
      %vm1228 = vcmp.lt.s32.totalorder %v1164, 8450
      %vm1229 = vcmp.lt.s32.totalorder %v1165, 8450
      %vm1230 = vcmp.lt.s32.totalorder %v1166, 8450
      %v1231 = vsel %vm1167, 1, 0
      %v1232 = vsel %vm1168, 1, 0
      %v1233 = vsel %vm1169, 1, 0
      %v1234 = vsel %vm1170, 1, 0
      %v1235 = vsel %vm1171, 1, 0
      %v1236 = vsel %vm1172, 1, 0
      %v1237 = vsel %vm1173, 1, 0
      %v1238 = vsel %vm1174, 1, 0
      %v1239 = vsel %vm1175, 1, 0
      %v1240 = vsel %vm1176, 1, 0
      %v1241 = vsel %vm1177, 1, 0
      %v1242 = vsel %vm1178, 1, 0
      %v1243 = vsel %vm1179, 1, 0
      %v1244 = vsel %vm1180, 1, 0
      %v1245 = vsel %vm1181, 1, 0
      %v1246 = vsel %vm1182, 1, 0
      %v1247 = vsel %vm1183, 1, 0
      %v1248 = vsel %vm1184, 1, 0
      %v1249 = vsel %vm1185, 1, 0
      %v1250 = vsel %vm1186, 1, 0
      %v1251 = vsel %vm1187, 1, 0
      %v1252 = vsel %vm1188, 1, 0
      %v1253 = vsel %vm1189, 1, 0
      %v1254 = vsel %vm1190, 1, 0
      %v1255 = vsel %vm1191, 1, 0
      %v1256 = vsel %vm1192, 1, 0
      %v1257 = vsel %vm1193, 1, 0
      %v1258 = vsel %vm1194, 1, 0
      %v1259 = vsel %vm1195, 1, 0
      %v1260 = vsel %vm1196, 1, 0
      %v1261 = vsel %vm1197, 1, 0
      %v1262 = vsel %vm1198, 1, 0
      %v1263 = vsel %vm1199, 1, 0
      %v1264 = vsel %vm1200, 1, 0
      %v1265 = vsel %vm1201, 1, 0
      %v1266 = vsel %vm1202, 1, 0
      %v1267 = vsel %vm1203, 1, 0
      %v1268 = vsel %vm1204, 1, 0
      %v1269 = vsel %vm1205, 1, 0
      %v1270 = vsel %vm1206, 1, 0
      %v1271 = vsel %vm1207, 1, 0
      %v1272 = vsel %vm1208, 1, 0
      %v1273 = vsel %vm1209, 1, 0
      %v1274 = vsel %vm1210, 1, 0
      %v1275 = vsel %vm1211, 1, 0
      %v1276 = vsel %vm1212, 1, 0
      %v1277 = vsel %vm1213, 1, 0
      %v1278 = vsel %vm1214, 1, 0
      %v1279 = vsel %vm1215, 1, 0
      %v1280 = vsel %vm1216, 1, 0
      %v1281 = vsel %vm1217, 1, 0
      %v1282 = vsel %vm1218, 1, 0
      %v1283 = vsel %vm1219, 1, 0
      %v1284 = vsel %vm1220, 1, 0
      %v1285 = vsel %vm1221, 1, 0
      %v1286 = vsel %vm1222, 1, 0
      %v1287 = vsel %vm1223, 1, 0
      %v1288 = vsel %vm1224, 1, 0
      %v1289 = vsel %vm1225, 1, 0
      %v1290 = vsel %vm1226, 1, 0
      %v1291 = vsel %vm1227, 1, 0
      %v1292 = vsel %vm1228, 1, 0
      %v1293 = vsel %vm1229, 1, 0
      %v1294 = vsel %vm1230, 1, 0
      %vm1295 = vcmp.eq.s32.totalorder %v1231, 1
      %vm1296 = vcmp.eq.s32.totalorder %v1232, 1
      %vm1297 = vcmp.eq.s32.totalorder %v1233, 1
      %vm1298 = vcmp.eq.s32.totalorder %v1234, 1
      %vm1299 = vcmp.eq.s32.totalorder %v1235, 1
      %vm1300 = vcmp.eq.s32.totalorder %v1236, 1
      %vm1301 = vcmp.eq.s32.totalorder %v1237, 1
      %vm1302 = vcmp.eq.s32.totalorder %v1238, 1
      %vm1303 = vcmp.eq.s32.totalorder %v1239, 1
      %vm1304 = vcmp.eq.s32.totalorder %v1240, 1
      %vm1305 = vcmp.eq.s32.totalorder %v1241, 1
      %vm1306 = vcmp.eq.s32.totalorder %v1242, 1
      %vm1307 = vcmp.eq.s32.totalorder %v1243, 1
      %vm1308 = vcmp.eq.s32.totalorder %v1244, 1
      %vm1309 = vcmp.eq.s32.totalorder %v1245, 1
      %vm1310 = vcmp.eq.s32.totalorder %v1246, 1
      %vm1311 = vcmp.eq.s32.totalorder %v1247, 1
      %vm1312 = vcmp.eq.s32.totalorder %v1248, 1
      %vm1313 = vcmp.eq.s32.totalorder %v1249, 1
      %vm1314 = vcmp.eq.s32.totalorder %v1250, 1
      %vm1315 = vcmp.eq.s32.totalorder %v1251, 1
      %vm1316 = vcmp.eq.s32.totalorder %v1252, 1
      %vm1317 = vcmp.eq.s32.totalorder %v1253, 1
      %vm1318 = vcmp.eq.s32.totalorder %v1254, 1
      %vm1319 = vcmp.eq.s32.totalorder %v1255, 1
      %vm1320 = vcmp.eq.s32.totalorder %v1256, 1
      %vm1321 = vcmp.eq.s32.totalorder %v1257, 1
      %vm1322 = vcmp.eq.s32.totalorder %v1258, 1
      %vm1323 = vcmp.eq.s32.totalorder %v1259, 1
      %vm1324 = vcmp.eq.s32.totalorder %v1260, 1
      %vm1325 = vcmp.eq.s32.totalorder %v1261, 1
      %vm1326 = vcmp.eq.s32.totalorder %v1262, 1
      %vm1327 = vcmp.eq.s32.totalorder %v1263, 1
      %vm1328 = vcmp.eq.s32.totalorder %v1264, 1
      %vm1329 = vcmp.eq.s32.totalorder %v1265, 1
      %vm1330 = vcmp.eq.s32.totalorder %v1266, 1
      %vm1331 = vcmp.eq.s32.totalorder %v1267, 1
      %vm1332 = vcmp.eq.s32.totalorder %v1268, 1
      %vm1333 = vcmp.eq.s32.totalorder %v1269, 1
      %vm1334 = vcmp.eq.s32.totalorder %v1270, 1
      %vm1335 = vcmp.eq.s32.totalorder %v1271, 1
      %vm1336 = vcmp.eq.s32.totalorder %v1272, 1
      %vm1337 = vcmp.eq.s32.totalorder %v1273, 1
      %vm1338 = vcmp.eq.s32.totalorder %v1274, 1
      %vm1339 = vcmp.eq.s32.totalorder %v1275, 1
      %vm1340 = vcmp.eq.s32.totalorder %v1276, 1
      %vm1341 = vcmp.eq.s32.totalorder %v1277, 1
      %vm1342 = vcmp.eq.s32.totalorder %v1278, 1
      %vm1343 = vcmp.eq.s32.totalorder %v1279, 1
      %vm1344 = vcmp.eq.s32.totalorder %v1280, 1
      %vm1345 = vcmp.eq.s32.totalorder %v1281, 1
      %vm1346 = vcmp.eq.s32.totalorder %v1282, 1
      %vm1347 = vcmp.eq.s32.totalorder %v1283, 1
      %vm1348 = vcmp.eq.s32.totalorder %v1284, 1
      %vm1349 = vcmp.eq.s32.totalorder %v1285, 1
      %vm1350 = vcmp.eq.s32.totalorder %v1286, 1
      %vm1351 = vcmp.eq.s32.totalorder %v1287, 1
      %vm1352 = vcmp.eq.s32.totalorder %v1288, 1
      %vm1353 = vcmp.eq.s32.totalorder %v1289, 1
      %vm1354 = vcmp.eq.s32.totalorder %v1290, 1
      %vm1355 = vcmp.eq.s32.totalorder %v1291, 1
      %vm1356 = vcmp.eq.s32.totalorder %v1292, 1
      %vm1357 = vcmp.eq.s32.totalorder %v1293, 1
      %vm1358 = vcmp.eq.s32.totalorder %v1294, 1
      %v1359 = vsel %vm1295, %v907, 0.0
      %v1360 = vsel %vm1296, %v908, 0.0
      %v1361 = vsel %vm1297, %v909, 0.0
      %v1362 = vsel %vm1298, %v910, 0.0
      %v1363 = vsel %vm1299, %v911, 0.0
      %v1364 = vsel %vm1300, %v912, 0.0
      %v1365 = vsel %vm1301, %v913, 0.0
      %v1366 = vsel %vm1302, %v914, 0.0
      %v1367 = vsel %vm1303, %v915, 0.0
      %v1368 = vsel %vm1304, %v916, 0.0
      %v1369 = vsel %vm1305, %v917, 0.0
      %v1370 = vsel %vm1306, %v918, 0.0
      %v1371 = vsel %vm1307, %v919, 0.0
      %v1372 = vsel %vm1308, %v920, 0.0
      %v1373 = vsel %vm1309, %v921, 0.0
      %v1374 = vsel %vm1310, %v922, 0.0
      %v1375 = vsel %vm1311, %v923, 0.0
      %v1376 = vsel %vm1312, %v924, 0.0
      %v1377 = vsel %vm1313, %v925, 0.0
      %v1378 = vsel %vm1314, %v926, 0.0
      %v1379 = vsel %vm1315, %v927, 0.0
      %v1380 = vsel %vm1316, %v928, 0.0
      %v1381 = vsel %vm1317, %v929, 0.0
      %v1382 = vsel %vm1318, %v930, 0.0
      %v1383 = vsel %vm1319, %v931, 0.0
      %v1384 = vsel %vm1320, %v932, 0.0
      %v1385 = vsel %vm1321, %v933, 0.0
      %v1386 = vsel %vm1322, %v934, 0.0
      %v1387 = vsel %vm1323, %v935, 0.0
      %v1388 = vsel %vm1324, %v936, 0.0
      %v1389 = vsel %vm1325, %v937, 0.0
      %v1390 = vsel %vm1326, %v938, 0.0
      %v1391 = vsel %vm1327, %v939, 0.0
      %v1392 = vsel %vm1328, %v940, 0.0
      %v1393 = vsel %vm1329, %v941, 0.0
      %v1394 = vsel %vm1330, %v942, 0.0
      %v1395 = vsel %vm1331, %v943, 0.0
      %v1396 = vsel %vm1332, %v944, 0.0
      %v1397 = vsel %vm1333, %v945, 0.0
      %v1398 = vsel %vm1334, %v946, 0.0
      %v1399 = vsel %vm1335, %v947, 0.0
      %v1400 = vsel %vm1336, %v948, 0.0
      %v1401 = vsel %vm1337, %v949, 0.0
      %v1402 = vsel %vm1338, %v950, 0.0
      %v1403 = vsel %vm1339, %v951, 0.0
      %v1404 = vsel %vm1340, %v952, 0.0
      %v1405 = vsel %vm1341, %v953, 0.0
      %v1406 = vsel %vm1342, %v954, 0.0
      %v1407 = vsel %vm1343, %v955, 0.0
      %v1408 = vsel %vm1344, %v956, 0.0
      %v1409 = vsel %vm1345, %v957, 0.0
      %v1410 = vsel %vm1346, %v958, 0.0
      %v1411 = vsel %vm1347, %v959, 0.0
      %v1412 = vsel %vm1348, %v960, 0.0
      %v1413 = vsel %vm1349, %v961, 0.0
      %v1414 = vsel %vm1350, %v962, 0.0
      %v1415 = vsel %vm1351, %v963, 0.0
      %v1416 = vsel %vm1352, %v964, 0.0
      %v1417 = vsel %vm1353, %v965, 0.0
      %v1418 = vsel %vm1354, %v966, 0.0
      %v1419 = vsel %vm1355, %v967, 0.0
      %v1420 = vsel %vm1356, %v968, 0.0
      %v1421 = vsel %vm1357, %v969, 0.0
      %v1422 = vsel %vm1358, %v970, 0.0
      %v1423 = vadd.f32 %v1359, %v1360
      %v1424 = vadd.f32 %v1423, %v1361
      %v1425 = vadd.f32 %v1424, %v1362
      %v1426 = vadd.f32 %v1425, %v1363
      %v1427 = vadd.f32 %v1426, %v1364
      %v1428 = vadd.f32 %v1427, %v1365
      %v1429 = vadd.f32 %v1428, %v1366
      %v1430 = vadd.f32 %v1429, %v1367
      %v1431 = vadd.f32 %v1430, %v1368
      %v1432 = vadd.f32 %v1431, %v1369
      %v1433 = vadd.f32 %v1432, %v1370
      %v1434 = vadd.f32 %v1433, %v1371
      %v1435 = vadd.f32 %v1434, %v1372
      %v1436 = vadd.f32 %v1435, %v1373
      %v1437 = vadd.f32 %v1436, %v1374
      %v1438 = vadd.f32 %v1437, %v1375
      %v1439 = vadd.f32 %v1438, %v1376
      %v1440 = vadd.f32 %v1439, %v1377
      %v1441 = vadd.f32 %v1440, %v1378
      %v1442 = vadd.f32 %v1441, %v1379
      %v1443 = vadd.f32 %v1442, %v1380
      %v1444 = vadd.f32 %v1443, %v1381
      %v1445 = vadd.f32 %v1444, %v1382
      %v1446 = vadd.f32 %v1445, %v1383
      %v1447 = vadd.f32 %v1446, %v1384
      %v1448 = vadd.f32 %v1447, %v1385
      %v1449 = vadd.f32 %v1448, %v1386
      %v1450 = vadd.f32 %v1449, %v1387
      %v1451 = vadd.f32 %v1450, %v1388
      %v1452 = vadd.f32 %v1451, %v1389
      %v1453 = vadd.f32 %v1452, %v1390
      %v1454 = vadd.f32 %v1453, %v1391
      %v1455 = vadd.f32 %v1454, %v1392
      %v1456 = vadd.f32 %v1455, %v1393
      %v1457 = vadd.f32 %v1456, %v1394
      %v1458 = vadd.f32 %v1457, %v1395
      %v1459 = vadd.f32 %v1458, %v1396
      %v1460 = vadd.f32 %v1459, %v1397
      %v1461 = vadd.f32 %v1460, %v1398
      %v1462 = vadd.f32 %v1461, %v1399
      %v1463 = vadd.f32 %v1462, %v1400
      %v1464 = vadd.f32 %v1463, %v1401
      %v1465 = vadd.f32 %v1464, %v1402
      %v1466 = vadd.f32 %v1465, %v1403
      %v1467 = vadd.f32 %v1466, %v1404
      %v1468 = vadd.f32 %v1467, %v1405
      %v1469 = vadd.f32 %v1468, %v1406
      %v1470 = vadd.f32 %v1469, %v1407
      %v1471 = vadd.f32 %v1470, %v1408
      %v1472 = vadd.f32 %v1471, %v1409
      %v1473 = vadd.f32 %v1472, %v1410
      %v1474 = vadd.f32 %v1473, %v1411
      %v1475 = vadd.f32 %v1474, %v1412
      %v1476 = vadd.f32 %v1475, %v1413
      %v1477 = vadd.f32 %v1476, %v1414
      %v1478 = vadd.f32 %v1477, %v1415
      %v1479 = vadd.f32 %v1478, %v1416
      %v1480 = vadd.f32 %v1479, %v1417
      %v1481 = vadd.f32 %v1480, %v1418
      %v1482 = vadd.f32 %v1481, %v1419
      %v1483 = vadd.f32 %v1482, %v1420
      %v1484 = vadd.f32 %v1483, %v1421
      %v1485 = vadd.f32 %v1484, %v1422
      %v1486 = vrot.slane %v1485, 4
      %v1487 = vadd.f32 %v1485, %v1486
      %v1488 = vrot.slane %v1487, 2
      %v1489 = vadd.f32 %v1487, %v1488
      %v1490 = vrot.slane %v1489, 1
      %v1491 = vadd.f32 %v1489, %v1490
      %v1492 = vmul.f32 %v1359, %v1359
      %v1493 = vmul.f32 %v1360, %v1360
      %v1494 = vmul.f32 %v1361, %v1361
      %v1495 = vmul.f32 %v1362, %v1362
      %v1496 = vmul.f32 %v1363, %v1363
      %v1497 = vmul.f32 %v1364, %v1364
      %v1498 = vmul.f32 %v1365, %v1365
      %v1499 = vmul.f32 %v1366, %v1366
      %v1500 = vmul.f32 %v1367, %v1367
      %v1501 = vmul.f32 %v1368, %v1368
      %v1502 = vmul.f32 %v1369, %v1369
      %v1503 = vmul.f32 %v1370, %v1370
      %v1504 = vmul.f32 %v1371, %v1371
      %v1505 = vmul.f32 %v1372, %v1372
      %v1506 = vmul.f32 %v1373, %v1373
      %v1507 = vmul.f32 %v1374, %v1374
      %v1508 = vmul.f32 %v1375, %v1375
      %v1509 = vmul.f32 %v1376, %v1376
      %v1510 = vmul.f32 %v1377, %v1377
      %v1511 = vmul.f32 %v1378, %v1378
      %v1512 = vmul.f32 %v1379, %v1379
      %v1513 = vmul.f32 %v1380, %v1380
      %v1514 = vmul.f32 %v1381, %v1381
      %v1515 = vmul.f32 %v1382, %v1382
      %v1516 = vmul.f32 %v1383, %v1383
      %v1517 = vmul.f32 %v1384, %v1384
      %v1518 = vmul.f32 %v1385, %v1385
      %v1519 = vmul.f32 %v1386, %v1386
      %v1520 = vmul.f32 %v1387, %v1387
      %v1521 = vmul.f32 %v1388, %v1388
      %v1522 = vmul.f32 %v1389, %v1389
      %v1523 = vmul.f32 %v1390, %v1390
      %v1524 = vmul.f32 %v1391, %v1391
      %v1525 = vmul.f32 %v1392, %v1392
      %v1526 = vmul.f32 %v1393, %v1393
      %v1527 = vmul.f32 %v1394, %v1394
      %v1528 = vmul.f32 %v1395, %v1395
      %v1529 = vmul.f32 %v1396, %v1396
      %v1530 = vmul.f32 %v1397, %v1397
      %v1531 = vmul.f32 %v1398, %v1398
      %v1532 = vmul.f32 %v1399, %v1399
      %v1533 = vmul.f32 %v1400, %v1400
      %v1534 = vmul.f32 %v1401, %v1401
      %v1535 = vmul.f32 %v1402, %v1402
      %v1536 = vmul.f32 %v1403, %v1403
      %v1537 = vmul.f32 %v1404, %v1404
      %v1538 = vmul.f32 %v1405, %v1405
      %v1539 = vmul.f32 %v1406, %v1406
      %v1540 = vmul.f32 %v1407, %v1407
      %v1541 = vmul.f32 %v1408, %v1408
      %v1542 = vmul.f32 %v1409, %v1409
      %v1543 = vmul.f32 %v1410, %v1410
      %v1544 = vmul.f32 %v1411, %v1411
      %v1545 = vmul.f32 %v1412, %v1412
      %v1546 = vmul.f32 %v1413, %v1413
      %v1547 = vmul.f32 %v1414, %v1414
      %v1548 = vmul.f32 %v1415, %v1415
      %v1549 = vmul.f32 %v1416, %v1416
      %v1550 = vmul.f32 %v1417, %v1417
      %v1551 = vmul.f32 %v1418, %v1418
      %v1552 = vmul.f32 %v1419, %v1419
      %v1553 = vmul.f32 %v1420, %v1420
      %v1554 = vmul.f32 %v1421, %v1421
      %v1555 = vmul.f32 %v1422, %v1422
      %v1556 = vadd.f32 %v1492, %v1493
      %v1557 = vadd.f32 %v1556, %v1494
      %v1558 = vadd.f32 %v1557, %v1495
      %v1559 = vadd.f32 %v1558, %v1496
      %v1560 = vadd.f32 %v1559, %v1497
      %v1561 = vadd.f32 %v1560, %v1498
      %v1562 = vadd.f32 %v1561, %v1499
      %v1563 = vadd.f32 %v1562, %v1500
      %v1564 = vadd.f32 %v1563, %v1501
      %v1565 = vadd.f32 %v1564, %v1502
      %v1566 = vadd.f32 %v1565, %v1503
      %v1567 = vadd.f32 %v1566, %v1504
      %v1568 = vadd.f32 %v1567, %v1505
      %v1569 = vadd.f32 %v1568, %v1506
      %v1570 = vadd.f32 %v1569, %v1507
      %v1571 = vadd.f32 %v1570, %v1508
      %v1572 = vadd.f32 %v1571, %v1509
      %v1573 = vadd.f32 %v1572, %v1510
      %v1574 = vadd.f32 %v1573, %v1511
      %v1575 = vadd.f32 %v1574, %v1512
      %v1576 = vadd.f32 %v1575, %v1513
      %v1577 = vadd.f32 %v1576, %v1514
      %v1578 = vadd.f32 %v1577, %v1515
      %v1579 = vadd.f32 %v1578, %v1516
      %v1580 = vadd.f32 %v1579, %v1517
      %v1581 = vadd.f32 %v1580, %v1518
      %v1582 = vadd.f32 %v1581, %v1519
      %v1583 = vadd.f32 %v1582, %v1520
      %v1584 = vadd.f32 %v1583, %v1521
      %v1585 = vadd.f32 %v1584, %v1522
      %v1586 = vadd.f32 %v1585, %v1523
      %v1587 = vadd.f32 %v1586, %v1524
      %v1588 = vadd.f32 %v1587, %v1525
      %v1589 = vadd.f32 %v1588, %v1526
      %v1590 = vadd.f32 %v1589, %v1527
      %v1591 = vadd.f32 %v1590, %v1528
      %v1592 = vadd.f32 %v1591, %v1529
      %v1593 = vadd.f32 %v1592, %v1530
      %v1594 = vadd.f32 %v1593, %v1531
      %v1595 = vadd.f32 %v1594, %v1532
      %v1596 = vadd.f32 %v1595, %v1533
      %v1597 = vadd.f32 %v1596, %v1534
      %v1598 = vadd.f32 %v1597, %v1535
      %v1599 = vadd.f32 %v1598, %v1536
      %v1600 = vadd.f32 %v1599, %v1537
      %v1601 = vadd.f32 %v1600, %v1538
      %v1602 = vadd.f32 %v1601, %v1539
      %v1603 = vadd.f32 %v1602, %v1540
      %v1604 = vadd.f32 %v1603, %v1541
      %v1605 = vadd.f32 %v1604, %v1542
      %v1606 = vadd.f32 %v1605, %v1543
      %v1607 = vadd.f32 %v1606, %v1544
      %v1608 = vadd.f32 %v1607, %v1545
      %v1609 = vadd.f32 %v1608, %v1546
      %v1610 = vadd.f32 %v1609, %v1547
      %v1611 = vadd.f32 %v1610, %v1548
      %v1612 = vadd.f32 %v1611, %v1549
      %v1613 = vadd.f32 %v1612, %v1550
      %v1614 = vadd.f32 %v1613, %v1551
      %v1615 = vadd.f32 %v1614, %v1552
      %v1616 = vadd.f32 %v1615, %v1553
      %v1617 = vadd.f32 %v1616, %v1554
      %v1618 = vadd.f32 %v1617, %v1555
      %v1619 = vrot.slane %v1618, 4
      %v1620 = vadd.f32 %v1618, %v1619
      %v1621 = vrot.slane %v1620, 2
      %v1622 = vadd.f32 %v1620, %v1621
      %v1623 = vrot.slane %v1622, 1
      %v1624 = vadd.f32 %v1622, %v1623
      %1625 = vst.msk [vmem:[%s244] sm:$0xff] %vm971, %v1491
      %1626 = vst.msk [vmem:[%s248] sm:$0xff] %vm971, %v1624
      %s1627 = smul.u32 64, %s17
      %p1628 = scmp.lt.s32.totalorder %s1627, 1087
      %s1629 = scalar_select %p1628, %s1627, 1087
      %s1630 = smul.addr %s1629, 8
      %s1631 = scalar_lea.vmem %s3, %s1630
      %p1632 = scmp.lt.s32.totalorder %s17, 16
      %s1633 = scalar_select %p1632, %s17, 16
      %s1634 = smul.addr %s1633, 8
      %s1635 = scalar_lea.vmem %s4, %s1634
      %p1636 = scmp.lt.s32.totalorder %s17, 16
      %s1637 = scalar_select %p1636, %s17, 16
      %s1638 = smul.addr %s1637, 8
      %s1639 = scalar_lea.vmem %s5, %s1638
      // Predicated region
      $region33: #{deconv_nn_forward.10} parent=31 // pred_check
        %p1640 = pneg %p103
      $region34: #{deconv_nn_forward.10} parent=31 // pred_check_branch
        %1642 = sbr.rel (%p1640) target = $region36
      $region35: #{deconv_nn_forward.10} parent=31 // pred_region
        %s1643 = smul.u32 64, %s17
      $region36: #{deconv_nn_forward.10} parent=31 // pred_fallthru
        _
      // Predicated region
      $region37: #{deconv_nn_forward.10} parent=31 // pred_check
        %p1644 = pneg %p129
      $region38: #{deconv_nn_forward.10} parent=31 // pred_check_branch
        %1646 = sbr.rel (%p1644) target = $region40
      $region39: #{deconv_nn_forward.10} parent=31 // pred_region
        _
      $region40: #{deconv_nn_forward.10} parent=31 // pred_fallthru
        _
      // Predicated region
      $region41: #{deconv_nn_forward.10} parent=31 // pred_check
        %p1647 = pneg %p155
      $region42: #{deconv_nn_forward.10} parent=31 // pred_check_branch
        %1649 = sbr.rel (%p1647) target = $region44
      $region43: #{deconv_nn_forward.10} parent=31 // pred_region
        _
      $region44: #{deconv_nn_forward.10} parent=31 // pred_fallthru
        _
    $region32: #{deconv_nn_forward.10} parent=5 // pred_fallthru
      _
    %p1650 = scmp.le.s32.totalorder 2, %s12
    // Predicated region
    $region45: #{deconv_nn_forward.10} parent=5 // pred_check
      %p1651 = pneg %p1650
    $region46: #{deconv_nn_forward.10} parent=5 // pred_check_branch
      %1653 = sbr.rel (%p1651) target = $region48
    $region47: #{deconv_nn_forward.10} parent=5 // pred_region
      %s1654 = ssub.s32 %s12, 2
      // Predicated region
      $region49: #{deconv_nn_forward.10} parent=47 // pred_check
        %p1655 = pneg %p109
      $region50: #{deconv_nn_forward.10} parent=47 // pred_check_branch
        %1657 = sbr.rel (%p1655) target = $region52
      $region51: #{deconv_nn_forward.10} parent=47 // pred_region
        %s1658 = smul.u32 64, %s18
        %p1659 = scmp.lt.s32.totalorder %s1658, 1087
        %s1660 = scalar_select %p1659, %s1658, 1087
        %s1661 = smul.addr %s1660, 8
        %s1662 = scalar_lea.vmem %s3, %s1661
      $region52: #{deconv_nn_forward.10} parent=47 // pred_fallthru
        _
      // Predicated region
      $region53: #{deconv_nn_forward.10} parent=47 // pred_check
        %p1663 = pneg %p135
      $region54: #{deconv_nn_forward.10} parent=47 // pred_check_branch
        %1665 = sbr.rel (%p1663) target = $region56
      $region55: #{deconv_nn_forward.10} parent=47 // pred_region
        %p1666 = scmp.lt.s32.totalorder %s18, 16
        %s1667 = scalar_select %p1666, %s18, 16
        %s1668 = smul.addr %s1667, 8
        %s1669 = scalar_lea.vmem %s4, %s1668
      $region56: #{deconv_nn_forward.10} parent=47 // pred_fallthru
        _
      // Predicated region
      $region57: #{deconv_nn_forward.10} parent=47 // pred_check
        %p1670 = pneg %p161
      $region58: #{deconv_nn_forward.10} parent=47 // pred_check_branch
        %1672 = sbr.rel (%p1670) target = $region60
      $region59: #{deconv_nn_forward.10} parent=47 // pred_region
        %p1673 = scmp.lt.s32.totalorder %s18, 16
        %s1674 = scalar_select %p1673, %s18, 16
        %s1675 = smul.addr %s1674, 8
        %s1676 = scalar_lea.vmem %s5, %s1675
      $region60: #{deconv_nn_forward.10} parent=47 // pred_fallthru
        _
    $region48: #{deconv_nn_forward.10} parent=5 // pred_fallthru
      _
  $region6: #{deconv_nn_forward.10} parent=0 // loop_footer
    %s16 = sadd.s32 1, %s12
  $region7: #{deconv_nn_forward.10} parent=0 // loop_footer_branch
    %11 = sbr.rel target = $region3
  $region8: #{deconv_nn_forward.10} parent=0 // loop_exit
    _

// kernel: deconv_nn_forward.11
$region0: #{deconv_nn_forward.11}
  #allocation0 [shape = 'u32[]', space=smem, size = 0x4, offset = 0x4, fixed_abs, tag = 'smem constant byte address 0x4 - core index']
  #allocation1 [shape = 'u32[144,128]{1,0:T(1,128)}', space=vmem, size = 0x12000, scoped, tag = 'internal scratch']
  %s0 = inlined_call_operand.vmem [shape: f32[8704,4], index: 0, kind: input, shape index: {}]
  %s1 = inlined_call_operand.vmem [shape: f32[1,4], index: 1, kind: input, shape index: {}]
  %s2 = inlined_call_operand.vmem [shape: f32[1,4], index: 2, kind: input, shape index: {}]
  %s3 = inlined_call_operand.vmem [shape: f32[8704,4], index: 3, kind: output, shape index: {}]
  %s4 = sld [smem:[#allocation0]]
  $region45: #{deconv_nn_forward.11} parent=0
    _
  %s6 = ssub.s32 1, %s4
  %s7 = scalar_select 0, %s6, %s4
  loop: start=0, step=1, limit=19
  $region2: #{deconv_nn_forward.11} parent=0 // loop_pre_header
    _
  $region3: #{deconv_nn_forward.11} parent=0 // loop_header
    %s9 = sphi 0, %s13
    %p10 = scmp.ge.s32.totalorder %s9, 19
    %s19 = sphi 0, %s21
    %s22 = sphi 0, %s19
    %s23 = sphi 0, %s22
    %s39 = sphi 0, %s23
    %s43 = sphi 0, %s43
    %s45 = sphi 0, %s43
    %s46 = sphi 0, %s45
    %s60 = sphi 0, %s46
    %s64 = sphi 0, %s64
    %s66 = sphi 0, %s64
    %s67 = sphi 0, %s66
    %s81 = sphi 0, %s67
    %s87 = sphi 0, %s89
    %s90 = sphi 0, %s87
    %s91 = sphi 0, %s90
    %s107 = sphi 0, %s91
  $region4: #{deconv_nn_forward.11} parent=0 // loop_header_branch
    %12 = sbr.rel (%p10) target = $region8
  $region5: #{deconv_nn_forward.11} parent=0 // loop_body
    %s14 = ssub.s32 %s9, 1
    %s15 = ssub.s32 %s9, 2
    %s16 = sadd.s32 %s9, 1
    %s17 = ssub.s32 %s9, %s16
    %p18 = scmp.eq.s32.totalorder %s17, 0
    %s20 = sadd.s32 %s19, 1
    %s21 = scalar_select %p18, %s19, %s20
    %p24 = pneg %p18
    %p25 = scmp.eq.s32.totalorder %s9, 16
    %p26 = por %p24, %p25
    %p27 = scmp.ne.s32.totalorder %s19, %s22
    %p28 = scmp.eq.s32.totalorder %s9, 0
    %p29 = por %p27, %p28
    %p30 = scmp.ne.s32.totalorder %s19, %s22
    %p31 = scmp.eq.s32.totalorder %s14, 16
    %p32 = por %p30, %p31
    %p33 = scmp.ne.s32.totalorder %s22, %s23
    %p34 = scmp.eq.s32.totalorder %s14, 0
    %p35 = por %p33, %p34
    %p36 = scmp.ne.s32.totalorder %s22, %s23
    %p37 = scmp.eq.s32.totalorder %s15, 16
    %p38 = por %p36, %p37
    %p40 = scmp.ne.s32.totalorder %s23, %s39
    %p41 = scmp.eq.s32.totalorder %s15, 0
    %p42 = por %p40, %p41
    %s44 = sadd.s32 %s43, 1
    %p47 = scmp.eq.s32.totalorder %s9, 16
    %p48 = scmp.ne.s32.totalorder %s43, %s45
    %p49 = scmp.eq.s32.totalorder %s9, 0
    %p50 = por %p48, %p49
    %p51 = scmp.ne.s32.totalorder %s43, %s45
    %p52 = scmp.eq.s32.totalorder %s14, 16
    %p53 = por %p51, %p52
    %p54 = scmp.ne.s32.totalorder %s45, %s46
    %p55 = scmp.eq.s32.totalorder %s14, 0
    %p56 = por %p54, %p55
    %p57 = scmp.ne.s32.totalorder %s45, %s46
    %p58 = scmp.eq.s32.totalorder %s15, 16
    %p59 = por %p57, %p58
    %p61 = scmp.ne.s32.totalorder %s46, %s60
    %p62 = scmp.eq.s32.totalorder %s15, 0
    %p63 = por %p61, %p62
    %s65 = sadd.s32 %s64, 1
    %p68 = scmp.eq.s32.totalorder %s9, 16
    %p69 = scmp.ne.s32.totalorder %s64, %s66
    %p70 = scmp.eq.s32.totalorder %s9, 0
    %p71 = por %p69, %p70
    %p72 = scmp.ne.s32.totalorder %s64, %s66
    %p73 = scmp.eq.s32.totalorder %s14, 16
    %p74 = por %p72, %p73
    %p75 = scmp.ne.s32.totalorder %s66, %s67
    %p76 = scmp.eq.s32.totalorder %s14, 0
    %p77 = por %p75, %p76
    %p78 = scmp.ne.s32.totalorder %s66, %s67
    %p79 = scmp.eq.s32.totalorder %s15, 16
    %p80 = por %p78, %p79
    %p82 = scmp.ne.s32.totalorder %s67, %s81
    %p83 = scmp.eq.s32.totalorder %s15, 0
    %p84 = por %p82, %p83
    %s85 = ssub.s32 %s9, %s16
    %p86 = scmp.eq.s32.totalorder %s85, 0
    %s88 = sadd.s32 %s87, 1
    %s89 = scalar_select %p86, %s87, %s88
    %p92 = pneg %p86
    %p93 = scmp.eq.s32.totalorder %s9, 16
    %p94 = por %p92, %p93
    %p95 = scmp.ne.s32.totalorder %s87, %s90
    %p96 = scmp.eq.s32.totalorder %s9, 0
    %p97 = por %p95, %p96
    %p98 = scmp.ne.s32.totalorder %s87, %s90
    %p99 = scmp.eq.s32.totalorder %s14, 16
    %p100 = por %p98, %p99
    %p101 = scmp.ne.s32.totalorder %s90, %s91
    %p102 = scmp.eq.s32.totalorder %s14, 0
    %p103 = por %p101, %p102
    %p104 = scmp.ne.s32.totalorder %s90, %s91
    %p105 = scmp.eq.s32.totalorder %s15, 16
    %p106 = por %p104, %p105
    %p108 = scmp.ne.s32.totalorder %s91, %s107
    %p109 = scmp.eq.s32.totalorder %s15, 0
    %p110 = por %p108, %p109
    %p111 = scmp.le.s32.totalorder 1, %s9
    %p112 = scmp.lt.s32.totalorder %s9, 18
    %p113 = pnand %p111, %p112
    %p114 = pneg %p113
    // Predicated region
    $region9: #{deconv_nn_forward.11} parent=5 // pred_check
      _
    $region10: #{deconv_nn_forward.11} parent=5 // pred_check_branch
      %116 = sbr.rel (%p113) target = $region12
    $region11: #{deconv_nn_forward.11} parent=5 // pred_region
      %s117 = ssub.s32 %s9, 1
      // Predicated region
      $region13: #{deconv_nn_forward.11} parent=11 // pred_check
        %p118 = pneg %p56
      $region14: #{deconv_nn_forward.11} parent=11 // pred_check_branch
        %120 = sbr.rel (%p118) target = $region16
      $region15: #{deconv_nn_forward.11} parent=11 // pred_region
        _
      $region16: #{deconv_nn_forward.11} parent=11 // pred_fallthru
        _
      // Predicated region
      $region17: #{deconv_nn_forward.11} parent=11 // pred_check
        %p121 = pneg %p77
      $region18: #{deconv_nn_forward.11} parent=11 // pred_check_branch
        %123 = sbr.rel (%p121) target = $region20
      $region19: #{deconv_nn_forward.11} parent=11 // pred_region
        _
      $region20: #{deconv_nn_forward.11} parent=11 // pred_fallthru
        _
    $region12: #{deconv_nn_forward.11} parent=5 // pred_fallthru
      _
    %p124 = scmp.lt.s32.totalorder %s9, 17
    // Predicated region
    $region21: #{deconv_nn_forward.11} parent=5 // pred_check
      %p125 = pneg %p124
    $region22: #{deconv_nn_forward.11} parent=5 // pred_check_branch
      %127 = sbr.rel (%p125) target = $region24
    $region23: #{deconv_nn_forward.11} parent=5 // pred_region
      // Predicated region
      $region25: #{deconv_nn_forward.11} parent=23 // pred_check
        %p128 = pneg %p29
      $region26: #{deconv_nn_forward.11} parent=23 // pred_check_branch
        %130 = sbr.rel (%p128) target = $region28
      $region27: #{deconv_nn_forward.11} parent=23 // pred_region
        %s131 = smul.u32 64, %s9
        %p132 = scmp.lt.s32.totalorder %s131, 1087
        %s133 = scalar_select %p132, %s131, 1087
        %s134 = smul.addr %s133, 8
        %s135 = scalar_lea.vmem %s0, %s134
        %s136 = smul.u32 64, %s9
      $region28: #{deconv_nn_forward.11} parent=23 // pred_fallthru
        _
    $region24: #{deconv_nn_forward.11} parent=5 // pred_fallthru
      _
    %p137 = scmp.le.s32.totalorder 1, %s9
    %p138 = scmp.lt.s32.totalorder %s9, 18
    %p139 = pnand %p137, %p138
    %p140 = pneg %p139
    // Predicated region
    $region29: #{deconv_nn_forward.11} parent=5 // pred_check
      _
    $region30: #{deconv_nn_forward.11} parent=5 // pred_check_branch
      %142 = sbr.rel (%p139) target = $region32
    $region31: #{deconv_nn_forward.11} parent=5 // pred_region
      %s143 = ssub.s32 %s9, 1
      %s144 = smul.u32 64, %s14
      %p145 = scmp.lt.s32.totalorder %s144, 1087
      %s146 = scalar_select %p145, %s144, 1087
      %s147 = smul.addr %s146, 8
      %s148 = scalar_lea.vmem %s0, %s147
      %p149 = pneg %p35
      %p150 = pneg %p32
      %p151 = pneg %p56
      %p152 = pneg %p53
      %p153 = pneg %p77
      %p154 = pneg %p74
      %p155 = pneg %p103
      %p156 = pneg %p100
      %s157 = smul.u32 64, %s14
      %p158 = scmp.lt.s32.totalorder %s157, 1087
      %s159 = scalar_select %p158, %s157, 1087
      %s160 = smul.addr %s159, 8
      %s161 = scalar_lea.vmem %s3, %s160
      %s162 = smul.u32 64, %s14
      %p163 = scmp.lt.s32.totalorder %s162, 1087
      %s164 = scalar_select %p163, %s162, 1087
      %s165 = smul.addr %s164, 8
      %s166 = scalar_lea.vmem %s0, %s165
      %s167 = smul.u32 64, %s14
      %s168 = smul.u32 64, %s14
      %p169 = scmp.lt.s32.totalorder %s168, 1087
      %s170 = scalar_select %p169, %s168, 1087
      %s171 = smul.addr %s170, 8
      %s172 = scalar_lea.vmem %s3, %s171
      %s173 = smul.u32 64, %s14
      %v174 = vld [vmem:[%s166] sm:$0xff]
      %v175 = vld [vmem:[%s166 + $0x8] sm:$0xff]
      %v176 = vld [vmem:[%s166 + $0x10] sm:$0xff]
      %v177 = vld [vmem:[%s166 + $0x18] sm:$0xff]
      %v178 = vld [vmem:[%s166 + $0x20] sm:$0xff]
      %v179 = vld [vmem:[%s166 + $0x28] sm:$0xff]
      %v180 = vld [vmem:[%s166 + $0x30] sm:$0xff]
      %v181 = vld [vmem:[%s166 + $0x38] sm:$0xff]
      %v182 = vld [vmem:[%s166 + $0x40] sm:$0xff]
      %v183 = vld [vmem:[%s166 + $0x48] sm:$0xff]
      %v184 = vld [vmem:[%s166 + $0x50] sm:$0xff]
      %v185 = vld [vmem:[%s166 + $0x58] sm:$0xff]
      %v186 = vld [vmem:[%s166 + $0x60] sm:$0xff]
      %v187 = vld [vmem:[%s166 + $0x68] sm:$0xff]
      %v188 = vld [vmem:[%s166 + $0x70] sm:$0xff]
      %v189 = vld [vmem:[%s166 + $0x78] sm:$0xff]
      %v190 = vld [vmem:[%s166 + $0x80] sm:$0xff]
      %v191 = vld [vmem:[%s166 + $0x88] sm:$0xff]
      %v192 = vld [vmem:[%s166 + $0x90] sm:$0xff]
      %v193 = vld [vmem:[%s166 + $0x98] sm:$0xff]
      %v194 = vld [vmem:[%s166 + $0xa0] sm:$0xff]
      %v195 = vld [vmem:[%s166 + $0xa8] sm:$0xff]
      %v196 = vld [vmem:[%s166 + $0xb0] sm:$0xff]
      %v197 = vld [vmem:[%s166 + $0xb8] sm:$0xff]
      %v198 = vld [vmem:[%s166 + $0xc0] sm:$0xff]
      %v199 = vld [vmem:[%s166 + $0xc8] sm:$0xff]
      %v200 = vld [vmem:[%s166 + $0xd0] sm:$0xff]
      %v201 = vld [vmem:[%s166 + $0xd8] sm:$0xff]
      %v202 = vld [vmem:[%s166 + $0xe0] sm:$0xff]
      %v203 = vld [vmem:[%s166 + $0xe8] sm:$0xff]
      %v204 = vld [vmem:[%s166 + $0xf0] sm:$0xff]
      %v205 = vld [vmem:[%s166 + $0xf8] sm:$0xff]
      %v206 = vld [vmem:[%s166 + $0x100] sm:$0xff]
      %v207 = vld [vmem:[%s166 + $0x108] sm:$0xff]
      %v208 = vld [vmem:[%s166 + $0x110] sm:$0xff]
      %v209 = vld [vmem:[%s166 + $0x118] sm:$0xff]
      %v210 = vld [vmem:[%s166 + $0x120] sm:$0xff]
      %v211 = vld [vmem:[%s166 + $0x128] sm:$0xff]
      %v212 = vld [vmem:[%s166 + $0x130] sm:$0xff]
      %v213 = vld [vmem:[%s166 + $0x138] sm:$0xff]
      %v214 = vld [vmem:[%s166 + $0x140] sm:$0xff]
      %v215 = vld [vmem:[%s166 + $0x148] sm:$0xff]
      %v216 = vld [vmem:[%s166 + $0x150] sm:$0xff]
      %v217 = vld [vmem:[%s166 + $0x158] sm:$0xff]
      %v218 = vld [vmem:[%s166 + $0x160] sm:$0xff]
      %v219 = vld [vmem:[%s166 + $0x168] sm:$0xff]
      %v220 = vld [vmem:[%s166 + $0x170] sm:$0xff]
      %v221 = vld [vmem:[%s166 + $0x178] sm:$0xff]
      %v222 = vld [vmem:[%s166 + $0x180] sm:$0xff]
      %v223 = vld [vmem:[%s166 + $0x188] sm:$0xff]
      %v224 = vld [vmem:[%s166 + $0x190] sm:$0xff]
      %v225 = vld [vmem:[%s166 + $0x198] sm:$0xff]
      %v226 = vld [vmem:[%s166 + $0x1a0] sm:$0xff]
      %v227 = vld [vmem:[%s166 + $0x1a8] sm:$0xff]
      %v228 = vld [vmem:[%s166 + $0x1b0] sm:$0xff]
      %v229 = vld [vmem:[%s166 + $0x1b8] sm:$0xff]
      %v230 = vld [vmem:[%s166 + $0x1c0] sm:$0xff]
      %v231 = vld [vmem:[%s166 + $0x1c8] sm:$0xff]
      %v232 = vld [vmem:[%s166 + $0x1d0] sm:$0xff]
      %v233 = vld [vmem:[%s166 + $0x1d8] sm:$0xff]
      %v234 = vld [vmem:[%s166 + $0x1e0] sm:$0xff]
      %v235 = vld [vmem:[%s166 + $0x1e8] sm:$0xff]
      %v236 = vld [vmem:[%s166 + $0x1f0] sm:$0xff]
      %v237 = vld [vmem:[%s166 + $0x1f8] sm:$0xff]
      %v238 = vld [vmem:[%s1] sm:$0x1]
      %v240 = vlaneseq
      %v241 = vshrl.u32 %v240, 7
      %v242 = vsub.s32 0, %v241
      %v243 = vrot.slane %v238, %v242
      %v245 = vmul.f32 %v174, %v243
      %v246 = vmul.f32 %v175, %v243
      %v247 = vmul.f32 %v176, %v243
      %v248 = vmul.f32 %v177, %v243
      %v249 = vmul.f32 %v178, %v243
      %v250 = vmul.f32 %v179, %v243
      %v251 = vmul.f32 %v180, %v243
      %v252 = vmul.f32 %v181, %v243
      %v253 = vmul.f32 %v182, %v243
      %v254 = vmul.f32 %v183, %v243
      %v255 = vmul.f32 %v184, %v243
      %v256 = vmul.f32 %v185, %v243
      %v257 = vmul.f32 %v186, %v243
      %v258 = vmul.f32 %v187, %v243
      %v259 = vmul.f32 %v188, %v243
      %v260 = vmul.f32 %v189, %v243
      %v261 = vmul.f32 %v190, %v243
      %v262 = vmul.f32 %v191, %v243
      %v263 = vmul.f32 %v192, %v243
      %v264 = vmul.f32 %v193, %v243
      %v265 = vmul.f32 %v194, %v243
      %v266 = vmul.f32 %v195, %v243
      %v267 = vmul.f32 %v196, %v243
      %v268 = vmul.f32 %v197, %v243
      %v269 = vmul.f32 %v198, %v243
      %v270 = vmul.f32 %v199, %v243
      %v271 = vmul.f32 %v200, %v243
      %v272 = vmul.f32 %v201, %v243
      %v273 = vmul.f32 %v202, %v243
      %v274 = vmul.f32 %v203, %v243
      %v275 = vmul.f32 %v204, %v243
      %v276 = vmul.f32 %v205, %v243
      %v277 = vmul.f32 %v206, %v243
      %v278 = vmul.f32 %v207, %v243
      %v279 = vmul.f32 %v208, %v243
      %v280 = vmul.f32 %v209, %v243
      %v281 = vmul.f32 %v210, %v243
      %v282 = vmul.f32 %v211, %v243
      %v283 = vmul.f32 %v212, %v243
      %v284 = vmul.f32 %v213, %v243
      %v285 = vmul.f32 %v214, %v243
      %v286 = vmul.f32 %v215, %v243
      %v287 = vmul.f32 %v216, %v243
      %v288 = vmul.f32 %v217, %v243
      %v289 = vmul.f32 %v218, %v243
      %v290 = vmul.f32 %v219, %v243
      %v291 = vmul.f32 %v220, %v243
      %v292 = vmul.f32 %v221, %v243
      %v293 = vmul.f32 %v222, %v243
      %v294 = vmul.f32 %v223, %v243
      %v295 = vmul.f32 %v224, %v243
      %v296 = vmul.f32 %v225, %v243
      %v297 = vmul.f32 %v226, %v243
      %v298 = vmul.f32 %v227, %v243
      %v299 = vmul.f32 %v228, %v243
      %v300 = vmul.f32 %v229, %v243
      %v301 = vmul.f32 %v230, %v243
      %v302 = vmul.f32 %v231, %v243
      %v303 = vmul.f32 %v232, %v243
      %v304 = vmul.f32 %v233, %v243
      %v305 = vmul.f32 %v234, %v243
      %v306 = vmul.f32 %v235, %v243
      %v307 = vmul.f32 %v236, %v243
      %v308 = vmul.f32 %v237, %v243
      %v309 = vld [vmem:[%s2] sm:$0x1]
      %v311 = vlaneseq
      %v312 = vshrl.u32 %v311, 7
      %v313 = vsub.s32 0, %v312
      %v314 = vrot.slane %v309, %v313
      %v316 = vadd.f32 %v245, %v314
      %v317 = vadd.f32 %v246, %v314
      %v318 = vadd.f32 %v247, %v314
      %v319 = vadd.f32 %v248, %v314
      %v320 = vadd.f32 %v249, %v314
      %v321 = vadd.f32 %v250, %v314
      %v322 = vadd.f32 %v251, %v314
      %v323 = vadd.f32 %v252, %v314
      %v324 = vadd.f32 %v253, %v314
      %v325 = vadd.f32 %v254, %v314
      %v326 = vadd.f32 %v255, %v314
      %v327 = vadd.f32 %v256, %v314
      %v328 = vadd.f32 %v257, %v314
      %v329 = vadd.f32 %v258, %v314
      %v330 = vadd.f32 %v259, %v314
      %v331 = vadd.f32 %v260, %v314
      %v332 = vadd.f32 %v261, %v314
      %v333 = vadd.f32 %v262, %v314
      %v334 = vadd.f32 %v263, %v314
      %v335 = vadd.f32 %v264, %v314
      %v336 = vadd.f32 %v265, %v314
      %v337 = vadd.f32 %v266, %v314
      %v338 = vadd.f32 %v267, %v314
      %v339 = vadd.f32 %v268, %v314
      %v340 = vadd.f32 %v269, %v314
      %v341 = vadd.f32 %v270, %v314
      %v342 = vadd.f32 %v271, %v314
      %v343 = vadd.f32 %v272, %v314
      %v344 = vadd.f32 %v273, %v314
      %v345 = vadd.f32 %v274, %v314
      %v346 = vadd.f32 %v275, %v314
      %v347 = vadd.f32 %v276, %v314
      %v348 = vadd.f32 %v277, %v314
      %v349 = vadd.f32 %v278, %v314
      %v350 = vadd.f32 %v279, %v314
      %v351 = vadd.f32 %v280, %v314
      %v352 = vadd.f32 %v281, %v314
      %v353 = vadd.f32 %v282, %v314
      %v354 = vadd.f32 %v283, %v314
      %v355 = vadd.f32 %v284, %v314
      %v356 = vadd.f32 %v285, %v314
      %v357 = vadd.f32 %v286, %v314
      %v358 = vadd.f32 %v287, %v314
      %v359 = vadd.f32 %v288, %v314
      %v360 = vadd.f32 %v289, %v314
      %v361 = vadd.f32 %v290, %v314
      %v362 = vadd.f32 %v291, %v314
      %v363 = vadd.f32 %v292, %v314
      %v364 = vadd.f32 %v293, %v314
      %v365 = vadd.f32 %v294, %v314
      %v366 = vadd.f32 %v295, %v314
      %v367 = vadd.f32 %v296, %v314
      %v368 = vadd.f32 %v297, %v314
      %v369 = vadd.f32 %v298, %v314
      %v370 = vadd.f32 %v299, %v314
      %v371 = vadd.f32 %v300, %v314
      %v372 = vadd.f32 %v301, %v314
      %v373 = vadd.f32 %v302, %v314
      %v374 = vadd.f32 %v303, %v314
      %v375 = vadd.f32 %v304, %v314
      %v376 = vadd.f32 %v305, %v314
      %v377 = vadd.f32 %v306, %v314
      %v378 = vadd.f32 %v307, %v314
      %v379 = vadd.f32 %v308, %v314
      %vm380 = vcmask 31744
      %381 = vst.msk [vmem:[%s172] sm:$0xff] %vm380, %v316
      %382 = vst.msk [vmem:[%s172 + $0x8] sm:$0xff] %vm380, %v317
      %383 = vst.msk [vmem:[%s172 + $0x10] sm:$0xff] %vm380, %v318
      %384 = vst.msk [vmem:[%s172 + $0x18] sm:$0xff] %vm380, %v319
      %385 = vst.msk [vmem:[%s172 + $0x20] sm:$0xff] %vm380, %v320
      %386 = vst.msk [vmem:[%s172 + $0x28] sm:$0xff] %vm380, %v321
      %387 = vst.msk [vmem:[%s172 + $0x30] sm:$0xff] %vm380, %v322
      %388 = vst.msk [vmem:[%s172 + $0x38] sm:$0xff] %vm380, %v323
      %389 = vst.msk [vmem:[%s172 + $0x40] sm:$0xff] %vm380, %v324
      %390 = vst.msk [vmem:[%s172 + $0x48] sm:$0xff] %vm380, %v325
      %391 = vst.msk [vmem:[%s172 + $0x50] sm:$0xff] %vm380, %v326
      %392 = vst.msk [vmem:[%s172 + $0x58] sm:$0xff] %vm380, %v327
      %393 = vst.msk [vmem:[%s172 + $0x60] sm:$0xff] %vm380, %v328
      %394 = vst.msk [vmem:[%s172 + $0x68] sm:$0xff] %vm380, %v329
      %395 = vst.msk [vmem:[%s172 + $0x70] sm:$0xff] %vm380, %v330
      %396 = vst.msk [vmem:[%s172 + $0x78] sm:$0xff] %vm380, %v331
      %397 = vst.msk [vmem:[%s172 + $0x80] sm:$0xff] %vm380, %v332
      %398 = vst.msk [vmem:[%s172 + $0x88] sm:$0xff] %vm380, %v333
      %399 = vst.msk [vmem:[%s172 + $0x90] sm:$0xff] %vm380, %v334
      %400 = vst.msk [vmem:[%s172 + $0x98] sm:$0xff] %vm380, %v335
      %401 = vst.msk [vmem:[%s172 + $0xa0] sm:$0xff] %vm380, %v336
      %402 = vst.msk [vmem:[%s172 + $0xa8] sm:$0xff] %vm380, %v337
      %403 = vst.msk [vmem:[%s172 + $0xb0] sm:$0xff] %vm380, %v338
      %404 = vst.msk [vmem:[%s172 + $0xb8] sm:$0xff] %vm380, %v339
      %405 = vst.msk [vmem:[%s172 + $0xc0] sm:$0xff] %vm380, %v340
      %406 = vst.msk [vmem:[%s172 + $0xc8] sm:$0xff] %vm380, %v341
      %407 = vst.msk [vmem:[%s172 + $0xd0] sm:$0xff] %vm380, %v342
      %408 = vst.msk [vmem:[%s172 + $0xd8] sm:$0xff] %vm380, %v343
      %409 = vst.msk [vmem:[%s172 + $0xe0] sm:$0xff] %vm380, %v344
      %410 = vst.msk [vmem:[%s172 + $0xe8] sm:$0xff] %vm380, %v345
      %411 = vst.msk [vmem:[%s172 + $0xf0] sm:$0xff] %vm380, %v346
      %412 = vst.msk [vmem:[%s172 + $0xf8] sm:$0xff] %vm380, %v347
      %413 = vst.msk [vmem:[%s172 + $0x100] sm:$0xff] %vm380, %v348
      %414 = vst.msk [vmem:[%s172 + $0x108] sm:$0xff] %vm380, %v349
      %415 = vst.msk [vmem:[%s172 + $0x110] sm:$0xff] %vm380, %v350
      %416 = vst.msk [vmem:[%s172 + $0x118] sm:$0xff] %vm380, %v351
      %417 = vst.msk [vmem:[%s172 + $0x120] sm:$0xff] %vm380, %v352
      %418 = vst.msk [vmem:[%s172 + $0x128] sm:$0xff] %vm380, %v353
      %419 = vst.msk [vmem:[%s172 + $0x130] sm:$0xff] %vm380, %v354
      %420 = vst.msk [vmem:[%s172 + $0x138] sm:$0xff] %vm380, %v355
      %421 = vst.msk [vmem:[%s172 + $0x140] sm:$0xff] %vm380, %v356
      %422 = vst.msk [vmem:[%s172 + $0x148] sm:$0xff] %vm380, %v357
      %423 = vst.msk [vmem:[%s172 + $0x150] sm:$0xff] %vm380, %v358
      %424 = vst.msk [vmem:[%s172 + $0x158] sm:$0xff] %vm380, %v359
      %425 = vst.msk [vmem:[%s172 + $0x160] sm:$0xff] %vm380, %v360
      %426 = vst.msk [vmem:[%s172 + $0x168] sm:$0xff] %vm380, %v361
      %427 = vst.msk [vmem:[%s172 + $0x170] sm:$0xff] %vm380, %v362
      %428 = vst.msk [vmem:[%s172 + $0x178] sm:$0xff] %vm380, %v363
      %429 = vst.msk [vmem:[%s172 + $0x180] sm:$0xff] %vm380, %v364
      %430 = vst.msk [vmem:[%s172 + $0x188] sm:$0xff] %vm380, %v365
      %431 = vst.msk [vmem:[%s172 + $0x190] sm:$0xff] %vm380, %v366
      %432 = vst.msk [vmem:[%s172 + $0x198] sm:$0xff] %vm380, %v367
      %433 = vst.msk [vmem:[%s172 + $0x1a0] sm:$0xff] %vm380, %v368
      %434 = vst.msk [vmem:[%s172 + $0x1a8] sm:$0xff] %vm380, %v369
      %435 = vst.msk [vmem:[%s172 + $0x1b0] sm:$0xff] %vm380, %v370
      %436 = vst.msk [vmem:[%s172 + $0x1b8] sm:$0xff] %vm380, %v371
      %437 = vst.msk [vmem:[%s172 + $0x1c0] sm:$0xff] %vm380, %v372
      %438 = vst.msk [vmem:[%s172 + $0x1c8] sm:$0xff] %vm380, %v373
      %439 = vst.msk [vmem:[%s172 + $0x1d0] sm:$0xff] %vm380, %v374
      %440 = vst.msk [vmem:[%s172 + $0x1d8] sm:$0xff] %vm380, %v375
      %441 = vst.msk [vmem:[%s172 + $0x1e0] sm:$0xff] %vm380, %v376
      %442 = vst.msk [vmem:[%s172 + $0x1e8] sm:$0xff] %vm380, %v377
      %443 = vst.msk [vmem:[%s172 + $0x1f0] sm:$0xff] %vm380, %v378
      %444 = vst.msk [vmem:[%s172 + $0x1f8] sm:$0xff] %vm380, %v379
      %s445 = smul.u32 64, %s14
      %p446 = scmp.lt.s32.totalorder %s445, 1087
      %s447 = scalar_select %p446, %s445, 1087
      %s448 = smul.addr %s447, 8
      %s449 = scalar_lea.vmem %s3, %s448
      // Predicated region
      $region33: #{deconv_nn_forward.11} parent=31 // pred_check
        %p450 = pneg %p100
      $region34: #{deconv_nn_forward.11} parent=31 // pred_check_branch
        %452 = sbr.rel (%p450) target = $region36
      $region35: #{deconv_nn_forward.11} parent=31 // pred_region
        %s453 = smul.u32 64, %s14
      $region36: #{deconv_nn_forward.11} parent=31 // pred_fallthru
        _
    $region32: #{deconv_nn_forward.11} parent=5 // pred_fallthru
      _
    %p454 = scmp.le.s32.totalorder 2, %s9
    // Predicated region
    $region37: #{deconv_nn_forward.11} parent=5 // pred_check
      %p455 = pneg %p454
    $region38: #{deconv_nn_forward.11} parent=5 // pred_check_branch
      %457 = sbr.rel (%p455) target = $region40
    $region39: #{deconv_nn_forward.11} parent=5 // pred_region
      %s458 = ssub.s32 %s9, 2
      // Predicated region
      $region41: #{deconv_nn_forward.11} parent=39 // pred_check
        %p459 = pneg %p106
      $region42: #{deconv_nn_forward.11} parent=39 // pred_check_branch
        %461 = sbr.rel (%p459) target = $region44
      $region43: #{deconv_nn_forward.11} parent=39 // pred_region
        %s462 = smul.u32 64, %s15
        %p463 = scmp.lt.s32.totalorder %s462, 1087
        %s464 = scalar_select %p463, %s462, 1087
        %s465 = smul.addr %s464, 8
        %s466 = scalar_lea.vmem %s3, %s465
      $region44: #{deconv_nn_forward.11} parent=39 // pred_fallthru
        _
    $region40: #{deconv_nn_forward.11} parent=5 // pred_fallthru
      _
  $region6: #{deconv_nn_forward.11} parent=0 // loop_footer
    %s13 = sadd.s32 1, %s9
  $region7: #{deconv_nn_forward.11} parent=0 // loop_footer_branch
    %8 = sbr.rel target = $region3
  $region8: #{deconv_nn_forward.11} parent=0 // loop_exit
    _

</llo_original>
